<compile_context>
chip_gen: v7x
topology: tpu7x:2x2x1
jax: 0.10.0
libtpu: 0.0.40
codegen_flags: <defaults>
</compile_context>

<pallas_src>
import math
import functools

import jax
import jax.numpy as jnp
from jax.experimental import pallas as pl
from jax.experimental.pallas import tpu as pltpu


def _encoder_block_kernel(
    xq_ref, xkv_ref, mask_ref,
    wq_ref, bq_ref, wk_ref, bk_ref, wv_ref, bv_ref, wo_ref, bo_ref,
    ln1_g_ref, ln1_b_ref, ln2_g_ref, ln2_b_ref,
    w1_ref, b1_ref, w2_ref, b2_ref,
    out_ref,
    k_scr, v_scr,
    *, head_num, eps,
):
    f32, bf16 = jnp.float32, jnp.bfloat16

    tq = xq_ref.shape[1]          # query-tile rows handled by this grid step
    D = xq_ref.shape[2]
    hd = D // head_num
    scale = 1.0 / math.sqrt(hd)

    # ---- K/V projections hoisted out of the query-tile loop -------------------
    # The query-tile grid axis is the inner "arbitrary" axis, so t == 0 runs first
    # for every batch element; K/V of the full sequence are computed once into
    # persistent VMEM scratch and reused by all nq query tiles (previously this
    # MXU work was redone nq times). Head-major scratch layout avoids any
    # per-tile lane slicing of the (S, hd) K/V operands.
    @pl.when(pl.program_id(1) == 0)
    def _project_kv():
        x_kv = xkv_ref[0]                                   # (S, D) bf16 stream
        for h in range(head_num):
            kh = jnp.dot(x_kv, wk_ref[h], preferred_element_type=f32) + bk_ref[h]
            vh = jnp.dot(x_kv, wv_ref[h], preferred_element_type=f32) + bv_ref[h]
            k_scr[h] = kh.astype(bf16)
            v_scr[h] = vh.astype(bf16)

    # Residual / LayerNorm path stays f32; MXU operands are bf16.
    x_q = xq_ref[0]                                          # (TQ, D) f32
    x_q_bf = x_q.astype(bf16)
    keep = mask_ref[0] != 0                                  # (TQ, S), int8 stream

    # Full-width Q projection (fills the MXU N dimension); 1/sqrt(hd) folded into Q.
    q_all = jnp.dot(x_q_bf, wq_ref[...], preferred_element_type=f32) + bq_ref[0]
    q_all = (q_all * scale).astype(bf16)                     # (TQ, D)

    # ---- per-head attention ----------------------------------------------------
    # TODO(synk): for head_num >= 8 convert this static unroll to lax.fori_loop,
    # and for very long S switch to flash-style KV tiling (online softmax) so the
    # K/V scratch and (TQ, S) score tensors are O(TQ * tkv) instead of O(S).
    attn = jnp.zeros((tq, D), f32)
    for h in range(head_num):
        qh = q_all[:, h * hd:(h + 1) * hd]                   # (TQ, hd) bf16
        kh = k_scr[h]                                         # (S, hd) bf16
        vh = v_scr[h]                                         # (S, hd) bf16
        # Contract over hd without materializing kh.T (saves an XLU transpose).
        s = jax.lax.dot_general(qh, kh, (((1,), (1,)), ((), ())),
                                preferred_element_type=f32)   # (TQ, S) f32
        s = jnp.where(keep, s, f32(-1e9))
        s = s - jnp.max(s, axis=-1, keepdims=True)            # stable softmax (f32)
        p = jnp.exp(s)
        p = p * pl.reciprocal(jnp.sum(p, axis=-1, keepdims=True), approx=True)
        ctx = jnp.dot(p.astype(bf16), vh, preferred_element_type=f32)   # (TQ, hd)
        # Accumulate the output projection per head -> no head concatenation needed.
        attn = attn + jnp.dot(ctx.astype(bf16), wo_ref[h], preferred_element_type=f32)
    attn = attn + bo_ref[0]

    def layer_norm(z, g, b):
        mu = jnp.mean(z, axis=-1, keepdims=True)
        var = jnp.mean((z - mu) ** 2, axis=-1, keepdims=True)
        return (z - mu) * jax.lax.rsqrt(var + eps) * g + b

    # TODO(synk): dropout is identity (eval mode); training-mode dropout would need
    # pltpu.prng_seed / prng_random_bits.
    x1 = layer_norm(attn + x_q, ln1_g_ref[0], ln1_b_ref[0])   # (TQ, D) f32
    x1_bf = x1.astype(bf16)

    # ---- feed-forward, blocked over the hidden dim F ---------------------------
    ff = jnp.zeros((tq, D), f32)
    for f in range(w1_ref.shape[0]):       # static unroll over F tiles (nf == 1 when F fits)
        h1 = jnp.dot(x1_bf, w1_ref[f], preferred_element_type=f32) + b1_ref[f]
        h1 = jnp.maximum(h1, 0.0).astype(bf16)
        ff = ff + jnp.dot(h1, w2_ref[f], preferred_element_type=f32)
    ff = ff + b2_ref[0]

    y = layer_norm(x1 + ff, ln2_g_ref[0], ln2_b_ref[0])
    out_ref[0] = y.astype(out_ref.dtype)


def _pick_tile(total, cap, multiple):
    """Largest divisor of `total` that is <= cap and a multiple of `multiple`;
    falls back to the full extent (always a legal block dim)."""
    if total <= cap:
        return total
    for t in range(cap, 0, -1):
        if total % t == 0 and t % multiple == 0:
            return t
    return total


def _vmem_limit_bytes():
    """Generation-aware VMEM limit: ~75% of physical per-core VMEM
    (~48 MiB on v7x, ~96 MiB on v5e/v6e)."""
    cap = 128 * 1024 * 1024
    try:
        cap = int(getattr(pltpu.get_tpu_info(), "vmem_capacity_bytes", cap))
    except Exception:
        pass
    return max(32 * 1024 * 1024, (cap * 3) // 4)


def encoder_block(x, mask, params, *, head_num, eps=1e-5, q_tile=None, ff_tile=None):
    """x: (B, S, D) f32, mask: (B, S, S) (nonzero = attend, 0 = masked)."""
    B, S, D = x.shape
    F = params["w1"].shape[1]
    assert D % head_num == 0
    hd = D // head_num

    if q_tile is None:
        q_tile = _pick_tile(S, 256, 32)      # multiple of 32: bf16/int8 sublane friendly
    if ff_tile is None:
        ff_tile = _pick_tile(F, 2048, 128)   # single dot for realistic F on v5e/v6e
    assert S % q_tile == 0 and F % ff_tile == 0
    nq = S // q_tile
    nf = F // ff_tile

    f32, bf16 = jnp.float32, jnp.bfloat16

    # Host-side (free) re-layouts: head-major K/V/O and F-tile-major FF weights so
    # the kernel only indexes the leading (major) dim, never slices weight lanes.
    def heads_w(w):   # (D, D) -> (H, D, hd), bf16 MXU operand
        return jnp.transpose(w.reshape(D, head_num, hd), (1, 0, 2)).astype(bf16)

    def heads_b(b):   # (1, D) -> (H, 1, hd), f32 (added after f32 accumulation)
        return jnp.transpose(b.reshape(1, head_num, hd), (1, 0, 2)).astype(f32)

    wq_full = params["wq"].astype(bf16)                       # (D, D) full-width Q weight
    bq = params["bq"].astype(f32)                             # (1, D)
    wk_h, wv_h = heads_w(params["wk"]), heads_w(params["wv"])
    bk_h, bv_h = heads_b(params["bk"]), heads_b(params["bv"])
    wo_h = params["wo"].reshape(head_num, hd, D).astype(bf16)                            # (H, hd, D)
    w1_t = jnp.transpose(params["w1"].reshape(D, nf, ff_tile), (1, 0, 2)).astype(bf16)   # (nF, D, tF)
    b1_t = jnp.transpose(params["b1"].reshape(1, nf, ff_tile), (1, 0, 2)).astype(f32)    # (nF, 1, tF)
    w2_t = params["w2"].reshape(nf, ff_tile, D).astype(bf16)                             # (nF, tF, D)

    x_kv = x.astype(bf16)                    # bf16 K/V activation stream: halves HBM/VMEM
    mask_i8 = (mask > 0).astype(jnp.int8)    # 4x smaller mask stream

    args = (
        x, x_kv, mask_i8,
        wq_full, bq, wk_h, bk_h, wv_h, bv_h, wo_h, params["bo"].astype(f32),
        params["ln1_g"].astype(f32), params["ln1_b"].astype(f32),
        params["ln2_g"].astype(f32), params["ln2_b"].astype(f32),
        w1_t, b1_t, w2_t, params["b2"].astype(f32),
    )

    kernel = functools.partial(_encoder_block_kernel, head_num=head_num, eps=eps)

    def run(weight_mode):
        def wspec(shape):
            idx = lambda b, t: (0,) * len(shape)
            if weight_mode is None:
                return pl.BlockSpec(shape, idx)
            return pl.BlockSpec(shape, idx, pipeline_mode=weight_mode)

        in_specs = [
            pl.BlockSpec((1, q_tile, D), lambda b, t: (b, t, 0)),   # x  (query tile, f32)
            pl.BlockSpec((1, S, D),      lambda b, t: (b, 0, 0)),   # x  (full sequence, bf16)
            pl.BlockSpec((1, q_tile, S), lambda b, t: (b, t, 0)),   # mask rows (int8)
            wspec((D, D)), wspec((1, D)),                           # Wq (full), bq
            wspec((head_num, D, hd)), wspec((head_num, 1, hd)),     # Wk, bk
            wspec((head_num, D, hd)), wspec((head_num, 1, hd)),     # Wv, bv
            wspec((head_num, hd, D)), wspec((1, D)),                # Wo, bo
            wspec((1, D)), wspec((1, D)),                           # ln1 gamma, beta
            wspec((1, D)), wspec((1, D)),                           # ln2 gamma, beta
            wspec((nf, D, ff_tile)), wspec((nf, 1, ff_tile)),       # FF W1, b1 (F-tiled)
            wspec((nf, ff_tile, D)), wspec((1, D)),                 # FF W2, b2 (F-tiled)
        ]

        return pl.pallas_call(
            kernel,
            out_shape=jax.ShapeDtypeStruct((B, S, D), x.dtype),
            grid_spec=pltpu.PrefetchScalarGridSpec(
                num_scalar_prefetch=0,
                grid=(B, nq),
                in_specs=in_specs,
                out_specs=pl.BlockSpec((1, q_tile, D), lambda b, t: (b, t, 0)),
                scratch_shapes=[
                    pltpu.VMEM((head_num, S, hd), bf16),    # hoisted K (head-major)
                    pltpu.VMEM((head_num, S, hd), bf16),    # hoisted V (head-major)
                ],
            ),
            compiler_params=pltpu.CompilerParams(
                # Batch is parallel (megacore sharding); the query-tile axis carries
                # the hoisted K/V scratch so it must stay sequential ("arbitrary").
                dimension_semantics=("parallel", "arbitrary"),
                vmem_limit_bytes=_vmem_limit_bytes(),
            ),
        )(*args)

    try:
        # Constant-index weight blocks never change: single-buffer them to halve
        # weight VMEM (critical on v7x's 64 MiB physical VMEM).
        return run(pl.Buffered(1))
    except Exception:
        # Fallback for Pallas versions without BlockSpec.pipeline_mode / Buffered(1):
        # default double buffering (correct, just uses more VMEM).
        return run(None)


def _reference(x, mask, params, *, head_num, eps=1e-5):
    """Pure-JAX f32 reference for correctness checking."""
    B, S, D = x.shape
    hd = D // head_num

    def lin(z, w, b):
        return z @ w + b[0]

    q = lin(x, params["wq"], params["bq"])
    k = lin(x, params["wk"], params["bk"])
    v = lin(x, params["wv"], params["bv"])

    def split(z):  # (B,S,D) -> (B,H,S,hd)
        return z.reshape(B, S, head_num, hd).transpose(0, 2, 1, 3)

    qh, kh, vh = split(q), split(k), split(v)
    scores = jnp.einsum("bhqd,bhkd->bhqk", qh, kh) / math.sqrt(hd)
    scores = jnp.where(mask[:, None, :, :] > 0, scores, -1e9)
    p = jax.nn.softmax(scores, axis=-1)
    ctx = jnp.einsum("bhqk,bhkd->bhqd", p, vh).transpose(0, 2, 1, 3).reshape(B, S, D)
    attn_out = lin(ctx, params["wo"], params["bo"])

    def ln(z, g, b):
        mu = jnp.mean(z, axis=-1, keepdims=True)
        var = jnp.mean((z - mu) ** 2, axis=-1, keepdims=True)
        return (z - mu) * jax.lax.rsqrt(var + eps) * g[0] + b[0]

    x1 = ln(attn_out + x, params["ln1_g"], params["ln1_b"])
    h1 = jnp.maximum(lin(x1, params["w1"], params["b1"]), 0.0)
    h2 = lin(h1, params["w2"], params["b2"])
    return ln(x1 + h2, params["ln2_g"], params["ln2_b"])


if __name__ == "__main__":
    # batch, seq, feature_dim, head_num, ff_hidden_dim (small but exercises nq > 1)
    B, S, D, H, F = 2, 64, 32, 4, 64

    key = jax.random.PRNGKey(0)
    ks = jax.random.split(key, 16)

    def w(k, shape, scale=0.1):
        return (scale * jax.random.normal(k, shape)).astype(jnp.float32)

    params = {
        "wq": w(ks[0], (D, D)), "bq": w(ks[1], (1, D)),
        "wk": w(ks[2], (D, D)), "bk": w(ks[3], (1, D)),
        "wv": w(ks[4], (D, D)), "bv": w(ks[5], (1, D)),
        "wo": w(ks[6], (D, D)), "bo": w(ks[7], (1, D)),
        "ln1_g": jnp.ones((1, D), jnp.float32), "ln1_b": jnp.zeros((1, D), jnp.float32),
        "ln2_g": jnp.ones((1, D), jnp.float32), "ln2_b": jnp.zeros((1, D), jnp.float32),
        "w1": w(ks[8], (D, F)), "b1": w(ks[9], (1, F)),
        "w2": w(ks[10], (F, D)), "b2": w(ks[11], (1, D)),
    }

    x = jax.random.normal(ks[12], (B, S, D), dtype=jnp.float32)
    # padding-style mask: last 2 key positions of batch element 1 are masked out
    mask = jnp.ones((B, S, S), dtype=jnp.float32)
    mask = mask.at[1, :, S - 2:].set(0.0)

    # q_tile=32 -> nq=2 query tiles per batch element: exercises the hoisted-K/V reuse path.
    out = encoder_block(x, mask, params, head_num=H, q_tile=32)
    out = jax.block_until_ready(out)

    ref = _reference(x, mask, params, head_num=H)
    assert out.shape == (B, S, D)
    # bf16 MXU operands (f32 accumulation) + approx softmax reciprocal -> relaxed tolerance.
    assert jnp.allclose(out, ref, atol=5e-2, rtol=5e-2), "mismatch vs reference"

    print("KERNEL_OK")
</pallas_src>

<mosaic_0001>
module attributes {stable_mosaic.version = 11 : i64} {
  func.func @_encoder_block_kernel(%arg0: i32, %arg1: i32, %arg2: memref<1x32x32xf32, #tpu.memory_space<vmem>>, %arg3: memref<1x64x32xbf16, #tpu.memory_space<vmem>>, %arg4: memref<1x32x64xi8, #tpu.memory_space<vmem>>, %arg5: memref<32x32xbf16, #tpu.memory_space<vmem>>, %arg6: memref<1x32xf32, #tpu.memory_space<vmem>>, %arg7: memref<4x32x8xbf16, #tpu.memory_space<vmem>>, %arg8: memref<4x1x8xf32, #tpu.memory_space<vmem>>, %arg9: memref<4x32x8xbf16, #tpu.memory_space<vmem>>, %arg10: memref<4x1x8xf32, #tpu.memory_space<vmem>>, %arg11: memref<4x8x32xbf16, #tpu.memory_space<vmem>>, %arg12: memref<1x32xf32, #tpu.memory_space<vmem>>, %arg13: memref<1x32xf32, #tpu.memory_space<vmem>>, %arg14: memref<1x32xf32, #tpu.memory_space<vmem>>, %arg15: memref<1x32xf32, #tpu.memory_space<vmem>>, %arg16: memref<1x32xf32, #tpu.memory_space<vmem>>, %arg17: memref<1x32x64xbf16, #tpu.memory_space<vmem>>, %arg18: memref<1x1x64xf32, #tpu.memory_space<vmem>>, %arg19: memref<1x64x32xbf16, #tpu.memory_space<vmem>>, %arg20: memref<1x32xf32, #tpu.memory_space<vmem>>, %arg21: memref<1x32x32xf32, #tpu.memory_space<vmem>>, %arg22: memref<4x64x8xbf16, #tpu.memory_space<vmem>>, %arg23: memref<4x64x8xbf16, #tpu.memory_space<vmem>>) attributes {dimension_semantics = [#tpu.dimension_semantics<parallel>, #tpu.dimension_semantics<arbitrary>], iteration_bounds = array<i64: 2, 2>, scalar_prefetch = 0 : i64, scratch_operands = 2 : i64, tpu.core_type = #tpu.core_type<tc>, window_params = [{transform_indices = @transform_0, window_bounds = array<i64: 1, 32, 32>}, {transform_indices = @transform_1, window_bounds = array<i64: 1, 64, 32>}, {transform_indices = @transform_2, window_bounds = array<i64: 1, 32, 64>}, {pipeline_mode = #tpu.pipeline_mode<synchronous>, transform_indices = @transform_3, window_bounds = array<i64: 32, 32>}, {pipeline_mode = #tpu.pipeline_mode<synchronous>, transform_indices = @transform_4, window_bounds = array<i64: 1, 32>}, {pipeline_mode = #tpu.pipeline_mode<synchronous>, transform_indices = @transform_5, window_bounds = array<i64: 4, 32, 8>}, {pipeline_mode = #tpu.pipeline_mode<synchronous>, transform_indices = @transform_6, window_bounds = array<i64: 4, 1, 8>}, {pipeline_mode = #tpu.pipeline_mode<synchronous>, transform_indices = @transform_7, window_bounds = array<i64: 4, 32, 8>}, {pipeline_mode = #tpu.pipeline_mode<synchronous>, transform_indices = @transform_8, window_bounds = array<i64: 4, 1, 8>}, {pipeline_mode = #tpu.pipeline_mode<synchronous>, transform_indices = @transform_9, window_bounds = array<i64: 4, 8, 32>}, {pipeline_mode = #tpu.pipeline_mode<synchronous>, transform_indices = @transform_10, window_bounds = array<i64: 1, 32>}, {pipeline_mode = #tpu.pipeline_mode<synchronous>, transform_indices = @transform_11, window_bounds = array<i64: 1, 32>}, {pipeline_mode = #tpu.pipeline_mode<synchronous>, transform_indices = @transform_12, window_bounds = array<i64: 1, 32>}, {pipeline_mode = #tpu.pipeline_mode<synchronous>, transform_indices = @transform_13, window_bounds = array<i64: 1, 32>}, {pipeline_mode = #tpu.pipeline_mode<synchronous>, transform_indices = @transform_14, window_bounds = array<i64: 1, 32>}, {pipeline_mode = #tpu.pipeline_mode<synchronous>, transform_indices = @transform_15, window_bounds = array<i64: 1, 32, 64>}, {pipeline_mode = #tpu.pipeline_mode<synchronous>, transform_indices = @transform_16, window_bounds = array<i64: 1, 1, 64>}, {pipeline_mode = #tpu.pipeline_mode<synchronous>, transform_indices = @transform_17, window_bounds = array<i64: 1, 64, 32>}, {pipeline_mode = #tpu.pipeline_mode<synchronous>, transform_indices = @transform_18, window_bounds = array<i64: 1, 32>}, {transform_indices = @transform_19, window_bounds = array<i64: 1, 32, 32>}]} {
    %c0_i32 = arith.constant 0 : i32
    %0 = arith.cmpi eq, %arg1, %c0_i32 : i32
    %1 = arith.extui %0 : i1 to i32
    %c0_i32_0 = arith.constant 0 : i32
    %2 = arith.cmpi ne, %1, %c0_i32_0 : i32
    scf.if %2 {
      %c0_107 = arith.constant 0 : index
      %c0_108 = arith.constant 0 : index
      %c0_109 = arith.constant 0 : index
      %208 = vector.load %arg3[%c0_107, %c0_108, %c0_109] : memref<1x64x32xbf16, #tpu.memory_space<vmem>>, vector<1x64x32xbf16>
      %209 = vector.shape_cast %208 : vector<1x64x32xbf16> to vector<64x32xbf16>
      %c0_110 = arith.constant 0 : index
      %c0_111 = arith.constant 0 : index
      %c0_112 = arith.constant 0 : index
      %210 = vector.load %arg7[%c0_110, %c0_111, %c0_112] : memref<4x32x8xbf16, #tpu.memory_space<vmem>>, vector<1x32x8xbf16>
      %211 = vector.shape_cast %210 : vector<1x32x8xbf16> to vector<32x8xbf16>
      %cst_113 = arith.constant dense<0.000000e+00> : vector<64x8xf32>
      %212 = tpu.matmul %209, %211, %cst_113 {dimension_numbers = #tpu.dot_dimension_numbers<[1], [0], [0], [1], [0, 0, 1, 1], [], []>} : vector<64x32xbf16>, vector<32x8xbf16>, vector<64x8xf32> -> vector<64x8xf32>
      %c0_114 = arith.constant 0 : index
      %c0_115 = arith.constant 0 : index
      %c0_116 = arith.constant 0 : index
      %213 = vector.load %arg8[%c0_114, %c0_115, %c0_116] : memref<4x1x8xf32, #tpu.memory_space<vmem>>, vector<1x1x8xf32>
      %214 = vector.shape_cast %213 : vector<1x1x8xf32> to vector<1x8xf32>
      %215 = vector.broadcast %214 : vector<1x8xf32> to vector<64x8xf32>
      %216 = arith.addf %212, %215 : vector<64x8xf32>
      %c0_117 = arith.constant 0 : index
      %c0_118 = arith.constant 0 : index
      %c0_119 = arith.constant 0 : index
      %217 = vector.load %arg9[%c0_117, %c0_118, %c0_119] : memref<4x32x8xbf16, #tpu.memory_space<vmem>>, vector<1x32x8xbf16>
      %218 = vector.shape_cast %217 : vector<1x32x8xbf16> to vector<32x8xbf16>
      %cst_120 = arith.constant dense<0.000000e+00> : vector<64x8xf32>
      %219 = tpu.matmul %209, %218, %cst_120 {dimension_numbers = #tpu.dot_dimension_numbers<[1], [0], [0], [1], [0, 0, 1, 1], [], []>} : vector<64x32xbf16>, vector<32x8xbf16>, vector<64x8xf32> -> vector<64x8xf32>
      %c0_121 = arith.constant 0 : index
      %c0_122 = arith.constant 0 : index
      %c0_123 = arith.constant 0 : index
      %220 = vector.load %arg10[%c0_121, %c0_122, %c0_123] : memref<4x1x8xf32, #tpu.memory_space<vmem>>, vector<1x1x8xf32>
      %221 = vector.shape_cast %220 : vector<1x1x8xf32> to vector<1x8xf32>
      %222 = vector.broadcast %221 : vector<1x8xf32> to vector<64x8xf32>
      %223 = arith.addf %219, %222 : vector<64x8xf32>
      %224 = arith.truncf %216 : vector<64x8xf32> to vector<64x8xbf16>
      %c0_124 = arith.constant 0 : index
      %c0_125 = arith.constant 0 : index
      %c0_126 = arith.constant 0 : index
      %225 = vector.load %arg22[%c0_124, %c0_125, %c0_126] : memref<4x64x8xbf16, #tpu.memory_space<vmem>>, vector<1x64x8xbf16>
      %226 = vector.shape_cast %225 : vector<1x64x8xbf16> to vector<64x8xbf16>
      %227 = vector.shape_cast %224 : vector<64x8xbf16> to vector<1x64x8xbf16>
      tpu.vector_store %arg22[%c0_124, %c0_125, %c0_126], %227 {strides = array<i32>} : memref<4x64x8xbf16, #tpu.memory_space<vmem>>, vector<1x64x8xbf16>,
      %228 = arith.truncf %223 : vector<64x8xf32> to vector<64x8xbf16>
      %c0_127 = arith.constant 0 : index
      %c0_128 = arith.constant 0 : index
      %c0_129 = arith.constant 0 : index
      %229 = vector.load %arg23[%c0_127, %c0_128, %c0_129] : memref<4x64x8xbf16, #tpu.memory_space<vmem>>, vector<1x64x8xbf16>
      %230 = vector.shape_cast %229 : vector<1x64x8xbf16> to vector<64x8xbf16>
      %231 = vector.shape_cast %228 : vector<64x8xbf16> to vector<1x64x8xbf16>
      tpu.vector_store %arg23[%c0_127, %c0_128, %c0_129], %231 {strides = array<i32>} : memref<4x64x8xbf16, #tpu.memory_space<vmem>>, vector<1x64x8xbf16>,
      %c1_130 = arith.constant 1 : index
      %c0_131 = arith.constant 0 : index
      %c0_132 = arith.constant 0 : index
      %232 = vector.load %arg7[%c1_130, %c0_131, %c0_132] : memref<4x32x8xbf16, #tpu.memory_space<vmem>>, vector<1x32x8xbf16>
      %233 = vector.shape_cast %232 : vector<1x32x8xbf16> to vector<32x8xbf16>
      %cst_133 = arith.constant dense<0.000000e+00> : vector<64x8xf32>
      %234 = tpu.matmul %209, %233, %cst_133 {dimension_numbers = #tpu.dot_dimension_numbers<[1], [0], [0], [1], [0, 0, 1, 1], [], []>} : vector<64x32xbf16>, vector<32x8xbf16>, vector<64x8xf32> -> vector<64x8xf32>
      %c1_134 = arith.constant 1 : index
      %c0_135 = arith.constant 0 : index
      %c0_136 = arith.constant 0 : index
      %235 = vector.load %arg8[%c1_134, %c0_135, %c0_136] : memref<4x1x8xf32, #tpu.memory_space<vmem>>, vector<1x1x8xf32>
      %236 = vector.shape_cast %235 : vector<1x1x8xf32> to vector<1x8xf32>
      %237 = vector.broadcast %236 : vector<1x8xf32> to vector<64x8xf32>
      %238 = arith.addf %234, %237 : vector<64x8xf32>
      %c1_137 = arith.constant 1 : index
      %c0_138 = arith.constant 0 : index
      %c0_139 = arith.constant 0 : index
      %239 = vector.load %arg9[%c1_137, %c0_138, %c0_139] : memref<4x32x8xbf16, #tpu.memory_space<vmem>>, vector<1x32x8xbf16>
      %240 = vector.shape_cast %239 : vector<1x32x8xbf16> to vector<32x8xbf16>
      %cst_140 = arith.constant dense<0.000000e+00> : vector<64x8xf32>
      %241 = tpu.matmul %209, %240, %cst_140 {dimension_numbers = #tpu.dot_dimension_numbers<[1], [0], [0], [1], [0, 0, 1, 1], [], []>} : vector<64x32xbf16>, vector<32x8xbf16>, vector<64x8xf32> -> vector<64x8xf32>
      %c1_141 = arith.constant 1 : index
      %c0_142 = arith.constant 0 : index
      %c0_143 = arith.constant 0 : index
      %242 = vector.load %arg10[%c1_141, %c0_142, %c0_143] : memref<4x1x8xf32, #tpu.memory_space<vmem>>, vector<1x1x8xf32>
      %243 = vector.shape_cast %242 : vector<1x1x8xf32> to vector<1x8xf32>
      %244 = vector.broadcast %243 : vector<1x8xf32> to vector<64x8xf32>
      %245 = arith.addf %241, %244 : vector<64x8xf32>
      %246 = arith.truncf %238 : vector<64x8xf32> to vector<64x8xbf16>
      %c1_144 = arith.constant 1 : index
      %c0_145 = arith.constant 0 : index
      %c0_146 = arith.constant 0 : index
      %247 = vector.load %arg22[%c1_144, %c0_145, %c0_146] : memref<4x64x8xbf16, #tpu.memory_space<vmem>>, vector<1x64x8xbf16>
      %248 = vector.shape_cast %247 : vector<1x64x8xbf16> to vector<64x8xbf16>
      %249 = vector.shape_cast %246 : vector<64x8xbf16> to vector<1x64x8xbf16>
      tpu.vector_store %arg22[%c1_144, %c0_145, %c0_146], %249 {strides = array<i32>} : memref<4x64x8xbf16, #tpu.memory_space<vmem>>, vector<1x64x8xbf16>,
      %250 = arith.truncf %245 : vector<64x8xf32> to vector<64x8xbf16>
      %c1_147 = arith.constant 1 : index
      %c0_148 = arith.constant 0 : index
      %c0_149 = arith.constant 0 : index
      %251 = vector.load %arg23[%c1_147, %c0_148, %c0_149] : memref<4x64x8xbf16, #tpu.memory_space<vmem>>, vector<1x64x8xbf16>
      %252 = vector.shape_cast %251 : vector<1x64x8xbf16> to vector<64x8xbf16>
      %253 = vector.shape_cast %250 : vector<64x8xbf16> to vector<1x64x8xbf16>
      tpu.vector_store %arg23[%c1_147, %c0_148, %c0_149], %253 {strides = array<i32>} : memref<4x64x8xbf16, #tpu.memory_space<vmem>>, vector<1x64x8xbf16>,
      %c2_150 = arith.constant 2 : index
      %c0_151 = arith.constant 0 : index
      %c0_152 = arith.constant 0 : index
      %254 = vector.load %arg7[%c2_150, %c0_151, %c0_152] : memref<4x32x8xbf16, #tpu.memory_space<vmem>>, vector<1x32x8xbf16>
      %255 = vector.shape_cast %254 : vector<1x32x8xbf16> to vector<32x8xbf16>
      %cst_153 = arith.constant dense<0.000000e+00> : vector<64x8xf32>
      %256 = tpu.matmul %209, %255, %cst_153 {dimension_numbers = #tpu.dot_dimension_numbers<[1], [0], [0], [1], [0, 0, 1, 1], [], []>} : vector<64x32xbf16>, vector<32x8xbf16>, vector<64x8xf32> -> vector<64x8xf32>
      %c2_154 = arith.constant 2 : index
      %c0_155 = arith.constant 0 : index
      %c0_156 = arith.constant 0 : index
      %257 = vector.load %arg8[%c2_154, %c0_155, %c0_156] : memref<4x1x8xf32, #tpu.memory_space<vmem>>, vector<1x1x8xf32>
      %258 = vector.shape_cast %257 : vector<1x1x8xf32> to vector<1x8xf32>
      %259 = vector.broadcast %258 : vector<1x8xf32> to vector<64x8xf32>
      %260 = arith.addf %256, %259 : vector<64x8xf32>
      %c2_157 = arith.constant 2 : index
      %c0_158 = arith.constant 0 : index
      %c0_159 = arith.constant 0 : index
      %261 = vector.load %arg9[%c2_157, %c0_158, %c0_159] : memref<4x32x8xbf16, #tpu.memory_space<vmem>>, vector<1x32x8xbf16>
      %262 = vector.shape_cast %261 : vector<1x32x8xbf16> to vector<32x8xbf16>
      %cst_160 = arith.constant dense<0.000000e+00> : vector<64x8xf32>
      %263 = tpu.matmul %209, %262, %cst_160 {dimension_numbers = #tpu.dot_dimension_numbers<[1], [0], [0], [1], [0, 0, 1, 1], [], []>} : vector<64x32xbf16>, vector<32x8xbf16>, vector<64x8xf32> -> vector<64x8xf32>
      %c2_161 = arith.constant 2 : index
      %c0_162 = arith.constant 0 : index
      %c0_163 = arith.constant 0 : index
      %264 = vector.load %arg10[%c2_161, %c0_162, %c0_163] : memref<4x1x8xf32, #tpu.memory_space<vmem>>, vector<1x1x8xf32>
      %265 = vector.shape_cast %264 : vector<1x1x8xf32> to vector<1x8xf32>
      %266 = vector.broadcast %265 : vector<1x8xf32> to vector<64x8xf32>
      %267 = arith.addf %263, %266 : vector<64x8xf32>
      %268 = arith.truncf %260 : vector<64x8xf32> to vector<64x8xbf16>
      %c2_164 = arith.constant 2 : index
      %c0_165 = arith.constant 0 : index
      %c0_166 = arith.constant 0 : index
      %269 = vector.load %arg22[%c2_164, %c0_165, %c0_166] : memref<4x64x8xbf16, #tpu.memory_space<vmem>>, vector<1x64x8xbf16>
      %270 = vector.shape_cast %269 : vector<1x64x8xbf16> to vector<64x8xbf16>
      %271 = vector.shape_cast %268 : vector<64x8xbf16> to vector<1x64x8xbf16>
      tpu.vector_store %arg22[%c2_164, %c0_165, %c0_166], %271 {strides = array<i32>} : memref<4x64x8xbf16, #tpu.memory_space<vmem>>, vector<1x64x8xbf16>,
      %272 = arith.truncf %267 : vector<64x8xf32> to vector<64x8xbf16>
      %c2_167 = arith.constant 2 : index
      %c0_168 = arith.constant 0 : index
      %c0_169 = arith.constant 0 : index
      %273 = vector.load %arg23[%c2_167, %c0_168, %c0_169] : memref<4x64x8xbf16, #tpu.memory_space<vmem>>, vector<1x64x8xbf16>
      %274 = vector.shape_cast %273 : vector<1x64x8xbf16> to vector<64x8xbf16>
      %275 = vector.shape_cast %272 : vector<64x8xbf16> to vector<1x64x8xbf16>
      tpu.vector_store %arg23[%c2_167, %c0_168, %c0_169], %275 {strides = array<i32>} : memref<4x64x8xbf16, #tpu.memory_space<vmem>>, vector<1x64x8xbf16>,
      %c3_170 = arith.constant 3 : index
      %c0_171 = arith.constant 0 : index
      %c0_172 = arith.constant 0 : index
      %276 = vector.load %arg7[%c3_170, %c0_171, %c0_172] : memref<4x32x8xbf16, #tpu.memory_space<vmem>>, vector<1x32x8xbf16>
      %277 = vector.shape_cast %276 : vector<1x32x8xbf16> to vector<32x8xbf16>
      %cst_173 = arith.constant dense<0.000000e+00> : vector<64x8xf32>
      %278 = tpu.matmul %209, %277, %cst_173 {dimension_numbers = #tpu.dot_dimension_numbers<[1], [0], [0], [1], [0, 0, 1, 1], [], []>} : vector<64x32xbf16>, vector<32x8xbf16>, vector<64x8xf32> -> vector<64x8xf32>
      %c3_174 = arith.constant 3 : index
      %c0_175 = arith.constant 0 : index
      %c0_176 = arith.constant 0 : index
      %279 = vector.load %arg8[%c3_174, %c0_175, %c0_176] : memref<4x1x8xf32, #tpu.memory_space<vmem>>, vector<1x1x8xf32>
      %280 = vector.shape_cast %279 : vector<1x1x8xf32> to vector<1x8xf32>
      %281 = vector.broadcast %280 : vector<1x8xf32> to vector<64x8xf32>
      %282 = arith.addf %278, %281 : vector<64x8xf32>
      %c3_177 = arith.constant 3 : index
      %c0_178 = arith.constant 0 : index
      %c0_179 = arith.constant 0 : index
      %283 = vector.load %arg9[%c3_177, %c0_178, %c0_179] : memref<4x32x8xbf16, #tpu.memory_space<vmem>>, vector<1x32x8xbf16>
      %284 = vector.shape_cast %283 : vector<1x32x8xbf16> to vector<32x8xbf16>
      %cst_180 = arith.constant dense<0.000000e+00> : vector<64x8xf32>
      %285 = tpu.matmul %209, %284, %cst_180 {dimension_numbers = #tpu.dot_dimension_numbers<[1], [0], [0], [1], [0, 0, 1, 1], [], []>} : vector<64x32xbf16>, vector<32x8xbf16>, vector<64x8xf32> -> vector<64x8xf32>
      %c3_181 = arith.constant 3 : index
      %c0_182 = arith.constant 0 : index
      %c0_183 = arith.constant 0 : index
      %286 = vector.load %arg10[%c3_181, %c0_182, %c0_183] : memref<4x1x8xf32, #tpu.memory_space<vmem>>, vector<1x1x8xf32>
      %287 = vector.shape_cast %286 : vector<1x1x8xf32> to vector<1x8xf32>
      %288 = vector.broadcast %287 : vector<1x8xf32> to vector<64x8xf32>
      %289 = arith.addf %285, %288 : vector<64x8xf32>
      %290 = arith.truncf %282 : vector<64x8xf32> to vector<64x8xbf16>
      %c3_184 = arith.constant 3 : index
      %c0_185 = arith.constant 0 : index
      %c0_186 = arith.constant 0 : index
      %291 = vector.load %arg22[%c3_184, %c0_185, %c0_186] : memref<4x64x8xbf16, #tpu.memory_space<vmem>>, vector<1x64x8xbf16>
      %292 = vector.shape_cast %291 : vector<1x64x8xbf16> to vector<64x8xbf16>
      %293 = vector.shape_cast %290 : vector<64x8xbf16> to vector<1x64x8xbf16>
      tpu.vector_store %arg22[%c3_184, %c0_185, %c0_186], %293 {strides = array<i32>} : memref<4x64x8xbf16, #tpu.memory_space<vmem>>, vector<1x64x8xbf16>,
      %294 = arith.truncf %289 : vector<64x8xf32> to vector<64x8xbf16>
      %c3_187 = arith.constant 3 : index
      %c0_188 = arith.constant 0 : index
      %c0_189 = arith.constant 0 : index
      %295 = vector.load %arg23[%c3_187, %c0_188, %c0_189] : memref<4x64x8xbf16, #tpu.memory_space<vmem>>, vector<1x64x8xbf16>
      %296 = vector.shape_cast %295 : vector<1x64x8xbf16> to vector<64x8xbf16>
      %297 = vector.shape_cast %294 : vector<64x8xbf16> to vector<1x64x8xbf16>
      tpu.vector_store %arg23[%c3_187, %c0_188, %c0_189], %297 {strides = array<i32>} : memref<4x64x8xbf16, #tpu.memory_space<vmem>>, vector<1x64x8xbf16>,
    } else {
    }
    %c0 = arith.constant 0 : index
    %c0_1 = arith.constant 0 : index
    %c0_2 = arith.constant 0 : index
    %3 = vector.load %arg2[%c0, %c0_1, %c0_2] : memref<1x32x32xf32, #tpu.memory_space<vmem>>, vector<1x32x32xf32>
    %4 = vector.shape_cast %3 : vector<1x32x32xf32> to vector<32x32xf32>
    %5 = arith.truncf %4 : vector<32x32xf32> to vector<32x32xbf16>
    %c0_3 = arith.constant 0 : index
    %c0_4 = arith.constant 0 : index
    %c0_5 = arith.constant 0 : index
    %6 = vector.load %arg4[%c0_3, %c0_4, %c0_5] : memref<1x32x64xi8, #tpu.memory_space<vmem>>, vector<1x32x64xi8>
    %7 = vector.shape_cast %6 : vector<1x32x64xi8> to vector<32x64xi8>
    %c0_i8 = arith.constant 0 : i8
    %8 = vector.broadcast %c0_i8 : i8 to vector<32x64xi8>
    %9 = arith.cmpi ne, %7, %8 : vector<32x64xi8>
    %c0_6 = arith.constant 0 : index
    %c0_7 = arith.constant 0 : index
    %10 = vector.load %arg5[%c0_6, %c0_7] : memref<32x32xbf16, #tpu.memory_space<vmem>>, vector<32x32xbf16>
    %cst = arith.constant dense<0.000000e+00> : vector<32x32xf32>
    %11 = tpu.matmul %5, %10, %cst {dimension_numbers = #tpu.dot_dimension_numbers<[1], [0], [0], [1], [0, 0, 1, 1], [], []>} : vector<32x32xbf16>, vector<32x32xbf16>, vector<32x32xf32> -> vector<32x32xf32>
    %c0_8 = arith.constant 0 : index
    %c0_9 = arith.constant 0 : index
    %12 = vector.load %arg6[%c0_8, %c0_9] : memref<1x32xf32, #tpu.memory_space<vmem>>, vector<1x32xf32>
    %13 = vector.shape_cast %12 : vector<1x32xf32> to vector<32xf32>
    %14 = vector.shape_cast %13 : vector<32xf32> to vector<1x32xf32>
    %15 = vector.broadcast %14 : vector<1x32xf32> to vector<32x32xf32>
    %16 = arith.addf %11, %15 : vector<32x32xf32>
    %cst_10 = arith.constant 0.353553385 : f32
    %17 = vector.broadcast %cst_10 : f32 to vector<32x32xf32>
    %18 = arith.mulf %16, %17 : vector<32x32xf32>
    %19 = arith.truncf %18 : vector<32x32xf32> to vector<32x32xbf16>
    %cst_11 = arith.constant 0.000000e+00 : f32
    %20 = vector.broadcast %cst_11 : f32 to vector<32x32xf32>
    %21 = vector.extract_strided_slice %19 {offsets = [0, 0], sizes = [32, 8], strides = [1, 1]} : vector<32x32xbf16> to vector<32x8xbf16>
    %c0_12 = arith.constant 0 : index
    %c0_13 = arith.constant 0 : index
    %c0_14 = arith.constant 0 : index
    %22 = vector.load %arg22[%c0_12, %c0_13, %c0_14] : memref<4x64x8xbf16, #tpu.memory_space<vmem>>, vector<1x64x8xbf16>
    %23 = vector.shape_cast %22 : vector<1x64x8xbf16> to vector<64x8xbf16>
    %c0_15 = arith.constant 0 : index
    %c0_16 = arith.constant 0 : index
    %c0_17 = arith.constant 0 : index
    %24 = vector.load %arg23[%c0_15, %c0_16, %c0_17] : memref<4x64x8xbf16, #tpu.memory_space<vmem>>, vector<1x64x8xbf16>
    %25 = vector.shape_cast %24 : vector<1x64x8xbf16> to vector<64x8xbf16>
    %cst_18 = arith.constant dense<0.000000e+00> : vector<32x64xf32>
    %26 = tpu.matmul %21, %23, %cst_18 {dimension_numbers = #tpu.dot_dimension_numbers<[1], [1], [0], [0], [0, 0, 1, 0], [], []>} : vector<32x8xbf16>, vector<64x8xbf16>, vector<32x64xf32> -> vector<32x64xf32>
    %cst_19 = arith.constant -1.000000e+09 : f32
    %27 = vector.broadcast %cst_19 : f32 to vector<32x64xf32>
    %28 = arith.select %9, %26, %27 : vector<32x64xi1>, vector<32x64xf32>
    %cst_20 = arith.constant dense<0xFF800000> : vector<32xf32>
    %29 = vector.multi_reduction <maximumf>, %28, %cst_20 [1] : vector<32x64xf32> to vector<32xf32>
    %30 = vector.shape_cast %29 : vector<32xf32> to vector<32x1xf32>
    %31 = vector.broadcast %30 : vector<32x1xf32> to vector<32x64xf32>
    %32 = arith.subf %28, %31 : vector<32x64xf32>
    %33 = math.exp %32 : vector<32x64xf32>
    %cst_21 = arith.constant dense<0.000000e+00> : vector<32xf32>
    %34 = vector.multi_reduction <add>, %33, %cst_21 [1] : vector<32x64xf32> to vector<32xf32>
    %35 = vector.shape_cast %34 : vector<32xf32> to vector<32x1xf32>
    %36 = tpu.reciprocal %35 {approx = true} : vector<32x1xf32> -> vector<32x1xf32>
    %37 = vector.broadcast %36 : vector<32x1xf32> to vector<32x64xf32>
    %38 = arith.mulf %33, %37 : vector<32x64xf32>
    %39 = arith.truncf %38 : vector<32x64xf32> to vector<32x64xbf16>
    %cst_22 = arith.constant dense<0.000000e+00> : vector<32x8xf32>
    %40 = tpu.matmul %39, %25, %cst_22 {dimension_numbers = #tpu.dot_dimension_numbers<[1], [0], [0], [1], [0, 0, 1, 1], [], []>} : vector<32x64xbf16>, vector<64x8xbf16>, vector<32x8xf32> -> vector<32x8xf32>
    %41 = arith.truncf %40 : vector<32x8xf32> to vector<32x8xbf16>
    %c0_23 = arith.constant 0 : index
    %c0_24 = arith.constant 0 : index
    %c0_25 = arith.constant 0 : index
    %42 = vector.load %arg11[%c0_23, %c0_24, %c0_25] : memref<4x8x32xbf16, #tpu.memory_space<vmem>>, vector<1x8x32xbf16>
    %43 = vector.shape_cast %42 : vector<1x8x32xbf16> to vector<8x32xbf16>
    %cst_26 = arith.constant dense<0.000000e+00> : vector<32x32xf32>
    %44 = tpu.matmul %41, %43, %cst_26 {dimension_numbers = #tpu.dot_dimension_numbers<[1], [0], [0], [1], [0, 0, 1, 1], [], []>} : vector<32x8xbf16>, vector<8x32xbf16>, vector<32x32xf32> -> vector<32x32xf32>
    %45 = arith.addf %20, %44 : vector<32x32xf32>
    %46 = vector.extract_strided_slice %19 {offsets = [0, 8], sizes = [32, 8], strides = [1, 1]} : vector<32x32xbf16> to vector<32x8xbf16>
    %c1 = arith.constant 1 : index
    %c0_27 = arith.constant 0 : index
    %c0_28 = arith.constant 0 : index
    %47 = vector.load %arg22[%c1, %c0_27, %c0_28] : memref<4x64x8xbf16, #tpu.memory_space<vmem>>, vector<1x64x8xbf16>
    %48 = vector.shape_cast %47 : vector<1x64x8xbf16> to vector<64x8xbf16>
    %c1_29 = arith.constant 1 : index
    %c0_30 = arith.constant 0 : index
    %c0_31 = arith.constant 0 : index
    %49 = vector.load %arg23[%c1_29, %c0_30, %c0_31] : memref<4x64x8xbf16, #tpu.memory_space<vmem>>, vector<1x64x8xbf16>
    %50 = vector.shape_cast %49 : vector<1x64x8xbf16> to vector<64x8xbf16>
    %cst_32 = arith.constant dense<0.000000e+00> : vector<32x64xf32>
    %51 = tpu.matmul %46, %48, %cst_32 {dimension_numbers = #tpu.dot_dimension_numbers<[1], [1], [0], [0], [0, 0, 1, 0], [], []>} : vector<32x8xbf16>, vector<64x8xbf16>, vector<32x64xf32> -> vector<32x64xf32>
    %cst_33 = arith.constant -1.000000e+09 : f32
    %52 = vector.broadcast %cst_33 : f32 to vector<32x64xf32>
    %53 = arith.select %9, %51, %52 : vector<32x64xi1>, vector<32x64xf32>
    %cst_34 = arith.constant dense<0xFF800000> : vector<32xf32>
    %54 = vector.multi_reduction <maximumf>, %53, %cst_34 [1] : vector<32x64xf32> to vector<32xf32>
    %55 = vector.shape_cast %54 : vector<32xf32> to vector<32x1xf32>
    %56 = vector.broadcast %55 : vector<32x1xf32> to vector<32x64xf32>
    %57 = arith.subf %53, %56 : vector<32x64xf32>
    %58 = math.exp %57 : vector<32x64xf32>
    %cst_35 = arith.constant dense<0.000000e+00> : vector<32xf32>
    %59 = vector.multi_reduction <add>, %58, %cst_35 [1] : vector<32x64xf32> to vector<32xf32>
    %60 = vector.shape_cast %59 : vector<32xf32> to vector<32x1xf32>
    %61 = tpu.reciprocal %60 {approx = true} : vector<32x1xf32> -> vector<32x1xf32>
    %62 = vector.broadcast %61 : vector<32x1xf32> to vector<32x64xf32>
    %63 = arith.mulf %58, %62 : vector<32x64xf32>
    %64 = arith.truncf %63 : vector<32x64xf32> to vector<32x64xbf16>
    %cst_36 = arith.constant dense<0.000000e+00> : vector<32x8xf32>
    %65 = tpu.matmul %64, %50, %cst_36 {dimension_numbers = #tpu.dot_dimension_numbers<[1], [0], [0], [1], [0, 0, 1, 1], [], []>} : vector<32x64xbf16>, vector<64x8xbf16>, vector<32x8xf32> -> vector<32x8xf32>
    %66 = arith.truncf %65 : vector<32x8xf32> to vector<32x8xbf16>
    %c1_37 = arith.constant 1 : index
    %c0_38 = arith.constant 0 : index
    %c0_39 = arith.constant 0 : index
    %67 = vector.load %arg11[%c1_37, %c0_38, %c0_39] : memref<4x8x32xbf16, #tpu.memory_space<vmem>>, vector<1x8x32xbf16>
    %68 = vector.shape_cast %67 : vector<1x8x32xbf16> to vector<8x32xbf16>
    %cst_40 = arith.constant dense<0.000000e+00> : vector<32x32xf32>
    %69 = tpu.matmul %66, %68, %cst_40 {dimension_numbers = #tpu.dot_dimension_numbers<[1], [0], [0], [1], [0, 0, 1, 1], [], []>} : vector<32x8xbf16>, vector<8x32xbf16>, vector<32x32xf32> -> vector<32x32xf32>
    %70 = arith.addf %45, %69 : vector<32x32xf32>
    %71 = vector.extract_strided_slice %19 {offsets = [0, 16], sizes = [32, 8], strides = [1, 1]} : vector<32x32xbf16> to vector<32x8xbf16>
    %c2 = arith.constant 2 : index
    %c0_41 = arith.constant 0 : index
    %c0_42 = arith.constant 0 : index
    %72 = vector.load %arg22[%c2, %c0_41, %c0_42] : memref<4x64x8xbf16, #tpu.memory_space<vmem>>, vector<1x64x8xbf16>
    %73 = vector.shape_cast %72 : vector<1x64x8xbf16> to vector<64x8xbf16>
    %c2_43 = arith.constant 2 : index
    %c0_44 = arith.constant 0 : index
    %c0_45 = arith.constant 0 : index
    %74 = vector.load %arg23[%c2_43, %c0_44, %c0_45] : memref<4x64x8xbf16, #tpu.memory_space<vmem>>, vector<1x64x8xbf16>
    %75 = vector.shape_cast %74 : vector<1x64x8xbf16> to vector<64x8xbf16>
    %cst_46 = arith.constant dense<0.000000e+00> : vector<32x64xf32>
    %76 = tpu.matmul %71, %73, %cst_46 {dimension_numbers = #tpu.dot_dimension_numbers<[1], [1], [0], [0], [0, 0, 1, 0], [], []>} : vector<32x8xbf16>, vector<64x8xbf16>, vector<32x64xf32> -> vector<32x64xf32>
    %cst_47 = arith.constant -1.000000e+09 : f32
    %77 = vector.broadcast %cst_47 : f32 to vector<32x64xf32>
    %78 = arith.select %9, %76, %77 : vector<32x64xi1>, vector<32x64xf32>
    %cst_48 = arith.constant dense<0xFF800000> : vector<32xf32>
    %79 = vector.multi_reduction <maximumf>, %78, %cst_48 [1] : vector<32x64xf32> to vector<32xf32>
    %80 = vector.shape_cast %79 : vector<32xf32> to vector<32x1xf32>
    %81 = vector.broadcast %80 : vector<32x1xf32> to vector<32x64xf32>
    %82 = arith.subf %78, %81 : vector<32x64xf32>
    %83 = math.exp %82 : vector<32x64xf32>
    %cst_49 = arith.constant dense<0.000000e+00> : vector<32xf32>
    %84 = vector.multi_reduction <add>, %83, %cst_49 [1] : vector<32x64xf32> to vector<32xf32>
    %85 = vector.shape_cast %84 : vector<32xf32> to vector<32x1xf32>
    %86 = tpu.reciprocal %85 {approx = true} : vector<32x1xf32> -> vector<32x1xf32>
    %87 = vector.broadcast %86 : vector<32x1xf32> to vector<32x64xf32>
    %88 = arith.mulf %83, %87 : vector<32x64xf32>
    %89 = arith.truncf %88 : vector<32x64xf32> to vector<32x64xbf16>
    %cst_50 = arith.constant dense<0.000000e+00> : vector<32x8xf32>
    %90 = tpu.matmul %89, %75, %cst_50 {dimension_numbers = #tpu.dot_dimension_numbers<[1], [0], [0], [1], [0, 0, 1, 1], [], []>} : vector<32x64xbf16>, vector<64x8xbf16>, vector<32x8xf32> -> vector<32x8xf32>
    %91 = arith.truncf %90 : vector<32x8xf32> to vector<32x8xbf16>
    %c2_51 = arith.constant 2 : index
    %c0_52 = arith.constant 0 : index
    %c0_53 = arith.constant 0 : index
    %92 = vector.load %arg11[%c2_51, %c0_52, %c0_53] : memref<4x8x32xbf16, #tpu.memory_space<vmem>>, vector<1x8x32xbf16>
    %93 = vector.shape_cast %92 : vector<1x8x32xbf16> to vector<8x32xbf16>
    %cst_54 = arith.constant dense<0.000000e+00> : vector<32x32xf32>
    %94 = tpu.matmul %91, %93, %cst_54 {dimension_numbers = #tpu.dot_dimension_numbers<[1], [0], [0], [1], [0, 0, 1, 1], [], []>} : vector<32x8xbf16>, vector<8x32xbf16>, vector<32x32xf32> -> vector<32x32xf32>
    %95 = arith.addf %70, %94 : vector<32x32xf32>
    %96 = vector.extract_strided_slice %19 {offsets = [0, 24], sizes = [32, 8], strides = [1, 1]} : vector<32x32xbf16> to vector<32x8xbf16>
    %c3 = arith.constant 3 : index
    %c0_55 = arith.constant 0 : index
    %c0_56 = arith.constant 0 : index
    %97 = vector.load %arg22[%c3, %c0_55, %c0_56] : memref<4x64x8xbf16, #tpu.memory_space<vmem>>, vector<1x64x8xbf16>
    %98 = vector.shape_cast %97 : vector<1x64x8xbf16> to vector<64x8xbf16>
    %c3_57 = arith.constant 3 : index
    %c0_58 = arith.constant 0 : index
    %c0_59 = arith.constant 0 : index
    %99 = vector.load %arg23[%c3_57, %c0_58, %c0_59] : memref<4x64x8xbf16, #tpu.memory_space<vmem>>, vector<1x64x8xbf16>
    %100 = vector.shape_cast %99 : vector<1x64x8xbf16> to vector<64x8xbf16>
    %cst_60 = arith.constant dense<0.000000e+00> : vector<32x64xf32>
    %101 = tpu.matmul %96, %98, %cst_60 {dimension_numbers = #tpu.dot_dimension_numbers<[1], [1], [0], [0], [0, 0, 1, 0], [], []>} : vector<32x8xbf16>, vector<64x8xbf16>, vector<32x64xf32> -> vector<32x64xf32>
    %cst_61 = arith.constant -1.000000e+09 : f32
    %102 = vector.broadcast %cst_61 : f32 to vector<32x64xf32>
    %103 = arith.select %9, %101, %102 : vector<32x64xi1>, vector<32x64xf32>
    %cst_62 = arith.constant dense<0xFF800000> : vector<32xf32>
    %104 = vector.multi_reduction <maximumf>, %103, %cst_62 [1] : vector<32x64xf32> to vector<32xf32>
    %105 = vector.shape_cast %104 : vector<32xf32> to vector<32x1xf32>
    %106 = vector.broadcast %105 : vector<32x1xf32> to vector<32x64xf32>
    %107 = arith.subf %103, %106 : vector<32x64xf32>
    %108 = math.exp %107 : vector<32x64xf32>
    %cst_63 = arith.constant dense<0.000000e+00> : vector<32xf32>
    %109 = vector.multi_reduction <add>, %108, %cst_63 [1] : vector<32x64xf32> to vector<32xf32>
    %110 = vector.shape_cast %109 : vector<32xf32> to vector<32x1xf32>
    %111 = tpu.reciprocal %110 {approx = true} : vector<32x1xf32> -> vector<32x1xf32>
    %112 = vector.broadcast %111 : vector<32x1xf32> to vector<32x64xf32>
    %113 = arith.mulf %108, %112 : vector<32x64xf32>
    %114 = arith.truncf %113 : vector<32x64xf32> to vector<32x64xbf16>
    %cst_64 = arith.constant dense<0.000000e+00> : vector<32x8xf32>
    %115 = tpu.matmul %114, %100, %cst_64 {dimension_numbers = #tpu.dot_dimension_numbers<[1], [0], [0], [1], [0, 0, 1, 1], [], []>} : vector<32x64xbf16>, vector<64x8xbf16>, vector<32x8xf32> -> vector<32x8xf32>
    %116 = arith.truncf %115 : vector<32x8xf32> to vector<32x8xbf16>
    %c3_65 = arith.constant 3 : index
    %c0_66 = arith.constant 0 : index
    %c0_67 = arith.constant 0 : index
    %117 = vector.load %arg11[%c3_65, %c0_66, %c0_67] : memref<4x8x32xbf16, #tpu.memory_space<vmem>>, vector<1x8x32xbf16>
    %118 = vector.shape_cast %117 : vector<1x8x32xbf16> to vector<8x32xbf16>
    %cst_68 = arith.constant dense<0.000000e+00> : vector<32x32xf32>
    %119 = tpu.matmul %116, %118, %cst_68 {dimension_numbers = #tpu.dot_dimension_numbers<[1], [0], [0], [1], [0, 0, 1, 1], [], []>} : vector<32x8xbf16>, vector<8x32xbf16>, vector<32x32xf32> -> vector<32x32xf32>
    %120 = arith.addf %95, %119 : vector<32x32xf32>
    %c0_69 = arith.constant 0 : index
    %c0_70 = arith.constant 0 : index
    %121 = vector.load %arg12[%c0_69, %c0_70] : memref<1x32xf32, #tpu.memory_space<vmem>>, vector<1x32xf32>
    %122 = vector.shape_cast %121 : vector<1x32xf32> to vector<32xf32>
    %123 = vector.shape_cast %122 : vector<32xf32> to vector<1x32xf32>
    %124 = vector.broadcast %123 : vector<1x32xf32> to vector<32x32xf32>
    %125 = arith.addf %120, %124 : vector<32x32xf32>
    %126 = arith.addf %125, %4 : vector<32x32xf32>
    %c0_71 = arith.constant 0 : index
    %c0_72 = arith.constant 0 : index
    %127 = vector.load %arg13[%c0_71, %c0_72] : memref<1x32xf32, #tpu.memory_space<vmem>>, vector<1x32xf32>
    %128 = vector.shape_cast %127 : vector<1x32xf32> to vector<32xf32>
    %c0_73 = arith.constant 0 : index
    %c0_74 = arith.constant 0 : index
    %129 = vector.load %arg14[%c0_73, %c0_74] : memref<1x32xf32, #tpu.memory_space<vmem>>, vector<1x32xf32>
    %130 = vector.shape_cast %129 : vector<1x32xf32> to vector<32xf32>
    %cst_75 = arith.constant dense<0.000000e+00> : vector<32xf32>
    %131 = vector.multi_reduction <add>, %126, %cst_75 [1] : vector<32x32xf32> to vector<32xf32>
    %132 = vector.shape_cast %131 : vector<32xf32> to vector<32x1xf32>
    %cst_76 = arith.constant 3.200000e+01 : f32
    %133 = vector.broadcast %cst_76 : f32 to vector<32x1xf32>
    %134 = arith.divf %132, %133 : vector<32x1xf32>
    %135 = vector.broadcast %134 : vector<32x1xf32> to vector<32x32xf32>
    %136 = arith.subf %126, %135 : vector<32x32xf32>
    %137 = arith.mulf %136, %136 : vector<32x32xf32>
    %cst_77 = arith.constant dense<0.000000e+00> : vector<32xf32>
    %138 = vector.multi_reduction <add>, %137, %cst_77 [1] : vector<32x32xf32> to vector<32xf32>
    %139 = vector.shape_cast %138 : vector<32xf32> to vector<32x1xf32>
    %cst_78 = arith.constant 3.200000e+01 : f32
    %140 = vector.broadcast %cst_78 : f32 to vector<32x1xf32>
    %141 = arith.divf %139, %140 : vector<32x1xf32>
    %142 = vector.broadcast %134 : vector<32x1xf32> to vector<32x32xf32>
    %143 = arith.subf %126, %142 : vector<32x32xf32>
    %cst_79 = arith.constant 9.99999974E-6 : f32
    %144 = vector.broadcast %cst_79 : f32 to vector<32x1xf32>
    %145 = arith.addf %141, %144 : vector<32x1xf32>
    %146 = math.rsqrt %145 : vector<32x1xf32>
    %147 = vector.broadcast %146 : vector<32x1xf32> to vector<32x32xf32>
    %148 = arith.mulf %143, %147 : vector<32x32xf32>
    %149 = vector.shape_cast %128 : vector<32xf32> to vector<1x32xf32>
    %150 = vector.broadcast %149 : vector<1x32xf32> to vector<32x32xf32>
    %151 = arith.mulf %148, %150 : vector<32x32xf32>
    %152 = vector.shape_cast %130 : vector<32xf32> to vector<1x32xf32>
    %153 = vector.broadcast %152 : vector<1x32xf32> to vector<32x32xf32>
    %154 = arith.addf %151, %153 : vector<32x32xf32>
    %155 = arith.truncf %154 : vector<32x32xf32> to vector<32x32xbf16>
    %cst_80 = arith.constant 0.000000e+00 : f32
    %156 = vector.broadcast %cst_80 : f32 to vector<32x32xf32>
    %c0_81 = arith.constant 0 : index
    %c0_82 = arith.constant 0 : index
    %c0_83 = arith.constant 0 : index
    %157 = vector.load %arg17[%c0_81, %c0_82, %c0_83] : memref<1x32x64xbf16, #tpu.memory_space<vmem>>, vector<1x32x64xbf16>
    %158 = vector.shape_cast %157 : vector<1x32x64xbf16> to vector<32x64xbf16>
    %cst_84 = arith.constant dense<0.000000e+00> : vector<32x64xf32>
    %159 = tpu.matmul %155, %158, %cst_84 {dimension_numbers = #tpu.dot_dimension_numbers<[1], [0], [0], [1], [0, 0, 1, 1], [], []>} : vector<32x32xbf16>, vector<32x64xbf16>, vector<32x64xf32> -> vector<32x64xf32>
    %c0_85 = arith.constant 0 : index
    %c0_86 = arith.constant 0 : index
    %c0_87 = arith.constant 0 : index
    %160 = vector.load %arg18[%c0_85, %c0_86, %c0_87] : memref<1x1x64xf32, #tpu.memory_space<vmem>>, vector<1x1x64xf32>
    %161 = vector.shape_cast %160 : vector<1x1x64xf32> to vector<1x64xf32>
    %162 = vector.broadcast %161 : vector<1x64xf32> to vector<32x64xf32>
    %163 = arith.addf %159, %162 : vector<32x64xf32>
    %cst_88 = arith.constant 0.000000e+00 : f32
    %164 = vector.broadcast %cst_88 : f32 to vector<32x64xf32>
    %165 = arith.maximumf %163, %164 : vector<32x64xf32>
    %166 = arith.truncf %165 : vector<32x64xf32> to vector<32x64xbf16>
    %c0_89 = arith.constant 0 : index
    %c0_90 = arith.constant 0 : index
    %c0_91 = arith.constant 0 : index
    %167 = vector.load %arg19[%c0_89, %c0_90, %c0_91] : memref<1x64x32xbf16, #tpu.memory_space<vmem>>, vector<1x64x32xbf16>
    %168 = vector.shape_cast %167 : vector<1x64x32xbf16> to vector<64x32xbf16>
    %cst_92 = arith.constant dense<0.000000e+00> : vector<32x32xf32>
    %169 = tpu.matmul %166, %168, %cst_92 {dimension_numbers = #tpu.dot_dimension_numbers<[1], [0], [0], [1], [0, 0, 1, 1], [], []>} : vector<32x64xbf16>, vector<64x32xbf16>, vector<32x32xf32> -> vector<32x32xf32>
    %170 = arith.addf %156, %169 : vector<32x32xf32>
    %c0_93 = arith.constant 0 : index
    %c0_94 = arith.constant 0 : index
    %171 = vector.load %arg20[%c0_93, %c0_94] : memref<1x32xf32, #tpu.memory_space<vmem>>, vector<1x32xf32>
    %172 = vector.shape_cast %171 : vector<1x32xf32> to vector<32xf32>
    %173 = vector.shape_cast %172 : vector<32xf32> to vector<1x32xf32>
    %174 = vector.broadcast %173 : vector<1x32xf32> to vector<32x32xf32>
    %175 = arith.addf %170, %174 : vector<32x32xf32>
    %176 = arith.addf %154, %175 : vector<32x32xf32>
    %c0_95 = arith.constant 0 : index
    %c0_96 = arith.constant 0 : index
    %177 = vector.load %arg15[%c0_95, %c0_96] : memref<1x32xf32, #tpu.memory_space<vmem>>, vector<1x32xf32>
    %178 = vector.shape_cast %177 : vector<1x32xf32> to vector<32xf32>
    %c0_97 = arith.constant 0 : index
    %c0_98 = arith.constant 0 : index
    %179 = vector.load %arg16[%c0_97, %c0_98] : memref<1x32xf32, #tpu.memory_space<vmem>>, vector<1x32xf32>
    %180 = vector.shape_cast %179 : vector<1x32xf32> to vector<32xf32>
    %cst_99 = arith.constant dense<0.000000e+00> : vector<32xf32>
    %181 = vector.multi_reduction <add>, %176, %cst_99 [1] : vector<32x32xf32> to vector<32xf32>
    %182 = vector.shape_cast %181 : vector<32xf32> to vector<32x1xf32>
    %cst_100 = arith.constant 3.200000e+01 : f32
    %183 = vector.broadcast %cst_100 : f32 to vector<32x1xf32>
    %184 = arith.divf %182, %183 : vector<32x1xf32>
    %185 = vector.broadcast %184 : vector<32x1xf32> to vector<32x32xf32>
    %186 = arith.subf %176, %185 : vector<32x32xf32>
    %187 = arith.mulf %186, %186 : vector<32x32xf32>
    %cst_101 = arith.constant dense<0.000000e+00> : vector<32xf32>
    %188 = vector.multi_reduction <add>, %187, %cst_101 [1] : vector<32x32xf32> to vector<32xf32>
    %189 = vector.shape_cast %188 : vector<32xf32> to vector<32x1xf32>
    %cst_102 = arith.constant 3.200000e+01 : f32
    %190 = vector.broadcast %cst_102 : f32 to vector<32x1xf32>
    %191 = arith.divf %189, %190 : vector<32x1xf32>
    %192 = vector.broadcast %184 : vector<32x1xf32> to vector<32x32xf32>
    %193 = arith.subf %176, %192 : vector<32x32xf32>
    %cst_103 = arith.constant 9.99999974E-6 : f32
    %194 = vector.broadcast %cst_103 : f32 to vector<32x1xf32>
    %195 = arith.addf %191, %194 : vector<32x1xf32>
    %196 = math.rsqrt %195 : vector<32x1xf32>
    %197 = vector.broadcast %196 : vector<32x1xf32> to vector<32x32xf32>
    %198 = arith.mulf %193, %197 : vector<32x32xf32>
    %199 = vector.shape_cast %178 : vector<32xf32> to vector<1x32xf32>
    %200 = vector.broadcast %199 : vector<1x32xf32> to vector<32x32xf32>
    %201 = arith.mulf %198, %200 : vector<32x32xf32>
    %202 = vector.shape_cast %180 : vector<32xf32> to vector<1x32xf32>
    %203 = vector.broadcast %202 : vector<1x32xf32> to vector<32x32xf32>
    %204 = arith.addf %201, %203 : vector<32x32xf32>
    %c0_104 = arith.constant 0 : index
    %c0_105 = arith.constant 0 : index
    %c0_106 = arith.constant 0 : index
    %205 = vector.load %arg21[%c0_104, %c0_105, %c0_106] : memref<1x32x32xf32, #tpu.memory_space<vmem>>, vector<1x32x32xf32>
    %206 = vector.shape_cast %205 : vector<1x32x32xf32> to vector<32x32xf32>
    %207 = vector.shape_cast %204 : vector<32x32xf32> to vector<1x32x32xf32>
    tpu.vector_store %arg21[%c0_104, %c0_105, %c0_106], %207 {strides = array<i32>} : memref<1x32x32xf32, #tpu.memory_space<vmem>>, vector<1x32x32xf32>,
    return
  }
  func.func @transform_0(%arg0: i32, %arg1: i32) -> (i32, i32, i32) {
    %c0_i32 = arith.constant 0 : i32
    %c0_i32_0 = arith.constant 0 : i32
    return %arg0, %arg1, %c0_i32 : i32, i32, i32
  }
  func.func @transform_1(%arg0: i32, %arg1: i32) -> (i32, i32, i32) {
    %c0_i32 = arith.constant 0 : i32
    %c0_i32_0 = arith.constant 0 : i32
    %c0_i32_1 = arith.constant 0 : i32
    return %arg0, %c0_i32, %c0_i32_0 : i32, i32, i32
  }
  func.func @transform_2(%arg0: i32, %arg1: i32) -> (i32, i32, i32) {
    %c0_i32 = arith.constant 0 : i32
    %c0_i32_0 = arith.constant 0 : i32
    return %arg0, %arg1, %c0_i32 : i32, i32, i32
  }
  func.func @transform_3(%arg0: i32, %arg1: i32) -> (i32, i32) {
    %c0_i32 = arith.constant 0 : i32
    %c0_i32_0 = arith.constant 0 : i32
    %c0_i32_1 = arith.constant 0 : i32
    return %c0_i32, %c0_i32_0 : i32, i32
  }
  func.func @transform_4(%arg0: i32, %arg1: i32) -> (i32, i32) {
    %c0_i32 = arith.constant 0 : i32
    %c0_i32_0 = arith.constant 0 : i32
    %c0_i32_1 = arith.constant 0 : i32
    return %c0_i32, %c0_i32_0 : i32, i32
  }
  func.func @transform_5(%arg0: i32, %arg1: i32) -> (i32, i32, i32) {
    %c0_i32 = arith.constant 0 : i32
    %c0_i32_0 = arith.constant 0 : i32
    %c0_i32_1 = arith.constant 0 : i32
    %c0_i32_2 = arith.constant 0 : i32
    return %c0_i32, %c0_i32_0, %c0_i32_1 : i32, i32, i32
  }
  func.func @transform_6(%arg0: i32, %arg1: i32) -> (i32, i32, i32) {
    %c0_i32 = arith.constant 0 : i32
    %c0_i32_0 = arith.constant 0 : i32
    %c0_i32_1 = arith.constant 0 : i32
    %c0_i32_2 = arith.constant 0 : i32
    return %c0_i32, %c0_i32_0, %c0_i32_1 : i32, i32, i32
  }
  func.func @transform_7(%arg0: i32, %arg1: i32) -> (i32, i32, i32) {
    %c0_i32 = arith.constant 0 : i32
    %c0_i32_0 = arith.constant 0 : i32
    %c0_i32_1 = arith.constant 0 : i32
    %c0_i32_2 = arith.constant 0 : i32
    return %c0_i32, %c0_i32_0, %c0_i32_1 : i32, i32, i32
  }
  func.func @transform_8(%arg0: i32, %arg1: i32) -> (i32, i32, i32) {
    %c0_i32 = arith.constant 0 : i32
    %c0_i32_0 = arith.constant 0 : i32
    %c0_i32_1 = arith.constant 0 : i32
    %c0_i32_2 = arith.constant 0 : i32
    return %c0_i32, %c0_i32_0, %c0_i32_1 : i32, i32, i32
  }
  func.func @transform_9(%arg0: i32, %arg1: i32) -> (i32, i32, i32) {
    %c0_i32 = arith.constant 0 : i32
    %c0_i32_0 = arith.constant 0 : i32
    %c0_i32_1 = arith.constant 0 : i32
    %c0_i32_2 = arith.constant 0 : i32
    return %c0_i32, %c0_i32_0, %c0_i32_1 : i32, i32, i32
  }
  func.func @transform_10(%arg0: i32, %arg1: i32) -> (i32, i32) {
    %c0_i32 = arith.constant 0 : i32
    %c0_i32_0 = arith.constant 0 : i32
    %c0_i32_1 = arith.constant 0 : i32
    return %c0_i32, %c0_i32_0 : i32, i32
  }
  func.func @transform_11(%arg0: i32, %arg1: i32) -> (i32, i32) {
    %c0_i32 = arith.constant 0 : i32
    %c0_i32_0 = arith.constant 0 : i32
    %c0_i32_1 = arith.constant 0 : i32
    return %c0_i32, %c0_i32_0 : i32, i32
  }
  func.func @transform_12(%arg0: i32, %arg1: i32) -> (i32, i32) {
    %c0_i32 = arith.constant 0 : i32
    %c0_i32_0 = arith.constant 0 : i32
    %c0_i32_1 = arith.constant 0 : i32
    return %c0_i32, %c0_i32_0 : i32, i32
  }
  func.func @transform_13(%arg0: i32, %arg1: i32) -> (i32, i32) {
    %c0_i32 = arith.constant 0 : i32
    %c0_i32_0 = arith.constant 0 : i32
    %c0_i32_1 = arith.constant 0 : i32
    return %c0_i32, %c0_i32_0 : i32, i32
  }
  func.func @transform_14(%arg0: i32, %arg1: i32) -> (i32, i32) {
    %c0_i32 = arith.constant 0 : i32
    %c0_i32_0 = arith.constant 0 : i32
    %c0_i32_1 = arith.constant 0 : i32
    return %c0_i32, %c0_i32_0 : i32, i32
  }
  func.func @transform_15(%arg0: i32, %arg1: i32) -> (i32, i32, i32) {
    %c0_i32 = arith.constant 0 : i32
    %c0_i32_0 = arith.constant 0 : i32
    %c0_i32_1 = arith.constant 0 : i32
    %c0_i32_2 = arith.constant 0 : i32
    return %c0_i32, %c0_i32_0, %c0_i32_1 : i32, i32, i32
  }
  func.func @transform_16(%arg0: i32, %arg1: i32) -> (i32, i32, i32) {
    %c0_i32 = arith.constant 0 : i32
    %c0_i32_0 = arith.constant 0 : i32
    %c0_i32_1 = arith.constant 0 : i32
    %c0_i32_2 = arith.constant 0 : i32
    return %c0_i32, %c0_i32_0, %c0_i32_1 : i32, i32, i32
  }
  func.func @transform_17(%arg0: i32, %arg1: i32) -> (i32, i32, i32) {
    %c0_i32 = arith.constant 0 : i32
    %c0_i32_0 = arith.constant 0 : i32
    %c0_i32_1 = arith.constant 0 : i32
    %c0_i32_2 = arith.constant 0 : i32
    return %c0_i32, %c0_i32_0, %c0_i32_1 : i32, i32, i32
  }
  func.func @transform_18(%arg0: i32, %arg1: i32) -> (i32, i32) {
    %c0_i32 = arith.constant 0 : i32
    %c0_i32_0 = arith.constant 0 : i32
    %c0_i32_1 = arith.constant 0 : i32
    return %c0_i32, %c0_i32_0 : i32, i32
  }
  func.func @transform_19(%arg0: i32, %arg1: i32) -> (i32, i32, i32) {
    %c0_i32 = arith.constant 0 : i32
    %c0_i32_0 = arith.constant 0 : i32
    return %arg0, %arg1, %c0_i32 : i32, i32, i32
  }
}

module attributes {stable_mosaic.version = 11 : i64} {
  func.func @_encoder_block_kernel(%arg0: i32, %arg1: i32, %arg2: memref<1x32x32xf32, #tpu.memory_space<vmem>>, %arg3: memref<1x64x32xbf16, #tpu.memory_space<vmem>>, %arg4: memref<1x32x64xi8, #tpu.memory_space<vmem>>, %arg5: memref<32x32xbf16, #tpu.memory_space<vmem>>, %arg6: memref<1x32xf32, #tpu.memory_space<vmem>>, %arg7: memref<4x32x8xbf16, #tpu.memory_space<vmem>>, %arg8: memref<4x1x8xf32, #tpu.memory_space<vmem>>, %arg9: memref<4x32x8xbf16, #tpu.memory_space<vmem>>, %arg10: memref<4x1x8xf32, #tpu.memory_space<vmem>>, %arg11: memref<4x8x32xbf16, #tpu.memory_space<vmem>>, %arg12: memref<1x32xf32, #tpu.memory_space<vmem>>, %arg13: memref<1x32xf32, #tpu.memory_space<vmem>>, %arg14: memref<1x32xf32, #tpu.memory_space<vmem>>, %arg15: memref<1x32xf32, #tpu.memory_space<vmem>>, %arg16: memref<1x32xf32, #tpu.memory_space<vmem>>, %arg17: memref<1x32x64xbf16, #tpu.memory_space<vmem>>, %arg18: memref<1x1x64xf32, #tpu.memory_space<vmem>>, %arg19: memref<1x64x32xbf16, #tpu.memory_space<vmem>>, %arg20: memref<1x32xf32, #tpu.memory_space<vmem>>, %arg21: memref<1x32x32xf32, #tpu.memory_space<vmem>>, %arg22: memref<4x64x8xbf16, #tpu.memory_space<vmem>>, %arg23: memref<4x64x8xbf16, #tpu.memory_space<vmem>>) attributes {dimension_semantics = [#tpu.dimension_semantics<parallel>, #tpu.dimension_semantics<arbitrary>], iteration_bounds = array<i64: 2, 2>, scalar_prefetch = 0 : i64, scratch_operands = 2 : i64, tpu.core_type = #tpu.core_type<tc>, window_params = [{transform_indices = @transform_0, window_bounds = array<i64: 1, 32, 32>}, {transform_indices = @transform_1, window_bounds = array<i64: 1, 64, 32>}, {transform_indices = @transform_2, window_bounds = array<i64: 1, 32, 64>}, {pipeline_mode = #tpu.pipeline_mode<synchronous>, transform_indices = @transform_3, window_bounds = array<i64: 32, 32>}, {pipeline_mode = #tpu.pipeline_mode<synchronous>, transform_indices = @transform_4, window_bounds = array<i64: 1, 32>}, {pipeline_mode = #tpu.pipeline_mode<synchronous>, transform_indices = @transform_5, window_bounds = array<i64: 4, 32, 8>}, {pipeline_mode = #tpu.pipeline_mode<synchronous>, transform_indices = @transform_6, window_bounds = array<i64: 4, 1, 8>}, {pipeline_mode = #tpu.pipeline_mode<synchronous>, transform_indices = @transform_7, window_bounds = array<i64: 4, 32, 8>}, {pipeline_mode = #tpu.pipeline_mode<synchronous>, transform_indices = @transform_8, window_bounds = array<i64: 4, 1, 8>}, {pipeline_mode = #tpu.pipeline_mode<synchronous>, transform_indices = @transform_9, window_bounds = array<i64: 4, 8, 32>}, {pipeline_mode = #tpu.pipeline_mode<synchronous>, transform_indices = @transform_10, window_bounds = array<i64: 1, 32>}, {pipeline_mode = #tpu.pipeline_mode<synchronous>, transform_indices = @transform_11, window_bounds = array<i64: 1, 32>}, {pipeline_mode = #tpu.pipeline_mode<synchronous>, transform_indices = @transform_12, window_bounds = array<i64: 1, 32>}, {pipeline_mode = #tpu.pipeline_mode<synchronous>, transform_indices = @transform_13, window_bounds = array<i64: 1, 32>}, {pipeline_mode = #tpu.pipeline_mode<synchronous>, transform_indices = @transform_14, window_bounds = array<i64: 1, 32>}, {pipeline_mode = #tpu.pipeline_mode<synchronous>, transform_indices = @transform_15, window_bounds = array<i64: 1, 32, 64>}, {pipeline_mode = #tpu.pipeline_mode<synchronous>, transform_indices = @transform_16, window_bounds = array<i64: 1, 1, 64>}, {pipeline_mode = #tpu.pipeline_mode<synchronous>, transform_indices = @transform_17, window_bounds = array<i64: 1, 64, 32>}, {pipeline_mode = #tpu.pipeline_mode<synchronous>, transform_indices = @transform_18, window_bounds = array<i64: 1, 32>}, {transform_indices = @transform_19, window_bounds = array<i64: 1, 32, 32>}]} {
    %c0_i32 = arith.constant 0 : i32
    %0 = arith.cmpi eq, %arg1, %c0_i32 : i32
    %1 = arith.extui %0 : i1 to i32
    %c0_i32_0 = arith.constant 0 : i32
    %2 = arith.cmpi ne, %1, %c0_i32_0 : i32
    scf.if %2 {
      %c0_107 = arith.constant 0 : index
      %c0_108 = arith.constant 0 : index
      %c0_109 = arith.constant 0 : index
      %208 = vector.load %arg3[%c0_107, %c0_108, %c0_109] : memref<1x64x32xbf16, #tpu.memory_space<vmem>>, vector<1x64x32xbf16>
      %209 = vector.shape_cast %208 : vector<1x64x32xbf16> to vector<64x32xbf16>
      %c0_110 = arith.constant 0 : index
      %c0_111 = arith.constant 0 : index
      %c0_112 = arith.constant 0 : index
      %210 = vector.load %arg7[%c0_110, %c0_111, %c0_112] : memref<4x32x8xbf16, #tpu.memory_space<vmem>>, vector<1x32x8xbf16>
      %211 = vector.shape_cast %210 : vector<1x32x8xbf16> to vector<32x8xbf16>
      %cst_113 = arith.constant dense<0.000000e+00> : vector<64x8xf32>
      %212 = tpu.matmul %209, %211, %cst_113 {dimension_numbers = #tpu.dot_dimension_numbers<[1], [0], [0], [1], [0, 0, 1, 1], [], []>} : vector<64x32xbf16>, vector<32x8xbf16>, vector<64x8xf32> -> vector<64x8xf32>
      %c0_114 = arith.constant 0 : index
      %c0_115 = arith.constant 0 : index
      %c0_116 = arith.constant 0 : index
      %213 = vector.load %arg8[%c0_114, %c0_115, %c0_116] : memref<4x1x8xf32, #tpu.memory_space<vmem>>, vector<1x1x8xf32>
      %214 = vector.shape_cast %213 : vector<1x1x8xf32> to vector<1x8xf32>
      %215 = vector.broadcast %214 : vector<1x8xf32> to vector<64x8xf32>
      %216 = arith.addf %212, %215 : vector<64x8xf32>
      %c0_117 = arith.constant 0 : index
      %c0_118 = arith.constant 0 : index
      %c0_119 = arith.constant 0 : index
      %217 = vector.load %arg9[%c0_117, %c0_118, %c0_119] : memref<4x32x8xbf16, #tpu.memory_space<vmem>>, vector<1x32x8xbf16>
      %218 = vector.shape_cast %217 : vector<1x32x8xbf16> to vector<32x8xbf16>
      %cst_120 = arith.constant dense<0.000000e+00> : vector<64x8xf32>
      %219 = tpu.matmul %209, %218, %cst_120 {dimension_numbers = #tpu.dot_dimension_numbers<[1], [0], [0], [1], [0, 0, 1, 1], [], []>} : vector<64x32xbf16>, vector<32x8xbf16>, vector<64x8xf32> -> vector<64x8xf32>
      %c0_121 = arith.constant 0 : index
      %c0_122 = arith.constant 0 : index
      %c0_123 = arith.constant 0 : index
      %220 = vector.load %arg10[%c0_121, %c0_122, %c0_123] : memref<4x1x8xf32, #tpu.memory_space<vmem>>, vector<1x1x8xf32>
      %221 = vector.shape_cast %220 : vector<1x1x8xf32> to vector<1x8xf32>
      %222 = vector.broadcast %221 : vector<1x8xf32> to vector<64x8xf32>
      %223 = arith.addf %219, %222 : vector<64x8xf32>
      %224 = arith.truncf %216 : vector<64x8xf32> to vector<64x8xbf16>
      %c0_124 = arith.constant 0 : index
      %c0_125 = arith.constant 0 : index
      %c0_126 = arith.constant 0 : index
      %225 = vector.load %arg22[%c0_124, %c0_125, %c0_126] : memref<4x64x8xbf16, #tpu.memory_space<vmem>>, vector<1x64x8xbf16>
      %226 = vector.shape_cast %225 : vector<1x64x8xbf16> to vector<64x8xbf16>
      %227 = vector.shape_cast %224 : vector<64x8xbf16> to vector<1x64x8xbf16>
      tpu.vector_store %arg22[%c0_124, %c0_125, %c0_126], %227 {strides = array<i32>} : memref<4x64x8xbf16, #tpu.memory_space<vmem>>, vector<1x64x8xbf16>,
      %228 = arith.truncf %223 : vector<64x8xf32> to vector<64x8xbf16>
      %c0_127 = arith.constant 0 : index
      %c0_128 = arith.constant 0 : index
      %c0_129 = arith.constant 0 : index
      %229 = vector.load %arg23[%c0_127, %c0_128, %c0_129] : memref<4x64x8xbf16, #tpu.memory_space<vmem>>, vector<1x64x8xbf16>
      %230 = vector.shape_cast %229 : vector<1x64x8xbf16> to vector<64x8xbf16>
      %231 = vector.shape_cast %228 : vector<64x8xbf16> to vector<1x64x8xbf16>
      tpu.vector_store %arg23[%c0_127, %c0_128, %c0_129], %231 {strides = array<i32>} : memref<4x64x8xbf16, #tpu.memory_space<vmem>>, vector<1x64x8xbf16>,
      %c1_130 = arith.constant 1 : index
      %c0_131 = arith.constant 0 : index
      %c0_132 = arith.constant 0 : index
      %232 = vector.load %arg7[%c1_130, %c0_131, %c0_132] : memref<4x32x8xbf16, #tpu.memory_space<vmem>>, vector<1x32x8xbf16>
      %233 = vector.shape_cast %232 : vector<1x32x8xbf16> to vector<32x8xbf16>
      %cst_133 = arith.constant dense<0.000000e+00> : vector<64x8xf32>
      %234 = tpu.matmul %209, %233, %cst_133 {dimension_numbers = #tpu.dot_dimension_numbers<[1], [0], [0], [1], [0, 0, 1, 1], [], []>} : vector<64x32xbf16>, vector<32x8xbf16>, vector<64x8xf32> -> vector<64x8xf32>
      %c1_134 = arith.constant 1 : index
      %c0_135 = arith.constant 0 : index
      %c0_136 = arith.constant 0 : index
      %235 = vector.load %arg8[%c1_134, %c0_135, %c0_136] : memref<4x1x8xf32, #tpu.memory_space<vmem>>, vector<1x1x8xf32>
      %236 = vector.shape_cast %235 : vector<1x1x8xf32> to vector<1x8xf32>
      %237 = vector.broadcast %236 : vector<1x8xf32> to vector<64x8xf32>
      %238 = arith.addf %234, %237 : vector<64x8xf32>
      %c1_137 = arith.constant 1 : index
      %c0_138 = arith.constant 0 : index
      %c0_139 = arith.constant 0 : index
      %239 = vector.load %arg9[%c1_137, %c0_138, %c0_139] : memref<4x32x8xbf16, #tpu.memory_space<vmem>>, vector<1x32x8xbf16>
      %240 = vector.shape_cast %239 : vector<1x32x8xbf16> to vector<32x8xbf16>
      %cst_140 = arith.constant dense<0.000000e+00> : vector<64x8xf32>
      %241 = tpu.matmul %209, %240, %cst_140 {dimension_numbers = #tpu.dot_dimension_numbers<[1], [0], [0], [1], [0, 0, 1, 1], [], []>} : vector<64x32xbf16>, vector<32x8xbf16>, vector<64x8xf32> -> vector<64x8xf32>
      %c1_141 = arith.constant 1 : index
      %c0_142 = arith.constant 0 : index
      %c0_143 = arith.constant 0 : index
      %242 = vector.load %arg10[%c1_141, %c0_142, %c0_143] : memref<4x1x8xf32, #tpu.memory_space<vmem>>, vector<1x1x8xf32>
      %243 = vector.shape_cast %242 : vector<1x1x8xf32> to vector<1x8xf32>
      %244 = vector.broadcast %243 : vector<1x8xf32> to vector<64x8xf32>
      %245 = arith.addf %241, %244 : vector<64x8xf32>
      %246 = arith.truncf %238 : vector<64x8xf32> to vector<64x8xbf16>
      %c1_144 = arith.constant 1 : index
      %c0_145 = arith.constant 0 : index
      %c0_146 = arith.constant 0 : index
      %247 = vector.load %arg22[%c1_144, %c0_145, %c0_146] : memref<4x64x8xbf16, #tpu.memory_space<vmem>>, vector<1x64x8xbf16>
      %248 = vector.shape_cast %247 : vector<1x64x8xbf16> to vector<64x8xbf16>
      %249 = vector.shape_cast %246 : vector<64x8xbf16> to vector<1x64x8xbf16>
      tpu.vector_store %arg22[%c1_144, %c0_145, %c0_146], %249 {strides = array<i32>} : memref<4x64x8xbf16, #tpu.memory_space<vmem>>, vector<1x64x8xbf16>,
      %250 = arith.truncf %245 : vector<64x8xf32> to vector<64x8xbf16>
      %c1_147 = arith.constant 1 : index
      %c0_148 = arith.constant 0 : index
      %c0_149 = arith.constant 0 : index
      %251 = vector.load %arg23[%c1_147, %c0_148, %c0_149] : memref<4x64x8xbf16, #tpu.memory_space<vmem>>, vector<1x64x8xbf16>
      %252 = vector.shape_cast %251 : vector<1x64x8xbf16> to vector<64x8xbf16>
      %253 = vector.shape_cast %250 : vector<64x8xbf16> to vector<1x64x8xbf16>
      tpu.vector_store %arg23[%c1_147, %c0_148, %c0_149], %253 {strides = array<i32>} : memref<4x64x8xbf16, #tpu.memory_space<vmem>>, vector<1x64x8xbf16>,
      %c2_150 = arith.constant 2 : index
      %c0_151 = arith.constant 0 : index
      %c0_152 = arith.constant 0 : index
      %254 = vector.load %arg7[%c2_150, %c0_151, %c0_152] : memref<4x32x8xbf16, #tpu.memory_space<vmem>>, vector<1x32x8xbf16>
      %255 = vector.shape_cast %254 : vector<1x32x8xbf16> to vector<32x8xbf16>
      %cst_153 = arith.constant dense<0.000000e+00> : vector<64x8xf32>
      %256 = tpu.matmul %209, %255, %cst_153 {dimension_numbers = #tpu.dot_dimension_numbers<[1], [0], [0], [1], [0, 0, 1, 1], [], []>} : vector<64x32xbf16>, vector<32x8xbf16>, vector<64x8xf32> -> vector<64x8xf32>
      %c2_154 = arith.constant 2 : index
      %c0_155 = arith.constant 0 : index
      %c0_156 = arith.constant 0 : index
      %257 = vector.load %arg8[%c2_154, %c0_155, %c0_156] : memref<4x1x8xf32, #tpu.memory_space<vmem>>, vector<1x1x8xf32>
      %258 = vector.shape_cast %257 : vector<1x1x8xf32> to vector<1x8xf32>
      %259 = vector.broadcast %258 : vector<1x8xf32> to vector<64x8xf32>
      %260 = arith.addf %256, %259 : vector<64x8xf32>
      %c2_157 = arith.constant 2 : index
      %c0_158 = arith.constant 0 : index
      %c0_159 = arith.constant 0 : index
      %261 = vector.load %arg9[%c2_157, %c0_158, %c0_159] : memref<4x32x8xbf16, #tpu.memory_space<vmem>>, vector<1x32x8xbf16>
      %262 = vector.shape_cast %261 : vector<1x32x8xbf16> to vector<32x8xbf16>
      %cst_160 = arith.constant dense<0.000000e+00> : vector<64x8xf32>
      %263 = tpu.matmul %209, %262, %cst_160 {dimension_numbers = #tpu.dot_dimension_numbers<[1], [0], [0], [1], [0, 0, 1, 1], [], []>} : vector<64x32xbf16>, vector<32x8xbf16>, vector<64x8xf32> -> vector<64x8xf32>
      %c2_161 = arith.constant 2 : index
      %c0_162 = arith.constant 0 : index
      %c0_163 = arith.constant 0 : index
      %264 = vector.load %arg10[%c2_161, %c0_162, %c0_163] : memref<4x1x8xf32, #tpu.memory_space<vmem>>, vector<1x1x8xf32>
      %265 = vector.shape_cast %264 : vector<1x1x8xf32> to vector<1x8xf32>
      %266 = vector.broadcast %265 : vector<1x8xf32> to vector<64x8xf32>
      %267 = arith.addf %263, %266 : vector<64x8xf32>
      %268 = arith.truncf %260 : vector<64x8xf32> to vector<64x8xbf16>
      %c2_164 = arith.constant 2 : index
      %c0_165 = arith.constant 0 : index
      %c0_166 = arith.constant 0 : index
      %269 = vector.load %arg22[%c2_164, %c0_165, %c0_166] : memref<4x64x8xbf16, #tpu.memory_space<vmem>>, vector<1x64x8xbf16>
      %270 = vector.shape_cast %269 : vector<1x64x8xbf16> to vector<64x8xbf16>
      %271 = vector.shape_cast %268 : vector<64x8xbf16> to vector<1x64x8xbf16>
      tpu.vector_store %arg22[%c2_164, %c0_165, %c0_166], %271 {strides = array<i32>} : memref<4x64x8xbf16, #tpu.memory_space<vmem>>, vector<1x64x8xbf16>,
      %272 = arith.truncf %267 : vector<64x8xf32> to vector<64x8xbf16>
      %c2_167 = arith.constant 2 : index
      %c0_168 = arith.constant 0 : index
      %c0_169 = arith.constant 0 : index
      %273 = vector.load %arg23[%c2_167, %c0_168, %c0_169] : memref<4x64x8xbf16, #tpu.memory_space<vmem>>, vector<1x64x8xbf16>
      %274 = vector.shape_cast %273 : vector<1x64x8xbf16> to vector<64x8xbf16>
      %275 = vector.shape_cast %272 : vector<64x8xbf16> to vector<1x64x8xbf16>
      tpu.vector_store %arg23[%c2_167, %c0_168, %c0_169], %275 {strides = array<i32>} : memref<4x64x8xbf16, #tpu.memory_space<vmem>>, vector<1x64x8xbf16>,
      %c3_170 = arith.constant 3 : index
      %c0_171 = arith.constant 0 : index
      %c0_172 = arith.constant 0 : index
      %276 = vector.load %arg7[%c3_170, %c0_171, %c0_172] : memref<4x32x8xbf16, #tpu.memory_space<vmem>>, vector<1x32x8xbf16>
      %277 = vector.shape_cast %276 : vector<1x32x8xbf16> to vector<32x8xbf16>
      %cst_173 = arith.constant dense<0.000000e+00> : vector<64x8xf32>
      %278 = tpu.matmul %209, %277, %cst_173 {dimension_numbers = #tpu.dot_dimension_numbers<[1], [0], [0], [1], [0, 0, 1, 1], [], []>} : vector<64x32xbf16>, vector<32x8xbf16>, vector<64x8xf32> -> vector<64x8xf32>
      %c3_174 = arith.constant 3 : index
      %c0_175 = arith.constant 0 : index
      %c0_176 = arith.constant 0 : index
      %279 = vector.load %arg8[%c3_174, %c0_175, %c0_176] : memref<4x1x8xf32, #tpu.memory_space<vmem>>, vector<1x1x8xf32>
      %280 = vector.shape_cast %279 : vector<1x1x8xf32> to vector<1x8xf32>
      %281 = vector.broadcast %280 : vector<1x8xf32> to vector<64x8xf32>
      %282 = arith.addf %278, %281 : vector<64x8xf32>
      %c3_177 = arith.constant 3 : index
      %c0_178 = arith.constant 0 : index
      %c0_179 = arith.constant 0 : index
      %283 = vector.load %arg9[%c3_177, %c0_178, %c0_179] : memref<4x32x8xbf16, #tpu.memory_space<vmem>>, vector<1x32x8xbf16>
      %284 = vector.shape_cast %283 : vector<1x32x8xbf16> to vector<32x8xbf16>
      %cst_180 = arith.constant dense<0.000000e+00> : vector<64x8xf32>
      %285 = tpu.matmul %209, %284, %cst_180 {dimension_numbers = #tpu.dot_dimension_numbers<[1], [0], [0], [1], [0, 0, 1, 1], [], []>} : vector<64x32xbf16>, vector<32x8xbf16>, vector<64x8xf32> -> vector<64x8xf32>
      %c3_181 = arith.constant 3 : index
      %c0_182 = arith.constant 0 : index
      %c0_183 = arith.constant 0 : index
      %286 = vector.load %arg10[%c3_181, %c0_182, %c0_183] : memref<4x1x8xf32, #tpu.memory_space<vmem>>, vector<1x1x8xf32>
      %287 = vector.shape_cast %286 : vector<1x1x8xf32> to vector<1x8xf32>
      %288 = vector.broadcast %287 : vector<1x8xf32> to vector<64x8xf32>
      %289 = arith.addf %285, %288 : vector<64x8xf32>
      %290 = arith.truncf %282 : vector<64x8xf32> to vector<64x8xbf16>
      %c3_184 = arith.constant 3 : index
      %c0_185 = arith.constant 0 : index
      %c0_186 = arith.constant 0 : index
      %291 = vector.load %arg22[%c3_184, %c0_185, %c0_186] : memref<4x64x8xbf16, #tpu.memory_space<vmem>>, vector<1x64x8xbf16>
      %292 = vector.shape_cast %291 : vector<1x64x8xbf16> to vector<64x8xbf16>
      %293 = vector.shape_cast %290 : vector<64x8xbf16> to vector<1x64x8xbf16>
      tpu.vector_store %arg22[%c3_184, %c0_185, %c0_186], %293 {strides = array<i32>} : memref<4x64x8xbf16, #tpu.memory_space<vmem>>, vector<1x64x8xbf16>,
      %294 = arith.truncf %289 : vector<64x8xf32> to vector<64x8xbf16>
      %c3_187 = arith.constant 3 : index
      %c0_188 = arith.constant 0 : index
      %c0_189 = arith.constant 0 : index
      %295 = vector.load %arg23[%c3_187, %c0_188, %c0_189] : memref<4x64x8xbf16, #tpu.memory_space<vmem>>, vector<1x64x8xbf16>
      %296 = vector.shape_cast %295 : vector<1x64x8xbf16> to vector<64x8xbf16>
      %297 = vector.shape_cast %294 : vector<64x8xbf16> to vector<1x64x8xbf16>
      tpu.vector_store %arg23[%c3_187, %c0_188, %c0_189], %297 {strides = array<i32>} : memref<4x64x8xbf16, #tpu.memory_space<vmem>>, vector<1x64x8xbf16>,
    } else {
    }
    %c0 = arith.constant 0 : index
    %c0_1 = arith.constant 0 : index
    %c0_2 = arith.constant 0 : index
    %3 = vector.load %arg2[%c0, %c0_1, %c0_2] : memref<1x32x32xf32, #tpu.memory_space<vmem>>, vector<1x32x32xf32>
    %4 = vector.shape_cast %3 : vector<1x32x32xf32> to vector<32x32xf32>
    %5 = arith.truncf %4 : vector<32x32xf32> to vector<32x32xbf16>
    %c0_3 = arith.constant 0 : index
    %c0_4 = arith.constant 0 : index
    %c0_5 = arith.constant 0 : index
    %6 = vector.load %arg4[%c0_3, %c0_4, %c0_5] : memref<1x32x64xi8, #tpu.memory_space<vmem>>, vector<1x32x64xi8>
    %7 = vector.shape_cast %6 : vector<1x32x64xi8> to vector<32x64xi8>
    %c0_i8 = arith.constant 0 : i8
    %8 = vector.broadcast %c0_i8 : i8 to vector<32x64xi8>
    %9 = arith.cmpi ne, %7, %8 : vector<32x64xi8>
    %c0_6 = arith.constant 0 : index
    %c0_7 = arith.constant 0 : index
    %10 = vector.load %arg5[%c0_6, %c0_7] : memref<32x32xbf16, #tpu.memory_space<vmem>>, vector<32x32xbf16>
    %cst = arith.constant dense<0.000000e+00> : vector<32x32xf32>
    %11 = tpu.matmul %5, %10, %cst {dimension_numbers = #tpu.dot_dimension_numbers<[1], [0], [0], [1], [0, 0, 1, 1], [], []>} : vector<32x32xbf16>, vector<32x32xbf16>, vector<32x32xf32> -> vector<32x32xf32>
    %c0_8 = arith.constant 0 : index
    %c0_9 = arith.constant 0 : index
    %12 = vector.load %arg6[%c0_8, %c0_9] : memref<1x32xf32, #tpu.memory_space<vmem>>, vector<1x32xf32>
    %13 = vector.shape_cast %12 : vector<1x32xf32> to vector<32xf32>
    %14 = vector.shape_cast %13 : vector<32xf32> to vector<1x32xf32>
    %15 = vector.broadcast %14 : vector<1x32xf32> to vector<32x32xf32>
    %16 = arith.addf %11, %15 : vector<32x32xf32>
    %cst_10 = arith.constant 0.353553385 : f32
    %17 = vector.broadcast %cst_10 : f32 to vector<32x32xf32>
    %18 = arith.mulf %16, %17 : vector<32x32xf32>
    %19 = arith.truncf %18 : vector<32x32xf32> to vector<32x32xbf16>
    %cst_11 = arith.constant 0.000000e+00 : f32
    %20 = vector.broadcast %cst_11 : f32 to vector<32x32xf32>
    %21 = vector.extract_strided_slice %19 {offsets = [0, 0], sizes = [32, 8], strides = [1, 1]} : vector<32x32xbf16> to vector<32x8xbf16>
    %c0_12 = arith.constant 0 : index
    %c0_13 = arith.constant 0 : index
    %c0_14 = arith.constant 0 : index
    %22 = vector.load %arg22[%c0_12, %c0_13, %c0_14] : memref<4x64x8xbf16, #tpu.memory_space<vmem>>, vector<1x64x8xbf16>
    %23 = vector.shape_cast %22 : vector<1x64x8xbf16> to vector<64x8xbf16>
    %c0_15 = arith.constant 0 : index
    %c0_16 = arith.constant 0 : index
    %c0_17 = arith.constant 0 : index
    %24 = vector.load %arg23[%c0_15, %c0_16, %c0_17] : memref<4x64x8xbf16, #tpu.memory_space<vmem>>, vector<1x64x8xbf16>
    %25 = vector.shape_cast %24 : vector<1x64x8xbf16> to vector<64x8xbf16>
    %cst_18 = arith.constant dense<0.000000e+00> : vector<32x64xf32>
    %26 = tpu.matmul %21, %23, %cst_18 {dimension_numbers = #tpu.dot_dimension_numbers<[1], [1], [0], [0], [0, 0, 1, 0], [], []>} : vector<32x8xbf16>, vector<64x8xbf16>, vector<32x64xf32> -> vector<32x64xf32>
    %cst_19 = arith.constant -1.000000e+09 : f32
    %27 = vector.broadcast %cst_19 : f32 to vector<32x64xf32>
    %28 = arith.select %9, %26, %27 : vector<32x64xi1>, vector<32x64xf32>
    %cst_20 = arith.constant dense<0xFF800000> : vector<32xf32>
    %29 = vector.multi_reduction <maximumf>, %28, %cst_20 [1] : vector<32x64xf32> to vector<32xf32>
    %30 = vector.shape_cast %29 : vector<32xf32> to vector<32x1xf32>
    %31 = vector.broadcast %30 : vector<32x1xf32> to vector<32x64xf32>
    %32 = arith.subf %28, %31 : vector<32x64xf32>
    %33 = math.exp %32 : vector<32x64xf32>
    %cst_21 = arith.constant dense<0.000000e+00> : vector<32xf32>
    %34 = vector.multi_reduction <add>, %33, %cst_21 [1] : vector<32x64xf32> to vector<32xf32>
    %35 = vector.shape_cast %34 : vector<32xf32> to vector<32x1xf32>
    %36 = tpu.reciprocal %35 {approx = true} : vector<32x1xf32> -> vector<32x1xf32>
    %37 = vector.broadcast %36 : vector<32x1xf32> to vector<32x64xf32>
    %38 = arith.mulf %33, %37 : vector<32x64xf32>
    %39 = arith.truncf %38 : vector<32x64xf32> to vector<32x64xbf16>
    %cst_22 = arith.constant dense<0.000000e+00> : vector<32x8xf32>
    %40 = tpu.matmul %39, %25, %cst_22 {dimension_numbers = #tpu.dot_dimension_numbers<[1], [0], [0], [1], [0, 0, 1, 1], [], []>} : vector<32x64xbf16>, vector<64x8xbf16>, vector<32x8xf32> -> vector<32x8xf32>
    %41 = arith.truncf %40 : vector<32x8xf32> to vector<32x8xbf16>
    %c0_23 = arith.constant 0 : index
    %c0_24 = arith.constant 0 : index
    %c0_25 = arith.constant 0 : index
    %42 = vector.load %arg11[%c0_23, %c0_24, %c0_25] : memref<4x8x32xbf16, #tpu.memory_space<vmem>>, vector<1x8x32xbf16>
    %43 = vector.shape_cast %42 : vector<1x8x32xbf16> to vector<8x32xbf16>
    %cst_26 = arith.constant dense<0.000000e+00> : vector<32x32xf32>
    %44 = tpu.matmul %41, %43, %cst_26 {dimension_numbers = #tpu.dot_dimension_numbers<[1], [0], [0], [1], [0, 0, 1, 1], [], []>} : vector<32x8xbf16>, vector<8x32xbf16>, vector<32x32xf32> -> vector<32x32xf32>
    %45 = arith.addf %20, %44 : vector<32x32xf32>
    %46 = vector.extract_strided_slice %19 {offsets = [0, 8], sizes = [32, 8], strides = [1, 1]} : vector<32x32xbf16> to vector<32x8xbf16>
    %c1 = arith.constant 1 : index
    %c0_27 = arith.constant 0 : index
    %c0_28 = arith.constant 0 : index
    %47 = vector.load %arg22[%c1, %c0_27, %c0_28] : memref<4x64x8xbf16, #tpu.memory_space<vmem>>, vector<1x64x8xbf16>
    %48 = vector.shape_cast %47 : vector<1x64x8xbf16> to vector<64x8xbf16>
    %c1_29 = arith.constant 1 : index
    %c0_30 = arith.constant 0 : index
    %c0_31 = arith.constant 0 : index
    %49 = vector.load %arg23[%c1_29, %c0_30, %c0_31] : memref<4x64x8xbf16, #tpu.memory_space<vmem>>, vector<1x64x8xbf16>
    %50 = vector.shape_cast %49 : vector<1x64x8xbf16> to vector<64x8xbf16>
    %cst_32 = arith.constant dense<0.000000e+00> : vector<32x64xf32>
    %51 = tpu.matmul %46, %48, %cst_32 {dimension_numbers = #tpu.dot_dimension_numbers<[1], [1], [0], [0], [0, 0, 1, 0], [], []>} : vector<32x8xbf16>, vector<64x8xbf16>, vector<32x64xf32> -> vector<32x64xf32>
    %cst_33 = arith.constant -1.000000e+09 : f32
    %52 = vector.broadcast %cst_33 : f32 to vector<32x64xf32>
    %53 = arith.select %9, %51, %52 : vector<32x64xi1>, vector<32x64xf32>
    %cst_34 = arith.constant dense<0xFF800000> : vector<32xf32>
    %54 = vector.multi_reduction <maximumf>, %53, %cst_34 [1] : vector<32x64xf32> to vector<32xf32>
    %55 = vector.shape_cast %54 : vector<32xf32> to vector<32x1xf32>
    %56 = vector.broadcast %55 : vector<32x1xf32> to vector<32x64xf32>
    %57 = arith.subf %53, %56 : vector<32x64xf32>
    %58 = math.exp %57 : vector<32x64xf32>
    %cst_35 = arith.constant dense<0.000000e+00> : vector<32xf32>
    %59 = vector.multi_reduction <add>, %58, %cst_35 [1] : vector<32x64xf32> to vector<32xf32>
    %60 = vector.shape_cast %59 : vector<32xf32> to vector<32x1xf32>
    %61 = tpu.reciprocal %60 {approx = true} : vector<32x1xf32> -> vector<32x1xf32>
    %62 = vector.broadcast %61 : vector<32x1xf32> to vector<32x64xf32>
    %63 = arith.mulf %58, %62 : vector<32x64xf32>
    %64 = arith.truncf %63 : vector<32x64xf32> to vector<32x64xbf16>
    %cst_36 = arith.constant dense<0.000000e+00> : vector<32x8xf32>
    %65 = tpu.matmul %64, %50, %cst_36 {dimension_numbers = #tpu.dot_dimension_numbers<[1], [0], [0], [1], [0, 0, 1, 1], [], []>} : vector<32x64xbf16>, vector<64x8xbf16>, vector<32x8xf32> -> vector<32x8xf32>
    %66 = arith.truncf %65 : vector<32x8xf32> to vector<32x8xbf16>
    %c1_37 = arith.constant 1 : index
    %c0_38 = arith.constant 0 : index
    %c0_39 = arith.constant 0 : index
    %67 = vector.load %arg11[%c1_37, %c0_38, %c0_39] : memref<4x8x32xbf16, #tpu.memory_space<vmem>>, vector<1x8x32xbf16>
    %68 = vector.shape_cast %67 : vector<1x8x32xbf16> to vector<8x32xbf16>
    %cst_40 = arith.constant dense<0.000000e+00> : vector<32x32xf32>
    %69 = tpu.matmul %66, %68, %cst_40 {dimension_numbers = #tpu.dot_dimension_numbers<[1], [0], [0], [1], [0, 0, 1, 1], [], []>} : vector<32x8xbf16>, vector<8x32xbf16>, vector<32x32xf32> -> vector<32x32xf32>
    %70 = arith.addf %45, %69 : vector<32x32xf32>
    %71 = vector.extract_strided_slice %19 {offsets = [0, 16], sizes = [32, 8], strides = [1, 1]} : vector<32x32xbf16> to vector<32x8xbf16>
    %c2 = arith.constant 2 : index
    %c0_41 = arith.constant 0 : index
    %c0_42 = arith.constant 0 : index
    %72 = vector.load %arg22[%c2, %c0_41, %c0_42] : memref<4x64x8xbf16, #tpu.memory_space<vmem>>, vector<1x64x8xbf16>
    %73 = vector.shape_cast %72 : vector<1x64x8xbf16> to vector<64x8xbf16>
    %c2_43 = arith.constant 2 : index
    %c0_44 = arith.constant 0 : index
    %c0_45 = arith.constant 0 : index
    %74 = vector.load %arg23[%c2_43, %c0_44, %c0_45] : memref<4x64x8xbf16, #tpu.memory_space<vmem>>, vector<1x64x8xbf16>
    %75 = vector.shape_cast %74 : vector<1x64x8xbf16> to vector<64x8xbf16>
    %cst_46 = arith.constant dense<0.000000e+00> : vector<32x64xf32>
    %76 = tpu.matmul %71, %73, %cst_46 {dimension_numbers = #tpu.dot_dimension_numbers<[1], [1], [0], [0], [0, 0, 1, 0], [], []>} : vector<32x8xbf16>, vector<64x8xbf16>, vector<32x64xf32> -> vector<32x64xf32>
    %cst_47 = arith.constant -1.000000e+09 : f32
    %77 = vector.broadcast %cst_47 : f32 to vector<32x64xf32>
    %78 = arith.select %9, %76, %77 : vector<32x64xi1>, vector<32x64xf32>
    %cst_48 = arith.constant dense<0xFF800000> : vector<32xf32>
    %79 = vector.multi_reduction <maximumf>, %78, %cst_48 [1] : vector<32x64xf32> to vector<32xf32>
    %80 = vector.shape_cast %79 : vector<32xf32> to vector<32x1xf32>
    %81 = vector.broadcast %80 : vector<32x1xf32> to vector<32x64xf32>
    %82 = arith.subf %78, %81 : vector<32x64xf32>
    %83 = math.exp %82 : vector<32x64xf32>
    %cst_49 = arith.constant dense<0.000000e+00> : vector<32xf32>
    %84 = vector.multi_reduction <add>, %83, %cst_49 [1] : vector<32x64xf32> to vector<32xf32>
    %85 = vector.shape_cast %84 : vector<32xf32> to vector<32x1xf32>
    %86 = tpu.reciprocal %85 {approx = true} : vector<32x1xf32> -> vector<32x1xf32>
    %87 = vector.broadcast %86 : vector<32x1xf32> to vector<32x64xf32>
    %88 = arith.mulf %83, %87 : vector<32x64xf32>
    %89 = arith.truncf %88 : vector<32x64xf32> to vector<32x64xbf16>
    %cst_50 = arith.constant dense<0.000000e+00> : vector<32x8xf32>
    %90 = tpu.matmul %89, %75, %cst_50 {dimension_numbers = #tpu.dot_dimension_numbers<[1], [0], [0], [1], [0, 0, 1, 1], [], []>} : vector<32x64xbf16>, vector<64x8xbf16>, vector<32x8xf32> -> vector<32x8xf32>
    %91 = arith.truncf %90 : vector<32x8xf32> to vector<32x8xbf16>
    %c2_51 = arith.constant 2 : index
    %c0_52 = arith.constant 0 : index
    %c0_53 = arith.constant 0 : index
    %92 = vector.load %arg11[%c2_51, %c0_52, %c0_53] : memref<4x8x32xbf16, #tpu.memory_space<vmem>>, vector<1x8x32xbf16>
    %93 = vector.shape_cast %92 : vector<1x8x32xbf16> to vector<8x32xbf16>
    %cst_54 = arith.constant dense<0.000000e+00> : vector<32x32xf32>
    %94 = tpu.matmul %91, %93, %cst_54 {dimension_numbers = #tpu.dot_dimension_numbers<[1], [0], [0], [1], [0, 0, 1, 1], [], []>} : vector<32x8xbf16>, vector<8x32xbf16>, vector<32x32xf32> -> vector<32x32xf32>
    %95 = arith.addf %70, %94 : vector<32x32xf32>
    %96 = vector.extract_strided_slice %19 {offsets = [0, 24], sizes = [32, 8], strides = [1, 1]} : vector<32x32xbf16> to vector<32x8xbf16>
    %c3 = arith.constant 3 : index
    %c0_55 = arith.constant 0 : index
    %c0_56 = arith.constant 0 : index
    %97 = vector.load %arg22[%c3, %c0_55, %c0_56] : memref<4x64x8xbf16, #tpu.memory_space<vmem>>, vector<1x64x8xbf16>
    %98 = vector.shape_cast %97 : vector<1x64x8xbf16> to vector<64x8xbf16>
    %c3_57 = arith.constant 3 : index
    %c0_58 = arith.constant 0 : index
    %c0_59 = arith.constant 0 : index
    %99 = vector.load %arg23[%c3_57, %c0_58, %c0_59] : memref<4x64x8xbf16, #tpu.memory_space<vmem>>, vector<1x64x8xbf16>
    %100 = vector.shape_cast %99 : vector<1x64x8xbf16> to vector<64x8xbf16>
    %cst_60 = arith.constant dense<0.000000e+00> : vector<32x64xf32>
    %101 = tpu.matmul %96, %98, %cst_60 {dimension_numbers = #tpu.dot_dimension_numbers<[1], [1], [0], [0], [0, 0, 1, 0], [], []>} : vector<32x8xbf16>, vector<64x8xbf16>, vector<32x64xf32> -> vector<32x64xf32>
    %cst_61 = arith.constant -1.000000e+09 : f32
    %102 = vector.broadcast %cst_61 : f32 to vector<32x64xf32>
    %103 = arith.select %9, %101, %102 : vector<32x64xi1>, vector<32x64xf32>
    %cst_62 = arith.constant dense<0xFF800000> : vector<32xf32>
    %104 = vector.multi_reduction <maximumf>, %103, %cst_62 [1] : vector<32x64xf32> to vector<32xf32>
    %105 = vector.shape_cast %104 : vector<32xf32> to vector<32x1xf32>
    %106 = vector.broadcast %105 : vector<32x1xf32> to vector<32x64xf32>
    %107 = arith.subf %103, %106 : vector<32x64xf32>
    %108 = math.exp %107 : vector<32x64xf32>
    %cst_63 = arith.constant dense<0.000000e+00> : vector<32xf32>
    %109 = vector.multi_reduction <add>, %108, %cst_63 [1] : vector<32x64xf32> to vector<32xf32>
    %110 = vector.shape_cast %109 : vector<32xf32> to vector<32x1xf32>
    %111 = tpu.reciprocal %110 {approx = true} : vector<32x1xf32> -> vector<32x1xf32>
    %112 = vector.broadcast %111 : vector<32x1xf32> to vector<32x64xf32>
    %113 = arith.mulf %108, %112 : vector<32x64xf32>
    %114 = arith.truncf %113 : vector<32x64xf32> to vector<32x64xbf16>
    %cst_64 = arith.constant dense<0.000000e+00> : vector<32x8xf32>
    %115 = tpu.matmul %114, %100, %cst_64 {dimension_numbers = #tpu.dot_dimension_numbers<[1], [0], [0], [1], [0, 0, 1, 1], [], []>} : vector<32x64xbf16>, vector<64x8xbf16>, vector<32x8xf32> -> vector<32x8xf32>
    %116 = arith.truncf %115 : vector<32x8xf32> to vector<32x8xbf16>
    %c3_65 = arith.constant 3 : index
    %c0_66 = arith.constant 0 : index
    %c0_67 = arith.constant 0 : index
    %117 = vector.load %arg11[%c3_65, %c0_66, %c0_67] : memref<4x8x32xbf16, #tpu.memory_space<vmem>>, vector<1x8x32xbf16>
    %118 = vector.shape_cast %117 : vector<1x8x32xbf16> to vector<8x32xbf16>
    %cst_68 = arith.constant dense<0.000000e+00> : vector<32x32xf32>
    %119 = tpu.matmul %116, %118, %cst_68 {dimension_numbers = #tpu.dot_dimension_numbers<[1], [0], [0], [1], [0, 0, 1, 1], [], []>} : vector<32x8xbf16>, vector<8x32xbf16>, vector<32x32xf32> -> vector<32x32xf32>
    %120 = arith.addf %95, %119 : vector<32x32xf32>
    %c0_69 = arith.constant 0 : index
    %c0_70 = arith.constant 0 : index
    %121 = vector.load %arg12[%c0_69, %c0_70] : memref<1x32xf32, #tpu.memory_space<vmem>>, vector<1x32xf32>
    %122 = vector.shape_cast %121 : vector<1x32xf32> to vector<32xf32>
    %123 = vector.shape_cast %122 : vector<32xf32> to vector<1x32xf32>
    %124 = vector.broadcast %123 : vector<1x32xf32> to vector<32x32xf32>
    %125 = arith.addf %120, %124 : vector<32x32xf32>
    %126 = arith.addf %125, %4 : vector<32x32xf32>
    %c0_71 = arith.constant 0 : index
    %c0_72 = arith.constant 0 : index
    %127 = vector.load %arg13[%c0_71, %c0_72] : memref<1x32xf32, #tpu.memory_space<vmem>>, vector<1x32xf32>
    %128 = vector.shape_cast %127 : vector<1x32xf32> to vector<32xf32>
    %c0_73 = arith.constant 0 : index
    %c0_74 = arith.constant 0 : index
    %129 = vector.load %arg14[%c0_73, %c0_74] : memref<1x32xf32, #tpu.memory_space<vmem>>, vector<1x32xf32>
    %130 = vector.shape_cast %129 : vector<1x32xf32> to vector<32xf32>
    %cst_75 = arith.constant dense<0.000000e+00> : vector<32xf32>
    %131 = vector.multi_reduction <add>, %126, %cst_75 [1] : vector<32x32xf32> to vector<32xf32>
    %132 = vector.shape_cast %131 : vector<32xf32> to vector<32x1xf32>
    %cst_76 = arith.constant 3.200000e+01 : f32
    %133 = vector.broadcast %cst_76 : f32 to vector<32x1xf32>
    %134 = arith.divf %132, %133 : vector<32x1xf32>
    %135 = vector.broadcast %134 : vector<32x1xf32> to vector<32x32xf32>
    %136 = arith.subf %126, %135 : vector<32x32xf32>
    %137 = arith.mulf %136, %136 : vector<32x32xf32>
    %cst_77 = arith.constant dense<0.000000e+00> : vector<32xf32>
    %138 = vector.multi_reduction <add>, %137, %cst_77 [1] : vector<32x32xf32> to vector<32xf32>
    %139 = vector.shape_cast %138 : vector<32xf32> to vector<32x1xf32>
    %cst_78 = arith.constant 3.200000e+01 : f32
    %140 = vector.broadcast %cst_78 : f32 to vector<32x1xf32>
    %141 = arith.divf %139, %140 : vector<32x1xf32>
    %142 = vector.broadcast %134 : vector<32x1xf32> to vector<32x32xf32>
    %143 = arith.subf %126, %142 : vector<32x32xf32>
    %cst_79 = arith.constant 9.99999974E-6 : f32
    %144 = vector.broadcast %cst_79 : f32 to vector<32x1xf32>
    %145 = arith.addf %141, %144 : vector<32x1xf32>
    %146 = math.rsqrt %145 : vector<32x1xf32>
    %147 = vector.broadcast %146 : vector<32x1xf32> to vector<32x32xf32>
    %148 = arith.mulf %143, %147 : vector<32x32xf32>
    %149 = vector.shape_cast %128 : vector<32xf32> to vector<1x32xf32>
    %150 = vector.broadcast %149 : vector<1x32xf32> to vector<32x32xf32>
    %151 = arith.mulf %148, %150 : vector<32x32xf32>
    %152 = vector.shape_cast %130 : vector<32xf32> to vector<1x32xf32>
    %153 = vector.broadcast %152 : vector<1x32xf32> to vector<32x32xf32>
    %154 = arith.addf %151, %153 : vector<32x32xf32>
    %155 = arith.truncf %154 : vector<32x32xf32> to vector<32x32xbf16>
    %cst_80 = arith.constant 0.000000e+00 : f32
    %156 = vector.broadcast %cst_80 : f32 to vector<32x32xf32>
    %c0_81 = arith.constant 0 : index
    %c0_82 = arith.constant 0 : index
    %c0_83 = arith.constant 0 : index
    %157 = vector.load %arg17[%c0_81, %c0_82, %c0_83] : memref<1x32x64xbf16, #tpu.memory_space<vmem>>, vector<1x32x64xbf16>
    %158 = vector.shape_cast %157 : vector<1x32x64xbf16> to vector<32x64xbf16>
    %cst_84 = arith.constant dense<0.000000e+00> : vector<32x64xf32>
    %159 = tpu.matmul %155, %158, %cst_84 {dimension_numbers = #tpu.dot_dimension_numbers<[1], [0], [0], [1], [0, 0, 1, 1], [], []>} : vector<32x32xbf16>, vector<32x64xbf16>, vector<32x64xf32> -> vector<32x64xf32>
    %c0_85 = arith.constant 0 : index
    %c0_86 = arith.constant 0 : index
    %c0_87 = arith.constant 0 : index
    %160 = vector.load %arg18[%c0_85, %c0_86, %c0_87] : memref<1x1x64xf32, #tpu.memory_space<vmem>>, vector<1x1x64xf32>
    %161 = vector.shape_cast %160 : vector<1x1x64xf32> to vector<1x64xf32>
    %162 = vector.broadcast %161 : vector<1x64xf32> to vector<32x64xf32>
    %163 = arith.addf %159, %162 : vector<32x64xf32>
    %cst_88 = arith.constant 0.000000e+00 : f32
    %164 = vector.broadcast %cst_88 : f32 to vector<32x64xf32>
    %165 = arith.maximumf %163, %164 : vector<32x64xf32>
    %166 = arith.truncf %165 : vector<32x64xf32> to vector<32x64xbf16>
    %c0_89 = arith.constant 0 : index
    %c0_90 = arith.constant 0 : index
    %c0_91 = arith.constant 0 : index
    %167 = vector.load %arg19[%c0_89, %c0_90, %c0_91] : memref<1x64x32xbf16, #tpu.memory_space<vmem>>, vector<1x64x32xbf16>
    %168 = vector.shape_cast %167 : vector<1x64x32xbf16> to vector<64x32xbf16>
    %cst_92 = arith.constant dense<0.000000e+00> : vector<32x32xf32>
    %169 = tpu.matmul %166, %168, %cst_92 {dimension_numbers = #tpu.dot_dimension_numbers<[1], [0], [0], [1], [0, 0, 1, 1], [], []>} : vector<32x64xbf16>, vector<64x32xbf16>, vector<32x32xf32> -> vector<32x32xf32>
    %170 = arith.addf %156, %169 : vector<32x32xf32>
    %c0_93 = arith.constant 0 : index
    %c0_94 = arith.constant 0 : index
    %171 = vector.load %arg20[%c0_93, %c0_94] : memref<1x32xf32, #tpu.memory_space<vmem>>, vector<1x32xf32>
    %172 = vector.shape_cast %171 : vector<1x32xf32> to vector<32xf32>
    %173 = vector.shape_cast %172 : vector<32xf32> to vector<1x32xf32>
    %174 = vector.broadcast %173 : vector<1x32xf32> to vector<32x32xf32>
    %175 = arith.addf %170, %174 : vector<32x32xf32>
    %176 = arith.addf %154, %175 : vector<32x32xf32>
    %c0_95 = arith.constant 0 : index
    %c0_96 = arith.constant 0 : index
    %177 = vector.load %arg15[%c0_95, %c0_96] : memref<1x32xf32, #tpu.memory_space<vmem>>, vector<1x32xf32>
    %178 = vector.shape_cast %177 : vector<1x32xf32> to vector<32xf32>
    %c0_97 = arith.constant 0 : index
    %c0_98 = arith.constant 0 : index
    %179 = vector.load %arg16[%c0_97, %c0_98] : memref<1x32xf32, #tpu.memory_space<vmem>>, vector<1x32xf32>
    %180 = vector.shape_cast %179 : vector<1x32xf32> to vector<32xf32>
    %cst_99 = arith.constant dense<0.000000e+00> : vector<32xf32>
    %181 = vector.multi_reduction <add>, %176, %cst_99 [1] : vector<32x32xf32> to vector<32xf32>
    %182 = vector.shape_cast %181 : vector<32xf32> to vector<32x1xf32>
    %cst_100 = arith.constant 3.200000e+01 : f32
    %183 = vector.broadcast %cst_100 : f32 to vector<32x1xf32>
    %184 = arith.divf %182, %183 : vector<32x1xf32>
    %185 = vector.broadcast %184 : vector<32x1xf32> to vector<32x32xf32>
    %186 = arith.subf %176, %185 : vector<32x32xf32>
    %187 = arith.mulf %186, %186 : vector<32x32xf32>
    %cst_101 = arith.constant dense<0.000000e+00> : vector<32xf32>
    %188 = vector.multi_reduction <add>, %187, %cst_101 [1] : vector<32x32xf32> to vector<32xf32>
    %189 = vector.shape_cast %188 : vector<32xf32> to vector<32x1xf32>
    %cst_102 = arith.constant 3.200000e+01 : f32
    %190 = vector.broadcast %cst_102 : f32 to vector<32x1xf32>
    %191 = arith.divf %189, %190 : vector<32x1xf32>
    %192 = vector.broadcast %184 : vector<32x1xf32> to vector<32x32xf32>
    %193 = arith.subf %176, %192 : vector<32x32xf32>
    %cst_103 = arith.constant 9.99999974E-6 : f32
    %194 = vector.broadcast %cst_103 : f32 to vector<32x1xf32>
    %195 = arith.addf %191, %194 : vector<32x1xf32>
    %196 = math.rsqrt %195 : vector<32x1xf32>
    %197 = vector.broadcast %196 : vector<32x1xf32> to vector<32x32xf32>
    %198 = arith.mulf %193, %197 : vector<32x32xf32>
    %199 = vector.shape_cast %178 : vector<32xf32> to vector<1x32xf32>
    %200 = vector.broadcast %199 : vector<1x32xf32> to vector<32x32xf32>
    %201 = arith.mulf %198, %200 : vector<32x32xf32>
    %202 = vector.shape_cast %180 : vector<32xf32> to vector<1x32xf32>
    %203 = vector.broadcast %202 : vector<1x32xf32> to vector<32x32xf32>
    %204 = arith.addf %201, %203 : vector<32x32xf32>
    %c0_104 = arith.constant 0 : index
    %c0_105 = arith.constant 0 : index
    %c0_106 = arith.constant 0 : index
    %205 = vector.load %arg21[%c0_104, %c0_105, %c0_106] : memref<1x32x32xf32, #tpu.memory_space<vmem>>, vector<1x32x32xf32>
    %206 = vector.shape_cast %205 : vector<1x32x32xf32> to vector<32x32xf32>
    %207 = vector.shape_cast %204 : vector<32x32xf32> to vector<1x32x32xf32>
    tpu.vector_store %arg21[%c0_104, %c0_105, %c0_106], %207 {strides = array<i32>} : memref<1x32x32xf32, #tpu.memory_space<vmem>>, vector<1x32x32xf32>,
    return
  }
  func.func @transform_0(%arg0: i32, %arg1: i32) -> (i32, i32, i32) {
    %c0_i32 = arith.constant 0 : i32
    %c0_i32_0 = arith.constant 0 : i32
    return %arg0, %arg1, %c0_i32 : i32, i32, i32
  }
  func.func @transform_1(%arg0: i32, %arg1: i32) -> (i32, i32, i32) {
    %c0_i32 = arith.constant 0 : i32
    %c0_i32_0 = arith.constant 0 : i32
    %c0_i32_1 = arith.constant 0 : i32
    return %arg0, %c0_i32, %c0_i32_0 : i32, i32, i32
  }
  func.func @transform_2(%arg0: i32, %arg1: i32) -> (i32, i32, i32) {
    %c0_i32 = arith.constant 0 : i32
    %c0_i32_0 = arith.constant 0 : i32
    return %arg0, %arg1, %c0_i32 : i32, i32, i32
  }
  func.func @transform_3(%arg0: i32, %arg1: i32) -> (i32, i32) {
    %c0_i32 = arith.constant 0 : i32
    %c0_i32_0 = arith.constant 0 : i32
    %c0_i32_1 = arith.constant 0 : i32
    return %c0_i32, %c0_i32_0 : i32, i32
  }
  func.func @transform_4(%arg0: i32, %arg1: i32) -> (i32, i32) {
    %c0_i32 = arith.constant 0 : i32
    %c0_i32_0 = arith.constant 0 : i32
    %c0_i32_1 = arith.constant 0 : i32
    return %c0_i32, %c0_i32_0 : i32, i32
  }
  func.func @transform_5(%arg0: i32, %arg1: i32) -> (i32, i32, i32) {
    %c0_i32 = arith.constant 0 : i32
    %c0_i32_0 = arith.constant 0 : i32
    %c0_i32_1 = arith.constant 0 : i32
    %c0_i32_2 = arith.constant 0 : i32
    return %c0_i32, %c0_i32_0, %c0_i32_1 : i32, i32, i32
  }
  func.func @transform_6(%arg0: i32, %arg1: i32) -> (i32, i32, i32) {
    %c0_i32 = arith.constant 0 : i32
    %c0_i32_0 = arith.constant 0 : i32
    %c0_i32_1 = arith.constant 0 : i32
    %c0_i32_2 = arith.constant 0 : i32
    return %c0_i32, %c0_i32_0, %c0_i32_1 : i32, i32, i32
  }
  func.func @transform_7(%arg0: i32, %arg1: i32) -> (i32, i32, i32) {
    %c0_i32 = arith.constant 0 : i32
    %c0_i32_0 = arith.constant 0 : i32
    %c0_i32_1 = arith.constant 0 : i32
    %c0_i32_2 = arith.constant 0 : i32
    return %c0_i32, %c0_i32_0, %c0_i32_1 : i32, i32, i32
  }
  func.func @transform_8(%arg0: i32, %arg1: i32) -> (i32, i32, i32) {
    %c0_i32 = arith.constant 0 : i32
    %c0_i32_0 = arith.constant 0 : i32
    %c0_i32_1 = arith.constant 0 : i32
    %c0_i32_2 = arith.constant 0 : i32
    return %c0_i32, %c0_i32_0, %c0_i32_1 : i32, i32, i32
  }
  func.func @transform_9(%arg0: i32, %arg1: i32) -> (i32, i32, i32) {
    %c0_i32 = arith.constant 0 : i32
    %c0_i32_0 = arith.constant 0 : i32
    %c0_i32_1 = arith.constant 0 : i32
    %c0_i32_2 = arith.constant 0 : i32
    return %c0_i32, %c0_i32_0, %c0_i32_1 : i32, i32, i32
  }
  func.func @transform_10(%arg0: i32, %arg1: i32) -> (i32, i32) {
    %c0_i32 = arith.constant 0 : i32
    %c0_i32_0 = arith.constant 0 : i32
    %c0_i32_1 = arith.constant 0 : i32
    return %c0_i32, %c0_i32_0 : i32, i32
  }
  func.func @transform_11(%arg0: i32, %arg1: i32) -> (i32, i32) {
    %c0_i32 = arith.constant 0 : i32
    %c0_i32_0 = arith.constant 0 : i32
    %c0_i32_1 = arith.constant 0 : i32
    return %c0_i32, %c0_i32_0 : i32, i32
  }
  func.func @transform_12(%arg0: i32, %arg1: i32) -> (i32, i32) {
    %c0_i32 = arith.constant 0 : i32
    %c0_i32_0 = arith.constant 0 : i32
    %c0_i32_1 = arith.constant 0 : i32
    return %c0_i32, %c0_i32_0 : i32, i32
  }
  func.func @transform_13(%arg0: i32, %arg1: i32) -> (i32, i32) {
    %c0_i32 = arith.constant 0 : i32
    %c0_i32_0 = arith.constant 0 : i32
    %c0_i32_1 = arith.constant 0 : i32
    return %c0_i32, %c0_i32_0 : i32, i32
  }
  func.func @transform_14(%arg0: i32, %arg1: i32) -> (i32, i32) {
    %c0_i32 = arith.constant 0 : i32
    %c0_i32_0 = arith.constant 0 : i32
    %c0_i32_1 = arith.constant 0 : i32
    return %c0_i32, %c0_i32_0 : i32, i32
  }
  func.func @transform_15(%arg0: i32, %arg1: i32) -> (i32, i32, i32) {
    %c0_i32 = arith.constant 0 : i32
    %c0_i32_0 = arith.constant 0 : i32
    %c0_i32_1 = arith.constant 0 : i32
    %c0_i32_2 = arith.constant 0 : i32
    return %c0_i32, %c0_i32_0, %c0_i32_1 : i32, i32, i32
  }
  func.func @transform_16(%arg0: i32, %arg1: i32) -> (i32, i32, i32) {
    %c0_i32 = arith.constant 0 : i32
    %c0_i32_0 = arith.constant 0 : i32
    %c0_i32_1 = arith.constant 0 : i32
    %c0_i32_2 = arith.constant 0 : i32
    return %c0_i32, %c0_i32_0, %c0_i32_1 : i32, i32, i32
  }
  func.func @transform_17(%arg0: i32, %arg1: i32) -> (i32, i32, i32) {
    %c0_i32 = arith.constant 0 : i32
    %c0_i32_0 = arith.constant 0 : i32
    %c0_i32_1 = arith.constant 0 : i32
    %c0_i32_2 = arith.constant 0 : i32
    return %c0_i32, %c0_i32_0, %c0_i32_1 : i32, i32, i32
  }
  func.func @transform_18(%arg0: i32, %arg1: i32) -> (i32, i32) {
    %c0_i32 = arith.constant 0 : i32
    %c0_i32_0 = arith.constant 0 : i32
    %c0_i32_1 = arith.constant 0 : i32
    return %c0_i32, %c0_i32_0 : i32, i32
  }
  func.func @transform_19(%arg0: i32, %arg1: i32) -> (i32, i32, i32) {
    %c0_i32 = arith.constant 0 : i32
    %c0_i32_0 = arith.constant 0 : i32
    return %arg0, %arg1, %c0_i32 : i32, i32, i32
  }
}

</mosaic_0001>

<llo_original>
// kernel: tpu_custom_call.1
$region0: #{tpu_custom_call.1}
  #allocation0 [shape = 'u32[]', space=smem, size = 0x4, offset = 0x4, fixed_abs, tag = 'smem constant byte address 0x4 - core index']
  #allocation1 [shape = 'u32[144,128]{1,0:T(1,128)}', space=vmem, size = 0x12000, scoped, tag = 'internal scratch']
  #allocation2 [shape = 'bf16[4,64,8]{2,1,0:T(16,128)(2,1)}', space=vmem, size = 0x10000, scoped, tag = 'scratch operand']
  #allocation3 [shape = 'bf16[4,64,8]{2,1,0:T(16,128)(2,1)}', space=vmem, size = 0x10000, scoped, tag = 'scratch operand']
  %s0 = inlined_call_operand.hbm [shape: f32[2,64,32], index: 0, kind: input, shape index: {}]
  %s1 = inlined_call_operand.hbm [shape: bf16[2,64,32], index: 1, kind: input, shape index: {}]
  %s2 = inlined_call_operand.hbm [shape: s8[2,64,64], index: 2, kind: input, shape index: {}]
  %s3 = inlined_call_operand.hbm [shape: bf16[32,32], index: 3, kind: input, shape index: {}]
  %s4 = inlined_call_operand.hbm [shape: f32[1,32], index: 4, kind: input, shape index: {}]
  %s5 = inlined_call_operand.hbm [shape: bf16[4,32,8], index: 5, kind: input, shape index: {}]
  %s6 = inlined_call_operand.hbm [shape: f32[4,1,8], index: 6, kind: input, shape index: {}]
  %s7 = inlined_call_operand.hbm [shape: bf16[4,32,8], index: 7, kind: input, shape index: {}]
  %s8 = inlined_call_operand.hbm [shape: f32[4,1,8], index: 8, kind: input, shape index: {}]
  %s9 = inlined_call_operand.hbm [shape: bf16[4,8,32], index: 9, kind: input, shape index: {}]
  %s10 = inlined_call_operand.hbm [shape: f32[1,32], index: 10, kind: input, shape index: {}]
  %s11 = inlined_call_operand.hbm [shape: f32[1,32], index: 11, kind: input, shape index: {}]
  %s12 = inlined_call_operand.hbm [shape: f32[1,32], index: 12, kind: input, shape index: {}]
  %s13 = inlined_call_operand.hbm [shape: f32[1,32], index: 13, kind: input, shape index: {}]
  %s14 = inlined_call_operand.hbm [shape: f32[1,32], index: 14, kind: input, shape index: {}]
  %s15 = inlined_call_operand.hbm [shape: bf16[1,32,64], index: 15, kind: input, shape index: {}]
  %s16 = inlined_call_operand.hbm [shape: f32[1,1,64], index: 16, kind: input, shape index: {}]
  %s17 = inlined_call_operand.hbm [shape: bf16[1,64,32], index: 17, kind: input, shape index: {}]
  %s18 = inlined_call_operand.hbm [shape: f32[1,32], index: 18, kind: input, shape index: {}]
  %s19 = inlined_call_operand.hbm [shape: f32[2,64,32], index: 19, kind: output, shape index: {}]
  %s20 = sld [smem:[#allocation0]]
  $region189: #{tpu_custom_call.1} parent=0
    _
  %s22 = ssub.s32 1, %s20
  %s23 = scalar_select 0, %s22, %s20
  $region1: #{tpu_custom_call.1} parent=0
    #allocation4 [shape = 'u8[32768]{0}', space=vmem, size = 0x8000, scoped, tag = 'input window, operand 0']
    #allocation5 [shape = 's32[2]{0}', space=sflag, size = 0x8, scoped, tag = 'scoped memory for tpu_custom_call.1']
    #allocation6 [shape = 's32[2]{0}', space=sflag, size = 0x8, scoped, tag = 'scoped memory for tpu_custom_call.1']
    #allocation7 [shape = 'u8[32768]{0}', space=vmem, size = 0x8000, scoped, tag = 'input window, operand 1']
    #allocation8 [shape = 's32[2]{0}', space=sflag, size = 0x8, scoped, tag = 'scoped memory for tpu_custom_call.1']
    #allocation9 [shape = 'u8[8192]{0}', space=vmem, size = 0x2000, scoped, tag = 'input window, operand 2']
    #allocation10 [shape = 'u8[8192]{0}', space=vmem, size = 0x2000, scoped, tag = 'input window, operand 3, single buffered']
    #allocation11 [shape = 's32[1]{0}', space=sflag, size = 0x4, scoped, tag = 'scoped memory for tpu_custom_call.1']
    #allocation12 [shape = 'u8[512]{0}', space=vmem, size = 0x400, scoped, tag = 'input window, operand 4, single buffered']
    #allocation13 [shape = 'u8[32768]{0}', space=vmem, size = 0x8000, scoped, tag = 'input window, operand 5, single buffered']
    #allocation14 [shape = 's32[1]{0}', space=sflag, size = 0x4, scoped, tag = 'scoped memory for tpu_custom_call.1']
    #allocation15 [shape = 'u8[2048]{0}', space=vmem, size = 0x800, scoped, tag = 'input window, operand 6, single buffered']
    #allocation16 [shape = 'u8[32768]{0}', space=vmem, size = 0x8000, scoped, tag = 'input window, operand 7, single buffered']
    #allocation17 [shape = 's32[1]{0}', space=sflag, size = 0x4, scoped, tag = 'scoped memory for tpu_custom_call.1']
    #allocation18 [shape = 'u8[2048]{0}', space=vmem, size = 0x800, scoped, tag = 'input window, operand 8, single buffered']
    #allocation19 [shape = 'u8[8192]{0}', space=vmem, size = 0x2000, scoped, tag = 'input window, operand 9, single buffered']
    #allocation20 [shape = 's32[1]{0}', space=sflag, size = 0x4, scoped, tag = 'scoped memory for tpu_custom_call.1']
    #allocation21 [shape = 'u8[512]{0}', space=vmem, size = 0x400, scoped, tag = 'input window, operand 10, single buffered']
    #allocation22 [shape = 'u8[512]{0}', space=vmem, size = 0x400, scoped, tag = 'input window, operand 11, single buffered']
    #allocation23 [shape = 's32[1]{0}', space=sflag, size = 0x4, scoped, tag = 'scoped memory for tpu_custom_call.1']
    #allocation24 [shape = 'u8[512]{0}', space=vmem, size = 0x400, scoped, tag = 'input window, operand 12, single buffered']
    #allocation25 [shape = 'u8[512]{0}', space=vmem, size = 0x400, scoped, tag = 'input window, operand 13, single buffered']
    #allocation26 [shape = 's32[1]{0}', space=sflag, size = 0x4, scoped, tag = 'scoped memory for tpu_custom_call.1']
    #allocation27 [shape = 'u8[512]{0}', space=vmem, size = 0x400, scoped, tag = 'input window, operand 14, single buffered']
    #allocation28 [shape = 'u8[8192]{0}', space=vmem, size = 0x2000, scoped, tag = 'input window, operand 15, single buffered']
    #allocation29 [shape = 's32[1]{0}', space=sflag, size = 0x4, scoped, tag = 'scoped memory for tpu_custom_call.1']
    #allocation30 [shape = 'u8[512]{0}', space=vmem, size = 0x400, scoped, tag = 'input window, operand 16, single buffered']
    #allocation31 [shape = 'u8[16384]{0}', space=vmem, size = 0x4000, scoped, tag = 'input window, operand 17, single buffered']
    #allocation32 [shape = 's32[1]{0}', space=sflag, size = 0x4, scoped, tag = 'scoped memory for tpu_custom_call.1']
    #allocation33 [shape = 'u8[512]{0}', space=vmem, size = 0x400, scoped, tag = 'input window, operand 18, single buffered']
    #allocation34 [shape = 'u8[32768]{0}', space=vmem, size = 0x8000, scoped, tag = 'output window, operand 0']
    %24 = vsyncpa [#allocation5], 0
    %s25 = scalar_lea.sflag [#allocation5], 1
    %26 = vsyncpa %s25, 0
    %27 = vsyncpa [#allocation8], 0
    %s28 = scalar_lea.sflag [#allocation8], 1
    %29 = vsyncpa %s28, 0
    %30 = vsyncpa [#allocation11], 0
    %31 = vsyncpa [#allocation14], 0
    %32 = vsyncpa [#allocation17], 0
    %33 = vsyncpa [#allocation20], 0
    %34 = vsyncpa [#allocation23], 0
    %35 = vsyncpa [#allocation26], 0
    %36 = vsyncpa [#allocation29], 0
    %37 = vsyncpa [#allocation32], 0
    %38 = vsyncpa [#allocation6], 0
    %s39 = scalar_lea.sflag [#allocation6], 1
    %40 = vsyncpa %s39, 0
    loop: start=0, step=1, limit=6
    $region2: #{tpu_custom_call.1} parent=1 // loop_pre_header
      _
    $region3: #{tpu_custom_call.1} parent=1 // loop_header
      %s42 = sphi 0, %s46
      %p43 = scmp.ge.s32.totalorder %s42, 6
      %s49 = sphi 0, %s61
      %s50 = sphi 0, %s57
      %s51 = sphi 0, %s49
      %s52 = sphi 0, %s50
      %s53 = sphi 0, %s51
      %s54 = sphi 0, %s52
      %s66 = sphi 0, %s68
      %s69 = sphi 0, %s66
      %s70 = sphi 0, %s69
      %s86 = sphi 0, %s70
      %s92 = sphi 0, %s94
      %s95 = sphi 0, %s92
      %s96 = sphi 0, %s95
      %s112 = sphi 0, %s96
      %s120 = sphi 0, %s122
      %s123 = sphi 0, %s120
      %s124 = sphi 0, %s123
      %s140 = sphi 0, %s124
      %s144 = sphi 0, %s144
      %s146 = sphi 0, %s144
      %s147 = sphi 0, %s146
      %s161 = sphi 0, %s147
      %s165 = sphi 0, %s165
      %s167 = sphi 0, %s165
      %s168 = sphi 0, %s167
      %s182 = sphi 0, %s168
      %s186 = sphi 0, %s186
      %s188 = sphi 0, %s186
      %s189 = sphi 0, %s188
      %s203 = sphi 0, %s189
      %s207 = sphi 0, %s207
      %s209 = sphi 0, %s207
      %s210 = sphi 0, %s209
      %s224 = sphi 0, %s210
      %s228 = sphi 0, %s228
      %s230 = sphi 0, %s228
      %s231 = sphi 0, %s230
      %s245 = sphi 0, %s231
      %s249 = sphi 0, %s249
      %s251 = sphi 0, %s249
      %s252 = sphi 0, %s251
      %s266 = sphi 0, %s252
      %s270 = sphi 0, %s270
      %s272 = sphi 0, %s270
      %s273 = sphi 0, %s272
      %s287 = sphi 0, %s273
      %s291 = sphi 0, %s291
      %s293 = sphi 0, %s291
      %s294 = sphi 0, %s293
      %s308 = sphi 0, %s294
      %s312 = sphi 0, %s312
      %s314 = sphi 0, %s312
      %s315 = sphi 0, %s314
      %s329 = sphi 0, %s315
      %s333 = sphi 0, %s333
      %s335 = sphi 0, %s333
      %s336 = sphi 0, %s335
      %s350 = sphi 0, %s336
      %s354 = sphi 0, %s354
      %s356 = sphi 0, %s354
      %s357 = sphi 0, %s356
      %s371 = sphi 0, %s357
      %s375 = sphi 0, %s375
      %s377 = sphi 0, %s375
      %s378 = sphi 0, %s377
      %s392 = sphi 0, %s378
      %s396 = sphi 0, %s396
      %s398 = sphi 0, %s396
      %s399 = sphi 0, %s398
      %s413 = sphi 0, %s399
      %s417 = sphi 0, %s417
      %s419 = sphi 0, %s417
      %s420 = sphi 0, %s419
      %s434 = sphi 0, %s420
      %s438 = sphi 0, %s438
      %s440 = sphi 0, %s438
      %s441 = sphi 0, %s440
      %s455 = sphi 0, %s441
      %s459 = sphi 0, %s459
      %s461 = sphi 0, %s459
      %s462 = sphi 0, %s461
      %s476 = sphi 0, %s462
      %s484 = sphi 0, %s486
      %s487 = sphi 0, %s484
      %s488 = sphi 0, %s487
      %s504 = sphi 0, %s488
    $region4: #{tpu_custom_call.1} parent=1 // loop_header_branch
      %45 = sbr.rel (%p43) target = $region8
    $region5: #{tpu_custom_call.1} parent=1 // loop_body
      %s47 = ssub.s32 %s42, 1
      %s48 = ssub.s32 %s42, 2
      %s55 = sadd.s32 1, %s50
      %p56 = scmp.ge.s32.totalorder %s55, 2
      %s57 = scalar_select %p56, 0, %s55
      %s58 = sadd.s32 1, %s49
      %s59 = scalar_select %p56, %s58, %s49
      %p60 = scmp.ge.s32.totalorder %s59, 2
      %s61 = scalar_select %p60, 0, %s59
      %s62 = ssub.s32 %s49, %s61
      %s63 = ssub.s32 %s50, %s57
      %s64 = sor.u32 %s62, %s63
      %p65 = scmp.eq.s32.totalorder %s64, 0
      %s67 = sadd.s32 %s66, 1
      %s68 = scalar_select %p65, %s66, %s67
      %p71 = pneg %p65
      %p72 = scmp.eq.s32.totalorder %s42, 3
      %p73 = por %p71, %p72
      %p74 = scmp.ne.s32.totalorder %s66, %s69
      %p75 = scmp.eq.s32.totalorder %s42, 0
      %p76 = por %p74, %p75
      %p77 = scmp.ne.s32.totalorder %s66, %s69
      %p78 = scmp.eq.s32.totalorder %s47, 3
      %p79 = por %p77, %p78
      %p80 = scmp.ne.s32.totalorder %s69, %s70
      %p81 = scmp.eq.s32.totalorder %s47, 0
      %p82 = por %p80, %p81
      %p83 = scmp.ne.s32.totalorder %s69, %s70
      %p84 = scmp.eq.s32.totalorder %s48, 3
      %p85 = por %p83, %p84
      %p87 = scmp.ne.s32.totalorder %s70, %s86
      %p88 = scmp.eq.s32.totalorder %s48, 0
      %p89 = por %p87, %p88
      %s90 = ssub.s32 %s49, %s61
      %p91 = scmp.eq.s32.totalorder %s90, 0
      %s93 = sadd.s32 %s92, 1
      %s94 = scalar_select %p91, %s92, %s93
      %p97 = pneg %p91
      %p98 = scmp.eq.s32.totalorder %s42, 3
      %p99 = por %p97, %p98
      %p100 = scmp.ne.s32.totalorder %s92, %s95
      %p101 = scmp.eq.s32.totalorder %s42, 0
      %p102 = por %p100, %p101
      %p103 = scmp.ne.s32.totalorder %s92, %s95
      %p104 = scmp.eq.s32.totalorder %s47, 3
      %p105 = por %p103, %p104
      %p106 = scmp.ne.s32.totalorder %s95, %s96
      %p107 = scmp.eq.s32.totalorder %s47, 0
      %p108 = por %p106, %p107
      %p109 = scmp.ne.s32.totalorder %s95, %s96
      %p110 = scmp.eq.s32.totalorder %s48, 3
      %p111 = por %p109, %p110
      %p113 = scmp.ne.s32.totalorder %s96, %s112
      %p114 = scmp.eq.s32.totalorder %s48, 0
      %p115 = por %p113, %p114
      %s116 = ssub.s32 %s49, %s61
      %s117 = ssub.s32 %s50, %s57
      %s118 = sor.u32 %s116, %s117
      %p119 = scmp.eq.s32.totalorder %s118, 0
      %s121 = sadd.s32 %s120, 1
      %s122 = scalar_select %p119, %s120, %s121
      %p125 = pneg %p119
      %p126 = scmp.eq.s32.totalorder %s42, 3
      %p127 = por %p125, %p126
      %p128 = scmp.ne.s32.totalorder %s120, %s123
      %p129 = scmp.eq.s32.totalorder %s42, 0
      %p130 = por %p128, %p129
      %p131 = scmp.ne.s32.totalorder %s120, %s123
      %p132 = scmp.eq.s32.totalorder %s47, 3
      %p133 = por %p131, %p132
      %p134 = scmp.ne.s32.totalorder %s123, %s124
      %p135 = scmp.eq.s32.totalorder %s47, 0
      %p136 = por %p134, %p135
      %p137 = scmp.ne.s32.totalorder %s123, %s124
      %p138 = scmp.eq.s32.totalorder %s48, 3
      %p139 = por %p137, %p138
      %p141 = scmp.ne.s32.totalorder %s124, %s140
      %p142 = scmp.eq.s32.totalorder %s48, 0
      %p143 = por %p141, %p142
      %s145 = sadd.s32 %s144, 1
      %p148 = scmp.eq.s32.totalorder %s42, 3
      %p149 = scmp.ne.s32.totalorder %s144, %s146
      %p150 = scmp.eq.s32.totalorder %s42, 0
      %p151 = por %p149, %p150
      %p152 = scmp.ne.s32.totalorder %s144, %s146
      %p153 = scmp.eq.s32.totalorder %s47, 3
      %p154 = por %p152, %p153
      %p155 = scmp.ne.s32.totalorder %s146, %s147
      %p156 = scmp.eq.s32.totalorder %s47, 0
      %p157 = por %p155, %p156
      %p158 = scmp.ne.s32.totalorder %s146, %s147
      %p159 = scmp.eq.s32.totalorder %s48, 3
      %p160 = por %p158, %p159
      %p162 = scmp.ne.s32.totalorder %s147, %s161
      %p163 = scmp.eq.s32.totalorder %s48, 0
      %p164 = por %p162, %p163
      %s166 = sadd.s32 %s165, 1
      %p169 = scmp.eq.s32.totalorder %s42, 3
      %p170 = scmp.ne.s32.totalorder %s165, %s167
      %p171 = scmp.eq.s32.totalorder %s42, 0
      %p172 = por %p170, %p171
      %p173 = scmp.ne.s32.totalorder %s165, %s167
      %p174 = scmp.eq.s32.totalorder %s47, 3
      %p175 = por %p173, %p174
      %p176 = scmp.ne.s32.totalorder %s167, %s168
      %p177 = scmp.eq.s32.totalorder %s47, 0
      %p178 = por %p176, %p177
      %p179 = scmp.ne.s32.totalorder %s167, %s168
      %p180 = scmp.eq.s32.totalorder %s48, 3
      %p181 = por %p179, %p180
      %p183 = scmp.ne.s32.totalorder %s168, %s182
      %p184 = scmp.eq.s32.totalorder %s48, 0
      %p185 = por %p183, %p184
      %s187 = sadd.s32 %s186, 1
      %p190 = scmp.eq.s32.totalorder %s42, 3
      %p191 = scmp.ne.s32.totalorder %s186, %s188
      %p192 = scmp.eq.s32.totalorder %s42, 0
      %p193 = por %p191, %p192
      %p194 = scmp.ne.s32.totalorder %s186, %s188
      %p195 = scmp.eq.s32.totalorder %s47, 3
      %p196 = por %p194, %p195
      %p197 = scmp.ne.s32.totalorder %s188, %s189
      %p198 = scmp.eq.s32.totalorder %s47, 0
      %p199 = por %p197, %p198
      %p200 = scmp.ne.s32.totalorder %s188, %s189
      %p201 = scmp.eq.s32.totalorder %s48, 3
      %p202 = por %p200, %p201
      %p204 = scmp.ne.s32.totalorder %s189, %s203
      %p205 = scmp.eq.s32.totalorder %s48, 0
      %p206 = por %p204, %p205
      %s208 = sadd.s32 %s207, 1
      %p211 = scmp.eq.s32.totalorder %s42, 3
      %p212 = scmp.ne.s32.totalorder %s207, %s209
      %p213 = scmp.eq.s32.totalorder %s42, 0
      %p214 = por %p212, %p213
      %p215 = scmp.ne.s32.totalorder %s207, %s209
      %p216 = scmp.eq.s32.totalorder %s47, 3
      %p217 = por %p215, %p216
      %p218 = scmp.ne.s32.totalorder %s209, %s210
      %p219 = scmp.eq.s32.totalorder %s47, 0
      %p220 = por %p218, %p219
      %p221 = scmp.ne.s32.totalorder %s209, %s210
      %p222 = scmp.eq.s32.totalorder %s48, 3
      %p223 = por %p221, %p222
      %p225 = scmp.ne.s32.totalorder %s210, %s224
      %p226 = scmp.eq.s32.totalorder %s48, 0
      %p227 = por %p225, %p226
      %s229 = sadd.s32 %s228, 1
      %p232 = scmp.eq.s32.totalorder %s42, 3
      %p233 = scmp.ne.s32.totalorder %s228, %s230
      %p234 = scmp.eq.s32.totalorder %s42, 0
      %p235 = por %p233, %p234
      %p236 = scmp.ne.s32.totalorder %s228, %s230
      %p237 = scmp.eq.s32.totalorder %s47, 3
      %p238 = por %p236, %p237
      %p239 = scmp.ne.s32.totalorder %s230, %s231
      %p240 = scmp.eq.s32.totalorder %s47, 0
      %p241 = por %p239, %p240
      %p242 = scmp.ne.s32.totalorder %s230, %s231
      %p243 = scmp.eq.s32.totalorder %s48, 3
      %p244 = por %p242, %p243
      %p246 = scmp.ne.s32.totalorder %s231, %s245
      %p247 = scmp.eq.s32.totalorder %s48, 0
      %p248 = por %p246, %p247
      %s250 = sadd.s32 %s249, 1
      %p253 = scmp.eq.s32.totalorder %s42, 3
      %p254 = scmp.ne.s32.totalorder %s249, %s251
      %p255 = scmp.eq.s32.totalorder %s42, 0
      %p256 = por %p254, %p255
      %p257 = scmp.ne.s32.totalorder %s249, %s251
      %p258 = scmp.eq.s32.totalorder %s47, 3
      %p259 = por %p257, %p258
      %p260 = scmp.ne.s32.totalorder %s251, %s252
      %p261 = scmp.eq.s32.totalorder %s47, 0
      %p262 = por %p260, %p261
      %p263 = scmp.ne.s32.totalorder %s251, %s252
      %p264 = scmp.eq.s32.totalorder %s48, 3
      %p265 = por %p263, %p264
      %p267 = scmp.ne.s32.totalorder %s252, %s266
      %p268 = scmp.eq.s32.totalorder %s48, 0
      %p269 = por %p267, %p268
      %s271 = sadd.s32 %s270, 1
      %p274 = scmp.eq.s32.totalorder %s42, 3
      %p275 = scmp.ne.s32.totalorder %s270, %s272
      %p276 = scmp.eq.s32.totalorder %s42, 0
      %p277 = por %p275, %p276
      %p278 = scmp.ne.s32.totalorder %s270, %s272
      %p279 = scmp.eq.s32.totalorder %s47, 3
      %p280 = por %p278, %p279
      %p281 = scmp.ne.s32.totalorder %s272, %s273
      %p282 = scmp.eq.s32.totalorder %s47, 0
      %p283 = por %p281, %p282
      %p284 = scmp.ne.s32.totalorder %s272, %s273
      %p285 = scmp.eq.s32.totalorder %s48, 3
      %p286 = por %p284, %p285
      %p288 = scmp.ne.s32.totalorder %s273, %s287
      %p289 = scmp.eq.s32.totalorder %s48, 0
      %p290 = por %p288, %p289
      %s292 = sadd.s32 %s291, 1
      %p295 = scmp.eq.s32.totalorder %s42, 3
      %p296 = scmp.ne.s32.totalorder %s291, %s293
      %p297 = scmp.eq.s32.totalorder %s42, 0
      %p298 = por %p296, %p297
      %p299 = scmp.ne.s32.totalorder %s291, %s293
      %p300 = scmp.eq.s32.totalorder %s47, 3
      %p301 = por %p299, %p300
      %p302 = scmp.ne.s32.totalorder %s293, %s294
      %p303 = scmp.eq.s32.totalorder %s47, 0
      %p304 = por %p302, %p303
      %p305 = scmp.ne.s32.totalorder %s293, %s294
      %p306 = scmp.eq.s32.totalorder %s48, 3
      %p307 = por %p305, %p306
      %p309 = scmp.ne.s32.totalorder %s294, %s308
      %p310 = scmp.eq.s32.totalorder %s48, 0
      %p311 = por %p309, %p310
      %s313 = sadd.s32 %s312, 1
      %p316 = scmp.eq.s32.totalorder %s42, 3
      %p317 = scmp.ne.s32.totalorder %s312, %s314
      %p318 = scmp.eq.s32.totalorder %s42, 0
      %p319 = por %p317, %p318
      %p320 = scmp.ne.s32.totalorder %s312, %s314
      %p321 = scmp.eq.s32.totalorder %s47, 3
      %p322 = por %p320, %p321
      %p323 = scmp.ne.s32.totalorder %s314, %s315
      %p324 = scmp.eq.s32.totalorder %s47, 0
      %p325 = por %p323, %p324
      %p326 = scmp.ne.s32.totalorder %s314, %s315
      %p327 = scmp.eq.s32.totalorder %s48, 3
      %p328 = por %p326, %p327
      %p330 = scmp.ne.s32.totalorder %s315, %s329
      %p331 = scmp.eq.s32.totalorder %s48, 0
      %p332 = por %p330, %p331
      %s334 = sadd.s32 %s333, 1
      %p337 = scmp.eq.s32.totalorder %s42, 3
      %p338 = scmp.ne.s32.totalorder %s333, %s335
      %p339 = scmp.eq.s32.totalorder %s42, 0
      %p340 = por %p338, %p339
      %p341 = scmp.ne.s32.totalorder %s333, %s335
      %p342 = scmp.eq.s32.totalorder %s47, 3
      %p343 = por %p341, %p342
      %p344 = scmp.ne.s32.totalorder %s335, %s336
      %p345 = scmp.eq.s32.totalorder %s47, 0
      %p346 = por %p344, %p345
      %p347 = scmp.ne.s32.totalorder %s335, %s336
      %p348 = scmp.eq.s32.totalorder %s48, 3
      %p349 = por %p347, %p348
      %p351 = scmp.ne.s32.totalorder %s336, %s350
      %p352 = scmp.eq.s32.totalorder %s48, 0
      %p353 = por %p351, %p352
      %s355 = sadd.s32 %s354, 1
      %p358 = scmp.eq.s32.totalorder %s42, 3
      %p359 = scmp.ne.s32.totalorder %s354, %s356
      %p360 = scmp.eq.s32.totalorder %s42, 0
      %p361 = por %p359, %p360
      %p362 = scmp.ne.s32.totalorder %s354, %s356
      %p363 = scmp.eq.s32.totalorder %s47, 3
      %p364 = por %p362, %p363
      %p365 = scmp.ne.s32.totalorder %s356, %s357
      %p366 = scmp.eq.s32.totalorder %s47, 0
      %p367 = por %p365, %p366
      %p368 = scmp.ne.s32.totalorder %s356, %s357
      %p369 = scmp.eq.s32.totalorder %s48, 3
      %p370 = por %p368, %p369
      %p372 = scmp.ne.s32.totalorder %s357, %s371
      %p373 = scmp.eq.s32.totalorder %s48, 0
      %p374 = por %p372, %p373
      %s376 = sadd.s32 %s375, 1
      %p379 = scmp.eq.s32.totalorder %s42, 3
      %p380 = scmp.ne.s32.totalorder %s375, %s377
      %p381 = scmp.eq.s32.totalorder %s42, 0
      %p382 = por %p380, %p381
      %p383 = scmp.ne.s32.totalorder %s375, %s377
      %p384 = scmp.eq.s32.totalorder %s47, 3
      %p385 = por %p383, %p384
      %p386 = scmp.ne.s32.totalorder %s377, %s378
      %p387 = scmp.eq.s32.totalorder %s47, 0
      %p388 = por %p386, %p387
      %p389 = scmp.ne.s32.totalorder %s377, %s378
      %p390 = scmp.eq.s32.totalorder %s48, 3
      %p391 = por %p389, %p390
      %p393 = scmp.ne.s32.totalorder %s378, %s392
      %p394 = scmp.eq.s32.totalorder %s48, 0
      %p395 = por %p393, %p394
      %s397 = sadd.s32 %s396, 1
      %p400 = scmp.eq.s32.totalorder %s42, 3
      %p401 = scmp.ne.s32.totalorder %s396, %s398
      %p402 = scmp.eq.s32.totalorder %s42, 0
      %p403 = por %p401, %p402
      %p404 = scmp.ne.s32.totalorder %s396, %s398
      %p405 = scmp.eq.s32.totalorder %s47, 3
      %p406 = por %p404, %p405
      %p407 = scmp.ne.s32.totalorder %s398, %s399
      %p408 = scmp.eq.s32.totalorder %s47, 0
      %p409 = por %p407, %p408
      %p410 = scmp.ne.s32.totalorder %s398, %s399
      %p411 = scmp.eq.s32.totalorder %s48, 3
      %p412 = por %p410, %p411
      %p414 = scmp.ne.s32.totalorder %s399, %s413
      %p415 = scmp.eq.s32.totalorder %s48, 0
      %p416 = por %p414, %p415
      %s418 = sadd.s32 %s417, 1
      %p421 = scmp.eq.s32.totalorder %s42, 3
      %p422 = scmp.ne.s32.totalorder %s417, %s419
      %p423 = scmp.eq.s32.totalorder %s42, 0
      %p424 = por %p422, %p423
      %p425 = scmp.ne.s32.totalorder %s417, %s419
      %p426 = scmp.eq.s32.totalorder %s47, 3
      %p427 = por %p425, %p426
      %p428 = scmp.ne.s32.totalorder %s419, %s420
      %p429 = scmp.eq.s32.totalorder %s47, 0
      %p430 = por %p428, %p429
      %p431 = scmp.ne.s32.totalorder %s419, %s420
      %p432 = scmp.eq.s32.totalorder %s48, 3
      %p433 = por %p431, %p432
      %p435 = scmp.ne.s32.totalorder %s420, %s434
      %p436 = scmp.eq.s32.totalorder %s48, 0
      %p437 = por %p435, %p436
      %s439 = sadd.s32 %s438, 1
      %p442 = scmp.eq.s32.totalorder %s42, 3
      %p443 = scmp.ne.s32.totalorder %s438, %s440
      %p444 = scmp.eq.s32.totalorder %s42, 0
      %p445 = por %p443, %p444
      %p446 = scmp.ne.s32.totalorder %s438, %s440
      %p447 = scmp.eq.s32.totalorder %s47, 3
      %p448 = por %p446, %p447
      %p449 = scmp.ne.s32.totalorder %s440, %s441
      %p450 = scmp.eq.s32.totalorder %s47, 0
      %p451 = por %p449, %p450
      %p452 = scmp.ne.s32.totalorder %s440, %s441
      %p453 = scmp.eq.s32.totalorder %s48, 3
      %p454 = por %p452, %p453
      %p456 = scmp.ne.s32.totalorder %s441, %s455
      %p457 = scmp.eq.s32.totalorder %s48, 0
      %p458 = por %p456, %p457
      %s460 = sadd.s32 %s459, 1
      %p463 = scmp.eq.s32.totalorder %s42, 3
      %p464 = scmp.ne.s32.totalorder %s459, %s461
      %p465 = scmp.eq.s32.totalorder %s42, 0
      %p466 = por %p464, %p465
      %p467 = scmp.ne.s32.totalorder %s459, %s461
      %p468 = scmp.eq.s32.totalorder %s47, 3
      %p469 = por %p467, %p468
      %p470 = scmp.ne.s32.totalorder %s461, %s462
      %p471 = scmp.eq.s32.totalorder %s47, 0
      %p472 = por %p470, %p471
      %p473 = scmp.ne.s32.totalorder %s461, %s462
      %p474 = scmp.eq.s32.totalorder %s48, 3
      %p475 = por %p473, %p474
      %p477 = scmp.ne.s32.totalorder %s462, %s476
      %p478 = scmp.eq.s32.totalorder %s48, 0
      %p479 = por %p477, %p478
      %s480 = ssub.s32 %s49, %s61
      %s481 = ssub.s32 %s50, %s57
      %s482 = sor.u32 %s480, %s481
      %p483 = scmp.eq.s32.totalorder %s482, 0
      %s485 = sadd.s32 %s484, 1
      %s486 = scalar_select %p483, %s484, %s485
      %p489 = pneg %p483
      %p490 = scmp.eq.s32.totalorder %s42, 3
      %p491 = por %p489, %p490
      %p492 = scmp.ne.s32.totalorder %s484, %s487
      %p493 = scmp.eq.s32.totalorder %s42, 0
      %p494 = por %p492, %p493
      %p495 = scmp.ne.s32.totalorder %s484, %s487
      %p496 = scmp.eq.s32.totalorder %s47, 3
      %p497 = por %p495, %p496
      %p498 = scmp.ne.s32.totalorder %s487, %s488
      %p499 = scmp.eq.s32.totalorder %s47, 0
      %p500 = por %p498, %p499
      %p501 = scmp.ne.s32.totalorder %s487, %s488
      %p502 = scmp.eq.s32.totalorder %s48, 3
      %p503 = por %p501, %p502
      %p505 = scmp.ne.s32.totalorder %s488, %s504
      %p506 = scmp.eq.s32.totalorder %s48, 0
      %p507 = por %p505, %p506
      %p508 = scmp.le.s32.totalorder 1, %s42
      %p509 = scmp.lt.s32.totalorder %s42, 5
      %p510 = pnand %p508, %p509
      %p511 = pneg %p510
      // Predicated region
      $region9: #{tpu_custom_call.1} parent=5 // pred_check
        _
      $region10: #{tpu_custom_call.1} parent=5 // pred_check_branch
        %513 = sbr.rel (%p510) target = $region12
      $region11: #{tpu_custom_call.1} parent=5 // pred_region
        %s514 = ssub.s32 %s42, 1
        // Predicated region
        $region13: #{tpu_custom_call.1} parent=11 // pred_check
          %p515 = pneg %p157
        $region14: #{tpu_custom_call.1} parent=11 // pred_check_branch
          %517 = sbr.rel (%p515) target = $region16
        $region15: #{tpu_custom_call.1} parent=11 // pred_region
          %s519 = ssub.s32 256, 256
          %520 = vsyncadd [#allocation11], %s519
          %s521 = sshll.u32 [#allocation10], 4
          %s522 = int_to_ptr.vmem [resolvable:$true] %s521
          %527 = dma.hbm_to_vmem [thread:$0]  %s3, 256, %s522, [#allocation11], 64, 64, 4
        $region16: #{tpu_custom_call.1} parent=11 // pred_fallthru
          _
        // Predicated region
        $region17: #{tpu_custom_call.1} parent=11 // pred_check
          %p528 = pneg %p178
        $region18: #{tpu_custom_call.1} parent=11 // pred_check_branch
          %530 = sbr.rel (%p528) target = $region20
        $region19: #{tpu_custom_call.1} parent=11 // pred_region
          %s532 = ssub.s32 16, 16
          %533 = vsyncadd [#allocation11], %s532
          %s535 = sshll.u32 [#allocation12], 4
          %s536 = int_to_ptr.vmem [resolvable:$true] %s535
          %538 = dma.hbm_to_vmem [thread:$0]  %s4, 16, %s536, [#allocation11]
        $region20: #{tpu_custom_call.1} parent=11 // pred_fallthru
          _
        // Predicated region
        $region21: #{tpu_custom_call.1} parent=11 // pred_check
          %p539 = pneg %p199
        $region22: #{tpu_custom_call.1} parent=11 // pred_check_branch
          %541 = sbr.rel (%p539) target = $region24
        $region23: #{tpu_custom_call.1} parent=11 // pred_region
          %s543 = ssub.s32 1024, 1024
          %544 = vsyncadd [#allocation14], %s543
          %s545 = sshll.u32 [#allocation13], 4
          %s546 = int_to_ptr.vmem [resolvable:$true] %s545
          %551 = dma.hbm_to_vmem [thread:$0]  %s5, 1024, %s546, [#allocation14], 64, 64, 4
        $region24: #{tpu_custom_call.1} parent=11 // pred_fallthru
          _
        // Predicated region
        $region25: #{tpu_custom_call.1} parent=11 // pred_check
          %p552 = pneg %p220
        $region26: #{tpu_custom_call.1} parent=11 // pred_check_branch
          %554 = sbr.rel (%p552) target = $region28
        $region27: #{tpu_custom_call.1} parent=11 // pred_region
          %s556 = ssub.s32 64, 64
          %557 = vsyncadd [#allocation14], %s556
          %s558 = sshll.u32 [#allocation15], 4
          %s559 = int_to_ptr.vmem [resolvable:$true] %s558
          %564 = dma.hbm_to_vmem [thread:$0]  %s6, 64, %s559, [#allocation14], 16, 16, 1
        $region28: #{tpu_custom_call.1} parent=11 // pred_fallthru
          _
        // Predicated region
        $region29: #{tpu_custom_call.1} parent=11 // pred_check
          %p565 = pneg %p241
        $region30: #{tpu_custom_call.1} parent=11 // pred_check_branch
          %567 = sbr.rel (%p565) target = $region32
        $region31: #{tpu_custom_call.1} parent=11 // pred_region
          %s569 = ssub.s32 1024, 1024
          %570 = vsyncadd [#allocation17], %s569
          %s571 = sshll.u32 [#allocation16], 4
          %s572 = int_to_ptr.vmem [resolvable:$true] %s571
          %577 = dma.hbm_to_vmem [thread:$0]  %s7, 1024, %s572, [#allocation17], 64, 64, 4
        $region32: #{tpu_custom_call.1} parent=11 // pred_fallthru
          _
        // Predicated region
        $region33: #{tpu_custom_call.1} parent=11 // pred_check
          %p578 = pneg %p262
        $region34: #{tpu_custom_call.1} parent=11 // pred_check_branch
          %580 = sbr.rel (%p578) target = $region36
        $region35: #{tpu_custom_call.1} parent=11 // pred_region
          %s582 = ssub.s32 64, 64
          %583 = vsyncadd [#allocation17], %s582
          %s584 = sshll.u32 [#allocation18], 4
          %s585 = int_to_ptr.vmem [resolvable:$true] %s584
          %590 = dma.hbm_to_vmem [thread:$0]  %s8, 64, %s585, [#allocation17], 16, 16, 1
        $region36: #{tpu_custom_call.1} parent=11 // pred_fallthru
          _
        // Predicated region
        $region37: #{tpu_custom_call.1} parent=11 // pred_check
          %p591 = pneg %p283
        $region38: #{tpu_custom_call.1} parent=11 // pred_check_branch
          %593 = sbr.rel (%p591) target = $region40
        $region39: #{tpu_custom_call.1} parent=11 // pred_region
          %s595 = ssub.s32 256, 256
          %596 = vsyncadd [#allocation20], %s595
          %s597 = sshll.u32 [#allocation19], 4
          %s598 = int_to_ptr.vmem [resolvable:$true] %s597
          %603 = dma.hbm_to_vmem [thread:$0]  %s9, 256, %s598, [#allocation20], 64, 64, 4
        $region40: #{tpu_custom_call.1} parent=11 // pred_fallthru
          _
        // Predicated region
        $region41: #{tpu_custom_call.1} parent=11 // pred_check
          %p604 = pneg %p304
        $region42: #{tpu_custom_call.1} parent=11 // pred_check_branch
          %606 = sbr.rel (%p604) target = $region44
        $region43: #{tpu_custom_call.1} parent=11 // pred_region
          %s608 = ssub.s32 16, 16
          %609 = vsyncadd [#allocation20], %s608
          %s611 = sshll.u32 [#allocation21], 4
          %s612 = int_to_ptr.vmem [resolvable:$true] %s611
          %614 = dma.hbm_to_vmem [thread:$0]  %s10, 16, %s612, [#allocation20]
        $region44: #{tpu_custom_call.1} parent=11 // pred_fallthru
          _
        // Predicated region
        $region45: #{tpu_custom_call.1} parent=11 // pred_check
          %p615 = pneg %p325
        $region46: #{tpu_custom_call.1} parent=11 // pred_check_branch
          %617 = sbr.rel (%p615) target = $region48
        $region47: #{tpu_custom_call.1} parent=11 // pred_region
          %s619 = ssub.s32 16, 16
          %620 = vsyncadd [#allocation23], %s619
          %s622 = sshll.u32 [#allocation22], 4
          %s623 = int_to_ptr.vmem [resolvable:$true] %s622
          %625 = dma.hbm_to_vmem [thread:$0]  %s11, 16, %s623, [#allocation23]
        $region48: #{tpu_custom_call.1} parent=11 // pred_fallthru
          _
        // Predicated region
        $region49: #{tpu_custom_call.1} parent=11 // pred_check
          %p626 = pneg %p346
        $region50: #{tpu_custom_call.1} parent=11 // pred_check_branch
          %628 = sbr.rel (%p626) target = $region52
        $region51: #{tpu_custom_call.1} parent=11 // pred_region
          %s630 = ssub.s32 16, 16
          %631 = vsyncadd [#allocation23], %s630
          %s633 = sshll.u32 [#allocation24], 4
          %s634 = int_to_ptr.vmem [resolvable:$true] %s633
          %636 = dma.hbm_to_vmem [thread:$0]  %s12, 16, %s634, [#allocation23]
        $region52: #{tpu_custom_call.1} parent=11 // pred_fallthru
          _
        // Predicated region
        $region53: #{tpu_custom_call.1} parent=11 // pred_check
          %p637 = pneg %p367
        $region54: #{tpu_custom_call.1} parent=11 // pred_check_branch
          %639 = sbr.rel (%p637) target = $region56
        $region55: #{tpu_custom_call.1} parent=11 // pred_region
          %s641 = ssub.s32 16, 16
          %642 = vsyncadd [#allocation26], %s641
          %s644 = sshll.u32 [#allocation25], 4
          %s645 = int_to_ptr.vmem [resolvable:$true] %s644
          %647 = dma.hbm_to_vmem [thread:$0]  %s13, 16, %s645, [#allocation26]
        $region56: #{tpu_custom_call.1} parent=11 // pred_fallthru
          _
        // Predicated region
        $region57: #{tpu_custom_call.1} parent=11 // pred_check
          %p648 = pneg %p388
        $region58: #{tpu_custom_call.1} parent=11 // pred_check_branch
          %650 = sbr.rel (%p648) target = $region60
        $region59: #{tpu_custom_call.1} parent=11 // pred_region
          %s652 = ssub.s32 16, 16
          %653 = vsyncadd [#allocation26], %s652
          %s655 = sshll.u32 [#allocation27], 4
          %s656 = int_to_ptr.vmem [resolvable:$true] %s655
          %658 = dma.hbm_to_vmem [thread:$0]  %s14, 16, %s656, [#allocation26]
        $region60: #{tpu_custom_call.1} parent=11 // pred_fallthru
          _
        // Predicated region
        $region61: #{tpu_custom_call.1} parent=11 // pred_check
          %p659 = pneg %p409
        $region62: #{tpu_custom_call.1} parent=11 // pred_check_branch
          %661 = sbr.rel (%p659) target = $region64
        $region63: #{tpu_custom_call.1} parent=11 // pred_region
          %s663 = ssub.s32 256, 256
          %664 = vsyncadd [#allocation29], %s663
          %s665 = sshll.u32 [#allocation28], 4
          %s666 = int_to_ptr.vmem [resolvable:$true] %s665
          %671 = dma.hbm_to_vmem [thread:$0]  %s15, 256, %s666, [#allocation29], 64, 64, 4
        $region64: #{tpu_custom_call.1} parent=11 // pred_fallthru
          _
        // Predicated region
        $region65: #{tpu_custom_call.1} parent=11 // pred_check
          %p672 = pneg %p430
        $region66: #{tpu_custom_call.1} parent=11 // pred_check_branch
          %674 = sbr.rel (%p672) target = $region68
        $region67: #{tpu_custom_call.1} parent=11 // pred_region
          %s676 = ssub.s32 16, 16
          %677 = vsyncadd [#allocation29], %s676
          %s679 = sshll.u32 [#allocation30], 4
          %s680 = int_to_ptr.vmem [resolvable:$true] %s679
          %682 = dma.hbm_to_vmem [thread:$0]  %s16, 16, %s680, [#allocation29]
        $region68: #{tpu_custom_call.1} parent=11 // pred_fallthru
          _
        // Predicated region
        $region69: #{tpu_custom_call.1} parent=11 // pred_check
          %p683 = pneg %p451
        $region70: #{tpu_custom_call.1} parent=11 // pred_check_branch
          %685 = sbr.rel (%p683) target = $region72
        $region71: #{tpu_custom_call.1} parent=11 // pred_region
          %s687 = ssub.s32 512, 512
          %688 = vsyncadd [#allocation32], %s687
          %s689 = sshll.u32 [#allocation31], 4
          %s690 = int_to_ptr.vmem [resolvable:$true] %s689
          %695 = dma.hbm_to_vmem [thread:$0]  %s17, 512, %s690, [#allocation32], 64, 64, 4
        $region72: #{tpu_custom_call.1} parent=11 // pred_fallthru
          _
        // Predicated region
        $region73: #{tpu_custom_call.1} parent=11 // pred_check
          %p696 = pneg %p472
        $region74: #{tpu_custom_call.1} parent=11 // pred_check_branch
          %698 = sbr.rel (%p696) target = $region76
        $region75: #{tpu_custom_call.1} parent=11 // pred_region
          %s700 = ssub.s32 16, 16
          %701 = vsyncadd [#allocation32], %s700
          %s703 = sshll.u32 [#allocation33], 4
          %s704 = int_to_ptr.vmem [resolvable:$true] %s703
          %706 = dma.hbm_to_vmem [thread:$0]  %s18, 16, %s704, [#allocation32]
        $region76: #{tpu_custom_call.1} parent=11 // pred_fallthru
          _
      $region12: #{tpu_custom_call.1} parent=5 // pred_fallthru
        _
      %p707 = scmp.lt.s32.totalorder %s42, 4
      // Predicated region
      $region77: #{tpu_custom_call.1} parent=5 // pred_check
        %p708 = pneg %p707
      $region78: #{tpu_custom_call.1} parent=5 // pred_check_branch
        %710 = sbr.rel (%p708) target = $region80
      $region79: #{tpu_custom_call.1} parent=5 // pred_region
        // Predicated region
        $region81: #{tpu_custom_call.1} parent=79 // pred_check
          %p711 = pneg %p76
        $region82: #{tpu_custom_call.1} parent=79 // pred_check_branch
          %713 = sbr.rel (%p711) target = $region84
        $region83: #{tpu_custom_call.1} parent=79 // pred_region
          %s714 = sand.u32 %s66, 1
          %s715 = scalar_lea.sflag [#allocation5], %s714
          %s716 = sand.u32 %s66, 1
          %s717 = smul.addr %s716, 32
          %s718 = scalar_lea.vmem [#allocation4], %s717
          %s719 = smul.u32 4, %s50
          %s721 = ssub.s32 512, 512
          %722 = vsyncadd %s715, %s721
          %s723 = smul.addr %s49, 8
          %s724 = sadd.s32 %s719, %s723
          %s725 = smul.addr %s724, 128
          %s726 = scalar_lea.hbm %s0, %s725
          %s727 = sshll.u32 %s718, 4
          %s728 = int_to_ptr.vmem [resolvable:$true] %s727
          %733 = dma.hbm_to_vmem [thread:$0]  %s726, 512, %s728, %s715, 128, 128, 8
        $region84: #{tpu_custom_call.1} parent=79 // pred_fallthru
          _
        // Predicated region
        $region85: #{tpu_custom_call.1} parent=79 // pred_check
          %p734 = pneg %p102
        $region86: #{tpu_custom_call.1} parent=79 // pred_check_branch
          %736 = sbr.rel (%p734) target = $region88
        $region87: #{tpu_custom_call.1} parent=79 // pred_region
          %s737 = sand.u32 %s42, 1
          %s738 = scalar_lea.sflag [#allocation8], %s737
          %s739 = sand.u32 %s92, 1
          %s740 = smul.addr %s739, 32
          %s741 = scalar_lea.vmem [#allocation7], %s740
          %s743 = ssub.s32 512, 512
          %744 = vsyncadd %s738, %s743
          %s745 = smul.addr %s49, 8
          %s746 = smul.addr %s745, 64
          %s747 = scalar_lea.hbm %s1, %s746
          %s748 = sshll.u32 %s741, 4
          %s749 = int_to_ptr.vmem [resolvable:$true] %s748
          %754 = dma.hbm_to_vmem [thread:$0]  %s747, 512, %s749, %s738, 64, 64, 4
        $region88: #{tpu_custom_call.1} parent=79 // pred_fallthru
          _
        // Predicated region
        $region89: #{tpu_custom_call.1} parent=79 // pred_check
          %p755 = pneg %p130
        $region90: #{tpu_custom_call.1} parent=79 // pred_check_branch
          %757 = sbr.rel (%p755) target = $region92
        $region91: #{tpu_custom_call.1} parent=79 // pred_region
          %s758 = sand.u32 %s42, 1
          %s759 = scalar_lea.sflag [#allocation8], %s758
          %s760 = sand.u32 %s120, 1
          %s761 = smul.addr %s760, 8
          %s762 = scalar_lea.vmem [#allocation9], %s761
          %s764 = ssub.s32 128, 128
          %765 = vsyncadd %s759, %s764
          %s766 = smul.addr %s49, 2
          %s767 = sadd.s32 %s50, %s766
          %s768 = smul.addr %s767, 128
          %s769 = scalar_lea.hbm %s2, %s768
          %s771 = sshll.u32 %s762, 4
          %s772 = int_to_ptr.vmem [resolvable:$true] %s771
          %774 = dma.hbm_to_vmem [thread:$0]  %s769, 128, %s772, %s759
        $region92: #{tpu_custom_call.1} parent=79 // pred_fallthru
          _
      $region80: #{tpu_custom_call.1} parent=5 // pred_fallthru
        _
      %p775 = scmp.le.s32.totalorder 1, %s42
      %p776 = scmp.lt.s32.totalorder %s42, 5
      %p777 = pnand %p775, %p776
      %p778 = pneg %p777
      // Predicated region
      $region93: #{tpu_custom_call.1} parent=5 // pred_check
        _
      $region94: #{tpu_custom_call.1} parent=5 // pred_check_branch
        %780 = sbr.rel (%p777) target = $region96
      $region95: #{tpu_custom_call.1} parent=5 // pred_region
        %s781 = ssub.s32 %s42, 1
        %s782 = sand.u32 %s69, 1
        %s783 = scalar_lea.sflag [#allocation5], %s782
        %s784 = sand.u32 %s69, 1
        %s785 = smul.addr %s784, 32
        %s786 = scalar_lea.vmem [#allocation4], %s785
        // Predicated region
        $region97: #{tpu_custom_call.1} parent=95 // pred_check
          %p787 = pneg %p82
        $region98: #{tpu_custom_call.1} parent=95 // pred_check_branch
          %789 = sbr.rel (%p787) target = $region100
        $region99: #{tpu_custom_call.1} parent=95 // pred_region
          %790 = dma.done %s783, 512
        $region100: #{tpu_custom_call.1} parent=95 // pred_fallthru
          _
        %s791 = sand.u32 %s47, 1
        %s792 = scalar_lea.sflag [#allocation8], %s791
        %s793 = sand.u32 %s95, 1
        %s794 = smul.addr %s793, 32
        %s795 = scalar_lea.vmem [#allocation7], %s794
        // Predicated region
        $region101: #{tpu_custom_call.1} parent=95 // pred_check
          %p796 = pneg %p108
        $region102: #{tpu_custom_call.1} parent=95 // pred_check_branch
          %798 = sbr.rel (%p796) target = $region104
        $region103: #{tpu_custom_call.1} parent=95 // pred_region
          %799 = dma.done %s792, 512
        $region104: #{tpu_custom_call.1} parent=95 // pred_fallthru
          _
        %s800 = sand.u32 %s47, 1
        %s801 = scalar_lea.sflag [#allocation8], %s800
        %s802 = sand.u32 %s123, 1
        %s803 = smul.addr %s802, 8
        %s804 = scalar_lea.vmem [#allocation9], %s803
        // Predicated region
        $region105: #{tpu_custom_call.1} parent=95 // pred_check
          %p805 = pneg %p136
        $region106: #{tpu_custom_call.1} parent=95 // pred_check_branch
          %807 = sbr.rel (%p805) target = $region108
        $region107: #{tpu_custom_call.1} parent=95 // pred_region
          %808 = dma.done %s801, 128
        $region108: #{tpu_custom_call.1} parent=95 // pred_fallthru
          _
        // Predicated region
        $region109: #{tpu_custom_call.1} parent=95 // pred_check
          %p809 = pneg %p157
        $region110: #{tpu_custom_call.1} parent=95 // pred_check_branch
          %811 = sbr.rel (%p809) target = $region112
        $region111: #{tpu_custom_call.1} parent=95 // pred_region
          %812 = dma.done [#allocation11], 256
        $region112: #{tpu_custom_call.1} parent=95 // pred_fallthru
          _
        // Predicated region
        $region113: #{tpu_custom_call.1} parent=95 // pred_check
          %p813 = pneg %p178
        $region114: #{tpu_custom_call.1} parent=95 // pred_check_branch
          %815 = sbr.rel (%p813) target = $region116
        $region115: #{tpu_custom_call.1} parent=95 // pred_region
          %816 = dma.done [#allocation11], 16
        $region116: #{tpu_custom_call.1} parent=95 // pred_fallthru
          _
        // Predicated region
        $region117: #{tpu_custom_call.1} parent=95 // pred_check
          %p817 = pneg %p199
        $region118: #{tpu_custom_call.1} parent=95 // pred_check_branch
          %819 = sbr.rel (%p817) target = $region120
        $region119: #{tpu_custom_call.1} parent=95 // pred_region
          %820 = dma.done [#allocation14], 1024
        $region120: #{tpu_custom_call.1} parent=95 // pred_fallthru
          _
        // Predicated region
        $region121: #{tpu_custom_call.1} parent=95 // pred_check
          %p821 = pneg %p220
        $region122: #{tpu_custom_call.1} parent=95 // pred_check_branch
          %823 = sbr.rel (%p821) target = $region124
        $region123: #{tpu_custom_call.1} parent=95 // pred_region
          %824 = dma.done [#allocation14], 64
        $region124: #{tpu_custom_call.1} parent=95 // pred_fallthru
          _
        // Predicated region
        $region125: #{tpu_custom_call.1} parent=95 // pred_check
          %p825 = pneg %p241
        $region126: #{tpu_custom_call.1} parent=95 // pred_check_branch
          %827 = sbr.rel (%p825) target = $region128
        $region127: #{tpu_custom_call.1} parent=95 // pred_region
          %828 = dma.done [#allocation17], 1024
        $region128: #{tpu_custom_call.1} parent=95 // pred_fallthru
          _
        // Predicated region
        $region129: #{tpu_custom_call.1} parent=95 // pred_check
          %p829 = pneg %p262
        $region130: #{tpu_custom_call.1} parent=95 // pred_check_branch
          %831 = sbr.rel (%p829) target = $region132
        $region131: #{tpu_custom_call.1} parent=95 // pred_region
          %832 = dma.done [#allocation17], 64
        $region132: #{tpu_custom_call.1} parent=95 // pred_fallthru
          _
        // Predicated region
        $region133: #{tpu_custom_call.1} parent=95 // pred_check
          %p833 = pneg %p283
        $region134: #{tpu_custom_call.1} parent=95 // pred_check_branch
          %835 = sbr.rel (%p833) target = $region136
        $region135: #{tpu_custom_call.1} parent=95 // pred_region
          %836 = dma.done [#allocation20], 256
        $region136: #{tpu_custom_call.1} parent=95 // pred_fallthru
          _
        // Predicated region
        $region137: #{tpu_custom_call.1} parent=95 // pred_check
          %p837 = pneg %p304
        $region138: #{tpu_custom_call.1} parent=95 // pred_check_branch
          %839 = sbr.rel (%p837) target = $region140
        $region139: #{tpu_custom_call.1} parent=95 // pred_region
          %840 = dma.done [#allocation20], 16
        $region140: #{tpu_custom_call.1} parent=95 // pred_fallthru
          _
        // Predicated region
        $region141: #{tpu_custom_call.1} parent=95 // pred_check
          %p841 = pneg %p325
        $region142: #{tpu_custom_call.1} parent=95 // pred_check_branch
          %843 = sbr.rel (%p841) target = $region144
        $region143: #{tpu_custom_call.1} parent=95 // pred_region
          %844 = dma.done [#allocation23], 16
        $region144: #{tpu_custom_call.1} parent=95 // pred_fallthru
          _
        // Predicated region
        $region145: #{tpu_custom_call.1} parent=95 // pred_check
          %p845 = pneg %p346
        $region146: #{tpu_custom_call.1} parent=95 // pred_check_branch
          %847 = sbr.rel (%p845) target = $region148
        $region147: #{tpu_custom_call.1} parent=95 // pred_region
          %848 = dma.done [#allocation23], 16
        $region148: #{tpu_custom_call.1} parent=95 // pred_fallthru
          _
        // Predicated region
        $region149: #{tpu_custom_call.1} parent=95 // pred_check
          %p849 = pneg %p367
        $region150: #{tpu_custom_call.1} parent=95 // pred_check_branch
          %851 = sbr.rel (%p849) target = $region152
        $region151: #{tpu_custom_call.1} parent=95 // pred_region
          %852 = dma.done [#allocation26], 16
        $region152: #{tpu_custom_call.1} parent=95 // pred_fallthru
          _
        // Predicated region
        $region153: #{tpu_custom_call.1} parent=95 // pred_check
          %p853 = pneg %p388
        $region154: #{tpu_custom_call.1} parent=95 // pred_check_branch
          %855 = sbr.rel (%p853) target = $region156
        $region155: #{tpu_custom_call.1} parent=95 // pred_region
          %856 = dma.done [#allocation26], 16
        $region156: #{tpu_custom_call.1} parent=95 // pred_fallthru
          _
        // Predicated region
        $region157: #{tpu_custom_call.1} parent=95 // pred_check
          %p857 = pneg %p409
        $region158: #{tpu_custom_call.1} parent=95 // pred_check_branch
          %859 = sbr.rel (%p857) target = $region160
        $region159: #{tpu_custom_call.1} parent=95 // pred_region
          %860 = dma.done [#allocation29], 256
        $region160: #{tpu_custom_call.1} parent=95 // pred_fallthru
          _
        // Predicated region
        $region161: #{tpu_custom_call.1} parent=95 // pred_check
          %p861 = pneg %p430
        $region162: #{tpu_custom_call.1} parent=95 // pred_check_branch
          %863 = sbr.rel (%p861) target = $region164
        $region163: #{tpu_custom_call.1} parent=95 // pred_region
          %864 = dma.done [#allocation29], 16
        $region164: #{tpu_custom_call.1} parent=95 // pred_fallthru
          _
        // Predicated region
        $region165: #{tpu_custom_call.1} parent=95 // pred_check
          %p865 = pneg %p451
        $region166: #{tpu_custom_call.1} parent=95 // pred_check_branch
          %867 = sbr.rel (%p865) target = $region168
        $region167: #{tpu_custom_call.1} parent=95 // pred_region
          %868 = dma.done [#allocation32], 512
        $region168: #{tpu_custom_call.1} parent=95 // pred_fallthru
          _
        // Predicated region
        $region169: #{tpu_custom_call.1} parent=95 // pred_check
          %p869 = pneg %p472
        $region170: #{tpu_custom_call.1} parent=95 // pred_check_branch
          %871 = sbr.rel (%p869) target = $region172
        $region171: #{tpu_custom_call.1} parent=95 // pred_region
          %872 = dma.done [#allocation32], 16
        $region172: #{tpu_custom_call.1} parent=95 // pred_fallthru
          _
        %s873 = sand.u32 %s69, 1
        %s874 = scalar_lea.sflag [#allocation5], %s873
        %s875 = sand.u32 %s69, 1
        %s876 = smul.addr %s875, 32
        %s877 = scalar_lea.vmem [#allocation4], %s876
        %p878 = pneg %p82
        %p879 = pneg %p79
        %s880 = sand.u32 %s47, 1
        %s881 = scalar_lea.sflag [#allocation8], %s880
        %s882 = sand.u32 %s95, 1
        %s883 = smul.addr %s882, 32
        %s884 = scalar_lea.vmem [#allocation7], %s883
        %p885 = pneg %p108
        %p886 = pneg %p105
        %s887 = sand.u32 %s47, 1
        %s888 = scalar_lea.sflag [#allocation8], %s887
        %s889 = sand.u32 %s123, 1
        %s890 = smul.addr %s889, 8
        %s891 = scalar_lea.vmem [#allocation9], %s890
        %p892 = pneg %p136
        %p893 = pneg %p133
        %p894 = pneg %p157
        %p895 = pneg %p154
        %p896 = pneg %p178
        %p897 = pneg %p175
        %p898 = pneg %p199
        %p899 = pneg %p196
        %p900 = pneg %p220
        %p901 = pneg %p217
        %p902 = pneg %p241
        %p903 = pneg %p238
        %p904 = pneg %p262
        %p905 = pneg %p259
        %p906 = pneg %p283
        %p907 = pneg %p280
        %p908 = pneg %p304
        %p909 = pneg %p301
        %p910 = pneg %p325
        %p911 = pneg %p322
        %p912 = pneg %p346
        %p913 = pneg %p343
        %p914 = pneg %p367
        %p915 = pneg %p364
        %p916 = pneg %p388
        %p917 = pneg %p385
        %p918 = pneg %p409
        %p919 = pneg %p406
        %p920 = pneg %p430
        %p921 = pneg %p427
        %p922 = pneg %p451
        %p923 = pneg %p448
        %p924 = pneg %p472
        %p925 = pneg %p469
        %p926 = pneg %p500
        %p927 = pneg %p497
        %s928 = sand.u32 %s487, 1
        %s929 = scalar_lea.sflag [#allocation6], %s928
        %s930 = sand.u32 %s487, 1
        %s931 = smul.addr %s930, 32
        %s932 = scalar_lea.vmem [#allocation34], %s931
        %s933 = smul.u32 4, %s52
        %s934 = smul.u32 4, %s52
        %p938 = scmp.eq.s32.totalorder %s52, 0
        // Predicated region
        $region173: #{tpu_custom_call.1} parent=95 // pred_check
          %p939 = pneg %p938
        $region174: #{tpu_custom_call.1} parent=95 // pred_check_branch
          %941 = sbr.rel (%p939) target = $region176
        $region175: #{tpu_custom_call.1} parent=95 // pred_region
          %v942 = vld [vmem:[%s795] sm:$0xf]
          %v943 = vld [vmem:[%s795 + $0x4] sm:$0xf]
          %v944 = vld [vmem:[%s795 + $0x8] sm:$0xf]
          %v945 = vld [vmem:[%s795 + $0xc] sm:$0xf]
          %v946 = vld [vmem:[%s795 + $0x10] sm:$0xf]
          %v947 = vld [vmem:[%s795 + $0x14] sm:$0xf]
          %v948 = vld [vmem:[%s795 + $0x18] sm:$0xf]
          %v949 = vld [vmem:[%s795 + $0x1c] sm:$0xf]
          %v950 = vld [vmem:[#allocation13] sm:$0xf]
          %v951 = vld [vmem:[#allocation13 + $0x4] sm:$0xf]
          %v952 = vld [vmem:[#allocation13 + $0x8] sm:$0xf]
          %v953 = vld [vmem:[#allocation13 + $0xc] sm:$0xf]
          %v954 = vld [vmem:[#allocation15] sm:$0x1]
          %v956 = vlaneseq
          %v957 = vshrl.u32 %v956, 7
          %v958 = vsub.s32 0, %v957
          %v959 = vrot.slane %v954, %v958
          %v969 = vunpack.c.l.b16 %v942
          %v970 = vunpack.c.l.b16 %v943
          %v971 = vunpack.c.l.b16 %v944
          %v972 = vunpack.c.l.b16 %v945
          %v973 = vunpack.c.l.b16 %v946
          %v974 = vunpack.c.l.b16 %v947
          %v975 = vunpack.c.l.b16 %v948
          %v976 = vunpack.c.l.b16 %v949
          %v977 = vpack.c.b16 %v970, %v969
          %v978 = vpack.c.b16 %v972, %v971
          %v979 = vpack.c.b16 %v974, %v973
          %v980 = vpack.c.b16 %v976, %v975
          %v985 = vunpack.c.l.b16 %v950
          %v986 = vunpack.c.l.b16 %v951
          %v987 = vunpack.c.l.b16 %v952
          %v988 = vunpack.c.l.b16 %v953
          %v989 = vpack.c.b16 %v986, %v985
          %v990 = vpack.c.b16 %v988, %v987
          %vm993 = vcmask 261120
          %v995 = vsel %vm993, %v977, 0
          %v998 = vsel %vm993, %v978, 0
          %v1001 = vsel %vm993, %v979, 0
          %v1004 = vsel %vm993, %v980, 0
          %1006 = vmatprep.subr.bf16.mxu0 0
          %1007 = vmatpush1.bf16.msra.mxu0 %v989
          %1008 = vmatprep.subr.bf16.mxu0 0
          %1009 = vmatpush1.bf16.msra.mxu0 %v990
          %1010 = vmatprep.subr.bf16.mxu0 0
          %1011 = vmatpush1.bf16.msra.mxu0 0
          %1012 = vmatprep.subr.bf16.mxu0 0
          %1013 = vmatpush1.bf16.msra.mxu0 0
          %1014 = vmatprep.subr.bf16.mxu0 0
          %1015 = vmatpush1.bf16.msra.mxu0 0
          %1016 = vmatprep.subr.bf16.mxu0 0
          %1017 = vmatpush1.bf16.msra.mxu0 0
          %1018 = vmatprep.subr.bf16.mxu0 0
          %1019 = vmatpush1.bf16.msra.mxu0 0
          %1020 = vmatprep.subr.bf16.mxu0 0
          %1021 = vmatpush1.bf16.msra.mxu0 0
          %1022 = vmatprep.subr.bf16.mxu0 0
          %1023 = vmatpush1.bf16.msra.mxu0 0
          %1024 = vmatprep.subr.bf16.mxu0 0
          %1025 = vmatpush1.bf16.msra.mxu0 0
          %1026 = vmatprep.subr.bf16.mxu0 0
          %1027 = vmatpush1.bf16.msra.mxu0 0
          %1028 = vmatprep.subr.bf16.mxu0 0
          %1029 = vmatpush1.bf16.msra.mxu0 0
          %1030 = vmatprep.subr.bf16.mxu0 0
          %1031 = vmatpush1.bf16.msra.mxu0 0
          %1032 = vmatprep.subr.bf16.mxu0 0
          %1033 = vmatpush1.bf16.msra.mxu0 0
          %1034 = vmatprep.subr.bf16.mxu0 0
          %1035 = vmatpush1.bf16.msra.mxu0 0
          %1036 = vmatprep.subr.bf16.mxu0 0
          %1037 = vmatpush1.bf16.msra.mxu0 0
          %1038 = vmatprep.mubr.bf16.mxu0 0
          %1039 = vmatmul.mubr.bf16.gmra.mrb[0].mxu0 %v995
          %v1040 = vpop.f32.mrb[0].mxu0
          %v1041 = vadd.f32 %v959, %v1040
          %v1042 = vpop.f32.mrb[0].mxu0
          %v1043 = vpop.f32.mrb[0].mxu0
          %v1044 = vadd.f32 %v959, %v1043
          %v1045 = vpop.f32.mrb[0].mxu0
          %1046 = vmatprep.mubr.bf16.mxu0 0
          %1047 = vmatmul.mubr.bf16.gmra.mrb[0].mxu0 %v998
          %v1048 = vpop.f32.mrb[0].mxu0
          %v1049 = vadd.f32 %v959, %v1048
          %v1050 = vpop.f32.mrb[0].mxu0
          %v1051 = vpop.f32.mrb[0].mxu0
          %v1052 = vadd.f32 %v959, %v1051
          %v1053 = vpop.f32.mrb[0].mxu0
          %1054 = vmatprep.mubr.bf16.mxu0 0
          %1055 = vmatmul.mubr.bf16.gmra.mrb[0].mxu0 %v1001
          %v1056 = vpop.f32.mrb[0].mxu0
          %v1057 = vadd.f32 %v959, %v1056
          %v1058 = vpop.f32.mrb[0].mxu0
          %v1059 = vpop.f32.mrb[0].mxu0
          %v1060 = vadd.f32 %v959, %v1059
          %v1061 = vpop.f32.mrb[0].mxu0
          %1062 = vmatprep.mubr.bf16.mxu0 0
          %1063 = vmatmul.mubr.bf16.gmra.mrb[0].mxu0 %v1004
          %v1064 = vpop.f32.mrb[0].mxu0
          %v1065 = vadd.f32 %v959, %v1064
          %v1066 = vpop.f32.mrb[0].mxu0
          %v1067 = vpop.f32.mrb[0].mxu0
          %v1068 = vadd.f32 %v959, %v1067
          %v1069 = vpop.f32.mrb[0].mxu0
          %1070 = vdwg.mxu0
          %v1071 = vld [vmem:[#allocation16] sm:$0xf]
          %v1072 = vld [vmem:[#allocation16 + $0x4] sm:$0xf]
          %v1073 = vld [vmem:[#allocation16 + $0x8] sm:$0xf]
          %v1074 = vld [vmem:[#allocation16 + $0xc] sm:$0xf]
          %v1075 = vld [vmem:[#allocation18] sm:$0x1]
          %v1077 = vlaneseq
          %v1078 = vshrl.u32 %v1077, 7
          %v1079 = vsub.s32 0, %v1078
          %v1080 = vrot.slane %v1075, %v1079
          %v1086 = vunpack.c.l.b16 %v1071
          %v1087 = vunpack.c.l.b16 %v1072
          %v1088 = vunpack.c.l.b16 %v1073
          %v1089 = vunpack.c.l.b16 %v1074
          %v1090 = vpack.c.b16 %v1087, %v1086
          %v1091 = vpack.c.b16 %v1089, %v1088
          %1094 = vmatprep.subr.bf16.mxu0 0
          %1095 = vmatpush1.bf16.msra.mxu0 %v1090
          %1096 = vmatprep.subr.bf16.mxu0 0
          %1097 = vmatpush1.bf16.msra.mxu0 %v1091
          %1098 = vmatprep.subr.bf16.mxu0 0
          %1099 = vmatpush1.bf16.msra.mxu0 0
          %1100 = vmatprep.subr.bf16.mxu0 0
          %1101 = vmatpush1.bf16.msra.mxu0 0
          %1102 = vmatprep.subr.bf16.mxu0 0
          %1103 = vmatpush1.bf16.msra.mxu0 0
          %1104 = vmatprep.subr.bf16.mxu0 0
          %1105 = vmatpush1.bf16.msra.mxu0 0
          %1106 = vmatprep.subr.bf16.mxu0 0
          %1107 = vmatpush1.bf16.msra.mxu0 0
          %1108 = vmatprep.subr.bf16.mxu0 0
          %1109 = vmatpush1.bf16.msra.mxu0 0
          %1110 = vmatprep.subr.bf16.mxu0 0
          %1111 = vmatpush1.bf16.msra.mxu0 0
          %1112 = vmatprep.subr.bf16.mxu0 0
          %1113 = vmatpush1.bf16.msra.mxu0 0
          %1114 = vmatprep.subr.bf16.mxu0 0
          %1115 = vmatpush1.bf16.msra.mxu0 0
          %1116 = vmatprep.subr.bf16.mxu0 0
          %1117 = vmatpush1.bf16.msra.mxu0 0
          %1118 = vmatprep.subr.bf16.mxu0 0
          %1119 = vmatpush1.bf16.msra.mxu0 0
          %1120 = vmatprep.subr.bf16.mxu0 0
          %1121 = vmatpush1.bf16.msra.mxu0 0
          %1122 = vmatprep.subr.bf16.mxu0 0
          %1123 = vmatpush1.bf16.msra.mxu0 0
          %1124 = vmatprep.subr.bf16.mxu0 0
          %1125 = vmatpush1.bf16.msra.mxu0 0
          %1126 = vmatprep.mubr.bf16.mxu0 0
          %1127 = vmatmul.mubr.bf16.gmra.mrb[0].mxu0 %v995
          %v1128 = vpop.f32.mrb[0].mxu0
          %v1129 = vadd.f32 %v1080, %v1128
          %v1130 = vpop.f32.mrb[0].mxu0
          %v1131 = vpop.f32.mrb[0].mxu0
          %v1132 = vadd.f32 %v1080, %v1131
          %v1133 = vpop.f32.mrb[0].mxu0
          %1134 = vmatprep.mubr.bf16.mxu0 0
          %1135 = vmatmul.mubr.bf16.gmra.mrb[0].mxu0 %v998
          %v1136 = vpop.f32.mrb[0].mxu0
          %v1137 = vadd.f32 %v1080, %v1136
          %v1138 = vpop.f32.mrb[0].mxu0
          %v1139 = vpop.f32.mrb[0].mxu0
          %v1140 = vadd.f32 %v1080, %v1139
          %v1141 = vpop.f32.mrb[0].mxu0
          %1142 = vmatprep.mubr.bf16.mxu0 0
          %1143 = vmatmul.mubr.bf16.gmra.mrb[0].mxu0 %v1001
          %v1144 = vpop.f32.mrb[0].mxu0
          %v1145 = vadd.f32 %v1080, %v1144
          %v1146 = vpop.f32.mrb[0].mxu0
          %v1147 = vpop.f32.mrb[0].mxu0
          %v1148 = vadd.f32 %v1080, %v1147
          %v1149 = vpop.f32.mrb[0].mxu0
          %1150 = vmatprep.mubr.bf16.mxu0 0
          %1151 = vmatmul.mubr.bf16.gmra.mrb[0].mxu0 %v1004
          %v1152 = vpop.f32.mrb[0].mxu0
          %v1153 = vadd.f32 %v1080, %v1152
          %v1154 = vpop.f32.mrb[0].mxu0
          %v1155 = vpop.f32.mrb[0].mxu0
          %v1156 = vadd.f32 %v1080, %v1155
          %v1157 = vpop.f32.mrb[0].mxu0
          %1158 = vdwg.mxu0
          %v1159 = vpack.c.bf16 %v1044, %v1041
          %v1160 = vpack.c.bf16 %v1052, %v1049
          %v1161 = vpack.c.bf16 %v1060, %v1057
          %v1162 = vpack.c.bf16 %v1068, %v1065
          %vm1163 = vcmask 64512
          %1164 = vst.msk [vmem:[#allocation2] sm:$0xff] %vm1163, %v1159
          %1165 = vst.msk [vmem:[#allocation2 + $0x8] sm:$0xff] %vm1163, %v1160
          %1166 = vst.msk [vmem:[#allocation2 + $0x10] sm:$0xff] %vm1163, %v1161
          %1167 = vst.msk [vmem:[#allocation2 + $0x18] sm:$0xff] %vm1163, %v1162
          %v1168 = vpack.c.bf16 %v1132, %v1129
          %v1169 = vpack.c.bf16 %v1140, %v1137
          %v1170 = vpack.c.bf16 %v1148, %v1145
          %v1171 = vpack.c.bf16 %v1156, %v1153
          %1172 = vst.msk [vmem:[#allocation3] sm:$0xff] %vm1163, %v1168
          %1173 = vst.msk [vmem:[#allocation3 + $0x8] sm:$0xff] %vm1163, %v1169
          %1174 = vst.msk [vmem:[#allocation3 + $0x10] sm:$0xff] %vm1163, %v1170
          %1175 = vst.msk [vmem:[#allocation3 + $0x18] sm:$0xff] %vm1163, %v1171
          %s1176 = scalar_lea.vmem [#allocation13], 16
          %v1177 = vld [vmem:[%s1176] sm:$0xf]
          %v1178 = vld [vmem:[%s1176 + $0x4] sm:$0xf]
          %v1179 = vld [vmem:[%s1176 + $0x8] sm:$0xf]
          %v1180 = vld [vmem:[%s1176 + $0xc] sm:$0xf]
          %s1181 = scalar_lea.vmem [#allocation15], 1
          %v1182 = vld [vmem:[%s1181] sm:$0x1]
          %v1184 = vlaneseq
          %v1185 = vshrl.u32 %v1184, 7
          %v1186 = vsub.s32 0, %v1185
          %v1187 = vrot.slane %v1182, %v1186
          %v1193 = vunpack.c.l.b16 %v1177
          %v1194 = vunpack.c.l.b16 %v1178
          %v1195 = vunpack.c.l.b16 %v1179
          %v1196 = vunpack.c.l.b16 %v1180
          %v1197 = vpack.c.b16 %v1194, %v1193
          %v1198 = vpack.c.b16 %v1196, %v1195
          %1201 = vmatprep.subr.bf16.mxu0 0
          %1202 = vmatpush1.bf16.msra.mxu0 %v1197
          %1203 = vmatprep.subr.bf16.mxu0 0
          %1204 = vmatpush1.bf16.msra.mxu0 %v1198
          %1205 = vmatprep.subr.bf16.mxu0 0
          %1206 = vmatpush1.bf16.msra.mxu0 0
          %1207 = vmatprep.subr.bf16.mxu0 0
          %1208 = vmatpush1.bf16.msra.mxu0 0
          %1209 = vmatprep.subr.bf16.mxu0 0
          %1210 = vmatpush1.bf16.msra.mxu0 0
          %1211 = vmatprep.subr.bf16.mxu0 0
          %1212 = vmatpush1.bf16.msra.mxu0 0
          %1213 = vmatprep.subr.bf16.mxu0 0
          %1214 = vmatpush1.bf16.msra.mxu0 0
          %1215 = vmatprep.subr.bf16.mxu0 0
          %1216 = vmatpush1.bf16.msra.mxu0 0
          %1217 = vmatprep.subr.bf16.mxu0 0
          %1218 = vmatpush1.bf16.msra.mxu0 0
          %1219 = vmatprep.subr.bf16.mxu0 0
          %1220 = vmatpush1.bf16.msra.mxu0 0
          %1221 = vmatprep.subr.bf16.mxu0 0
          %1222 = vmatpush1.bf16.msra.mxu0 0
          %1223 = vmatprep.subr.bf16.mxu0 0
          %1224 = vmatpush1.bf16.msra.mxu0 0
          %1225 = vmatprep.subr.bf16.mxu0 0
          %1226 = vmatpush1.bf16.msra.mxu0 0
          %1227 = vmatprep.subr.bf16.mxu0 0
          %1228 = vmatpush1.bf16.msra.mxu0 0
          %1229 = vmatprep.subr.bf16.mxu0 0
          %1230 = vmatpush1.bf16.msra.mxu0 0
          %1231 = vmatprep.subr.bf16.mxu0 0
          %1232 = vmatpush1.bf16.msra.mxu0 0
          %1233 = vmatprep.mubr.bf16.mxu0 0
          %1234 = vmatmul.mubr.bf16.gmra.mrb[0].mxu0 %v995
          %v1235 = vpop.f32.mrb[0].mxu0
          %v1236 = vadd.f32 %v1187, %v1235
          %v1237 = vpop.f32.mrb[0].mxu0
          %v1238 = vpop.f32.mrb[0].mxu0
          %v1239 = vadd.f32 %v1187, %v1238
          %v1240 = vpop.f32.mrb[0].mxu0
          %1241 = vmatprep.mubr.bf16.mxu0 0
          %1242 = vmatmul.mubr.bf16.gmra.mrb[0].mxu0 %v998
          %v1243 = vpop.f32.mrb[0].mxu0
          %v1244 = vadd.f32 %v1187, %v1243
          %v1245 = vpop.f32.mrb[0].mxu0
          %v1246 = vpop.f32.mrb[0].mxu0
          %v1247 = vadd.f32 %v1187, %v1246
          %v1248 = vpop.f32.mrb[0].mxu0
          %1249 = vmatprep.mubr.bf16.mxu0 0
          %1250 = vmatmul.mubr.bf16.gmra.mrb[0].mxu0 %v1001
          %v1251 = vpop.f32.mrb[0].mxu0
          %v1252 = vadd.f32 %v1187, %v1251
          %v1253 = vpop.f32.mrb[0].mxu0
          %v1254 = vpop.f32.mrb[0].mxu0
          %v1255 = vadd.f32 %v1187, %v1254
          %v1256 = vpop.f32.mrb[0].mxu0
          %1257 = vmatprep.mubr.bf16.mxu0 0
          %1258 = vmatmul.mubr.bf16.gmra.mrb[0].mxu0 %v1004
          %v1259 = vpop.f32.mrb[0].mxu0
          %v1260 = vadd.f32 %v1187, %v1259
          %v1261 = vpop.f32.mrb[0].mxu0
          %v1262 = vpop.f32.mrb[0].mxu0
          %v1263 = vadd.f32 %v1187, %v1262
          %v1264 = vpop.f32.mrb[0].mxu0
          %1265 = vdwg.mxu0
          %s1266 = scalar_lea.vmem [#allocation16], 16
          %v1267 = vld [vmem:[%s1266] sm:$0xf]
          %v1268 = vld [vmem:[%s1266 + $0x4] sm:$0xf]
          %v1269 = vld [vmem:[%s1266 + $0x8] sm:$0xf]
          %v1270 = vld [vmem:[%s1266 + $0xc] sm:$0xf]
          %s1271 = scalar_lea.vmem [#allocation18], 1
          %v1272 = vld [vmem:[%s1271] sm:$0x1]
          %v1274 = vlaneseq
          %v1275 = vshrl.u32 %v1274, 7
          %v1276 = vsub.s32 0, %v1275
          %v1277 = vrot.slane %v1272, %v1276
          %v1283 = vunpack.c.l.b16 %v1267
          %v1284 = vunpack.c.l.b16 %v1268
          %v1285 = vunpack.c.l.b16 %v1269
          %v1286 = vunpack.c.l.b16 %v1270
          %v1287 = vpack.c.b16 %v1284, %v1283
          %v1288 = vpack.c.b16 %v1286, %v1285
          %1291 = vmatprep.subr.bf16.mxu0 0
          %1292 = vmatpush1.bf16.msra.mxu0 %v1287
          %1293 = vmatprep.subr.bf16.mxu0 0
          %1294 = vmatpush1.bf16.msra.mxu0 %v1288
          %1295 = vmatprep.subr.bf16.mxu0 0
          %1296 = vmatpush1.bf16.msra.mxu0 0
          %1297 = vmatprep.subr.bf16.mxu0 0
          %1298 = vmatpush1.bf16.msra.mxu0 0
          %1299 = vmatprep.subr.bf16.mxu0 0
          %1300 = vmatpush1.bf16.msra.mxu0 0
          %1301 = vmatprep.subr.bf16.mxu0 0
          %1302 = vmatpush1.bf16.msra.mxu0 0
          %1303 = vmatprep.subr.bf16.mxu0 0
          %1304 = vmatpush1.bf16.msra.mxu0 0
          %1305 = vmatprep.subr.bf16.mxu0 0
          %1306 = vmatpush1.bf16.msra.mxu0 0
          %1307 = vmatprep.subr.bf16.mxu0 0
          %1308 = vmatpush1.bf16.msra.mxu0 0
          %1309 = vmatprep.subr.bf16.mxu0 0
          %1310 = vmatpush1.bf16.msra.mxu0 0
          %1311 = vmatprep.subr.bf16.mxu0 0
          %1312 = vmatpush1.bf16.msra.mxu0 0
          %1313 = vmatprep.subr.bf16.mxu0 0
          %1314 = vmatpush1.bf16.msra.mxu0 0
          %1315 = vmatprep.subr.bf16.mxu0 0
          %1316 = vmatpush1.bf16.msra.mxu0 0
          %1317 = vmatprep.subr.bf16.mxu0 0
          %1318 = vmatpush1.bf16.msra.mxu0 0
          %1319 = vmatprep.subr.bf16.mxu0 0
          %1320 = vmatpush1.bf16.msra.mxu0 0
          %1321 = vmatprep.subr.bf16.mxu0 0
          %1322 = vmatpush1.bf16.msra.mxu0 0
          %1323 = vmatprep.mubr.bf16.mxu0 0
          %1324 = vmatmul.mubr.bf16.gmra.mrb[0].mxu0 %v995
          %v1325 = vpop.f32.mrb[0].mxu0
          %v1326 = vadd.f32 %v1277, %v1325
          %v1327 = vpop.f32.mrb[0].mxu0
          %v1328 = vpop.f32.mrb[0].mxu0
          %v1329 = vadd.f32 %v1277, %v1328
          %v1330 = vpop.f32.mrb[0].mxu0
          %1331 = vmatprep.mubr.bf16.mxu0 0
          %1332 = vmatmul.mubr.bf16.gmra.mrb[0].mxu0 %v998
          %v1333 = vpop.f32.mrb[0].mxu0
          %v1334 = vadd.f32 %v1277, %v1333
          %v1335 = vpop.f32.mrb[0].mxu0
          %v1336 = vpop.f32.mrb[0].mxu0
          %v1337 = vadd.f32 %v1277, %v1336
          %v1338 = vpop.f32.mrb[0].mxu0
          %1339 = vmatprep.mubr.bf16.mxu0 0
          %1340 = vmatmul.mubr.bf16.gmra.mrb[0].mxu0 %v1001
          %v1341 = vpop.f32.mrb[0].mxu0
          %v1342 = vadd.f32 %v1277, %v1341
          %v1343 = vpop.f32.mrb[0].mxu0
          %v1344 = vpop.f32.mrb[0].mxu0
          %v1345 = vadd.f32 %v1277, %v1344
          %v1346 = vpop.f32.mrb[0].mxu0
          %1347 = vmatprep.mubr.bf16.mxu0 0
          %1348 = vmatmul.mubr.bf16.gmra.mrb[0].mxu0 %v1004
          %v1349 = vpop.f32.mrb[0].mxu0
          %v1350 = vadd.f32 %v1277, %v1349
          %v1351 = vpop.f32.mrb[0].mxu0
          %v1352 = vpop.f32.mrb[0].mxu0
          %v1353 = vadd.f32 %v1277, %v1352
          %v1354 = vpop.f32.mrb[0].mxu0
          %1355 = vdwg.mxu0
          %v1356 = vpack.c.bf16 %v1239, %v1236
          %v1357 = vpack.c.bf16 %v1247, %v1244
          %v1358 = vpack.c.bf16 %v1255, %v1252
          %v1359 = vpack.c.bf16 %v1263, %v1260
          %s1360 = scalar_lea.vmem [#allocation2], 32
          %1361 = vst.msk [vmem:[%s1360] sm:$0xff] %vm1163, %v1356
          %1362 = vst.msk [vmem:[%s1360 + $0x8] sm:$0xff] %vm1163, %v1357
          %1363 = vst.msk [vmem:[%s1360 + $0x10] sm:$0xff] %vm1163, %v1358
          %1364 = vst.msk [vmem:[%s1360 + $0x18] sm:$0xff] %vm1163, %v1359
          %v1365 = vpack.c.bf16 %v1329, %v1326
          %v1366 = vpack.c.bf16 %v1337, %v1334
          %v1367 = vpack.c.bf16 %v1345, %v1342
          %v1368 = vpack.c.bf16 %v1353, %v1350
          %s1369 = scalar_lea.vmem [#allocation3], 32
          %1370 = vst.msk [vmem:[%s1369] sm:$0xff] %vm1163, %v1365
          %1371 = vst.msk [vmem:[%s1369 + $0x8] sm:$0xff] %vm1163, %v1366
          %1372 = vst.msk [vmem:[%s1369 + $0x10] sm:$0xff] %vm1163, %v1367
          %1373 = vst.msk [vmem:[%s1369 + $0x18] sm:$0xff] %vm1163, %v1368
          %s1374 = scalar_lea.vmem [#allocation13], 32
          %v1375 = vld [vmem:[%s1374] sm:$0xf]
          %v1376 = vld [vmem:[%s1374 + $0x4] sm:$0xf]
          %v1377 = vld [vmem:[%s1374 + $0x8] sm:$0xf]
          %v1378 = vld [vmem:[%s1374 + $0xc] sm:$0xf]
          %s1379 = scalar_lea.vmem [#allocation15], 2
          %v1380 = vld [vmem:[%s1379] sm:$0x1]
          %v1382 = vlaneseq
          %v1383 = vshrl.u32 %v1382, 7
          %v1384 = vsub.s32 0, %v1383
          %v1385 = vrot.slane %v1380, %v1384
          %v1391 = vunpack.c.l.b16 %v1375
          %v1392 = vunpack.c.l.b16 %v1376
          %v1393 = vunpack.c.l.b16 %v1377
          %v1394 = vunpack.c.l.b16 %v1378
          %v1395 = vpack.c.b16 %v1392, %v1391
          %v1396 = vpack.c.b16 %v1394, %v1393
          %1399 = vmatprep.subr.bf16.mxu0 0
          %1400 = vmatpush1.bf16.msra.mxu0 %v1395
          %1401 = vmatprep.subr.bf16.mxu0 0
          %1402 = vmatpush1.bf16.msra.mxu0 %v1396
          %1403 = vmatprep.subr.bf16.mxu0 0
          %1404 = vmatpush1.bf16.msra.mxu0 0
          %1405 = vmatprep.subr.bf16.mxu0 0
          %1406 = vmatpush1.bf16.msra.mxu0 0
          %1407 = vmatprep.subr.bf16.mxu0 0
          %1408 = vmatpush1.bf16.msra.mxu0 0
          %1409 = vmatprep.subr.bf16.mxu0 0
          %1410 = vmatpush1.bf16.msra.mxu0 0
          %1411 = vmatprep.subr.bf16.mxu0 0
          %1412 = vmatpush1.bf16.msra.mxu0 0
          %1413 = vmatprep.subr.bf16.mxu0 0
          %1414 = vmatpush1.bf16.msra.mxu0 0
          %1415 = vmatprep.subr.bf16.mxu0 0
          %1416 = vmatpush1.bf16.msra.mxu0 0
          %1417 = vmatprep.subr.bf16.mxu0 0
          %1418 = vmatpush1.bf16.msra.mxu0 0
          %1419 = vmatprep.subr.bf16.mxu0 0
          %1420 = vmatpush1.bf16.msra.mxu0 0
          %1421 = vmatprep.subr.bf16.mxu0 0
          %1422 = vmatpush1.bf16.msra.mxu0 0
          %1423 = vmatprep.subr.bf16.mxu0 0
          %1424 = vmatpush1.bf16.msra.mxu0 0
          %1425 = vmatprep.subr.bf16.mxu0 0
          %1426 = vmatpush1.bf16.msra.mxu0 0
          %1427 = vmatprep.subr.bf16.mxu0 0
          %1428 = vmatpush1.bf16.msra.mxu0 0
          %1429 = vmatprep.subr.bf16.mxu0 0
          %1430 = vmatpush1.bf16.msra.mxu0 0
          %1431 = vmatprep.mubr.bf16.mxu0 0
          %1432 = vmatmul.mubr.bf16.gmra.mrb[0].mxu0 %v995
          %v1433 = vpop.f32.mrb[0].mxu0
          %v1434 = vadd.f32 %v1385, %v1433
          %v1435 = vpop.f32.mrb[0].mxu0
          %v1436 = vpop.f32.mrb[0].mxu0
          %v1437 = vadd.f32 %v1385, %v1436
          %v1438 = vpop.f32.mrb[0].mxu0
          %1439 = vmatprep.mubr.bf16.mxu0 0
          %1440 = vmatmul.mubr.bf16.gmra.mrb[0].mxu0 %v998
          %v1441 = vpop.f32.mrb[0].mxu0
          %v1442 = vadd.f32 %v1385, %v1441
          %v1443 = vpop.f32.mrb[0].mxu0
          %v1444 = vpop.f32.mrb[0].mxu0
          %v1445 = vadd.f32 %v1385, %v1444
          %v1446 = vpop.f32.mrb[0].mxu0
          %1447 = vmatprep.mubr.bf16.mxu0 0
          %1448 = vmatmul.mubr.bf16.gmra.mrb[0].mxu0 %v1001
          %v1449 = vpop.f32.mrb[0].mxu0
          %v1450 = vadd.f32 %v1385, %v1449
          %v1451 = vpop.f32.mrb[0].mxu0
          %v1452 = vpop.f32.mrb[0].mxu0
          %v1453 = vadd.f32 %v1385, %v1452
          %v1454 = vpop.f32.mrb[0].mxu0
          %1455 = vmatprep.mubr.bf16.mxu0 0
          %1456 = vmatmul.mubr.bf16.gmra.mrb[0].mxu0 %v1004
          %v1457 = vpop.f32.mrb[0].mxu0
          %v1458 = vadd.f32 %v1385, %v1457
          %v1459 = vpop.f32.mrb[0].mxu0
          %v1460 = vpop.f32.mrb[0].mxu0
          %v1461 = vadd.f32 %v1385, %v1460
          %v1462 = vpop.f32.mrb[0].mxu0
          %1463 = vdwg.mxu0
          %s1464 = scalar_lea.vmem [#allocation16], 32
          %v1465 = vld [vmem:[%s1464] sm:$0xf]
          %v1466 = vld [vmem:[%s1464 + $0x4] sm:$0xf]
          %v1467 = vld [vmem:[%s1464 + $0x8] sm:$0xf]
          %v1468 = vld [vmem:[%s1464 + $0xc] sm:$0xf]
          %s1469 = scalar_lea.vmem [#allocation18], 2
          %v1470 = vld [vmem:[%s1469] sm:$0x1]
          %v1472 = vlaneseq
          %v1473 = vshrl.u32 %v1472, 7
          %v1474 = vsub.s32 0, %v1473
          %v1475 = vrot.slane %v1470, %v1474
          %v1481 = vunpack.c.l.b16 %v1465
          %v1482 = vunpack.c.l.b16 %v1466
          %v1483 = vunpack.c.l.b16 %v1467
          %v1484 = vunpack.c.l.b16 %v1468
          %v1485 = vpack.c.b16 %v1482, %v1481
          %v1486 = vpack.c.b16 %v1484, %v1483
          %1489 = vmatprep.subr.bf16.mxu0 0
          %1490 = vmatpush1.bf16.msra.mxu0 %v1485
          %1491 = vmatprep.subr.bf16.mxu0 0
          %1492 = vmatpush1.bf16.msra.mxu0 %v1486
          %1493 = vmatprep.subr.bf16.mxu0 0
          %1494 = vmatpush1.bf16.msra.mxu0 0
          %1495 = vmatprep.subr.bf16.mxu0 0
          %1496 = vmatpush1.bf16.msra.mxu0 0
          %1497 = vmatprep.subr.bf16.mxu0 0
          %1498 = vmatpush1.bf16.msra.mxu0 0
          %1499 = vmatprep.subr.bf16.mxu0 0
          %1500 = vmatpush1.bf16.msra.mxu0 0
          %1501 = vmatprep.subr.bf16.mxu0 0
          %1502 = vmatpush1.bf16.msra.mxu0 0
          %1503 = vmatprep.subr.bf16.mxu0 0
          %1504 = vmatpush1.bf16.msra.mxu0 0
          %1505 = vmatprep.subr.bf16.mxu0 0
          %1506 = vmatpush1.bf16.msra.mxu0 0
          %1507 = vmatprep.subr.bf16.mxu0 0
          %1508 = vmatpush1.bf16.msra.mxu0 0
          %1509 = vmatprep.subr.bf16.mxu0 0
          %1510 = vmatpush1.bf16.msra.mxu0 0
          %1511 = vmatprep.subr.bf16.mxu0 0
          %1512 = vmatpush1.bf16.msra.mxu0 0
          %1513 = vmatprep.subr.bf16.mxu0 0
          %1514 = vmatpush1.bf16.msra.mxu0 0
          %1515 = vmatprep.subr.bf16.mxu0 0
          %1516 = vmatpush1.bf16.msra.mxu0 0
          %1517 = vmatprep.subr.bf16.mxu0 0
          %1518 = vmatpush1.bf16.msra.mxu0 0
          %1519 = vmatprep.subr.bf16.mxu0 0
          %1520 = vmatpush1.bf16.msra.mxu0 0
          %1521 = vmatprep.mubr.bf16.mxu0 0
          %1522 = vmatmul.mubr.bf16.gmra.mrb[0].mxu0 %v995
          %v1523 = vpop.f32.mrb[0].mxu0
          %v1524 = vadd.f32 %v1475, %v1523
          %v1525 = vpop.f32.mrb[0].mxu0
          %v1526 = vpop.f32.mrb[0].mxu0
          %v1527 = vadd.f32 %v1475, %v1526
          %v1528 = vpop.f32.mrb[0].mxu0
          %1529 = vmatprep.mubr.bf16.mxu0 0
          %1530 = vmatmul.mubr.bf16.gmra.mrb[0].mxu0 %v998
          %v1531 = vpop.f32.mrb[0].mxu0
          %v1532 = vadd.f32 %v1475, %v1531
          %v1533 = vpop.f32.mrb[0].mxu0
          %v1534 = vpop.f32.mrb[0].mxu0
          %v1535 = vadd.f32 %v1475, %v1534
          %v1536 = vpop.f32.mrb[0].mxu0
          %1537 = vmatprep.mubr.bf16.mxu0 0
          %1538 = vmatmul.mubr.bf16.gmra.mrb[0].mxu0 %v1001
          %v1539 = vpop.f32.mrb[0].mxu0
          %v1540 = vadd.f32 %v1475, %v1539
          %v1541 = vpop.f32.mrb[0].mxu0
          %v1542 = vpop.f32.mrb[0].mxu0
          %v1543 = vadd.f32 %v1475, %v1542
          %v1544 = vpop.f32.mrb[0].mxu0
          %1545 = vmatprep.mubr.bf16.mxu0 0
          %1546 = vmatmul.mubr.bf16.gmra.mrb[0].mxu0 %v1004
          %v1547 = vpop.f32.mrb[0].mxu0
          %v1548 = vadd.f32 %v1475, %v1547
          %v1549 = vpop.f32.mrb[0].mxu0
          %v1550 = vpop.f32.mrb[0].mxu0
          %v1551 = vadd.f32 %v1475, %v1550
          %v1552 = vpop.f32.mrb[0].mxu0
          %1553 = vdwg.mxu0
          %v1554 = vpack.c.bf16 %v1437, %v1434
          %v1555 = vpack.c.bf16 %v1445, %v1442
          %v1556 = vpack.c.bf16 %v1453, %v1450
          %v1557 = vpack.c.bf16 %v1461, %v1458
          %s1558 = scalar_lea.vmem [#allocation2], 64
          %1559 = vst.msk [vmem:[%s1558] sm:$0xff] %vm1163, %v1554
          %1560 = vst.msk [vmem:[%s1558 + $0x8] sm:$0xff] %vm1163, %v1555
          %1561 = vst.msk [vmem:[%s1558 + $0x10] sm:$0xff] %vm1163, %v1556
          %1562 = vst.msk [vmem:[%s1558 + $0x18] sm:$0xff] %vm1163, %v1557
          %v1563 = vpack.c.bf16 %v1527, %v1524
          %v1564 = vpack.c.bf16 %v1535, %v1532
          %v1565 = vpack.c.bf16 %v1543, %v1540
          %v1566 = vpack.c.bf16 %v1551, %v1548
          %s1567 = scalar_lea.vmem [#allocation3], 64
          %1568 = vst.msk [vmem:[%s1567] sm:$0xff] %vm1163, %v1563
          %1569 = vst.msk [vmem:[%s1567 + $0x8] sm:$0xff] %vm1163, %v1564
          %1570 = vst.msk [vmem:[%s1567 + $0x10] sm:$0xff] %vm1163, %v1565
          %1571 = vst.msk [vmem:[%s1567 + $0x18] sm:$0xff] %vm1163, %v1566
          %s1572 = scalar_lea.vmem [#allocation13], 48
          %v1573 = vld [vmem:[%s1572] sm:$0xf]
          %v1574 = vld [vmem:[%s1572 + $0x4] sm:$0xf]
          %v1575 = vld [vmem:[%s1572 + $0x8] sm:$0xf]
          %v1576 = vld [vmem:[%s1572 + $0xc] sm:$0xf]
          %s1577 = scalar_lea.vmem [#allocation15], 3
          %v1578 = vld [vmem:[%s1577] sm:$0x1]
          %v1580 = vlaneseq
          %v1581 = vshrl.u32 %v1580, 7
          %v1582 = vsub.s32 0, %v1581
          %v1583 = vrot.slane %v1578, %v1582
          %v1589 = vunpack.c.l.b16 %v1573
          %v1590 = vunpack.c.l.b16 %v1574
          %v1591 = vunpack.c.l.b16 %v1575
          %v1592 = vunpack.c.l.b16 %v1576
          %v1593 = vpack.c.b16 %v1590, %v1589
          %v1594 = vpack.c.b16 %v1592, %v1591
          %1597 = vmatprep.subr.bf16.mxu0 0
          %1598 = vmatpush1.bf16.msra.mxu0 %v1593
          %1599 = vmatprep.subr.bf16.mxu0 0
          %1600 = vmatpush1.bf16.msra.mxu0 %v1594
          %1601 = vmatprep.subr.bf16.mxu0 0
          %1602 = vmatpush1.bf16.msra.mxu0 0
          %1603 = vmatprep.subr.bf16.mxu0 0
          %1604 = vmatpush1.bf16.msra.mxu0 0
          %1605 = vmatprep.subr.bf16.mxu0 0
          %1606 = vmatpush1.bf16.msra.mxu0 0
          %1607 = vmatprep.subr.bf16.mxu0 0
          %1608 = vmatpush1.bf16.msra.mxu0 0
          %1609 = vmatprep.subr.bf16.mxu0 0
          %1610 = vmatpush1.bf16.msra.mxu0 0
          %1611 = vmatprep.subr.bf16.mxu0 0
          %1612 = vmatpush1.bf16.msra.mxu0 0
          %1613 = vmatprep.subr.bf16.mxu0 0
          %1614 = vmatpush1.bf16.msra.mxu0 0
          %1615 = vmatprep.subr.bf16.mxu0 0
          %1616 = vmatpush1.bf16.msra.mxu0 0
          %1617 = vmatprep.subr.bf16.mxu0 0
          %1618 = vmatpush1.bf16.msra.mxu0 0
          %1619 = vmatprep.subr.bf16.mxu0 0
          %1620 = vmatpush1.bf16.msra.mxu0 0
          %1621 = vmatprep.subr.bf16.mxu0 0
          %1622 = vmatpush1.bf16.msra.mxu0 0
          %1623 = vmatprep.subr.bf16.mxu0 0
          %1624 = vmatpush1.bf16.msra.mxu0 0
          %1625 = vmatprep.subr.bf16.mxu0 0
          %1626 = vmatpush1.bf16.msra.mxu0 0
          %1627 = vmatprep.subr.bf16.mxu0 0
          %1628 = vmatpush1.bf16.msra.mxu0 0
          %1629 = vmatprep.mubr.bf16.mxu0 0
          %1630 = vmatmul.mubr.bf16.gmra.mrb[0].mxu0 %v995
          %v1631 = vpop.f32.mrb[0].mxu0
          %v1632 = vadd.f32 %v1583, %v1631
          %v1633 = vpop.f32.mrb[0].mxu0
          %v1634 = vpop.f32.mrb[0].mxu0
          %v1635 = vadd.f32 %v1583, %v1634
          %v1636 = vpop.f32.mrb[0].mxu0
          %1637 = vmatprep.mubr.bf16.mxu0 0
          %1638 = vmatmul.mubr.bf16.gmra.mrb[0].mxu0 %v998
          %v1639 = vpop.f32.mrb[0].mxu0
          %v1640 = vadd.f32 %v1583, %v1639
          %v1641 = vpop.f32.mrb[0].mxu0
          %v1642 = vpop.f32.mrb[0].mxu0
          %v1643 = vadd.f32 %v1583, %v1642
          %v1644 = vpop.f32.mrb[0].mxu0
          %1645 = vmatprep.mubr.bf16.mxu0 0
          %1646 = vmatmul.mubr.bf16.gmra.mrb[0].mxu0 %v1001
          %v1647 = vpop.f32.mrb[0].mxu0
          %v1648 = vadd.f32 %v1583, %v1647
          %v1649 = vpop.f32.mrb[0].mxu0
          %v1650 = vpop.f32.mrb[0].mxu0
          %v1651 = vadd.f32 %v1583, %v1650
          %v1652 = vpop.f32.mrb[0].mxu0
          %1653 = vmatprep.mubr.bf16.mxu0 0
          %1654 = vmatmul.mubr.bf16.gmra.mrb[0].mxu0 %v1004
          %v1655 = vpop.f32.mrb[0].mxu0
          %v1656 = vadd.f32 %v1583, %v1655
          %v1657 = vpop.f32.mrb[0].mxu0
          %v1658 = vpop.f32.mrb[0].mxu0
          %v1659 = vadd.f32 %v1583, %v1658
          %v1660 = vpop.f32.mrb[0].mxu0
          %1661 = vdwg.mxu0
          %s1662 = scalar_lea.vmem [#allocation16], 48
          %v1663 = vld [vmem:[%s1662] sm:$0xf]
          %v1664 = vld [vmem:[%s1662 + $0x4] sm:$0xf]
          %v1665 = vld [vmem:[%s1662 + $0x8] sm:$0xf]
          %v1666 = vld [vmem:[%s1662 + $0xc] sm:$0xf]
          %s1667 = scalar_lea.vmem [#allocation18], 3
          %v1668 = vld [vmem:[%s1667] sm:$0x1]
          %v1670 = vlaneseq
          %v1671 = vshrl.u32 %v1670, 7
          %v1672 = vsub.s32 0, %v1671
          %v1673 = vrot.slane %v1668, %v1672
          %v1679 = vunpack.c.l.b16 %v1663
          %v1680 = vunpack.c.l.b16 %v1664
          %v1681 = vunpack.c.l.b16 %v1665
          %v1682 = vunpack.c.l.b16 %v1666
          %v1683 = vpack.c.b16 %v1680, %v1679
          %v1684 = vpack.c.b16 %v1682, %v1681
          %1687 = vmatprep.subr.bf16.mxu0 0
          %1688 = vmatpush1.bf16.msra.mxu0 %v1683
          %1689 = vmatprep.subr.bf16.mxu0 0
          %1690 = vmatpush1.bf16.msra.mxu0 %v1684
          %1691 = vmatprep.subr.bf16.mxu0 0
          %1692 = vmatpush1.bf16.msra.mxu0 0
          %1693 = vmatprep.subr.bf16.mxu0 0
          %1694 = vmatpush1.bf16.msra.mxu0 0
          %1695 = vmatprep.subr.bf16.mxu0 0
          %1696 = vmatpush1.bf16.msra.mxu0 0
          %1697 = vmatprep.subr.bf16.mxu0 0
          %1698 = vmatpush1.bf16.msra.mxu0 0
          %1699 = vmatprep.subr.bf16.mxu0 0
          %1700 = vmatpush1.bf16.msra.mxu0 0
          %1701 = vmatprep.subr.bf16.mxu0 0
          %1702 = vmatpush1.bf16.msra.mxu0 0
          %1703 = vmatprep.subr.bf16.mxu0 0
          %1704 = vmatpush1.bf16.msra.mxu0 0
          %1705 = vmatprep.subr.bf16.mxu0 0
          %1706 = vmatpush1.bf16.msra.mxu0 0
          %1707 = vmatprep.subr.bf16.mxu0 0
          %1708 = vmatpush1.bf16.msra.mxu0 0
          %1709 = vmatprep.subr.bf16.mxu0 0
          %1710 = vmatpush1.bf16.msra.mxu0 0
          %1711 = vmatprep.subr.bf16.mxu0 0
          %1712 = vmatpush1.bf16.msra.mxu0 0
          %1713 = vmatprep.subr.bf16.mxu0 0
          %1714 = vmatpush1.bf16.msra.mxu0 0
          %1715 = vmatprep.subr.bf16.mxu0 0
          %1716 = vmatpush1.bf16.msra.mxu0 0
          %1717 = vmatprep.subr.bf16.mxu0 0
          %1718 = vmatpush1.bf16.msra.mxu0 0
          %1719 = vmatprep.mubr.bf16.mxu0 0
          %1720 = vmatmul.mubr.bf16.gmra.mrb[0].mxu0 %v995
          %v1721 = vpop.f32.mrb[0].mxu0
          %v1722 = vadd.f32 %v1673, %v1721
          %v1723 = vpop.f32.mrb[0].mxu0
          %v1724 = vpop.f32.mrb[0].mxu0
          %v1725 = vadd.f32 %v1673, %v1724
          %v1726 = vpop.f32.mrb[0].mxu0
          %1727 = vmatprep.mubr.bf16.mxu0 0
          %1728 = vmatmul.mubr.bf16.gmra.mrb[0].mxu0 %v998
          %v1729 = vpop.f32.mrb[0].mxu0
          %v1730 = vadd.f32 %v1673, %v1729
          %v1731 = vpop.f32.mrb[0].mxu0
          %v1732 = vpop.f32.mrb[0].mxu0
          %v1733 = vadd.f32 %v1673, %v1732
          %v1734 = vpop.f32.mrb[0].mxu0
          %1735 = vmatprep.mubr.bf16.mxu0 0
          %1736 = vmatmul.mubr.bf16.gmra.mrb[0].mxu0 %v1001
          %v1737 = vpop.f32.mrb[0].mxu0
          %v1738 = vadd.f32 %v1673, %v1737
          %v1739 = vpop.f32.mrb[0].mxu0
          %v1740 = vpop.f32.mrb[0].mxu0
          %v1741 = vadd.f32 %v1673, %v1740
          %v1742 = vpop.f32.mrb[0].mxu0
          %1743 = vmatprep.mubr.bf16.mxu0 0
          %1744 = vmatmul.mubr.bf16.gmra.mrb[0].mxu0 %v1004
          %v1745 = vpop.f32.mrb[0].mxu0
          %v1746 = vadd.f32 %v1673, %v1745
          %v1747 = vpop.f32.mrb[0].mxu0
          %v1748 = vpop.f32.mrb[0].mxu0
          %v1749 = vadd.f32 %v1673, %v1748
          %v1750 = vpop.f32.mrb[0].mxu0
          %1751 = vdwg.mxu0
          %v1752 = vpack.c.bf16 %v1635, %v1632
          %v1753 = vpack.c.bf16 %v1643, %v1640
          %v1754 = vpack.c.bf16 %v1651, %v1648
          %v1755 = vpack.c.bf16 %v1659, %v1656
          %s1756 = scalar_lea.vmem [#allocation2], 96
          %1757 = vst.msk [vmem:[%s1756] sm:$0xff] %vm1163, %v1752
          %1758 = vst.msk [vmem:[%s1756 + $0x8] sm:$0xff] %vm1163, %v1753
          %1759 = vst.msk [vmem:[%s1756 + $0x10] sm:$0xff] %vm1163, %v1754
          %1760 = vst.msk [vmem:[%s1756 + $0x18] sm:$0xff] %vm1163, %v1755
          %v1761 = vpack.c.bf16 %v1725, %v1722
          %v1762 = vpack.c.bf16 %v1733, %v1730
          %v1763 = vpack.c.bf16 %v1741, %v1738
          %v1764 = vpack.c.bf16 %v1749, %v1746
          %s1765 = scalar_lea.vmem [#allocation3], 96
          %1766 = vst.msk [vmem:[%s1765] sm:$0xff] %vm1163, %v1761
          %1767 = vst.msk [vmem:[%s1765 + $0x8] sm:$0xff] %vm1163, %v1762
          %1768 = vst.msk [vmem:[%s1765 + $0x10] sm:$0xff] %vm1163, %v1763
          %1769 = vst.msk [vmem:[%s1765 + $0x18] sm:$0xff] %vm1163, %v1764
        $region176: #{tpu_custom_call.1} parent=95 // pred_fallthru
          _
        %v1770 = vld [vmem:[%s786] sm:$0xff]
        %v1771 = vld [vmem:[%s786 + $0x8] sm:$0xff]
        %v1772 = vld [vmem:[%s786 + $0x10] sm:$0xff]
        %v1773 = vld [vmem:[%s786 + $0x18] sm:$0xff]
        %v1774 = vpack.c.bf16 %v1771, %v1770
        %v1775 = vpack.c.bf16 %v1773, %v1772
        %v1776 = vld [vmem:[%s804] sm:$0xff]
        %vm1777 = vnez %v1776
        %v1778 = vld [vmem:[#allocation10] sm:$0xf]
        %v1779 = vld [vmem:[#allocation10 + $0x4] sm:$0xf]
        %v1780 = vld [vmem:[#allocation10 + $0x8] sm:$0xf]
        %v1781 = vld [vmem:[#allocation10 + $0xc] sm:$0xf]
        %v1782 = vld [vmem:[#allocation12] sm:$0x1]
        %v1784 = vlaneseq
        %v1785 = vshrl.u32 %v1784, 7
        %v1786 = vsub.s32 0, %v1785
        %v1787 = vrot.slane %v1782, %v1786
        %v1793 = vunpack.c.l.b16 %v1778
        %v1794 = vunpack.c.l.b16 %v1779
        %v1795 = vunpack.c.l.b16 %v1780
        %v1796 = vunpack.c.l.b16 %v1781
        %v1797 = vpack.c.b16 %v1794, %v1793
        %v1798 = vpack.c.b16 %v1796, %v1795
        %vm1801 = vcmask 261120
        %v1803 = vsel %vm1801, %v1774, 0
        %v1806 = vsel %vm1801, %v1775, 0
        %1808 = vmatprep.subr.bf16.mxu0 0
        %1809 = vmatpush1.bf16.msra.mxu0 %v1797
        %1810 = vmatprep.subr.bf16.mxu0 0
        %1811 = vmatpush1.bf16.msra.mxu0 %v1798
        %1812 = vmatprep.subr.bf16.mxu0 0
        %1813 = vmatpush1.bf16.msra.mxu0 0
        %1814 = vmatprep.subr.bf16.mxu0 0
        %1815 = vmatpush1.bf16.msra.mxu0 0
        %1816 = vmatprep.subr.bf16.mxu0 0
        %1817 = vmatpush1.bf16.msra.mxu0 0
        %1818 = vmatprep.subr.bf16.mxu0 0
        %1819 = vmatpush1.bf16.msra.mxu0 0
        %1820 = vmatprep.subr.bf16.mxu0 0
        %1821 = vmatpush1.bf16.msra.mxu0 0
        %1822 = vmatprep.subr.bf16.mxu0 0
        %1823 = vmatpush1.bf16.msra.mxu0 0
        %1824 = vmatprep.subr.bf16.mxu0 0
        %1825 = vmatpush1.bf16.msra.mxu0 0
        %1826 = vmatprep.subr.bf16.mxu0 0
        %1827 = vmatpush1.bf16.msra.mxu0 0
        %1828 = vmatprep.subr.bf16.mxu0 0
        %1829 = vmatpush1.bf16.msra.mxu0 0
        %1830 = vmatprep.subr.bf16.mxu0 0
        %1831 = vmatpush1.bf16.msra.mxu0 0
        %1832 = vmatprep.subr.bf16.mxu0 0
        %1833 = vmatpush1.bf16.msra.mxu0 0
        %1834 = vmatprep.subr.bf16.mxu0 0
        %1835 = vmatpush1.bf16.msra.mxu0 0
        %1836 = vmatprep.subr.bf16.mxu0 0
        %1837 = vmatpush1.bf16.msra.mxu0 0
        %1838 = vmatprep.subr.bf16.mxu0 0
        %1839 = vmatpush1.bf16.msra.mxu0 0
        %1840 = vmatprep.mubr.bf16.mxu0 0
        %1841 = vmatmul.mubr.bf16.gmra.mrb[0].mxu0 %v1803
        %v1842 = vpop.f32.mrb[0].mxu0
        %v1843 = vadd.f32 %v1787, %v1842
        %v1844 = vpop.f32.mrb[0].mxu0
        %v1845 = vpop.f32.mrb[0].mxu0
        %v1846 = vadd.f32 %v1787, %v1845
        %v1847 = vpop.f32.mrb[0].mxu0
        %1848 = vmatprep.mubr.bf16.mxu0 0
        %1849 = vmatmul.mubr.bf16.gmra.mrb[0].mxu0 %v1806
        %v1850 = vpop.f32.mrb[0].mxu0
        %v1851 = vadd.f32 %v1787, %v1850
        %v1852 = vpop.f32.mrb[0].mxu0
        %v1853 = vpop.f32.mrb[0].mxu0
        %v1854 = vadd.f32 %v1787, %v1853
        %v1855 = vpop.f32.mrb[0].mxu0
        %1856 = vdwg.mxu0
        %v1857 = vmul.f32 %v1843, 0.35355338
        %v1858 = vmul.f32 %v1846, 0.35355338
        %v1859 = vmul.f32 %v1851, 0.35355338
        %v1860 = vmul.f32 %v1854, 0.35355338
        %v1861 = vpack.c.bf16 %v1858, %v1857
        %v1862 = vpack.c.bf16 %v1860, %v1859
        %v1863 = vld [vmem:[#allocation2] sm:$0xff]
        %v1864 = vld [vmem:[#allocation2 + $0x8] sm:$0xff]
        %v1865 = vld [vmem:[#allocation2 + $0x10] sm:$0xff]
        %v1866 = vld [vmem:[#allocation2 + $0x18] sm:$0xff]
        %v1867 = vld [vmem:[#allocation3] sm:$0xff]
        %v1868 = vld [vmem:[#allocation3 + $0x8] sm:$0xff]
        %v1869 = vld [vmem:[#allocation3 + $0x10] sm:$0xff]
        %v1870 = vld [vmem:[#allocation3 + $0x18] sm:$0xff]
        %vm1871 = vcmask 64512
        %v1873 = vsel %vm1871, %v1861, 0
        %v1876 = vsel %vm1871, %v1862, 0
        %v1879 = vsel %vm1871, %v1863, 0
        %v1882 = vsel %vm1871, %v1864, 0
        %v1885 = vsel %vm1871, %v1865, 0
        %v1888 = vsel %vm1871, %v1866, 0
        %1890 = vmatprep.subr.bf16.mxu0 0
        %1891 = vmatpush1.bf16.xpose.msra.mxu0 %v1879
        %1892 = vmatprep.subr.bf16.mxu0 0
        %1893 = vmatpush1.bf16.xpose.msra.mxu0 %v1882
        %1894 = vmatprep.subr.bf16.mxu0 0
        %1895 = vmatpush1.bf16.xpose.msra.mxu0 %v1885
        %1896 = vmatprep.subr.bf16.mxu0 0
        %1897 = vmatpush1.bf16.xpose.msra.mxu0 %v1888
        %1898 = vmatprep.subr.bf16.mxu0 0
        %1899 = vmatpush1.bf16.xpose.msra.mxu0 0
        %1900 = vmatprep.subr.bf16.mxu0 0
        %1901 = vmatpush1.bf16.xpose.msra.mxu0 0
        %1902 = vmatprep.subr.bf16.mxu0 0
        %1903 = vmatpush1.bf16.xpose.msra.mxu0 0
        %1904 = vmatprep.subr.bf16.mxu0 0
        %1905 = vmatpush1.bf16.xpose.msra.mxu0 0
        %1906 = vmatprep.subr.bf16.mxu0 0
        %1907 = vmatpush1.bf16.xpose.msra.mxu0 0
        %1908 = vmatprep.subr.bf16.mxu0 0
        %1909 = vmatpush1.bf16.xpose.msra.mxu0 0
        %1910 = vmatprep.subr.bf16.mxu0 0
        %1911 = vmatpush1.bf16.xpose.msra.mxu0 0
        %1912 = vmatprep.subr.bf16.mxu0 0
        %1913 = vmatpush1.bf16.xpose.msra.mxu0 0
        %1914 = vmatprep.subr.bf16.mxu0 0
        %1915 = vmatpush1.bf16.xpose.msra.mxu0 0
        %1916 = vmatprep.subr.bf16.mxu0 0
        %1917 = vmatpush1.bf16.xpose.msra.mxu0 0
        %1918 = vmatprep.subr.bf16.mxu0 0
        %1919 = vmatpush1.bf16.xpose.msra.mxu0 0
        %1920 = vmatprep.subr.bf16.mxu0 0
        %1921 = vmatpush1.bf16.xpose.msra.mxu0 0
        %1922 = vmatprep.mubr.bf16.mxu0 0
        %1923 = vmatmul.mubr.bf16.gmra.mrb[0].mxu0 %v1873
        %v1924 = vpop.f32.mrb[0].mxu0
        %v1925 = vadd.f32 0.0, %v1924
        %v1926 = vpop.f32.mrb[0].mxu0
        %v1927 = vpop.f32.mrb[0].mxu0
        %v1928 = vadd.f32 0.0, %v1927
        %v1929 = vpop.f32.mrb[0].mxu0
        %1930 = vmatprep.mubr.bf16.mxu0 0
        %1931 = vmatmul.mubr.bf16.gmra.mrb[0].mxu0 %v1876
        %v1932 = vpop.f32.mrb[0].mxu0
        %v1933 = vadd.f32 0.0, %v1932
        %v1934 = vpop.f32.mrb[0].mxu0
        %v1935 = vpop.f32.mrb[0].mxu0
        %v1936 = vadd.f32 0.0, %v1935
        %v1937 = vpop.f32.mrb[0].mxu0
        %1938 = vdwg.mxu0
        %v1939 = vsel %vm1777, 16843009, 0
        %v1940 = vunpack.c.0.s8 %v1939
        %v1941 = vunpack.c.1.s8 %v1939
        %v1942 = vunpack.c.2.s8 %v1939
        %v1943 = vunpack.c.3.s8 %v1939
        %v1944 = vpack.c.b16 %v1940, %v1940
        %v1945 = vpack.c.b8 %v1944, %v1944
        %v1946 = vpack.c.b16 %v1941, %v1941
        %v1947 = vpack.c.b8 %v1946, %v1946
        %v1948 = vpack.c.b16 %v1942, %v1942
        %v1949 = vpack.c.b8 %v1948, %v1948
        %v1950 = vpack.c.b16 %v1943, %v1943
        %v1951 = vpack.c.b8 %v1950, %v1950
        %vm1952 = vnez %v1945
        %vm1953 = vnez %v1947
        %vm1954 = vnez %v1949
        %vm1955 = vnez %v1951
        %v1956 = vsel %vm1952, 16843009, 0
        %v1957 = vsel %vm1953, 16843009, 0
        %v1958 = vsel %vm1954, 16843009, 0
        %v1959 = vsel %vm1955, 16843009, 0
        %v1960 = vunpack.c.0.s8 %v1956
        %v1961 = vunpack.c.0.s8 %v1957
        %v1962 = vunpack.c.0.s8 %v1958
        %v1963 = vunpack.c.0.s8 %v1959
        %vm1964 = vcmp.ne.s32.totalorder %v1960, 0
        %vm1965 = vcmp.ne.s32.totalorder %v1961, 0
        %vm1966 = vcmp.ne.s32.totalorder %v1962, 0
        %vm1967 = vcmp.ne.s32.totalorder %v1963, 0
        %v1968 = vsel %vm1964, %v1925, -1e+09
        %v1969 = vsel %vm1965, %v1928, -1e+09
        %v1970 = vsel %vm1966, %v1933, -1e+09
        %v1971 = vsel %vm1967, %v1936, -1e+09
        %vm1972 = vcmask 523264
        %v1973 = vsel %vm1972, %v1968, -inf
        %1974 = vmax.xlane.f32.xlu0 %v1973
        %v1975 = vpop.xlane.xlu0 %1974
        %v1976 = vsel %vm1972, %v1969, -inf
        %1977 = vmax.xlane.f32.xlu0 %v1976
        %v1978 = vpop.xlane.xlu0 %1977
        %v1979 = vsel %vm1972, %v1970, -inf
        %1980 = vmax.xlane.f32.xlu0 %v1979
        %v1981 = vpop.xlane.xlu0 %1980
        %v1982 = vsel %vm1972, %v1971, -inf
        %1983 = vmax.xlane.f32.xlu0 %v1982
        %v1984 = vpop.xlane.xlu0 %1983
        %v1985 = vsub.f32 %v1968, %v1975
        %v1986 = vsub.f32 %v1969, %v1978
        %v1987 = vsub.f32 %v1970, %v1981
        %v1988 = vsub.f32 %v1971, %v1984
        %v1989 = vmul.f32 %v1985, 1.442695
        %v1990 = vpow.pop %v1989
        %v1991 = vmul.f32 %v1986, 1.442695
        %v1992 = vpow.pop %v1991
        %v1993 = vmul.f32 %v1987, 1.442695
        %v1994 = vpow.pop %v1993
        %v1995 = vmul.f32 %v1988, 1.442695
        %v1996 = vpow.pop %v1995
        %v1997 = vsel %vm1972, %v1990, 0.0
        %1998 = vadd.xlane.f32.xlu0 %v1997
        %v1999 = vpop.xlane.xlu0 %1998
        %v2000 = vsel %vm1972, %v1992, 0.0
        %2001 = vadd.xlane.f32.xlu0 %v2000
        %v2002 = vpop.xlane.xlu0 %2001
        %v2003 = vsel %vm1972, %v1994, 0.0
        %2004 = vadd.xlane.f32.xlu0 %v2003
        %v2005 = vpop.xlane.xlu0 %2004
        %v2006 = vsel %vm1972, %v1996, 0.0
        %2007 = vadd.xlane.f32.xlu0 %v2006
        %v2008 = vpop.xlane.xlu0 %2007
        %v2009 = vrcp.pop %v1999
        %v2010 = vrcp.pop %v2002
        %v2011 = vrcp.pop %v2005
        %v2012 = vrcp.pop %v2008
        %v2013 = vmul.f32 %v1990, %v2009
        %v2014 = vmul.f32 %v1992, %v2010
        %v2015 = vmul.f32 %v1994, %v2011
        %v2016 = vmul.f32 %v1996, %v2012
        %v2017 = vpack.c.bf16 %v2014, %v2013
        %v2018 = vpack.c.bf16 %v2016, %v2015
        %v2020 = vsel %vm1972, %v2017, 0
        %v2023 = vsel %vm1972, %v2018, 0
        %2025 = vmatprep.subr.bf16.mxu0 0
        %2026 = vmatpush1.bf16.msra.mxu0 %v1867
        %2027 = vmatprep.subr.bf16.mxu0 0
        %2028 = vmatpush1.bf16.msra.mxu0 %v1868
        %2029 = vmatprep.subr.bf16.mxu0 0
        %2030 = vmatpush1.bf16.msra.mxu0 %v1869
        %2031 = vmatprep.subr.bf16.mxu0 0
        %2032 = vmatpush1.bf16.msra.mxu0 %v1870
        %2033 = vmatprep.subr.bf16.mxu0 0
        %2034 = vmatpush1.bf16.msra.mxu0 0
        %2035 = vmatprep.subr.bf16.mxu0 0
        %2036 = vmatpush1.bf16.msra.mxu0 0
        %2037 = vmatprep.subr.bf16.mxu0 0
        %2038 = vmatpush1.bf16.msra.mxu0 0
        %2039 = vmatprep.subr.bf16.mxu0 0
        %2040 = vmatpush1.bf16.msra.mxu0 0
        %2041 = vmatprep.subr.bf16.mxu0 0
        %2042 = vmatpush1.bf16.msra.mxu0 0
        %2043 = vmatprep.subr.bf16.mxu0 0
        %2044 = vmatpush1.bf16.msra.mxu0 0
        %2045 = vmatprep.subr.bf16.mxu0 0
        %2046 = vmatpush1.bf16.msra.mxu0 0
        %2047 = vmatprep.subr.bf16.mxu0 0
        %2048 = vmatpush1.bf16.msra.mxu0 0
        %2049 = vmatprep.subr.bf16.mxu0 0
        %2050 = vmatpush1.bf16.msra.mxu0 0
        %2051 = vmatprep.subr.bf16.mxu0 0
        %2052 = vmatpush1.bf16.msra.mxu0 0
        %2053 = vmatprep.subr.bf16.mxu0 0
        %2054 = vmatpush1.bf16.msra.mxu0 0
        %2055 = vmatprep.subr.bf16.mxu0 0
        %2056 = vmatpush1.bf16.msra.mxu0 0
        %2057 = vmatprep.mubr.bf16.mxu0 0
        %2058 = vmatmul.mubr.bf16.gmra.mrb[0].mxu0 %v2020
        %v2059 = vpop.f32.mrb[0].mxu0
        %v2060 = vadd.f32 0.0, %v2059
        %v2061 = vpop.f32.mrb[0].mxu0
        %v2062 = vpop.f32.mrb[0].mxu0
        %v2063 = vadd.f32 0.0, %v2062
        %v2064 = vpop.f32.mrb[0].mxu0
        %2065 = vmatprep.mubr.bf16.mxu0 0
        %2066 = vmatmul.mubr.bf16.gmra.mrb[0].mxu0 %v2023
        %v2067 = vpop.f32.mrb[0].mxu0
        %v2068 = vadd.f32 0.0, %v2067
        %v2069 = vpop.f32.mrb[0].mxu0
        %v2070 = vpop.f32.mrb[0].mxu0
        %v2071 = vadd.f32 0.0, %v2070
        %v2072 = vpop.f32.mrb[0].mxu0
        %2073 = vdwg.mxu0
        %v2074 = vpack.c.bf16 %v2063, %v2060
        %v2075 = vpack.c.bf16 %v2071, %v2068
        %v2076 = vld [vmem:[#allocation19] sm:$0xf]
        %s2077 = scalar_lea.vmem [#allocation2], 32
        %v2078 = vld [vmem:[%s2077] sm:$0xff]
        %v2079 = vld [vmem:[%s2077 + $0x8] sm:$0xff]
        %v2080 = vld [vmem:[%s2077 + $0x10] sm:$0xff]
        %v2081 = vld [vmem:[%s2077 + $0x18] sm:$0xff]
        %s2082 = scalar_lea.vmem [#allocation3], 32
        %v2083 = vld [vmem:[%s2082] sm:$0xff]
        %v2084 = vld [vmem:[%s2082 + $0x8] sm:$0xff]
        %v2085 = vld [vmem:[%s2082 + $0x10] sm:$0xff]
        %v2086 = vld [vmem:[%s2082 + $0x18] sm:$0xff]
        %2089 = vrot.lane.b32.xlu0 %v1861, 120
        %v2090 = vpop.permute.xlu0 %2089
        %2091 = vrot.lane.b32.xlu0 %v1862, 120
        %v2092 = vpop.permute.xlu0 %2091
        %v2094 = vsel %vm1871, %v2090, 0
        %v2097 = vsel %vm1871, %v2092, 0
        %v2100 = vsel %vm1871, %v2078, 0
        %v2103 = vsel %vm1871, %v2079, 0
        %v2106 = vsel %vm1871, %v2080, 0
        %v2109 = vsel %vm1871, %v2081, 0
        %2111 = vmatprep.subr.bf16.mxu0 0
        %2112 = vmatpush1.bf16.xpose.msra.mxu0 %v2100
        %2113 = vmatprep.subr.bf16.mxu0 0
        %2114 = vmatpush1.bf16.xpose.msra.mxu0 %v2103
        %2115 = vmatprep.subr.bf16.mxu0 0
        %2116 = vmatpush1.bf16.xpose.msra.mxu0 %v2106
        %2117 = vmatprep.subr.bf16.mxu0 0
        %2118 = vmatpush1.bf16.xpose.msra.mxu0 %v2109
        %2119 = vmatprep.subr.bf16.mxu0 0
        %2120 = vmatpush1.bf16.xpose.msra.mxu0 0
        %2121 = vmatprep.subr.bf16.mxu0 0
        %2122 = vmatpush1.bf16.xpose.msra.mxu0 0
        %2123 = vmatprep.subr.bf16.mxu0 0
        %2124 = vmatpush1.bf16.xpose.msra.mxu0 0
        %2125 = vmatprep.subr.bf16.mxu0 0
        %2126 = vmatpush1.bf16.xpose.msra.mxu0 0
        %2127 = vmatprep.subr.bf16.mxu0 0
        %2128 = vmatpush1.bf16.xpose.msra.mxu0 0
        %2129 = vmatprep.subr.bf16.mxu0 0
        %2130 = vmatpush1.bf16.xpose.msra.mxu0 0
        %2131 = vmatprep.subr.bf16.mxu0 0
        %2132 = vmatpush1.bf16.xpose.msra.mxu0 0
        %2133 = vmatprep.subr.bf16.mxu0 0
        %2134 = vmatpush1.bf16.xpose.msra.mxu0 0
        %2135 = vmatprep.subr.bf16.mxu0 0
        %2136 = vmatpush1.bf16.xpose.msra.mxu0 0
        %2137 = vmatprep.subr.bf16.mxu0 0
        %2138 = vmatpush1.bf16.xpose.msra.mxu0 0
        %2139 = vmatprep.subr.bf16.mxu0 0
        %2140 = vmatpush1.bf16.xpose.msra.mxu0 0
        %2141 = vmatprep.subr.bf16.mxu0 0
        %2142 = vmatpush1.bf16.xpose.msra.mxu0 0
        %2143 = vmatprep.mubr.bf16.mxu0 0
        %2144 = vmatmul.mubr.bf16.gmra.mrb[0].mxu0 %v2094
        %v2145 = vpop.f32.mrb[0].mxu0
        %v2146 = vadd.f32 0.0, %v2145
        %v2147 = vpop.f32.mrb[0].mxu0
        %v2148 = vpop.f32.mrb[0].mxu0
        %v2149 = vadd.f32 0.0, %v2148
        %v2150 = vpop.f32.mrb[0].mxu0
        %2151 = vmatprep.mubr.bf16.mxu0 0
        %2152 = vmatmul.mubr.bf16.gmra.mrb[0].mxu0 %v2097
        %v2153 = vpop.f32.mrb[0].mxu0
        %v2154 = vadd.f32 0.0, %v2153
        %v2155 = vpop.f32.mrb[0].mxu0
        %v2156 = vpop.f32.mrb[0].mxu0
        %v2157 = vadd.f32 0.0, %v2156
        %v2158 = vpop.f32.mrb[0].mxu0
        %2159 = vdwg.mxu0
        %v2160 = vsel %vm1964, %v2146, -1e+09
        %v2161 = vsel %vm1965, %v2149, -1e+09
        %v2162 = vsel %vm1966, %v2154, -1e+09
        %v2163 = vsel %vm1967, %v2157, -1e+09
        %v2164 = vsel %vm1972, %v2160, -inf
        %2165 = vmax.xlane.f32.xlu0 %v2164
        %v2166 = vpop.xlane.xlu0 %2165
        %v2167 = vsel %vm1972, %v2161, -inf
        %2168 = vmax.xlane.f32.xlu0 %v2167
        %v2169 = vpop.xlane.xlu0 %2168
        %v2170 = vsel %vm1972, %v2162, -inf
        %2171 = vmax.xlane.f32.xlu0 %v2170
        %v2172 = vpop.xlane.xlu0 %2171
        %v2173 = vsel %vm1972, %v2163, -inf
        %2174 = vmax.xlane.f32.xlu0 %v2173
        %v2175 = vpop.xlane.xlu0 %2174
        %v2176 = vsub.f32 %v2160, %v2166
        %v2177 = vsub.f32 %v2161, %v2169
        %v2178 = vsub.f32 %v2162, %v2172
        %v2179 = vsub.f32 %v2163, %v2175
        %v2180 = vmul.f32 %v2176, 1.442695
        %v2181 = vpow.pop %v2180
        %v2182 = vmul.f32 %v2177, 1.442695
        %v2183 = vpow.pop %v2182
        %v2184 = vmul.f32 %v2178, 1.442695
        %v2185 = vpow.pop %v2184
        %v2186 = vmul.f32 %v2179, 1.442695
        %v2187 = vpow.pop %v2186
        %v2188 = vsel %vm1972, %v2181, 0.0
        %2189 = vadd.xlane.f32.xlu0 %v2188
        %v2190 = vpop.xlane.xlu0 %2189
        %v2191 = vsel %vm1972, %v2183, 0.0
        %2192 = vadd.xlane.f32.xlu0 %v2191
        %v2193 = vpop.xlane.xlu0 %2192
        %v2194 = vsel %vm1972, %v2185, 0.0
        %2195 = vadd.xlane.f32.xlu0 %v2194
        %v2196 = vpop.xlane.xlu0 %2195
        %v2197 = vsel %vm1972, %v2187, 0.0
        %2198 = vadd.xlane.f32.xlu0 %v2197
        %v2199 = vpop.xlane.xlu0 %2198
        %v2200 = vrcp.pop %v2190
        %v2201 = vrcp.pop %v2193
        %v2202 = vrcp.pop %v2196
        %v2203 = vrcp.pop %v2199
        %v2204 = vmul.f32 %v2181, %v2200
        %v2205 = vmul.f32 %v2183, %v2201
        %v2206 = vmul.f32 %v2185, %v2202
        %v2207 = vmul.f32 %v2187, %v2203
        %v2208 = vpack.c.bf16 %v2205, %v2204
        %v2209 = vpack.c.bf16 %v2207, %v2206
        %v2211 = vsel %vm1972, %v2208, 0
        %v2214 = vsel %vm1972, %v2209, 0
        %2216 = vmatprep.subr.bf16.mxu0 0
        %2217 = vmatpush1.bf16.msra.mxu0 %v2083
        %2218 = vmatprep.subr.bf16.mxu0 0
        %2219 = vmatpush1.bf16.msra.mxu0 %v2084
        %2220 = vmatprep.subr.bf16.mxu0 0
        %2221 = vmatpush1.bf16.msra.mxu0 %v2085
        %2222 = vmatprep.subr.bf16.mxu0 0
        %2223 = vmatpush1.bf16.msra.mxu0 %v2086
        %2224 = vmatprep.subr.bf16.mxu0 0
        %2225 = vmatpush1.bf16.msra.mxu0 0
        %2226 = vmatprep.subr.bf16.mxu0 0
        %2227 = vmatpush1.bf16.msra.mxu0 0
        %2228 = vmatprep.subr.bf16.mxu0 0
        %2229 = vmatpush1.bf16.msra.mxu0 0
        %2230 = vmatprep.subr.bf16.mxu0 0
        %2231 = vmatpush1.bf16.msra.mxu0 0
        %2232 = vmatprep.subr.bf16.mxu0 0
        %2233 = vmatpush1.bf16.msra.mxu0 0
        %2234 = vmatprep.subr.bf16.mxu0 0
        %2235 = vmatpush1.bf16.msra.mxu0 0
        %2236 = vmatprep.subr.bf16.mxu0 0
        %2237 = vmatpush1.bf16.msra.mxu0 0
        %2238 = vmatprep.subr.bf16.mxu0 0
        %2239 = vmatpush1.bf16.msra.mxu0 0
        %2240 = vmatprep.subr.bf16.mxu0 0
        %2241 = vmatpush1.bf16.msra.mxu0 0
        %2242 = vmatprep.subr.bf16.mxu0 0
        %2243 = vmatpush1.bf16.msra.mxu0 0
        %2244 = vmatprep.subr.bf16.mxu0 0
        %2245 = vmatpush1.bf16.msra.mxu0 0
        %2246 = vmatprep.subr.bf16.mxu0 0
        %2247 = vmatpush1.bf16.msra.mxu0 0
        %2248 = vmatprep.mubr.bf16.mxu0 0
        %2249 = vmatmul.mubr.bf16.gmra.mrb[0].mxu0 %v2211
        %v2250 = vpop.f32.mrb[0].mxu0
        %v2251 = vadd.f32 0.0, %v2250
        %v2252 = vpop.f32.mrb[0].mxu0
        %v2253 = vpop.f32.mrb[0].mxu0
        %v2254 = vadd.f32 0.0, %v2253
        %v2255 = vpop.f32.mrb[0].mxu0
        %2256 = vmatprep.mubr.bf16.mxu0 0
        %2257 = vmatmul.mubr.bf16.gmra.mrb[0].mxu0 %v2214
        %v2258 = vpop.f32.mrb[0].mxu0
        %v2259 = vadd.f32 0.0, %v2258
        %v2260 = vpop.f32.mrb[0].mxu0
        %v2261 = vpop.f32.mrb[0].mxu0
        %v2262 = vadd.f32 0.0, %v2261
        %v2263 = vpop.f32.mrb[0].mxu0
        %2264 = vdwg.mxu0
        %v2265 = vpack.c.bf16 %v2254, %v2251
        %v2266 = vpack.c.bf16 %v2262, %v2259
        %s2267 = scalar_lea.vmem [#allocation19], 4
        %v2268 = vld [vmem:[%s2267] sm:$0xf]
        %v2270 = vsel %vm1871, %v2265, 0
        %v2273 = vsel %vm1871, %v2266, 0
        %vm2275 = vcmask 1043456
        %v2277 = vsel %vm2275, %v2268, 0
        %2279 = vmatprep.subr.bf16.mxu0 0
        %2280 = vmatpush1.bf16.msra.mxu0 %v2277
        %2281 = vmatprep.subr.bf16.mxu0 0
        %2282 = vmatpush1.bf16.msra.mxu0 0
        %2283 = vmatprep.subr.bf16.mxu0 0
        %2284 = vmatpush1.bf16.msra.mxu0 0
        %2285 = vmatprep.subr.bf16.mxu0 0
        %2286 = vmatpush1.bf16.msra.mxu0 0
        %2287 = vmatprep.subr.bf16.mxu0 0
        %2288 = vmatpush1.bf16.msra.mxu0 0
        %2289 = vmatprep.subr.bf16.mxu0 0
        %2290 = vmatpush1.bf16.msra.mxu0 0
        %2291 = vmatprep.subr.bf16.mxu0 0
        %2292 = vmatpush1.bf16.msra.mxu0 0
        %2293 = vmatprep.subr.bf16.mxu0 0
        %2294 = vmatpush1.bf16.msra.mxu0 0
        %2295 = vmatprep.subr.bf16.mxu0 0
        %2296 = vmatpush1.bf16.msra.mxu0 0
        %2297 = vmatprep.subr.bf16.mxu0 0
        %2298 = vmatpush1.bf16.msra.mxu0 0
        %2299 = vmatprep.subr.bf16.mxu0 0
        %2300 = vmatpush1.bf16.msra.mxu0 0
        %2301 = vmatprep.subr.bf16.mxu0 0
        %2302 = vmatpush1.bf16.msra.mxu0 0
        %2303 = vmatprep.subr.bf16.mxu0 0
        %2304 = vmatpush1.bf16.msra.mxu0 0
        %2305 = vmatprep.subr.bf16.mxu0 0
        %2306 = vmatpush1.bf16.msra.mxu0 0
        %2307 = vmatprep.subr.bf16.mxu0 0
        %2308 = vmatpush1.bf16.msra.mxu0 0
        %2309 = vmatprep.subr.bf16.mxu0 0
        %2310 = vmatpush1.bf16.msra.mxu0 0
        %2311 = vmatprep.mubr.bf16.mxu0 0
        %2312 = vmatmul.mubr.bf16.gmra.mrb[0].mxu0 %v2270
        %v2313 = vpop.f32.mrb[0].mxu0
        %v2314 = vadd.f32 0.0, %v2313
        %v2315 = vpop.f32.mrb[0].mxu0
        %v2316 = vpop.f32.mrb[0].mxu0
        %v2317 = vadd.f32 0.0, %v2316
        %v2318 = vpop.f32.mrb[0].mxu0
        %2319 = vmatprep.mubr.bf16.mxu0 0
        %2320 = vmatmul.mubr.bf16.gmra.mrb[0].mxu0 %v2273
        %v2321 = vpop.f32.mrb[0].mxu0
        %v2322 = vadd.f32 0.0, %v2321
        %v2323 = vpop.f32.mrb[0].mxu0
        %v2324 = vpop.f32.mrb[0].mxu0
        %v2325 = vadd.f32 0.0, %v2324
        %v2326 = vpop.f32.mrb[0].mxu0
        %2327 = vdwg.mxu0
        %v2329 = vsel %vm1871, %v2074, 0
        %v2332 = vsel %vm1871, %v2075, 0
        %v2335 = vsel %vm2275, %v2076, 0
        %2337 = vmatprep.subr.bf16.mxu0 0
        %2338 = vmatpush1.bf16.msra.mxu0 %v2335
        %2339 = vmatprep.subr.bf16.mxu0 0
        %2340 = vmatpush1.bf16.msra.mxu0 0
        %2341 = vmatprep.subr.bf16.mxu0 0
        %2342 = vmatpush1.bf16.msra.mxu0 0
        %2343 = vmatprep.subr.bf16.mxu0 0
        %2344 = vmatpush1.bf16.msra.mxu0 0
        %2345 = vmatprep.subr.bf16.mxu0 0
        %2346 = vmatpush1.bf16.msra.mxu0 0
        %2347 = vmatprep.subr.bf16.mxu0 0
        %2348 = vmatpush1.bf16.msra.mxu0 0
        %2349 = vmatprep.subr.bf16.mxu0 0
        %2350 = vmatpush1.bf16.msra.mxu0 0
        %2351 = vmatprep.subr.bf16.mxu0 0
        %2352 = vmatpush1.bf16.msra.mxu0 0
        %2353 = vmatprep.subr.bf16.mxu0 0
        %2354 = vmatpush1.bf16.msra.mxu0 0
        %2355 = vmatprep.subr.bf16.mxu0 0
        %2356 = vmatpush1.bf16.msra.mxu0 0
        %2357 = vmatprep.subr.bf16.mxu0 0
        %2358 = vmatpush1.bf16.msra.mxu0 0
        %2359 = vmatprep.subr.bf16.mxu0 0
        %2360 = vmatpush1.bf16.msra.mxu0 0
        %2361 = vmatprep.subr.bf16.mxu0 0
        %2362 = vmatpush1.bf16.msra.mxu0 0
        %2363 = vmatprep.subr.bf16.mxu0 0
        %2364 = vmatpush1.bf16.msra.mxu0 0
        %2365 = vmatprep.subr.bf16.mxu0 0
        %2366 = vmatpush1.bf16.msra.mxu0 0
        %2367 = vmatprep.subr.bf16.mxu0 0
        %2368 = vmatpush1.bf16.msra.mxu0 0
        %2369 = vmatprep.mubr.bf16.mxu0 0
        %2370 = vmatmul.mubr.bf16.gmra.mrb[0].mxu0 %v2329
        %v2371 = vpop.f32.mrb[0].mxu0
        %v2372 = vadd.f32 %v2314, %v2371
        %v2373 = vpop.f32.mrb[0].mxu0
        %v2374 = vpop.f32.mrb[0].mxu0
        %v2375 = vadd.f32 %v2317, %v2374
        %v2376 = vpop.f32.mrb[0].mxu0
        %2377 = vmatprep.mubr.bf16.mxu0 0
        %2378 = vmatmul.mubr.bf16.gmra.mrb[0].mxu0 %v2332
        %v2379 = vpop.f32.mrb[0].mxu0
        %v2380 = vadd.f32 %v2322, %v2379
        %v2381 = vpop.f32.mrb[0].mxu0
        %v2382 = vpop.f32.mrb[0].mxu0
        %v2383 = vadd.f32 %v2325, %v2382
        %v2384 = vpop.f32.mrb[0].mxu0
        %2385 = vdwg.mxu0
        %s2386 = scalar_lea.vmem [#allocation2], 64
        %v2387 = vld [vmem:[%s2386] sm:$0xff]
        %v2388 = vld [vmem:[%s2386 + $0x8] sm:$0xff]
        %v2389 = vld [vmem:[%s2386 + $0x10] sm:$0xff]
        %v2390 = vld [vmem:[%s2386 + $0x18] sm:$0xff]
        %s2391 = scalar_lea.vmem [#allocation3], 64
        %v2392 = vld [vmem:[%s2391] sm:$0xff]
        %v2393 = vld [vmem:[%s2391 + $0x8] sm:$0xff]
        %v2394 = vld [vmem:[%s2391 + $0x10] sm:$0xff]
        %v2395 = vld [vmem:[%s2391 + $0x18] sm:$0xff]
        %2396 = vrot.lane.b32.xlu0 %v1861, 112
        %v2397 = vpop.permute.xlu0 %2396
        %2398 = vrot.lane.b32.xlu0 %v1862, 112
        %v2399 = vpop.permute.xlu0 %2398
        %v2401 = vsel %vm1871, %v2397, 0
        %v2404 = vsel %vm1871, %v2399, 0
        %v2407 = vsel %vm1871, %v2387, 0
        %v2410 = vsel %vm1871, %v2388, 0
        %v2413 = vsel %vm1871, %v2389, 0
        %v2416 = vsel %vm1871, %v2390, 0
        %2418 = vmatprep.subr.bf16.mxu0 0
        %2419 = vmatpush1.bf16.xpose.msra.mxu0 %v2407
        %2420 = vmatprep.subr.bf16.mxu0 0
        %2421 = vmatpush1.bf16.xpose.msra.mxu0 %v2410
        %2422 = vmatprep.subr.bf16.mxu0 0
        %2423 = vmatpush1.bf16.xpose.msra.mxu0 %v2413
        %2424 = vmatprep.subr.bf16.mxu0 0
        %2425 = vmatpush1.bf16.xpose.msra.mxu0 %v2416
        %2426 = vmatprep.subr.bf16.mxu0 0
        %2427 = vmatpush1.bf16.xpose.msra.mxu0 0
        %2428 = vmatprep.subr.bf16.mxu0 0
        %2429 = vmatpush1.bf16.xpose.msra.mxu0 0
        %2430 = vmatprep.subr.bf16.mxu0 0
        %2431 = vmatpush1.bf16.xpose.msra.mxu0 0
        %2432 = vmatprep.subr.bf16.mxu0 0
        %2433 = vmatpush1.bf16.xpose.msra.mxu0 0
        %2434 = vmatprep.subr.bf16.mxu0 0
        %2435 = vmatpush1.bf16.xpose.msra.mxu0 0
        %2436 = vmatprep.subr.bf16.mxu0 0
        %2437 = vmatpush1.bf16.xpose.msra.mxu0 0
        %2438 = vmatprep.subr.bf16.mxu0 0
        %2439 = vmatpush1.bf16.xpose.msra.mxu0 0
        %2440 = vmatprep.subr.bf16.mxu0 0
        %2441 = vmatpush1.bf16.xpose.msra.mxu0 0
        %2442 = vmatprep.subr.bf16.mxu0 0
        %2443 = vmatpush1.bf16.xpose.msra.mxu0 0
        %2444 = vmatprep.subr.bf16.mxu0 0
        %2445 = vmatpush1.bf16.xpose.msra.mxu0 0
        %2446 = vmatprep.subr.bf16.mxu0 0
        %2447 = vmatpush1.bf16.xpose.msra.mxu0 0
        %2448 = vmatprep.subr.bf16.mxu0 0
        %2449 = vmatpush1.bf16.xpose.msra.mxu0 0
        %2450 = vmatprep.mubr.bf16.mxu0 0
        %2451 = vmatmul.mubr.bf16.gmra.mrb[0].mxu0 %v2401
        %v2452 = vpop.f32.mrb[0].mxu0
        %v2453 = vadd.f32 0.0, %v2452
        %v2454 = vpop.f32.mrb[0].mxu0
        %v2455 = vpop.f32.mrb[0].mxu0
        %v2456 = vadd.f32 0.0, %v2455
        %v2457 = vpop.f32.mrb[0].mxu0
        %2458 = vmatprep.mubr.bf16.mxu0 0
        %2459 = vmatmul.mubr.bf16.gmra.mrb[0].mxu0 %v2404
        %v2460 = vpop.f32.mrb[0].mxu0
        %v2461 = vadd.f32 0.0, %v2460
        %v2462 = vpop.f32.mrb[0].mxu0
        %v2463 = vpop.f32.mrb[0].mxu0
        %v2464 = vadd.f32 0.0, %v2463
        %v2465 = vpop.f32.mrb[0].mxu0
        %2466 = vdwg.mxu0
        %v2467 = vsel %vm1964, %v2453, -1e+09
        %v2468 = vsel %vm1965, %v2456, -1e+09
        %v2469 = vsel %vm1966, %v2461, -1e+09
        %v2470 = vsel %vm1967, %v2464, -1e+09
        %v2471 = vsel %vm1972, %v2467, -inf
        %2472 = vmax.xlane.f32.xlu0 %v2471
        %v2473 = vpop.xlane.xlu0 %2472
        %v2474 = vsel %vm1972, %v2468, -inf
        %2475 = vmax.xlane.f32.xlu0 %v2474
        %v2476 = vpop.xlane.xlu0 %2475
        %v2477 = vsel %vm1972, %v2469, -inf
        %2478 = vmax.xlane.f32.xlu0 %v2477
        %v2479 = vpop.xlane.xlu0 %2478
        %v2480 = vsel %vm1972, %v2470, -inf
        %2481 = vmax.xlane.f32.xlu0 %v2480
        %v2482 = vpop.xlane.xlu0 %2481
        %v2483 = vsub.f32 %v2467, %v2473
        %v2484 = vsub.f32 %v2468, %v2476
        %v2485 = vsub.f32 %v2469, %v2479
        %v2486 = vsub.f32 %v2470, %v2482
        %v2487 = vmul.f32 %v2483, 1.442695
        %v2488 = vpow.pop %v2487
        %v2489 = vmul.f32 %v2484, 1.442695
        %v2490 = vpow.pop %v2489
        %v2491 = vmul.f32 %v2485, 1.442695
        %v2492 = vpow.pop %v2491
        %v2493 = vmul.f32 %v2486, 1.442695
        %v2494 = vpow.pop %v2493
        %v2495 = vsel %vm1972, %v2488, 0.0
        %2496 = vadd.xlane.f32.xlu0 %v2495
        %v2497 = vpop.xlane.xlu0 %2496
        %v2498 = vsel %vm1972, %v2490, 0.0
        %2499 = vadd.xlane.f32.xlu0 %v2498
        %v2500 = vpop.xlane.xlu0 %2499
        %v2501 = vsel %vm1972, %v2492, 0.0
        %2502 = vadd.xlane.f32.xlu0 %v2501
        %v2503 = vpop.xlane.xlu0 %2502
        %v2504 = vsel %vm1972, %v2494, 0.0
        %2505 = vadd.xlane.f32.xlu0 %v2504
        %v2506 = vpop.xlane.xlu0 %2505
        %v2507 = vrcp.pop %v2497
        %v2508 = vrcp.pop %v2500
        %v2509 = vrcp.pop %v2503
        %v2510 = vrcp.pop %v2506
        %v2511 = vmul.f32 %v2488, %v2507
        %v2512 = vmul.f32 %v2490, %v2508
        %v2513 = vmul.f32 %v2492, %v2509
        %v2514 = vmul.f32 %v2494, %v2510
        %v2515 = vpack.c.bf16 %v2512, %v2511
        %v2516 = vpack.c.bf16 %v2514, %v2513
        %v2518 = vsel %vm1972, %v2515, 0
        %v2521 = vsel %vm1972, %v2516, 0
        %2523 = vmatprep.subr.bf16.mxu0 0
        %2524 = vmatpush1.bf16.msra.mxu0 %v2392
        %2525 = vmatprep.subr.bf16.mxu0 0
        %2526 = vmatpush1.bf16.msra.mxu0 %v2393
        %2527 = vmatprep.subr.bf16.mxu0 0
        %2528 = vmatpush1.bf16.msra.mxu0 %v2394
        %2529 = vmatprep.subr.bf16.mxu0 0
        %2530 = vmatpush1.bf16.msra.mxu0 %v2395
        %2531 = vmatprep.subr.bf16.mxu0 0
        %2532 = vmatpush1.bf16.msra.mxu0 0
        %2533 = vmatprep.subr.bf16.mxu0 0
        %2534 = vmatpush1.bf16.msra.mxu0 0
        %2535 = vmatprep.subr.bf16.mxu0 0
        %2536 = vmatpush1.bf16.msra.mxu0 0
        %2537 = vmatprep.subr.bf16.mxu0 0
        %2538 = vmatpush1.bf16.msra.mxu0 0
        %2539 = vmatprep.subr.bf16.mxu0 0
        %2540 = vmatpush1.bf16.msra.mxu0 0
        %2541 = vmatprep.subr.bf16.mxu0 0
        %2542 = vmatpush1.bf16.msra.mxu0 0
        %2543 = vmatprep.subr.bf16.mxu0 0
        %2544 = vmatpush1.bf16.msra.mxu0 0
        %2545 = vmatprep.subr.bf16.mxu0 0
        %2546 = vmatpush1.bf16.msra.mxu0 0
        %2547 = vmatprep.subr.bf16.mxu0 0
        %2548 = vmatpush1.bf16.msra.mxu0 0
        %2549 = vmatprep.subr.bf16.mxu0 0
        %2550 = vmatpush1.bf16.msra.mxu0 0
        %2551 = vmatprep.subr.bf16.mxu0 0
        %2552 = vmatpush1.bf16.msra.mxu0 0
        %2553 = vmatprep.subr.bf16.mxu0 0
        %2554 = vmatpush1.bf16.msra.mxu0 0
        %2555 = vmatprep.mubr.bf16.mxu0 0
        %2556 = vmatmul.mubr.bf16.gmra.mrb[0].mxu0 %v2518
        %v2557 = vpop.f32.mrb[0].mxu0
        %v2558 = vadd.f32 0.0, %v2557
        %v2559 = vpop.f32.mrb[0].mxu0
        %v2560 = vpop.f32.mrb[0].mxu0
        %v2561 = vadd.f32 0.0, %v2560
        %v2562 = vpop.f32.mrb[0].mxu0
        %2563 = vmatprep.mubr.bf16.mxu0 0
        %2564 = vmatmul.mubr.bf16.gmra.mrb[0].mxu0 %v2521
        %v2565 = vpop.f32.mrb[0].mxu0
        %v2566 = vadd.f32 0.0, %v2565
        %v2567 = vpop.f32.mrb[0].mxu0
        %v2568 = vpop.f32.mrb[0].mxu0
        %v2569 = vadd.f32 0.0, %v2568
        %v2570 = vpop.f32.mrb[0].mxu0
        %2571 = vdwg.mxu0
        %v2572 = vpack.c.bf16 %v2561, %v2558
        %v2573 = vpack.c.bf16 %v2569, %v2566
        %s2574 = scalar_lea.vmem [#allocation19], 8
        %v2575 = vld [vmem:[%s2574] sm:$0xf]
        %v2577 = vsel %vm1871, %v2572, 0
        %v2580 = vsel %vm1871, %v2573, 0
        %v2583 = vsel %vm2275, %v2575, 0
        %2585 = vmatprep.subr.bf16.mxu0 0
        %2586 = vmatpush1.bf16.msra.mxu0 %v2583
        %2587 = vmatprep.subr.bf16.mxu0 0
        %2588 = vmatpush1.bf16.msra.mxu0 0
        %2589 = vmatprep.subr.bf16.mxu0 0
        %2590 = vmatpush1.bf16.msra.mxu0 0
        %2591 = vmatprep.subr.bf16.mxu0 0
        %2592 = vmatpush1.bf16.msra.mxu0 0
        %2593 = vmatprep.subr.bf16.mxu0 0
        %2594 = vmatpush1.bf16.msra.mxu0 0
        %2595 = vmatprep.subr.bf16.mxu0 0
        %2596 = vmatpush1.bf16.msra.mxu0 0
        %2597 = vmatprep.subr.bf16.mxu0 0
        %2598 = vmatpush1.bf16.msra.mxu0 0
        %2599 = vmatprep.subr.bf16.mxu0 0
        %2600 = vmatpush1.bf16.msra.mxu0 0
        %2601 = vmatprep.subr.bf16.mxu0 0
        %2602 = vmatpush1.bf16.msra.mxu0 0
        %2603 = vmatprep.subr.bf16.mxu0 0
        %2604 = vmatpush1.bf16.msra.mxu0 0
        %2605 = vmatprep.subr.bf16.mxu0 0
        %2606 = vmatpush1.bf16.msra.mxu0 0
        %2607 = vmatprep.subr.bf16.mxu0 0
        %2608 = vmatpush1.bf16.msra.mxu0 0
        %2609 = vmatprep.subr.bf16.mxu0 0
        %2610 = vmatpush1.bf16.msra.mxu0 0
        %2611 = vmatprep.subr.bf16.mxu0 0
        %2612 = vmatpush1.bf16.msra.mxu0 0
        %2613 = vmatprep.subr.bf16.mxu0 0
        %2614 = vmatpush1.bf16.msra.mxu0 0
        %2615 = vmatprep.subr.bf16.mxu0 0
        %2616 = vmatpush1.bf16.msra.mxu0 0
        %2617 = vmatprep.mubr.bf16.mxu0 0
        %2618 = vmatmul.mubr.bf16.gmra.mrb[0].mxu0 %v2577
        %v2619 = vpop.f32.mrb[0].mxu0
        %v2620 = vadd.f32 0.0, %v2619
        %v2621 = vpop.f32.mrb[0].mxu0
        %v2622 = vpop.f32.mrb[0].mxu0
        %v2623 = vadd.f32 0.0, %v2622
        %v2624 = vpop.f32.mrb[0].mxu0
        %2625 = vmatprep.mubr.bf16.mxu0 0
        %2626 = vmatmul.mubr.bf16.gmra.mrb[0].mxu0 %v2580
        %v2627 = vpop.f32.mrb[0].mxu0
        %v2628 = vadd.f32 0.0, %v2627
        %v2629 = vpop.f32.mrb[0].mxu0
        %v2630 = vpop.f32.mrb[0].mxu0
        %v2631 = vadd.f32 0.0, %v2630
        %v2632 = vpop.f32.mrb[0].mxu0
        %2633 = vdwg.mxu0
        %v2634 = vadd.f32 %v2372, %v2620
        %v2635 = vadd.f32 %v2375, %v2623
        %v2636 = vadd.f32 %v2380, %v2628
        %v2637 = vadd.f32 %v2383, %v2631
        %s2638 = scalar_lea.vmem [#allocation2], 96
        %v2639 = vld [vmem:[%s2638] sm:$0xff]
        %v2640 = vld [vmem:[%s2638 + $0x8] sm:$0xff]
        %v2641 = vld [vmem:[%s2638 + $0x10] sm:$0xff]
        %v2642 = vld [vmem:[%s2638 + $0x18] sm:$0xff]
        %s2643 = scalar_lea.vmem [#allocation3], 96
        %v2644 = vld [vmem:[%s2643] sm:$0xff]
        %v2645 = vld [vmem:[%s2643 + $0x8] sm:$0xff]
        %v2646 = vld [vmem:[%s2643 + $0x10] sm:$0xff]
        %v2647 = vld [vmem:[%s2643 + $0x18] sm:$0xff]
        %2648 = vrot.lane.b32.xlu0 %v1861, 104
        %v2649 = vpop.permute.xlu0 %2648
        %2650 = vrot.lane.b32.xlu0 %v1862, 104
        %v2651 = vpop.permute.xlu0 %2650
        %v2653 = vsel %vm1871, %v2649, 0
        %v2656 = vsel %vm1871, %v2651, 0
        %v2659 = vsel %vm1871, %v2639, 0
        %v2662 = vsel %vm1871, %v2640, 0
        %v2665 = vsel %vm1871, %v2641, 0
        %v2668 = vsel %vm1871, %v2642, 0
        %2670 = vmatprep.subr.bf16.mxu0 0
        %2671 = vmatpush1.bf16.xpose.msra.mxu0 %v2659
        %2672 = vmatprep.subr.bf16.mxu0 0
        %2673 = vmatpush1.bf16.xpose.msra.mxu0 %v2662
        %2674 = vmatprep.subr.bf16.mxu0 0
        %2675 = vmatpush1.bf16.xpose.msra.mxu0 %v2665
        %2676 = vmatprep.subr.bf16.mxu0 0
        %2677 = vmatpush1.bf16.xpose.msra.mxu0 %v2668
        %2678 = vmatprep.subr.bf16.mxu0 0
        %2679 = vmatpush1.bf16.xpose.msra.mxu0 0
        %2680 = vmatprep.subr.bf16.mxu0 0
        %2681 = vmatpush1.bf16.xpose.msra.mxu0 0
        %2682 = vmatprep.subr.bf16.mxu0 0
        %2683 = vmatpush1.bf16.xpose.msra.mxu0 0
        %2684 = vmatprep.subr.bf16.mxu0 0
        %2685 = vmatpush1.bf16.xpose.msra.mxu0 0
        %2686 = vmatprep.subr.bf16.mxu0 0
        %2687 = vmatpush1.bf16.xpose.msra.mxu0 0
        %2688 = vmatprep.subr.bf16.mxu0 0
        %2689 = vmatpush1.bf16.xpose.msra.mxu0 0
        %2690 = vmatprep.subr.bf16.mxu0 0
        %2691 = vmatpush1.bf16.xpose.msra.mxu0 0
        %2692 = vmatprep.subr.bf16.mxu0 0
        %2693 = vmatpush1.bf16.xpose.msra.mxu0 0
        %2694 = vmatprep.subr.bf16.mxu0 0
        %2695 = vmatpush1.bf16.xpose.msra.mxu0 0
        %2696 = vmatprep.subr.bf16.mxu0 0
        %2697 = vmatpush1.bf16.xpose.msra.mxu0 0
        %2698 = vmatprep.subr.bf16.mxu0 0
        %2699 = vmatpush1.bf16.xpose.msra.mxu0 0
        %2700 = vmatprep.subr.bf16.mxu0 0
        %2701 = vmatpush1.bf16.xpose.msra.mxu0 0
        %2702 = vmatprep.mubr.bf16.mxu0 0
        %2703 = vmatmul.mubr.bf16.gmra.mrb[0].mxu0 %v2653
        %v2704 = vpop.f32.mrb[0].mxu0
        %v2705 = vadd.f32 0.0, %v2704
        %v2706 = vpop.f32.mrb[0].mxu0
        %v2707 = vpop.f32.mrb[0].mxu0
        %v2708 = vadd.f32 0.0, %v2707
        %v2709 = vpop.f32.mrb[0].mxu0
        %2710 = vmatprep.mubr.bf16.mxu0 0
        %2711 = vmatmul.mubr.bf16.gmra.mrb[0].mxu0 %v2656
        %v2712 = vpop.f32.mrb[0].mxu0
        %v2713 = vadd.f32 0.0, %v2712
        %v2714 = vpop.f32.mrb[0].mxu0
        %v2715 = vpop.f32.mrb[0].mxu0
        %v2716 = vadd.f32 0.0, %v2715
        %v2717 = vpop.f32.mrb[0].mxu0
        %2718 = vdwg.mxu0
        %v2719 = vsel %vm1964, %v2705, -1e+09
        %v2720 = vsel %vm1965, %v2708, -1e+09
        %v2721 = vsel %vm1966, %v2713, -1e+09
        %v2722 = vsel %vm1967, %v2716, -1e+09
        %v2723 = vsel %vm1972, %v2719, -inf
        %2724 = vmax.xlane.f32.xlu0 %v2723
        %v2725 = vpop.xlane.xlu0 %2724
        %v2726 = vsel %vm1972, %v2720, -inf
        %2727 = vmax.xlane.f32.xlu0 %v2726
        %v2728 = vpop.xlane.xlu0 %2727
        %v2729 = vsel %vm1972, %v2721, -inf
        %2730 = vmax.xlane.f32.xlu0 %v2729
        %v2731 = vpop.xlane.xlu0 %2730
        %v2732 = vsel %vm1972, %v2722, -inf
        %2733 = vmax.xlane.f32.xlu0 %v2732
        %v2734 = vpop.xlane.xlu0 %2733
        %v2735 = vsub.f32 %v2719, %v2725
        %v2736 = vsub.f32 %v2720, %v2728
        %v2737 = vsub.f32 %v2721, %v2731
        %v2738 = vsub.f32 %v2722, %v2734
        %v2739 = vmul.f32 %v2735, 1.442695
        %v2740 = vpow.pop %v2739
        %v2741 = vmul.f32 %v2736, 1.442695
        %v2742 = vpow.pop %v2741
        %v2743 = vmul.f32 %v2737, 1.442695
        %v2744 = vpow.pop %v2743
        %v2745 = vmul.f32 %v2738, 1.442695
        %v2746 = vpow.pop %v2745
        %v2747 = vsel %vm1972, %v2740, 0.0
        %2748 = vadd.xlane.f32.xlu0 %v2747
        %v2749 = vpop.xlane.xlu0 %2748
        %v2750 = vsel %vm1972, %v2742, 0.0
        %2751 = vadd.xlane.f32.xlu0 %v2750
        %v2752 = vpop.xlane.xlu0 %2751
        %v2753 = vsel %vm1972, %v2744, 0.0
        %2754 = vadd.xlane.f32.xlu0 %v2753
        %v2755 = vpop.xlane.xlu0 %2754
        %v2756 = vsel %vm1972, %v2746, 0.0
        %2757 = vadd.xlane.f32.xlu0 %v2756
        %v2758 = vpop.xlane.xlu0 %2757
        %v2759 = vrcp.pop %v2749
        %v2760 = vrcp.pop %v2752
        %v2761 = vrcp.pop %v2755
        %v2762 = vrcp.pop %v2758
        %v2763 = vmul.f32 %v2740, %v2759
        %v2764 = vmul.f32 %v2742, %v2760
        %v2765 = vmul.f32 %v2744, %v2761
        %v2766 = vmul.f32 %v2746, %v2762
        %v2767 = vpack.c.bf16 %v2764, %v2763
        %v2768 = vpack.c.bf16 %v2766, %v2765
        %v2770 = vsel %vm1972, %v2767, 0
        %v2773 = vsel %vm1972, %v2768, 0
        %2775 = vmatprep.subr.bf16.mxu0 0
        %2776 = vmatpush1.bf16.msra.mxu0 %v2644
        %2777 = vmatprep.subr.bf16.mxu0 0
        %2778 = vmatpush1.bf16.msra.mxu0 %v2645
        %2779 = vmatprep.subr.bf16.mxu0 0
        %2780 = vmatpush1.bf16.msra.mxu0 %v2646
        %2781 = vmatprep.subr.bf16.mxu0 0
        %2782 = vmatpush1.bf16.msra.mxu0 %v2647
        %2783 = vmatprep.subr.bf16.mxu0 0
        %2784 = vmatpush1.bf16.msra.mxu0 0
        %2785 = vmatprep.subr.bf16.mxu0 0
        %2786 = vmatpush1.bf16.msra.mxu0 0
        %2787 = vmatprep.subr.bf16.mxu0 0
        %2788 = vmatpush1.bf16.msra.mxu0 0
        %2789 = vmatprep.subr.bf16.mxu0 0
        %2790 = vmatpush1.bf16.msra.mxu0 0
        %2791 = vmatprep.subr.bf16.mxu0 0
        %2792 = vmatpush1.bf16.msra.mxu0 0
        %2793 = vmatprep.subr.bf16.mxu0 0
        %2794 = vmatpush1.bf16.msra.mxu0 0
        %2795 = vmatprep.subr.bf16.mxu0 0
        %2796 = vmatpush1.bf16.msra.mxu0 0
        %2797 = vmatprep.subr.bf16.mxu0 0
        %2798 = vmatpush1.bf16.msra.mxu0 0
        %2799 = vmatprep.subr.bf16.mxu0 0
        %2800 = vmatpush1.bf16.msra.mxu0 0
        %2801 = vmatprep.subr.bf16.mxu0 0
        %2802 = vmatpush1.bf16.msra.mxu0 0
        %2803 = vmatprep.subr.bf16.mxu0 0
        %2804 = vmatpush1.bf16.msra.mxu0 0
        %2805 = vmatprep.subr.bf16.mxu0 0
        %2806 = vmatpush1.bf16.msra.mxu0 0
        %2807 = vmatprep.mubr.bf16.mxu0 0
        %2808 = vmatmul.mubr.bf16.gmra.mrb[0].mxu0 %v2770
        %v2809 = vpop.f32.mrb[0].mxu0
        %v2810 = vadd.f32 0.0, %v2809
        %v2811 = vpop.f32.mrb[0].mxu0
        %v2812 = vpop.f32.mrb[0].mxu0
        %v2813 = vadd.f32 0.0, %v2812
        %v2814 = vpop.f32.mrb[0].mxu0
        %2815 = vmatprep.mubr.bf16.mxu0 0
        %2816 = vmatmul.mubr.bf16.gmra.mrb[0].mxu0 %v2773
        %v2817 = vpop.f32.mrb[0].mxu0
        %v2818 = vadd.f32 0.0, %v2817
        %v2819 = vpop.f32.mrb[0].mxu0
        %v2820 = vpop.f32.mrb[0].mxu0
        %v2821 = vadd.f32 0.0, %v2820
        %v2822 = vpop.f32.mrb[0].mxu0
        %2823 = vdwg.mxu0
        %v2824 = vpack.c.bf16 %v2813, %v2810
        %v2825 = vpack.c.bf16 %v2821, %v2818
        %s2826 = scalar_lea.vmem [#allocation19], 12
        %v2827 = vld [vmem:[%s2826] sm:$0xf]
        %v2829 = vsel %vm1871, %v2824, 0
        %v2832 = vsel %vm1871, %v2825, 0
        %v2835 = vsel %vm2275, %v2827, 0
        %2837 = vmatprep.subr.bf16.mxu0 0
        %2838 = vmatpush1.bf16.msra.mxu0 %v2835
        %2839 = vmatprep.subr.bf16.mxu0 0
        %2840 = vmatpush1.bf16.msra.mxu0 0
        %2841 = vmatprep.subr.bf16.mxu0 0
        %2842 = vmatpush1.bf16.msra.mxu0 0
        %2843 = vmatprep.subr.bf16.mxu0 0
        %2844 = vmatpush1.bf16.msra.mxu0 0
        %2845 = vmatprep.subr.bf16.mxu0 0
        %2846 = vmatpush1.bf16.msra.mxu0 0
        %2847 = vmatprep.subr.bf16.mxu0 0
        %2848 = vmatpush1.bf16.msra.mxu0 0
        %2849 = vmatprep.subr.bf16.mxu0 0
        %2850 = vmatpush1.bf16.msra.mxu0 0
        %2851 = vmatprep.subr.bf16.mxu0 0
        %2852 = vmatpush1.bf16.msra.mxu0 0
        %2853 = vmatprep.subr.bf16.mxu0 0
        %2854 = vmatpush1.bf16.msra.mxu0 0
        %2855 = vmatprep.subr.bf16.mxu0 0
        %2856 = vmatpush1.bf16.msra.mxu0 0
        %2857 = vmatprep.subr.bf16.mxu0 0
        %2858 = vmatpush1.bf16.msra.mxu0 0
        %2859 = vmatprep.subr.bf16.mxu0 0
        %2860 = vmatpush1.bf16.msra.mxu0 0
        %2861 = vmatprep.subr.bf16.mxu0 0
        %2862 = vmatpush1.bf16.msra.mxu0 0
        %2863 = vmatprep.subr.bf16.mxu0 0
        %2864 = vmatpush1.bf16.msra.mxu0 0
        %2865 = vmatprep.subr.bf16.mxu0 0
        %2866 = vmatpush1.bf16.msra.mxu0 0
        %2867 = vmatprep.subr.bf16.mxu0 0
        %2868 = vmatpush1.bf16.msra.mxu0 0
        %2869 = vmatprep.mubr.bf16.mxu0 0
        %2870 = vmatmul.mubr.bf16.gmra.mrb[0].mxu0 %v2829
        %v2871 = vpop.f32.mrb[0].mxu0
        %v2872 = vadd.f32 0.0, %v2871
        %v2873 = vpop.f32.mrb[0].mxu0
        %v2874 = vpop.f32.mrb[0].mxu0
        %v2875 = vadd.f32 0.0, %v2874
        %v2876 = vpop.f32.mrb[0].mxu0
        %2877 = vmatprep.mubr.bf16.mxu0 0
        %2878 = vmatmul.mubr.bf16.gmra.mrb[0].mxu0 %v2832
        %v2879 = vpop.f32.mrb[0].mxu0
        %v2880 = vadd.f32 0.0, %v2879
        %v2881 = vpop.f32.mrb[0].mxu0
        %v2882 = vpop.f32.mrb[0].mxu0
        %v2883 = vadd.f32 0.0, %v2882
        %v2884 = vpop.f32.mrb[0].mxu0
        %2885 = vdwg.mxu0
        %v2886 = vadd.f32 %v2634, %v2872
        %v2887 = vadd.f32 %v2635, %v2875
        %v2888 = vadd.f32 %v2636, %v2880
        %v2889 = vadd.f32 %v2637, %v2883
        %v2890 = vld [vmem:[#allocation21] sm:$0x1]
        %v2892 = vlaneseq
        %v2893 = vshrl.u32 %v2892, 7
        %v2894 = vsub.s32 0, %v2893
        %v2895 = vrot.slane %v2890, %v2894
        %v2897 = vadd.f32 %v2886, %v2895
        %v2898 = vadd.f32 %v2887, %v2895
        %v2899 = vadd.f32 %v2888, %v2895
        %v2900 = vadd.f32 %v2889, %v2895
        %v2901 = vadd.f32 %v2897, %v1770
        %v2902 = vadd.f32 %v2898, %v1771
        %v2903 = vadd.f32 %v2899, %v1772
        %v2904 = vadd.f32 %v2900, %v1773
        %v2905 = vld [vmem:[#allocation22] sm:$0x1]
        %v2906 = vld [vmem:[#allocation24] sm:$0x1]
        %v2907 = vsel %vm1801, %v2901, 0.0
        %2908 = vadd.xlane.f32.xlu0 %v2907
        %v2909 = vpop.xlane.xlu0 %2908
        %v2910 = vsel %vm1801, %v2902, 0.0
        %2911 = vadd.xlane.f32.xlu0 %v2910
        %v2912 = vpop.xlane.xlu0 %2911
        %v2913 = vsel %vm1801, %v2903, 0.0
        %2914 = vadd.xlane.f32.xlu0 %v2913
        %v2915 = vpop.xlane.xlu0 %2914
        %v2916 = vsel %vm1801, %v2904, 0.0
        %2917 = vadd.xlane.f32.xlu0 %v2916
        %v2918 = vpop.xlane.xlu0 %2917
        %v2919 = vrcp.pop 32.0
        %v2920 = vmul.f32 %v2909, %v2919
        %v2921 = vmul.f32 %v2912, %v2919
        %v2922 = vmul.f32 %v2915, %v2919
        %v2923 = vmul.f32 %v2918, %v2919
        %v2924 = vsub.f32 %v2901, %v2920
        %v2925 = vsub.f32 %v2902, %v2921
        %v2926 = vsub.f32 %v2903, %v2922
        %v2927 = vsub.f32 %v2904, %v2923
        %v2928 = vmul.f32 %v2924, %v2924
        %v2929 = vmul.f32 %v2925, %v2925
        %v2930 = vmul.f32 %v2926, %v2926
        %v2931 = vmul.f32 %v2927, %v2927
        %v2932 = vsel %vm1801, %v2928, 0.0
        %2933 = vadd.xlane.f32.xlu0 %v2932
        %v2934 = vpop.xlane.xlu0 %2933
        %v2935 = vsel %vm1801, %v2929, 0.0
        %2936 = vadd.xlane.f32.xlu0 %v2935
        %v2937 = vpop.xlane.xlu0 %2936
        %v2938 = vsel %vm1801, %v2930, 0.0
        %2939 = vadd.xlane.f32.xlu0 %v2938
        %v2940 = vpop.xlane.xlu0 %2939
        %v2941 = vsel %vm1801, %v2931, 0.0
        %2942 = vadd.xlane.f32.xlu0 %v2941
        %v2943 = vpop.xlane.xlu0 %2942
        %v2944 = vmul.f32 %v2934, %v2919
        %v2945 = vmul.f32 %v2937, %v2919
        %v2946 = vmul.f32 %v2940, %v2919
        %v2947 = vmul.f32 %v2943, %v2919
        %v2948 = vadd.f32 %v2944, 1e-05
        %v2949 = vadd.f32 %v2945, 1e-05
        %v2950 = vadd.f32 %v2946, 1e-05
        %v2951 = vadd.f32 %v2947, 1e-05
        %v2952 = vrsqrt.pop %v2948
        %v2953 = vrsqrt.pop %v2949
        %v2954 = vrsqrt.pop %v2950
        %v2955 = vrsqrt.pop %v2951
        %v2956 = vmul.f32 %v2924, %v2952
        %v2957 = vmul.f32 %v2925, %v2953
        %v2958 = vmul.f32 %v2926, %v2954
        %v2959 = vmul.f32 %v2927, %v2955
        %v2961 = vlaneseq
        %v2962 = vshrl.u32 %v2961, 7
        %v2963 = vsub.s32 0, %v2962
        %v2964 = vrot.slane %v2905, %v2963
        %v2966 = vmul.f32 %v2956, %v2964
        %v2967 = vmul.f32 %v2957, %v2964
        %v2968 = vmul.f32 %v2958, %v2964
        %v2969 = vmul.f32 %v2959, %v2964
        %v2971 = vlaneseq
        %v2972 = vshrl.u32 %v2971, 7
        %v2973 = vsub.s32 0, %v2972
        %v2974 = vrot.slane %v2906, %v2973
        %v2976 = vadd.f32 %v2966, %v2974
        %v2977 = vadd.f32 %v2967, %v2974
        %v2978 = vadd.f32 %v2968, %v2974
        %v2979 = vadd.f32 %v2969, %v2974
        %v2980 = vpack.c.bf16 %v2977, %v2976
        %v2981 = vpack.c.bf16 %v2979, %v2978
        %v2982 = vld [vmem:[#allocation28] sm:$0xf]
        %v2983 = vld [vmem:[#allocation28 + $0x4] sm:$0xf]
        %v2984 = vld [vmem:[#allocation28 + $0x8] sm:$0xf]
        %v2985 = vld [vmem:[#allocation28 + $0xc] sm:$0xf]
        %v2986 = vld [vmem:[#allocation30] sm:$0x1]
        %v2988 = vlaneseq
        %v2989 = vshrl.u32 %v2988, 7
        %v2990 = vsub.s32 0, %v2989
        %v2991 = vrot.slane %v2986, %v2990
        %v2997 = vunpack.c.l.b16 %v2982
        %v2998 = vunpack.c.l.b16 %v2983
        %v2999 = vunpack.c.l.b16 %v2984
        %v3000 = vunpack.c.l.b16 %v2985
        %v3001 = vpack.c.b16 %v2998, %v2997
        %v3002 = vpack.c.b16 %v3000, %v2999
        %v3006 = vsel %vm1801, %v2980, 0
        %v3009 = vsel %vm1801, %v2981, 0
        %3011 = vmatprep.subr.bf16.mxu0 0
        %3012 = vmatpush1.bf16.msra.mxu0 %v3001
        %3013 = vmatprep.subr.bf16.mxu0 0
        %3014 = vmatpush1.bf16.msra.mxu0 %v3002
        %3015 = vmatprep.subr.bf16.mxu0 0
        %3016 = vmatpush1.bf16.msra.mxu0 0
        %3017 = vmatprep.subr.bf16.mxu0 0
        %3018 = vmatpush1.bf16.msra.mxu0 0
        %3019 = vmatprep.subr.bf16.mxu0 0
        %3020 = vmatpush1.bf16.msra.mxu0 0
        %3021 = vmatprep.subr.bf16.mxu0 0
        %3022 = vmatpush1.bf16.msra.mxu0 0
        %3023 = vmatprep.subr.bf16.mxu0 0
        %3024 = vmatpush1.bf16.msra.mxu0 0
        %3025 = vmatprep.subr.bf16.mxu0 0
        %3026 = vmatpush1.bf16.msra.mxu0 0
        %3027 = vmatprep.subr.bf16.mxu0 0
        %3028 = vmatpush1.bf16.msra.mxu0 0
        %3029 = vmatprep.subr.bf16.mxu0 0
        %3030 = vmatpush1.bf16.msra.mxu0 0
        %3031 = vmatprep.subr.bf16.mxu0 0
        %3032 = vmatpush1.bf16.msra.mxu0 0
        %3033 = vmatprep.subr.bf16.mxu0 0
        %3034 = vmatpush1.bf16.msra.mxu0 0
        %3035 = vmatprep.subr.bf16.mxu0 0
        %3036 = vmatpush1.bf16.msra.mxu0 0
        %3037 = vmatprep.subr.bf16.mxu0 0
        %3038 = vmatpush1.bf16.msra.mxu0 0
        %3039 = vmatprep.subr.bf16.mxu0 0
        %3040 = vmatpush1.bf16.msra.mxu0 0
        %3041 = vmatprep.subr.bf16.mxu0 0
        %3042 = vmatpush1.bf16.msra.mxu0 0
        %3043 = vmatprep.mubr.bf16.mxu0 0
        %3044 = vmatmul.mubr.bf16.gmra.mrb[0].mxu0 %v3006
        %v3045 = vpop.f32.mrb[0].mxu0
        %v3046 = vadd.f32 %v2991, %v3045
        %v3047 = vpop.f32.mrb[0].mxu0
        %v3048 = vpop.f32.mrb[0].mxu0
        %v3049 = vadd.f32 %v2991, %v3048
        %v3050 = vpop.f32.mrb[0].mxu0
        %3051 = vmatprep.mubr.bf16.mxu0 0
        %3052 = vmatmul.mubr.bf16.gmra.mrb[0].mxu0 %v3009
        %v3053 = vpop.f32.mrb[0].mxu0
        %v3054 = vadd.f32 %v2991, %v3053
        %v3055 = vpop.f32.mrb[0].mxu0
        %v3056 = vpop.f32.mrb[0].mxu0
        %v3057 = vadd.f32 %v2991, %v3056
        %v3058 = vpop.f32.mrb[0].mxu0
        %3059 = vdwg.mxu0
        %v3060 = vmax.f32 %v3046, 0.0
        %v3061 = vmax.f32 %v3049, 0.0
        %v3062 = vmax.f32 %v3054, 0.0
        %v3063 = vmax.f32 %v3057, 0.0
        %v3064 = vpack.c.bf16 %v3061, %v3060
        %v3065 = vpack.c.bf16 %v3063, %v3062
        %v3066 = vld [vmem:[#allocation31] sm:$0xf]
        %v3067 = vld [vmem:[#allocation31 + $0x4] sm:$0xf]
        %v3068 = vld [vmem:[#allocation31 + $0x8] sm:$0xf]
        %v3069 = vld [vmem:[#allocation31 + $0xc] sm:$0xf]
        %v3070 = vld [vmem:[#allocation31 + $0x10] sm:$0xf]
        %v3071 = vld [vmem:[#allocation31 + $0x14] sm:$0xf]
        %v3072 = vld [vmem:[#allocation31 + $0x18] sm:$0xf]
        %v3073 = vld [vmem:[#allocation31 + $0x1c] sm:$0xf]
        %v3074 = vld [vmem:[#allocation33] sm:$0x1]
        %v3076 = vlaneseq
        %v3077 = vshrl.u32 %v3076, 7
        %v3078 = vsub.s32 0, %v3077
        %v3079 = vrot.slane %v3074, %v3078
        %v3089 = vunpack.c.l.b16 %v3066
        %v3090 = vunpack.c.l.b16 %v3067
        %v3091 = vunpack.c.l.b16 %v3068
        %v3092 = vunpack.c.l.b16 %v3069
        %v3093 = vunpack.c.l.b16 %v3070
        %v3094 = vunpack.c.l.b16 %v3071
        %v3095 = vunpack.c.l.b16 %v3072
        %v3096 = vunpack.c.l.b16 %v3073
        %v3097 = vpack.c.b16 %v3090, %v3089
        %v3098 = vpack.c.b16 %v3092, %v3091
        %v3099 = vpack.c.b16 %v3094, %v3093
        %v3100 = vpack.c.b16 %v3096, %v3095
        %v3106 = vsel %vm1972, %v3064, 0
        %v3109 = vsel %vm1972, %v3065, 0
        %3111 = vmatprep.subr.bf16.mxu0 0
        %3112 = vmatpush1.bf16.msra.mxu0 %v3097
        %3113 = vmatprep.subr.bf16.mxu0 0
        %3114 = vmatpush1.bf16.msra.mxu0 %v3098
        %3115 = vmatprep.subr.bf16.mxu0 0
        %3116 = vmatpush1.bf16.msra.mxu0 %v3099
        %3117 = vmatprep.subr.bf16.mxu0 0
        %3118 = vmatpush1.bf16.msra.mxu0 %v3100
        %3119 = vmatprep.subr.bf16.mxu0 0
        %3120 = vmatpush1.bf16.msra.mxu0 0
        %3121 = vmatprep.subr.bf16.mxu0 0
        %3122 = vmatpush1.bf16.msra.mxu0 0
        %3123 = vmatprep.subr.bf16.mxu0 0
        %3124 = vmatpush1.bf16.msra.mxu0 0
        %3125 = vmatprep.subr.bf16.mxu0 0
        %3126 = vmatpush1.bf16.msra.mxu0 0
        %3127 = vmatprep.subr.bf16.mxu0 0
        %3128 = vmatpush1.bf16.msra.mxu0 0
        %3129 = vmatprep.subr.bf16.mxu0 0
        %3130 = vmatpush1.bf16.msra.mxu0 0
        %3131 = vmatprep.subr.bf16.mxu0 0
        %3132 = vmatpush1.bf16.msra.mxu0 0
        %3133 = vmatprep.subr.bf16.mxu0 0
        %3134 = vmatpush1.bf16.msra.mxu0 0
        %3135 = vmatprep.subr.bf16.mxu0 0
        %3136 = vmatpush1.bf16.msra.mxu0 0
        %3137 = vmatprep.subr.bf16.mxu0 0
        %3138 = vmatpush1.bf16.msra.mxu0 0
        %3139 = vmatprep.subr.bf16.mxu0 0
        %3140 = vmatpush1.bf16.msra.mxu0 0
        %3141 = vmatprep.subr.bf16.mxu0 0
        %3142 = vmatpush1.bf16.msra.mxu0 0
        %3143 = vmatprep.mubr.bf16.mxu0 0
        %3144 = vmatmul.mubr.bf16.gmra.mrb[0].mxu0 %v3106
        %v3145 = vpop.f32.mrb[0].mxu0
        %v3146 = vadd.f32 %v3079, %v3145
        %v3147 = vpop.f32.mrb[0].mxu0
        %v3148 = vpop.f32.mrb[0].mxu0
        %v3149 = vadd.f32 %v3079, %v3148
        %v3150 = vpop.f32.mrb[0].mxu0
        %3151 = vmatprep.mubr.bf16.mxu0 0
        %3152 = vmatmul.mubr.bf16.gmra.mrb[0].mxu0 %v3109
        %v3153 = vpop.f32.mrb[0].mxu0
        %v3154 = vadd.f32 %v3079, %v3153
        %v3155 = vpop.f32.mrb[0].mxu0
        %v3156 = vpop.f32.mrb[0].mxu0
        %v3157 = vadd.f32 %v3079, %v3156
        %v3158 = vpop.f32.mrb[0].mxu0
        %3159 = vdwg.mxu0
        %v3160 = vadd.f32 %v2976, %v3146
        %v3161 = vadd.f32 %v2977, %v3149
        %v3162 = vadd.f32 %v2978, %v3154
        %v3163 = vadd.f32 %v2979, %v3157
        %v3164 = vld [vmem:[#allocation25] sm:$0x1]
        %v3165 = vld [vmem:[#allocation27] sm:$0x1]
        %v3166 = vsel %vm1801, %v3160, 0.0
        %3167 = vadd.xlane.f32.xlu0 %v3166
        %v3168 = vpop.xlane.xlu0 %3167
        %v3169 = vsel %vm1801, %v3161, 0.0
        %3170 = vadd.xlane.f32.xlu0 %v3169
        %v3171 = vpop.xlane.xlu0 %3170
        %v3172 = vsel %vm1801, %v3162, 0.0
        %3173 = vadd.xlane.f32.xlu0 %v3172
        %v3174 = vpop.xlane.xlu0 %3173
        %v3175 = vsel %vm1801, %v3163, 0.0
        %3176 = vadd.xlane.f32.xlu0 %v3175
        %v3177 = vpop.xlane.xlu0 %3176
        %v3178 = vmul.f32 %v3168, %v2919
        %v3179 = vmul.f32 %v3171, %v2919
        %v3180 = vmul.f32 %v3174, %v2919
        %v3181 = vmul.f32 %v3177, %v2919
        %v3182 = vsub.f32 %v3160, %v3178
        %v3183 = vsub.f32 %v3161, %v3179
        %v3184 = vsub.f32 %v3162, %v3180
        %v3185 = vsub.f32 %v3163, %v3181
        %v3186 = vmul.f32 %v3182, %v3182
        %v3187 = vmul.f32 %v3183, %v3183
        %v3188 = vmul.f32 %v3184, %v3184
        %v3189 = vmul.f32 %v3185, %v3185
        %v3190 = vsel %vm1801, %v3186, 0.0
        %3191 = vadd.xlane.f32.xlu0 %v3190
        %v3192 = vpop.xlane.xlu0 %3191
        %v3193 = vsel %vm1801, %v3187, 0.0
        %3194 = vadd.xlane.f32.xlu0 %v3193
        %v3195 = vpop.xlane.xlu0 %3194
        %v3196 = vsel %vm1801, %v3188, 0.0
        %3197 = vadd.xlane.f32.xlu0 %v3196
        %v3198 = vpop.xlane.xlu0 %3197
        %v3199 = vsel %vm1801, %v3189, 0.0
        %3200 = vadd.xlane.f32.xlu0 %v3199
        %v3201 = vpop.xlane.xlu0 %3200
        %v3202 = vmul.f32 %v3192, %v2919
        %v3203 = vmul.f32 %v3195, %v2919
        %v3204 = vmul.f32 %v3198, %v2919
        %v3205 = vmul.f32 %v3201, %v2919
        %v3206 = vadd.f32 %v3202, 1e-05
        %v3207 = vadd.f32 %v3203, 1e-05
        %v3208 = vadd.f32 %v3204, 1e-05
        %v3209 = vadd.f32 %v3205, 1e-05
        %v3210 = vrsqrt.pop %v3206
        %v3211 = vrsqrt.pop %v3207
        %v3212 = vrsqrt.pop %v3208
        %v3213 = vrsqrt.pop %v3209
        %v3214 = vmul.f32 %v3182, %v3210
        %v3215 = vmul.f32 %v3183, %v3211
        %v3216 = vmul.f32 %v3184, %v3212
        %v3217 = vmul.f32 %v3185, %v3213
        %v3219 = vlaneseq
        %v3220 = vshrl.u32 %v3219, 7
        %v3221 = vsub.s32 0, %v3220
        %v3222 = vrot.slane %v3164, %v3221
        %v3224 = vmul.f32 %v3214, %v3222
        %v3225 = vmul.f32 %v3215, %v3222
        %v3226 = vmul.f32 %v3216, %v3222
        %v3227 = vmul.f32 %v3217, %v3222
        %v3229 = vlaneseq
        %v3230 = vshrl.u32 %v3229, 7
        %v3231 = vsub.s32 0, %v3230
        %v3232 = vrot.slane %v3165, %v3231
        %v3234 = vadd.f32 %v3224, %v3232
        %v3235 = vadd.f32 %v3225, %v3232
        %v3236 = vadd.f32 %v3226, %v3232
        %v3237 = vadd.f32 %v3227, %v3232
        %3238 = vst.msk [vmem:[%s932] sm:$0xff] %vm1801, %v3234
        %3239 = vst.msk [vmem:[%s932 + $0x8] sm:$0xff] %vm1801, %v3235
        %3240 = vst.msk [vmem:[%s932 + $0x10] sm:$0xff] %vm1801, %v3236
        %3241 = vst.msk [vmem:[%s932 + $0x18] sm:$0xff] %vm1801, %v3237
        %s3242 = sand.u32 %s487, 1
        %s3243 = scalar_lea.sflag [#allocation6], %s3242
        %s3244 = sand.u32 %s487, 1
        %s3245 = smul.addr %s3244, 32
        %s3246 = scalar_lea.vmem [#allocation34], %s3245
        // Predicated region
        $region177: #{tpu_custom_call.1} parent=95 // pred_check
          %p3247 = pneg %p497
        $region178: #{tpu_custom_call.1} parent=95 // pred_check_branch
          %3249 = sbr.rel (%p3247) target = $region180
        $region179: #{tpu_custom_call.1} parent=95 // pred_region
          %s3250 = smul.u32 4, %s52
          %s3252 = ssub.s32 512, 512
          %3253 = vsyncadd %s3243, %s3252
          %s3254 = smul.addr %s51, 8
          %s3255 = sadd.s32 %s3250, %s3254
          %s3256 = smul.addr %s3255, 128
          %s3257 = scalar_lea.hbm %s19, %s3256
          %s3258 = sshll.u32 %s3246, 4
          %s3259 = int_to_ptr.vmem [resolvable:$true] %s3258
          %3264 = dma.vmem_to_hbm [thread:$0]  %s3259, 512, %s3257, %s3243, 128, 128, 8
        $region180: #{tpu_custom_call.1} parent=95 // pred_fallthru
          _
      $region96: #{tpu_custom_call.1} parent=5 // pred_fallthru
        _
      %p3265 = scmp.le.s32.totalorder 2, %s42
      // Predicated region
      $region181: #{tpu_custom_call.1} parent=5 // pred_check
        %p3266 = pneg %p3265
      $region182: #{tpu_custom_call.1} parent=5 // pred_check_branch
        %3268 = sbr.rel (%p3266) target = $region184
      $region183: #{tpu_custom_call.1} parent=5 // pred_region
        %s3269 = ssub.s32 %s42, 2
        // Predicated region
        $region185: #{tpu_custom_call.1} parent=183 // pred_check
          %p3270 = pneg %p503
        $region186: #{tpu_custom_call.1} parent=183 // pred_check_branch
          %3272 = sbr.rel (%p3270) target = $region188
        $region187: #{tpu_custom_call.1} parent=183 // pred_region
          %s3273 = sand.u32 %s488, 1
          %s3274 = scalar_lea.sflag [#allocation6], %s3273
          %s3275 = sand.u32 %s488, 1
          %s3276 = smul.addr %s3275, 32
          %s3277 = scalar_lea.vmem [#allocation34], %s3276
          %3278 = dma.done %s3274, 512
        $region188: #{tpu_custom_call.1} parent=183 // pred_fallthru
          _
      $region184: #{tpu_custom_call.1} parent=5 // pred_fallthru
        _
    $region6: #{tpu_custom_call.1} parent=1 // loop_footer
      %s46 = sadd.s32 1, %s42
    $region7: #{tpu_custom_call.1} parent=1 // loop_footer_branch
      %41 = sbr.rel target = $region3
    $region8: #{tpu_custom_call.1} parent=1 // loop_exit
      _
    %3279 = vsyncpa [#allocation5], 1
    %s3280 = scalar_lea.sflag [#allocation5], 1
    %3281 = vsyncpa %s3280, 1
    %3282 = vsyncpa [#allocation8], 1
    %s3283 = scalar_lea.sflag [#allocation8], 1
    %3284 = vsyncpa %s3283, 1
    %3285 = vsyncpa [#allocation11], 1
    %3286 = vsyncpa [#allocation14], 1
    %3287 = vsyncpa [#allocation17], 1
    %3288 = vsyncpa [#allocation20], 1
    %3289 = vsyncpa [#allocation23], 1
    %3290 = vsyncpa [#allocation26], 1
    %3291 = vsyncpa [#allocation29], 1
    %3292 = vsyncpa [#allocation32], 1
    %3293 = vsyncpa [#allocation6], 1
    %s3294 = scalar_lea.sflag [#allocation6], 1
    %3295 = vsyncpa %s3294, 1

// kernel: tpu_custom_call.1
$region0: #{tpu_custom_call.1}
  #allocation0 [shape = 'u32[]', space=smem, size = 0x4, offset = 0x4, fixed_abs, tag = 'smem constant byte address 0x4 - core index']
  #allocation1 [shape = 'u32[144,128]{1,0:T(1,128)}', space=vmem, size = 0x12000, scoped, tag = 'internal scratch']
  #allocation2 [shape = 'bf16[4,64,8]{2,1,0:T(16,128)(2,1)}', space=vmem, size = 0x10000, scoped, tag = 'scratch operand']
  #allocation3 [shape = 'bf16[4,64,8]{2,1,0:T(16,128)(2,1)}', space=vmem, size = 0x10000, scoped, tag = 'scratch operand']
  %s0 = inlined_call_operand.hbm [shape: f32[2,64,32], index: 0, kind: input, shape index: {}]
  %s1 = inlined_call_operand.hbm [shape: bf16[2,64,32], index: 1, kind: input, shape index: {}]
  %s2 = inlined_call_operand.hbm [shape: s8[2,64,64], index: 2, kind: input, shape index: {}]
  %s3 = inlined_call_operand.hbm [shape: bf16[32,32], index: 3, kind: input, shape index: {}]
  %s4 = inlined_call_operand.hbm [shape: f32[1,32], index: 4, kind: input, shape index: {}]
  %s5 = inlined_call_operand.hbm [shape: bf16[4,32,8], index: 5, kind: input, shape index: {}]
  %s6 = inlined_call_operand.hbm [shape: f32[4,1,8], index: 6, kind: input, shape index: {}]
  %s7 = inlined_call_operand.hbm [shape: bf16[4,32,8], index: 7, kind: input, shape index: {}]
  %s8 = inlined_call_operand.hbm [shape: f32[4,1,8], index: 8, kind: input, shape index: {}]
  %s9 = inlined_call_operand.hbm [shape: bf16[4,8,32], index: 9, kind: input, shape index: {}]
  %s10 = inlined_call_operand.hbm [shape: f32[1,32], index: 10, kind: input, shape index: {}]
  %s11 = inlined_call_operand.hbm [shape: f32[1,32], index: 11, kind: input, shape index: {}]
  %s12 = inlined_call_operand.hbm [shape: f32[1,32], index: 12, kind: input, shape index: {}]
  %s13 = inlined_call_operand.hbm [shape: f32[1,32], index: 13, kind: input, shape index: {}]
  %s14 = inlined_call_operand.hbm [shape: f32[1,32], index: 14, kind: input, shape index: {}]
  %s15 = inlined_call_operand.hbm [shape: bf16[1,32,64], index: 15, kind: input, shape index: {}]
  %s16 = inlined_call_operand.hbm [shape: f32[1,1,64], index: 16, kind: input, shape index: {}]
  %s17 = inlined_call_operand.hbm [shape: bf16[1,64,32], index: 17, kind: input, shape index: {}]
  %s18 = inlined_call_operand.hbm [shape: f32[1,32], index: 18, kind: input, shape index: {}]
  %s19 = inlined_call_operand.hbm [shape: f32[2,64,32], index: 19, kind: output, shape index: {}]
  %s20 = sld [smem:[#allocation0]]
  $region189: #{tpu_custom_call.1} parent=0
    _
  %s22 = ssub.s32 1, %s20
  %s23 = scalar_select 0, %s22, %s20
  $region1: #{tpu_custom_call.1} parent=0
    #allocation4 [shape = 'u8[32768]{0}', space=vmem, size = 0x8000, scoped, tag = 'input window, operand 0']
    #allocation5 [shape = 's32[2]{0}', space=sflag, size = 0x8, scoped, tag = 'scoped memory for tpu_custom_call.1']
    #allocation6 [shape = 's32[2]{0}', space=sflag, size = 0x8, scoped, tag = 'scoped memory for tpu_custom_call.1']
    #allocation7 [shape = 'u8[32768]{0}', space=vmem, size = 0x8000, scoped, tag = 'input window, operand 1']
    #allocation8 [shape = 's32[2]{0}', space=sflag, size = 0x8, scoped, tag = 'scoped memory for tpu_custom_call.1']
    #allocation9 [shape = 'u8[8192]{0}', space=vmem, size = 0x2000, scoped, tag = 'input window, operand 2']
    #allocation10 [shape = 'u8[8192]{0}', space=vmem, size = 0x2000, scoped, tag = 'input window, operand 3, single buffered']
    #allocation11 [shape = 's32[1]{0}', space=sflag, size = 0x4, scoped, tag = 'scoped memory for tpu_custom_call.1']
    #allocation12 [shape = 'u8[512]{0}', space=vmem, size = 0x400, scoped, tag = 'input window, operand 4, single buffered']
    #allocation13 [shape = 'u8[32768]{0}', space=vmem, size = 0x8000, scoped, tag = 'input window, operand 5, single buffered']
    #allocation14 [shape = 's32[1]{0}', space=sflag, size = 0x4, scoped, tag = 'scoped memory for tpu_custom_call.1']
    #allocation15 [shape = 'u8[2048]{0}', space=vmem, size = 0x800, scoped, tag = 'input window, operand 6, single buffered']
    #allocation16 [shape = 'u8[32768]{0}', space=vmem, size = 0x8000, scoped, tag = 'input window, operand 7, single buffered']
    #allocation17 [shape = 's32[1]{0}', space=sflag, size = 0x4, scoped, tag = 'scoped memory for tpu_custom_call.1']
    #allocation18 [shape = 'u8[2048]{0}', space=vmem, size = 0x800, scoped, tag = 'input window, operand 8, single buffered']
    #allocation19 [shape = 'u8[8192]{0}', space=vmem, size = 0x2000, scoped, tag = 'input window, operand 9, single buffered']
    #allocation20 [shape = 's32[1]{0}', space=sflag, size = 0x4, scoped, tag = 'scoped memory for tpu_custom_call.1']
    #allocation21 [shape = 'u8[512]{0}', space=vmem, size = 0x400, scoped, tag = 'input window, operand 10, single buffered']
    #allocation22 [shape = 'u8[512]{0}', space=vmem, size = 0x400, scoped, tag = 'input window, operand 11, single buffered']
    #allocation23 [shape = 's32[1]{0}', space=sflag, size = 0x4, scoped, tag = 'scoped memory for tpu_custom_call.1']
    #allocation24 [shape = 'u8[512]{0}', space=vmem, size = 0x400, scoped, tag = 'input window, operand 12, single buffered']
    #allocation25 [shape = 'u8[512]{0}', space=vmem, size = 0x400, scoped, tag = 'input window, operand 13, single buffered']
    #allocation26 [shape = 's32[1]{0}', space=sflag, size = 0x4, scoped, tag = 'scoped memory for tpu_custom_call.1']
    #allocation27 [shape = 'u8[512]{0}', space=vmem, size = 0x400, scoped, tag = 'input window, operand 14, single buffered']
    #allocation28 [shape = 'u8[8192]{0}', space=vmem, size = 0x2000, scoped, tag = 'input window, operand 15, single buffered']
    #allocation29 [shape = 's32[1]{0}', space=sflag, size = 0x4, scoped, tag = 'scoped memory for tpu_custom_call.1']
    #allocation30 [shape = 'u8[512]{0}', space=vmem, size = 0x400, scoped, tag = 'input window, operand 16, single buffered']
    #allocation31 [shape = 'u8[16384]{0}', space=vmem, size = 0x4000, scoped, tag = 'input window, operand 17, single buffered']
    #allocation32 [shape = 's32[1]{0}', space=sflag, size = 0x4, scoped, tag = 'scoped memory for tpu_custom_call.1']
    #allocation33 [shape = 'u8[512]{0}', space=vmem, size = 0x400, scoped, tag = 'input window, operand 18, single buffered']
    #allocation34 [shape = 'u8[32768]{0}', space=vmem, size = 0x8000, scoped, tag = 'output window, operand 0']
    %24 = vsyncpa [#allocation5], 0
    %s25 = scalar_lea.sflag [#allocation5], 1
    %26 = vsyncpa %s25, 0
    %27 = vsyncpa [#allocation8], 0
    %s28 = scalar_lea.sflag [#allocation8], 1
    %29 = vsyncpa %s28, 0
    %30 = vsyncpa [#allocation11], 0
    %31 = vsyncpa [#allocation14], 0
    %32 = vsyncpa [#allocation17], 0
    %33 = vsyncpa [#allocation20], 0
    %34 = vsyncpa [#allocation23], 0
    %35 = vsyncpa [#allocation26], 0
    %36 = vsyncpa [#allocation29], 0
    %37 = vsyncpa [#allocation32], 0
    %38 = vsyncpa [#allocation6], 0
    %s39 = scalar_lea.sflag [#allocation6], 1
    %40 = vsyncpa %s39, 0
    loop: start=0, step=1, limit=6
    $region2: #{tpu_custom_call.1} parent=1 // loop_pre_header
      _
    $region3: #{tpu_custom_call.1} parent=1 // loop_header
      %s42 = sphi 0, %s46
      %p43 = scmp.ge.s32.totalorder %s42, 6
      %s49 = sphi 0, %s61
      %s50 = sphi 0, %s57
      %s51 = sphi 0, %s49
      %s52 = sphi 0, %s50
      %s53 = sphi 0, %s51
      %s54 = sphi 0, %s52
      %s66 = sphi 0, %s68
      %s69 = sphi 0, %s66
      %s70 = sphi 0, %s69
      %s86 = sphi 0, %s70
      %s92 = sphi 0, %s94
      %s95 = sphi 0, %s92
      %s96 = sphi 0, %s95
      %s112 = sphi 0, %s96
      %s120 = sphi 0, %s122
      %s123 = sphi 0, %s120
      %s124 = sphi 0, %s123
      %s140 = sphi 0, %s124
      %s144 = sphi 0, %s144
      %s146 = sphi 0, %s144
      %s147 = sphi 0, %s146
      %s161 = sphi 0, %s147
      %s165 = sphi 0, %s165
      %s167 = sphi 0, %s165
      %s168 = sphi 0, %s167
      %s182 = sphi 0, %s168
      %s186 = sphi 0, %s186
      %s188 = sphi 0, %s186
      %s189 = sphi 0, %s188
      %s203 = sphi 0, %s189
      %s207 = sphi 0, %s207
      %s209 = sphi 0, %s207
      %s210 = sphi 0, %s209
      %s224 = sphi 0, %s210
      %s228 = sphi 0, %s228
      %s230 = sphi 0, %s228
      %s231 = sphi 0, %s230
      %s245 = sphi 0, %s231
      %s249 = sphi 0, %s249
      %s251 = sphi 0, %s249
      %s252 = sphi 0, %s251
      %s266 = sphi 0, %s252
      %s270 = sphi 0, %s270
      %s272 = sphi 0, %s270
      %s273 = sphi 0, %s272
      %s287 = sphi 0, %s273
      %s291 = sphi 0, %s291
      %s293 = sphi 0, %s291
      %s294 = sphi 0, %s293
      %s308 = sphi 0, %s294
      %s312 = sphi 0, %s312
      %s314 = sphi 0, %s312
      %s315 = sphi 0, %s314
      %s329 = sphi 0, %s315
      %s333 = sphi 0, %s333
      %s335 = sphi 0, %s333
      %s336 = sphi 0, %s335
      %s350 = sphi 0, %s336
      %s354 = sphi 0, %s354
      %s356 = sphi 0, %s354
      %s357 = sphi 0, %s356
      %s371 = sphi 0, %s357
      %s375 = sphi 0, %s375
      %s377 = sphi 0, %s375
      %s378 = sphi 0, %s377
      %s392 = sphi 0, %s378
      %s396 = sphi 0, %s396
      %s398 = sphi 0, %s396
      %s399 = sphi 0, %s398
      %s413 = sphi 0, %s399
      %s417 = sphi 0, %s417
      %s419 = sphi 0, %s417
      %s420 = sphi 0, %s419
      %s434 = sphi 0, %s420
      %s438 = sphi 0, %s438
      %s440 = sphi 0, %s438
      %s441 = sphi 0, %s440
      %s455 = sphi 0, %s441
      %s459 = sphi 0, %s459
      %s461 = sphi 0, %s459
      %s462 = sphi 0, %s461
      %s476 = sphi 0, %s462
      %s484 = sphi 0, %s486
      %s487 = sphi 0, %s484
      %s488 = sphi 0, %s487
      %s504 = sphi 0, %s488
    $region4: #{tpu_custom_call.1} parent=1 // loop_header_branch
      %45 = sbr.rel (%p43) target = $region8
    $region5: #{tpu_custom_call.1} parent=1 // loop_body
      %s47 = ssub.s32 %s42, 1
      %s48 = ssub.s32 %s42, 2
      %s55 = sadd.s32 1, %s50
      %p56 = scmp.ge.s32.totalorder %s55, 2
      %s57 = scalar_select %p56, 0, %s55
      %s58 = sadd.s32 1, %s49
      %s59 = scalar_select %p56, %s58, %s49
      %p60 = scmp.ge.s32.totalorder %s59, 2
      %s61 = scalar_select %p60, 0, %s59
      %s62 = ssub.s32 %s49, %s61
      %s63 = ssub.s32 %s50, %s57
      %s64 = sor.u32 %s62, %s63
      %p65 = scmp.eq.s32.totalorder %s64, 0
      %s67 = sadd.s32 %s66, 1
      %s68 = scalar_select %p65, %s66, %s67
      %p71 = pneg %p65
      %p72 = scmp.eq.s32.totalorder %s42, 3
      %p73 = por %p71, %p72
      %p74 = scmp.ne.s32.totalorder %s66, %s69
      %p75 = scmp.eq.s32.totalorder %s42, 0
      %p76 = por %p74, %p75
      %p77 = scmp.ne.s32.totalorder %s66, %s69
      %p78 = scmp.eq.s32.totalorder %s47, 3
      %p79 = por %p77, %p78
      %p80 = scmp.ne.s32.totalorder %s69, %s70
      %p81 = scmp.eq.s32.totalorder %s47, 0
      %p82 = por %p80, %p81
      %p83 = scmp.ne.s32.totalorder %s69, %s70
      %p84 = scmp.eq.s32.totalorder %s48, 3
      %p85 = por %p83, %p84
      %p87 = scmp.ne.s32.totalorder %s70, %s86
      %p88 = scmp.eq.s32.totalorder %s48, 0
      %p89 = por %p87, %p88
      %s90 = ssub.s32 %s49, %s61
      %p91 = scmp.eq.s32.totalorder %s90, 0
      %s93 = sadd.s32 %s92, 1
      %s94 = scalar_select %p91, %s92, %s93
      %p97 = pneg %p91
      %p98 = scmp.eq.s32.totalorder %s42, 3
      %p99 = por %p97, %p98
      %p100 = scmp.ne.s32.totalorder %s92, %s95
      %p101 = scmp.eq.s32.totalorder %s42, 0
      %p102 = por %p100, %p101
      %p103 = scmp.ne.s32.totalorder %s92, %s95
      %p104 = scmp.eq.s32.totalorder %s47, 3
      %p105 = por %p103, %p104
      %p106 = scmp.ne.s32.totalorder %s95, %s96
      %p107 = scmp.eq.s32.totalorder %s47, 0
      %p108 = por %p106, %p107
      %p109 = scmp.ne.s32.totalorder %s95, %s96
      %p110 = scmp.eq.s32.totalorder %s48, 3
      %p111 = por %p109, %p110
      %p113 = scmp.ne.s32.totalorder %s96, %s112
      %p114 = scmp.eq.s32.totalorder %s48, 0
      %p115 = por %p113, %p114
      %s116 = ssub.s32 %s49, %s61
      %s117 = ssub.s32 %s50, %s57
      %s118 = sor.u32 %s116, %s117
      %p119 = scmp.eq.s32.totalorder %s118, 0
      %s121 = sadd.s32 %s120, 1
      %s122 = scalar_select %p119, %s120, %s121
      %p125 = pneg %p119
      %p126 = scmp.eq.s32.totalorder %s42, 3
      %p127 = por %p125, %p126
      %p128 = scmp.ne.s32.totalorder %s120, %s123
      %p129 = scmp.eq.s32.totalorder %s42, 0
      %p130 = por %p128, %p129
      %p131 = scmp.ne.s32.totalorder %s120, %s123
      %p132 = scmp.eq.s32.totalorder %s47, 3
      %p133 = por %p131, %p132
      %p134 = scmp.ne.s32.totalorder %s123, %s124
      %p135 = scmp.eq.s32.totalorder %s47, 0
      %p136 = por %p134, %p135
      %p137 = scmp.ne.s32.totalorder %s123, %s124
      %p138 = scmp.eq.s32.totalorder %s48, 3
      %p139 = por %p137, %p138
      %p141 = scmp.ne.s32.totalorder %s124, %s140
      %p142 = scmp.eq.s32.totalorder %s48, 0
      %p143 = por %p141, %p142
      %s145 = sadd.s32 %s144, 1
      %p148 = scmp.eq.s32.totalorder %s42, 3
      %p149 = scmp.ne.s32.totalorder %s144, %s146
      %p150 = scmp.eq.s32.totalorder %s42, 0
      %p151 = por %p149, %p150
      %p152 = scmp.ne.s32.totalorder %s144, %s146
      %p153 = scmp.eq.s32.totalorder %s47, 3
      %p154 = por %p152, %p153
      %p155 = scmp.ne.s32.totalorder %s146, %s147
      %p156 = scmp.eq.s32.totalorder %s47, 0
      %p157 = por %p155, %p156
      %p158 = scmp.ne.s32.totalorder %s146, %s147
      %p159 = scmp.eq.s32.totalorder %s48, 3
      %p160 = por %p158, %p159
      %p162 = scmp.ne.s32.totalorder %s147, %s161
      %p163 = scmp.eq.s32.totalorder %s48, 0
      %p164 = por %p162, %p163
      %s166 = sadd.s32 %s165, 1
      %p169 = scmp.eq.s32.totalorder %s42, 3
      %p170 = scmp.ne.s32.totalorder %s165, %s167
      %p171 = scmp.eq.s32.totalorder %s42, 0
      %p172 = por %p170, %p171
      %p173 = scmp.ne.s32.totalorder %s165, %s167
      %p174 = scmp.eq.s32.totalorder %s47, 3
      %p175 = por %p173, %p174
      %p176 = scmp.ne.s32.totalorder %s167, %s168
      %p177 = scmp.eq.s32.totalorder %s47, 0
      %p178 = por %p176, %p177
      %p179 = scmp.ne.s32.totalorder %s167, %s168
      %p180 = scmp.eq.s32.totalorder %s48, 3
      %p181 = por %p179, %p180
      %p183 = scmp.ne.s32.totalorder %s168, %s182
      %p184 = scmp.eq.s32.totalorder %s48, 0
      %p185 = por %p183, %p184
      %s187 = sadd.s32 %s186, 1
      %p190 = scmp.eq.s32.totalorder %s42, 3
      %p191 = scmp.ne.s32.totalorder %s186, %s188
      %p192 = scmp.eq.s32.totalorder %s42, 0
      %p193 = por %p191, %p192
      %p194 = scmp.ne.s32.totalorder %s186, %s188
      %p195 = scmp.eq.s32.totalorder %s47, 3
      %p196 = por %p194, %p195
      %p197 = scmp.ne.s32.totalorder %s188, %s189
      %p198 = scmp.eq.s32.totalorder %s47, 0
      %p199 = por %p197, %p198
      %p200 = scmp.ne.s32.totalorder %s188, %s189
      %p201 = scmp.eq.s32.totalorder %s48, 3
      %p202 = por %p200, %p201
      %p204 = scmp.ne.s32.totalorder %s189, %s203
      %p205 = scmp.eq.s32.totalorder %s48, 0
      %p206 = por %p204, %p205
      %s208 = sadd.s32 %s207, 1
      %p211 = scmp.eq.s32.totalorder %s42, 3
      %p212 = scmp.ne.s32.totalorder %s207, %s209
      %p213 = scmp.eq.s32.totalorder %s42, 0
      %p214 = por %p212, %p213
      %p215 = scmp.ne.s32.totalorder %s207, %s209
      %p216 = scmp.eq.s32.totalorder %s47, 3
      %p217 = por %p215, %p216
      %p218 = scmp.ne.s32.totalorder %s209, %s210
      %p219 = scmp.eq.s32.totalorder %s47, 0
      %p220 = por %p218, %p219
      %p221 = scmp.ne.s32.totalorder %s209, %s210
      %p222 = scmp.eq.s32.totalorder %s48, 3
      %p223 = por %p221, %p222
      %p225 = scmp.ne.s32.totalorder %s210, %s224
      %p226 = scmp.eq.s32.totalorder %s48, 0
      %p227 = por %p225, %p226
      %s229 = sadd.s32 %s228, 1
      %p232 = scmp.eq.s32.totalorder %s42, 3
      %p233 = scmp.ne.s32.totalorder %s228, %s230
      %p234 = scmp.eq.s32.totalorder %s42, 0
      %p235 = por %p233, %p234
      %p236 = scmp.ne.s32.totalorder %s228, %s230
      %p237 = scmp.eq.s32.totalorder %s47, 3
      %p238 = por %p236, %p237
      %p239 = scmp.ne.s32.totalorder %s230, %s231
      %p240 = scmp.eq.s32.totalorder %s47, 0
      %p241 = por %p239, %p240
      %p242 = scmp.ne.s32.totalorder %s230, %s231
      %p243 = scmp.eq.s32.totalorder %s48, 3
      %p244 = por %p242, %p243
      %p246 = scmp.ne.s32.totalorder %s231, %s245
      %p247 = scmp.eq.s32.totalorder %s48, 0
      %p248 = por %p246, %p247
      %s250 = sadd.s32 %s249, 1
      %p253 = scmp.eq.s32.totalorder %s42, 3
      %p254 = scmp.ne.s32.totalorder %s249, %s251
      %p255 = scmp.eq.s32.totalorder %s42, 0
      %p256 = por %p254, %p255
      %p257 = scmp.ne.s32.totalorder %s249, %s251
      %p258 = scmp.eq.s32.totalorder %s47, 3
      %p259 = por %p257, %p258
      %p260 = scmp.ne.s32.totalorder %s251, %s252
      %p261 = scmp.eq.s32.totalorder %s47, 0
      %p262 = por %p260, %p261
      %p263 = scmp.ne.s32.totalorder %s251, %s252
      %p264 = scmp.eq.s32.totalorder %s48, 3
      %p265 = por %p263, %p264
      %p267 = scmp.ne.s32.totalorder %s252, %s266
      %p268 = scmp.eq.s32.totalorder %s48, 0
      %p269 = por %p267, %p268
      %s271 = sadd.s32 %s270, 1
      %p274 = scmp.eq.s32.totalorder %s42, 3
      %p275 = scmp.ne.s32.totalorder %s270, %s272
      %p276 = scmp.eq.s32.totalorder %s42, 0
      %p277 = por %p275, %p276
      %p278 = scmp.ne.s32.totalorder %s270, %s272
      %p279 = scmp.eq.s32.totalorder %s47, 3
      %p280 = por %p278, %p279
      %p281 = scmp.ne.s32.totalorder %s272, %s273
      %p282 = scmp.eq.s32.totalorder %s47, 0
      %p283 = por %p281, %p282
      %p284 = scmp.ne.s32.totalorder %s272, %s273
      %p285 = scmp.eq.s32.totalorder %s48, 3
      %p286 = por %p284, %p285
      %p288 = scmp.ne.s32.totalorder %s273, %s287
      %p289 = scmp.eq.s32.totalorder %s48, 0
      %p290 = por %p288, %p289
      %s292 = sadd.s32 %s291, 1
      %p295 = scmp.eq.s32.totalorder %s42, 3
      %p296 = scmp.ne.s32.totalorder %s291, %s293
      %p297 = scmp.eq.s32.totalorder %s42, 0
      %p298 = por %p296, %p297
      %p299 = scmp.ne.s32.totalorder %s291, %s293
      %p300 = scmp.eq.s32.totalorder %s47, 3
      %p301 = por %p299, %p300
      %p302 = scmp.ne.s32.totalorder %s293, %s294
      %p303 = scmp.eq.s32.totalorder %s47, 0
      %p304 = por %p302, %p303
      %p305 = scmp.ne.s32.totalorder %s293, %s294
      %p306 = scmp.eq.s32.totalorder %s48, 3
      %p307 = por %p305, %p306
      %p309 = scmp.ne.s32.totalorder %s294, %s308
      %p310 = scmp.eq.s32.totalorder %s48, 0
      %p311 = por %p309, %p310
      %s313 = sadd.s32 %s312, 1
      %p316 = scmp.eq.s32.totalorder %s42, 3
      %p317 = scmp.ne.s32.totalorder %s312, %s314
      %p318 = scmp.eq.s32.totalorder %s42, 0
      %p319 = por %p317, %p318
      %p320 = scmp.ne.s32.totalorder %s312, %s314
      %p321 = scmp.eq.s32.totalorder %s47, 3
      %p322 = por %p320, %p321
      %p323 = scmp.ne.s32.totalorder %s314, %s315
      %p324 = scmp.eq.s32.totalorder %s47, 0
      %p325 = por %p323, %p324
      %p326 = scmp.ne.s32.totalorder %s314, %s315
      %p327 = scmp.eq.s32.totalorder %s48, 3
      %p328 = por %p326, %p327
      %p330 = scmp.ne.s32.totalorder %s315, %s329
      %p331 = scmp.eq.s32.totalorder %s48, 0
      %p332 = por %p330, %p331
      %s334 = sadd.s32 %s333, 1
      %p337 = scmp.eq.s32.totalorder %s42, 3
      %p338 = scmp.ne.s32.totalorder %s333, %s335
      %p339 = scmp.eq.s32.totalorder %s42, 0
      %p340 = por %p338, %p339
      %p341 = scmp.ne.s32.totalorder %s333, %s335
      %p342 = scmp.eq.s32.totalorder %s47, 3
      %p343 = por %p341, %p342
      %p344 = scmp.ne.s32.totalorder %s335, %s336
      %p345 = scmp.eq.s32.totalorder %s47, 0
      %p346 = por %p344, %p345
      %p347 = scmp.ne.s32.totalorder %s335, %s336
      %p348 = scmp.eq.s32.totalorder %s48, 3
      %p349 = por %p347, %p348
      %p351 = scmp.ne.s32.totalorder %s336, %s350
      %p352 = scmp.eq.s32.totalorder %s48, 0
      %p353 = por %p351, %p352
      %s355 = sadd.s32 %s354, 1
      %p358 = scmp.eq.s32.totalorder %s42, 3
      %p359 = scmp.ne.s32.totalorder %s354, %s356
      %p360 = scmp.eq.s32.totalorder %s42, 0
      %p361 = por %p359, %p360
      %p362 = scmp.ne.s32.totalorder %s354, %s356
      %p363 = scmp.eq.s32.totalorder %s47, 3
      %p364 = por %p362, %p363
      %p365 = scmp.ne.s32.totalorder %s356, %s357
      %p366 = scmp.eq.s32.totalorder %s47, 0
      %p367 = por %p365, %p366
      %p368 = scmp.ne.s32.totalorder %s356, %s357
      %p369 = scmp.eq.s32.totalorder %s48, 3
      %p370 = por %p368, %p369
      %p372 = scmp.ne.s32.totalorder %s357, %s371
      %p373 = scmp.eq.s32.totalorder %s48, 0
      %p374 = por %p372, %p373
      %s376 = sadd.s32 %s375, 1
      %p379 = scmp.eq.s32.totalorder %s42, 3
      %p380 = scmp.ne.s32.totalorder %s375, %s377
      %p381 = scmp.eq.s32.totalorder %s42, 0
      %p382 = por %p380, %p381
      %p383 = scmp.ne.s32.totalorder %s375, %s377
      %p384 = scmp.eq.s32.totalorder %s47, 3
      %p385 = por %p383, %p384
      %p386 = scmp.ne.s32.totalorder %s377, %s378
      %p387 = scmp.eq.s32.totalorder %s47, 0
      %p388 = por %p386, %p387
      %p389 = scmp.ne.s32.totalorder %s377, %s378
      %p390 = scmp.eq.s32.totalorder %s48, 3
      %p391 = por %p389, %p390
      %p393 = scmp.ne.s32.totalorder %s378, %s392
      %p394 = scmp.eq.s32.totalorder %s48, 0
      %p395 = por %p393, %p394
      %s397 = sadd.s32 %s396, 1
      %p400 = scmp.eq.s32.totalorder %s42, 3
      %p401 = scmp.ne.s32.totalorder %s396, %s398
      %p402 = scmp.eq.s32.totalorder %s42, 0
      %p403 = por %p401, %p402
      %p404 = scmp.ne.s32.totalorder %s396, %s398
      %p405 = scmp.eq.s32.totalorder %s47, 3
      %p406 = por %p404, %p405
      %p407 = scmp.ne.s32.totalorder %s398, %s399
      %p408 = scmp.eq.s32.totalorder %s47, 0
      %p409 = por %p407, %p408
      %p410 = scmp.ne.s32.totalorder %s398, %s399
      %p411 = scmp.eq.s32.totalorder %s48, 3
      %p412 = por %p410, %p411
      %p414 = scmp.ne.s32.totalorder %s399, %s413
      %p415 = scmp.eq.s32.totalorder %s48, 0
      %p416 = por %p414, %p415
      %s418 = sadd.s32 %s417, 1
      %p421 = scmp.eq.s32.totalorder %s42, 3
      %p422 = scmp.ne.s32.totalorder %s417, %s419
      %p423 = scmp.eq.s32.totalorder %s42, 0
      %p424 = por %p422, %p423
      %p425 = scmp.ne.s32.totalorder %s417, %s419
      %p426 = scmp.eq.s32.totalorder %s47, 3
      %p427 = por %p425, %p426
      %p428 = scmp.ne.s32.totalorder %s419, %s420
      %p429 = scmp.eq.s32.totalorder %s47, 0
      %p430 = por %p428, %p429
      %p431 = scmp.ne.s32.totalorder %s419, %s420
      %p432 = scmp.eq.s32.totalorder %s48, 3
      %p433 = por %p431, %p432
      %p435 = scmp.ne.s32.totalorder %s420, %s434
      %p436 = scmp.eq.s32.totalorder %s48, 0
      %p437 = por %p435, %p436
      %s439 = sadd.s32 %s438, 1
      %p442 = scmp.eq.s32.totalorder %s42, 3
      %p443 = scmp.ne.s32.totalorder %s438, %s440
      %p444 = scmp.eq.s32.totalorder %s42, 0
      %p445 = por %p443, %p444
      %p446 = scmp.ne.s32.totalorder %s438, %s440
      %p447 = scmp.eq.s32.totalorder %s47, 3
      %p448 = por %p446, %p447
      %p449 = scmp.ne.s32.totalorder %s440, %s441
      %p450 = scmp.eq.s32.totalorder %s47, 0
      %p451 = por %p449, %p450
      %p452 = scmp.ne.s32.totalorder %s440, %s441
      %p453 = scmp.eq.s32.totalorder %s48, 3
      %p454 = por %p452, %p453
      %p456 = scmp.ne.s32.totalorder %s441, %s455
      %p457 = scmp.eq.s32.totalorder %s48, 0
      %p458 = por %p456, %p457
      %s460 = sadd.s32 %s459, 1
      %p463 = scmp.eq.s32.totalorder %s42, 3
      %p464 = scmp.ne.s32.totalorder %s459, %s461
      %p465 = scmp.eq.s32.totalorder %s42, 0
      %p466 = por %p464, %p465
      %p467 = scmp.ne.s32.totalorder %s459, %s461
      %p468 = scmp.eq.s32.totalorder %s47, 3
      %p469 = por %p467, %p468
      %p470 = scmp.ne.s32.totalorder %s461, %s462
      %p471 = scmp.eq.s32.totalorder %s47, 0
      %p472 = por %p470, %p471
      %p473 = scmp.ne.s32.totalorder %s461, %s462
      %p474 = scmp.eq.s32.totalorder %s48, 3
      %p475 = por %p473, %p474
      %p477 = scmp.ne.s32.totalorder %s462, %s476
      %p478 = scmp.eq.s32.totalorder %s48, 0
      %p479 = por %p477, %p478
      %s480 = ssub.s32 %s49, %s61
      %s481 = ssub.s32 %s50, %s57
      %s482 = sor.u32 %s480, %s481
      %p483 = scmp.eq.s32.totalorder %s482, 0
      %s485 = sadd.s32 %s484, 1
      %s486 = scalar_select %p483, %s484, %s485
      %p489 = pneg %p483
      %p490 = scmp.eq.s32.totalorder %s42, 3
      %p491 = por %p489, %p490
      %p492 = scmp.ne.s32.totalorder %s484, %s487
      %p493 = scmp.eq.s32.totalorder %s42, 0
      %p494 = por %p492, %p493
      %p495 = scmp.ne.s32.totalorder %s484, %s487
      %p496 = scmp.eq.s32.totalorder %s47, 3
      %p497 = por %p495, %p496
      %p498 = scmp.ne.s32.totalorder %s487, %s488
      %p499 = scmp.eq.s32.totalorder %s47, 0
      %p500 = por %p498, %p499
      %p501 = scmp.ne.s32.totalorder %s487, %s488
      %p502 = scmp.eq.s32.totalorder %s48, 3
      %p503 = por %p501, %p502
      %p505 = scmp.ne.s32.totalorder %s488, %s504
      %p506 = scmp.eq.s32.totalorder %s48, 0
      %p507 = por %p505, %p506
      %p508 = scmp.le.s32.totalorder 1, %s42
      %p509 = scmp.lt.s32.totalorder %s42, 5
      %p510 = pnand %p508, %p509
      %p511 = pneg %p510
      // Predicated region
      $region9: #{tpu_custom_call.1} parent=5 // pred_check
        _
      $region10: #{tpu_custom_call.1} parent=5 // pred_check_branch
        %513 = sbr.rel (%p510) target = $region12
      $region11: #{tpu_custom_call.1} parent=5 // pred_region
        %s514 = ssub.s32 %s42, 1
        // Predicated region
        $region13: #{tpu_custom_call.1} parent=11 // pred_check
          %p515 = pneg %p157
        $region14: #{tpu_custom_call.1} parent=11 // pred_check_branch
          %517 = sbr.rel (%p515) target = $region16
        $region15: #{tpu_custom_call.1} parent=11 // pred_region
          %s519 = ssub.s32 256, 256
          %520 = vsyncadd [#allocation11], %s519
          %s521 = sshll.u32 [#allocation10], 4
          %s522 = int_to_ptr.vmem [resolvable:$true] %s521
          %527 = dma.hbm_to_vmem [thread:$0]  %s3, 256, %s522, [#allocation11], 64, 64, 4
        $region16: #{tpu_custom_call.1} parent=11 // pred_fallthru
          _
        // Predicated region
        $region17: #{tpu_custom_call.1} parent=11 // pred_check
          %p528 = pneg %p178
        $region18: #{tpu_custom_call.1} parent=11 // pred_check_branch
          %530 = sbr.rel (%p528) target = $region20
        $region19: #{tpu_custom_call.1} parent=11 // pred_region
          %s532 = ssub.s32 16, 16
          %533 = vsyncadd [#allocation11], %s532
          %s535 = sshll.u32 [#allocation12], 4
          %s536 = int_to_ptr.vmem [resolvable:$true] %s535
          %538 = dma.hbm_to_vmem [thread:$0]  %s4, 16, %s536, [#allocation11]
        $region20: #{tpu_custom_call.1} parent=11 // pred_fallthru
          _
        // Predicated region
        $region21: #{tpu_custom_call.1} parent=11 // pred_check
          %p539 = pneg %p199
        $region22: #{tpu_custom_call.1} parent=11 // pred_check_branch
          %541 = sbr.rel (%p539) target = $region24
        $region23: #{tpu_custom_call.1} parent=11 // pred_region
          %s543 = ssub.s32 1024, 1024
          %544 = vsyncadd [#allocation14], %s543
          %s545 = sshll.u32 [#allocation13], 4
          %s546 = int_to_ptr.vmem [resolvable:$true] %s545
          %551 = dma.hbm_to_vmem [thread:$0]  %s5, 1024, %s546, [#allocation14], 64, 64, 4
        $region24: #{tpu_custom_call.1} parent=11 // pred_fallthru
          _
        // Predicated region
        $region25: #{tpu_custom_call.1} parent=11 // pred_check
          %p552 = pneg %p220
        $region26: #{tpu_custom_call.1} parent=11 // pred_check_branch
          %554 = sbr.rel (%p552) target = $region28
        $region27: #{tpu_custom_call.1} parent=11 // pred_region
          %s556 = ssub.s32 64, 64
          %557 = vsyncadd [#allocation14], %s556
          %s558 = sshll.u32 [#allocation15], 4
          %s559 = int_to_ptr.vmem [resolvable:$true] %s558
          %564 = dma.hbm_to_vmem [thread:$0]  %s6, 64, %s559, [#allocation14], 16, 16, 1
        $region28: #{tpu_custom_call.1} parent=11 // pred_fallthru
          _
        // Predicated region
        $region29: #{tpu_custom_call.1} parent=11 // pred_check
          %p565 = pneg %p241
        $region30: #{tpu_custom_call.1} parent=11 // pred_check_branch
          %567 = sbr.rel (%p565) target = $region32
        $region31: #{tpu_custom_call.1} parent=11 // pred_region
          %s569 = ssub.s32 1024, 1024
          %570 = vsyncadd [#allocation17], %s569
          %s571 = sshll.u32 [#allocation16], 4
          %s572 = int_to_ptr.vmem [resolvable:$true] %s571
          %577 = dma.hbm_to_vmem [thread:$0]  %s7, 1024, %s572, [#allocation17], 64, 64, 4
        $region32: #{tpu_custom_call.1} parent=11 // pred_fallthru
          _
        // Predicated region
        $region33: #{tpu_custom_call.1} parent=11 // pred_check
          %p578 = pneg %p262
        $region34: #{tpu_custom_call.1} parent=11 // pred_check_branch
          %580 = sbr.rel (%p578) target = $region36
        $region35: #{tpu_custom_call.1} parent=11 // pred_region
          %s582 = ssub.s32 64, 64
          %583 = vsyncadd [#allocation17], %s582
          %s584 = sshll.u32 [#allocation18], 4
          %s585 = int_to_ptr.vmem [resolvable:$true] %s584
          %590 = dma.hbm_to_vmem [thread:$0]  %s8, 64, %s585, [#allocation17], 16, 16, 1
        $region36: #{tpu_custom_call.1} parent=11 // pred_fallthru
          _
        // Predicated region
        $region37: #{tpu_custom_call.1} parent=11 // pred_check
          %p591 = pneg %p283
        $region38: #{tpu_custom_call.1} parent=11 // pred_check_branch
          %593 = sbr.rel (%p591) target = $region40
        $region39: #{tpu_custom_call.1} parent=11 // pred_region
          %s595 = ssub.s32 256, 256
          %596 = vsyncadd [#allocation20], %s595
          %s597 = sshll.u32 [#allocation19], 4
          %s598 = int_to_ptr.vmem [resolvable:$true] %s597
          %603 = dma.hbm_to_vmem [thread:$0]  %s9, 256, %s598, [#allocation20], 64, 64, 4
        $region40: #{tpu_custom_call.1} parent=11 // pred_fallthru
          _
        // Predicated region
        $region41: #{tpu_custom_call.1} parent=11 // pred_check
          %p604 = pneg %p304
        $region42: #{tpu_custom_call.1} parent=11 // pred_check_branch
          %606 = sbr.rel (%p604) target = $region44
        $region43: #{tpu_custom_call.1} parent=11 // pred_region
          %s608 = ssub.s32 16, 16
          %609 = vsyncadd [#allocation20], %s608
          %s611 = sshll.u32 [#allocation21], 4
          %s612 = int_to_ptr.vmem [resolvable:$true] %s611
          %614 = dma.hbm_to_vmem [thread:$0]  %s10, 16, %s612, [#allocation20]
        $region44: #{tpu_custom_call.1} parent=11 // pred_fallthru
          _
        // Predicated region
        $region45: #{tpu_custom_call.1} parent=11 // pred_check
          %p615 = pneg %p325
        $region46: #{tpu_custom_call.1} parent=11 // pred_check_branch
          %617 = sbr.rel (%p615) target = $region48
        $region47: #{tpu_custom_call.1} parent=11 // pred_region
          %s619 = ssub.s32 16, 16
          %620 = vsyncadd [#allocation23], %s619
          %s622 = sshll.u32 [#allocation22], 4
          %s623 = int_to_ptr.vmem [resolvable:$true] %s622
          %625 = dma.hbm_to_vmem [thread:$0]  %s11, 16, %s623, [#allocation23]
        $region48: #{tpu_custom_call.1} parent=11 // pred_fallthru
          _
        // Predicated region
        $region49: #{tpu_custom_call.1} parent=11 // pred_check
          %p626 = pneg %p346
        $region50: #{tpu_custom_call.1} parent=11 // pred_check_branch
          %628 = sbr.rel (%p626) target = $region52
        $region51: #{tpu_custom_call.1} parent=11 // pred_region
          %s630 = ssub.s32 16, 16
          %631 = vsyncadd [#allocation23], %s630
          %s633 = sshll.u32 [#allocation24], 4
          %s634 = int_to_ptr.vmem [resolvable:$true] %s633
          %636 = dma.hbm_to_vmem [thread:$0]  %s12, 16, %s634, [#allocation23]
        $region52: #{tpu_custom_call.1} parent=11 // pred_fallthru
          _
        // Predicated region
        $region53: #{tpu_custom_call.1} parent=11 // pred_check
          %p637 = pneg %p367
        $region54: #{tpu_custom_call.1} parent=11 // pred_check_branch
          %639 = sbr.rel (%p637) target = $region56
        $region55: #{tpu_custom_call.1} parent=11 // pred_region
          %s641 = ssub.s32 16, 16
          %642 = vsyncadd [#allocation26], %s641
          %s644 = sshll.u32 [#allocation25], 4
          %s645 = int_to_ptr.vmem [resolvable:$true] %s644
          %647 = dma.hbm_to_vmem [thread:$0]  %s13, 16, %s645, [#allocation26]
        $region56: #{tpu_custom_call.1} parent=11 // pred_fallthru
          _
        // Predicated region
        $region57: #{tpu_custom_call.1} parent=11 // pred_check
          %p648 = pneg %p388
        $region58: #{tpu_custom_call.1} parent=11 // pred_check_branch
          %650 = sbr.rel (%p648) target = $region60
        $region59: #{tpu_custom_call.1} parent=11 // pred_region
          %s652 = ssub.s32 16, 16
          %653 = vsyncadd [#allocation26], %s652
          %s655 = sshll.u32 [#allocation27], 4
          %s656 = int_to_ptr.vmem [resolvable:$true] %s655
          %658 = dma.hbm_to_vmem [thread:$0]  %s14, 16, %s656, [#allocation26]
        $region60: #{tpu_custom_call.1} parent=11 // pred_fallthru
          _
        // Predicated region
        $region61: #{tpu_custom_call.1} parent=11 // pred_check
          %p659 = pneg %p409
        $region62: #{tpu_custom_call.1} parent=11 // pred_check_branch
          %661 = sbr.rel (%p659) target = $region64
        $region63: #{tpu_custom_call.1} parent=11 // pred_region
          %s663 = ssub.s32 256, 256
          %664 = vsyncadd [#allocation29], %s663
          %s665 = sshll.u32 [#allocation28], 4
          %s666 = int_to_ptr.vmem [resolvable:$true] %s665
          %671 = dma.hbm_to_vmem [thread:$0]  %s15, 256, %s666, [#allocation29], 64, 64, 4
        $region64: #{tpu_custom_call.1} parent=11 // pred_fallthru
          _
        // Predicated region
        $region65: #{tpu_custom_call.1} parent=11 // pred_check
          %p672 = pneg %p430
        $region66: #{tpu_custom_call.1} parent=11 // pred_check_branch
          %674 = sbr.rel (%p672) target = $region68
        $region67: #{tpu_custom_call.1} parent=11 // pred_region
          %s676 = ssub.s32 16, 16
          %677 = vsyncadd [#allocation29], %s676
          %s679 = sshll.u32 [#allocation30], 4
          %s680 = int_to_ptr.vmem [resolvable:$true] %s679
          %682 = dma.hbm_to_vmem [thread:$0]  %s16, 16, %s680, [#allocation29]
        $region68: #{tpu_custom_call.1} parent=11 // pred_fallthru
          _
        // Predicated region
        $region69: #{tpu_custom_call.1} parent=11 // pred_check
          %p683 = pneg %p451
        $region70: #{tpu_custom_call.1} parent=11 // pred_check_branch
          %685 = sbr.rel (%p683) target = $region72
        $region71: #{tpu_custom_call.1} parent=11 // pred_region
          %s687 = ssub.s32 512, 512
          %688 = vsyncadd [#allocation32], %s687
          %s689 = sshll.u32 [#allocation31], 4
          %s690 = int_to_ptr.vmem [resolvable:$true] %s689
          %695 = dma.hbm_to_vmem [thread:$0]  %s17, 512, %s690, [#allocation32], 64, 64, 4
        $region72: #{tpu_custom_call.1} parent=11 // pred_fallthru
          _
        // Predicated region
        $region73: #{tpu_custom_call.1} parent=11 // pred_check
          %p696 = pneg %p472
        $region74: #{tpu_custom_call.1} parent=11 // pred_check_branch
          %698 = sbr.rel (%p696) target = $region76
        $region75: #{tpu_custom_call.1} parent=11 // pred_region
          %s700 = ssub.s32 16, 16
          %701 = vsyncadd [#allocation32], %s700
          %s703 = sshll.u32 [#allocation33], 4
          %s704 = int_to_ptr.vmem [resolvable:$true] %s703
          %706 = dma.hbm_to_vmem [thread:$0]  %s18, 16, %s704, [#allocation32]
        $region76: #{tpu_custom_call.1} parent=11 // pred_fallthru
          _
      $region12: #{tpu_custom_call.1} parent=5 // pred_fallthru
        _
      %p707 = scmp.lt.s32.totalorder %s42, 4
      // Predicated region
      $region77: #{tpu_custom_call.1} parent=5 // pred_check
        %p708 = pneg %p707
      $region78: #{tpu_custom_call.1} parent=5 // pred_check_branch
        %710 = sbr.rel (%p708) target = $region80
      $region79: #{tpu_custom_call.1} parent=5 // pred_region
        // Predicated region
        $region81: #{tpu_custom_call.1} parent=79 // pred_check
          %p711 = pneg %p76
        $region82: #{tpu_custom_call.1} parent=79 // pred_check_branch
          %713 = sbr.rel (%p711) target = $region84
        $region83: #{tpu_custom_call.1} parent=79 // pred_region
          %s714 = sand.u32 %s66, 1
          %s715 = scalar_lea.sflag [#allocation5], %s714
          %s716 = sand.u32 %s66, 1
          %s717 = smul.addr %s716, 32
          %s718 = scalar_lea.vmem [#allocation4], %s717
          %s719 = smul.u32 4, %s50
          %s721 = ssub.s32 512, 512
          %722 = vsyncadd %s715, %s721
          %s723 = smul.addr %s49, 8
          %s724 = sadd.s32 %s719, %s723
          %s725 = smul.addr %s724, 128
          %s726 = scalar_lea.hbm %s0, %s725
          %s727 = sshll.u32 %s718, 4
          %s728 = int_to_ptr.vmem [resolvable:$true] %s727
          %733 = dma.hbm_to_vmem [thread:$0]  %s726, 512, %s728, %s715, 128, 128, 8
        $region84: #{tpu_custom_call.1} parent=79 // pred_fallthru
          _
        // Predicated region
        $region85: #{tpu_custom_call.1} parent=79 // pred_check
          %p734 = pneg %p102
        $region86: #{tpu_custom_call.1} parent=79 // pred_check_branch
          %736 = sbr.rel (%p734) target = $region88
        $region87: #{tpu_custom_call.1} parent=79 // pred_region
          %s737 = sand.u32 %s42, 1
          %s738 = scalar_lea.sflag [#allocation8], %s737
          %s739 = sand.u32 %s92, 1
          %s740 = smul.addr %s739, 32
          %s741 = scalar_lea.vmem [#allocation7], %s740
          %s743 = ssub.s32 512, 512
          %744 = vsyncadd %s738, %s743
          %s745 = smul.addr %s49, 8
          %s746 = smul.addr %s745, 64
          %s747 = scalar_lea.hbm %s1, %s746
          %s748 = sshll.u32 %s741, 4
          %s749 = int_to_ptr.vmem [resolvable:$true] %s748
          %754 = dma.hbm_to_vmem [thread:$0]  %s747, 512, %s749, %s738, 64, 64, 4
        $region88: #{tpu_custom_call.1} parent=79 // pred_fallthru
          _
        // Predicated region
        $region89: #{tpu_custom_call.1} parent=79 // pred_check
          %p755 = pneg %p130
        $region90: #{tpu_custom_call.1} parent=79 // pred_check_branch
          %757 = sbr.rel (%p755) target = $region92
        $region91: #{tpu_custom_call.1} parent=79 // pred_region
          %s758 = sand.u32 %s42, 1
          %s759 = scalar_lea.sflag [#allocation8], %s758
          %s760 = sand.u32 %s120, 1
          %s761 = smul.addr %s760, 8
          %s762 = scalar_lea.vmem [#allocation9], %s761
          %s764 = ssub.s32 128, 128
          %765 = vsyncadd %s759, %s764
          %s766 = smul.addr %s49, 2
          %s767 = sadd.s32 %s50, %s766
          %s768 = smul.addr %s767, 128
          %s769 = scalar_lea.hbm %s2, %s768
          %s771 = sshll.u32 %s762, 4
          %s772 = int_to_ptr.vmem [resolvable:$true] %s771
          %774 = dma.hbm_to_vmem [thread:$0]  %s769, 128, %s772, %s759
        $region92: #{tpu_custom_call.1} parent=79 // pred_fallthru
          _
      $region80: #{tpu_custom_call.1} parent=5 // pred_fallthru
        _
      %p775 = scmp.le.s32.totalorder 1, %s42
      %p776 = scmp.lt.s32.totalorder %s42, 5
      %p777 = pnand %p775, %p776
      %p778 = pneg %p777
      // Predicated region
      $region93: #{tpu_custom_call.1} parent=5 // pred_check
        _
      $region94: #{tpu_custom_call.1} parent=5 // pred_check_branch
        %780 = sbr.rel (%p777) target = $region96
      $region95: #{tpu_custom_call.1} parent=5 // pred_region
        %s781 = ssub.s32 %s42, 1
        %s782 = sand.u32 %s69, 1
        %s783 = scalar_lea.sflag [#allocation5], %s782
        %s784 = sand.u32 %s69, 1
        %s785 = smul.addr %s784, 32
        %s786 = scalar_lea.vmem [#allocation4], %s785
        // Predicated region
        $region97: #{tpu_custom_call.1} parent=95 // pred_check
          %p787 = pneg %p82
        $region98: #{tpu_custom_call.1} parent=95 // pred_check_branch
          %789 = sbr.rel (%p787) target = $region100
        $region99: #{tpu_custom_call.1} parent=95 // pred_region
          %790 = dma.done %s783, 512
        $region100: #{tpu_custom_call.1} parent=95 // pred_fallthru
          _
        %s791 = sand.u32 %s47, 1
        %s792 = scalar_lea.sflag [#allocation8], %s791
        %s793 = sand.u32 %s95, 1
        %s794 = smul.addr %s793, 32
        %s795 = scalar_lea.vmem [#allocation7], %s794
        // Predicated region
        $region101: #{tpu_custom_call.1} parent=95 // pred_check
          %p796 = pneg %p108
        $region102: #{tpu_custom_call.1} parent=95 // pred_check_branch
          %798 = sbr.rel (%p796) target = $region104
        $region103: #{tpu_custom_call.1} parent=95 // pred_region
          %799 = dma.done %s792, 512
        $region104: #{tpu_custom_call.1} parent=95 // pred_fallthru
          _
        %s800 = sand.u32 %s47, 1
        %s801 = scalar_lea.sflag [#allocation8], %s800
        %s802 = sand.u32 %s123, 1
        %s803 = smul.addr %s802, 8
        %s804 = scalar_lea.vmem [#allocation9], %s803
        // Predicated region
        $region105: #{tpu_custom_call.1} parent=95 // pred_check
          %p805 = pneg %p136
        $region106: #{tpu_custom_call.1} parent=95 // pred_check_branch
          %807 = sbr.rel (%p805) target = $region108
        $region107: #{tpu_custom_call.1} parent=95 // pred_region
          %808 = dma.done %s801, 128
        $region108: #{tpu_custom_call.1} parent=95 // pred_fallthru
          _
        // Predicated region
        $region109: #{tpu_custom_call.1} parent=95 // pred_check
          %p809 = pneg %p157
        $region110: #{tpu_custom_call.1} parent=95 // pred_check_branch
          %811 = sbr.rel (%p809) target = $region112
        $region111: #{tpu_custom_call.1} parent=95 // pred_region
          %812 = dma.done [#allocation11], 256
        $region112: #{tpu_custom_call.1} parent=95 // pred_fallthru
          _
        // Predicated region
        $region113: #{tpu_custom_call.1} parent=95 // pred_check
          %p813 = pneg %p178
        $region114: #{tpu_custom_call.1} parent=95 // pred_check_branch
          %815 = sbr.rel (%p813) target = $region116
        $region115: #{tpu_custom_call.1} parent=95 // pred_region
          %816 = dma.done [#allocation11], 16
        $region116: #{tpu_custom_call.1} parent=95 // pred_fallthru
          _
        // Predicated region
        $region117: #{tpu_custom_call.1} parent=95 // pred_check
          %p817 = pneg %p199
        $region118: #{tpu_custom_call.1} parent=95 // pred_check_branch
          %819 = sbr.rel (%p817) target = $region120
        $region119: #{tpu_custom_call.1} parent=95 // pred_region
          %820 = dma.done [#allocation14], 1024
        $region120: #{tpu_custom_call.1} parent=95 // pred_fallthru
          _
        // Predicated region
        $region121: #{tpu_custom_call.1} parent=95 // pred_check
          %p821 = pneg %p220
        $region122: #{tpu_custom_call.1} parent=95 // pred_check_branch
          %823 = sbr.rel (%p821) target = $region124
        $region123: #{tpu_custom_call.1} parent=95 // pred_region
          %824 = dma.done [#allocation14], 64
        $region124: #{tpu_custom_call.1} parent=95 // pred_fallthru
          _
        // Predicated region
        $region125: #{tpu_custom_call.1} parent=95 // pred_check
          %p825 = pneg %p241
        $region126: #{tpu_custom_call.1} parent=95 // pred_check_branch
          %827 = sbr.rel (%p825) target = $region128
        $region127: #{tpu_custom_call.1} parent=95 // pred_region
          %828 = dma.done [#allocation17], 1024
        $region128: #{tpu_custom_call.1} parent=95 // pred_fallthru
          _
        // Predicated region
        $region129: #{tpu_custom_call.1} parent=95 // pred_check
          %p829 = pneg %p262
        $region130: #{tpu_custom_call.1} parent=95 // pred_check_branch
          %831 = sbr.rel (%p829) target = $region132
        $region131: #{tpu_custom_call.1} parent=95 // pred_region
          %832 = dma.done [#allocation17], 64
        $region132: #{tpu_custom_call.1} parent=95 // pred_fallthru
          _
        // Predicated region
        $region133: #{tpu_custom_call.1} parent=95 // pred_check
          %p833 = pneg %p283
        $region134: #{tpu_custom_call.1} parent=95 // pred_check_branch
          %835 = sbr.rel (%p833) target = $region136
        $region135: #{tpu_custom_call.1} parent=95 // pred_region
          %836 = dma.done [#allocation20], 256
        $region136: #{tpu_custom_call.1} parent=95 // pred_fallthru
          _
        // Predicated region
        $region137: #{tpu_custom_call.1} parent=95 // pred_check
          %p837 = pneg %p304
        $region138: #{tpu_custom_call.1} parent=95 // pred_check_branch
          %839 = sbr.rel (%p837) target = $region140
        $region139: #{tpu_custom_call.1} parent=95 // pred_region
          %840 = dma.done [#allocation20], 16
        $region140: #{tpu_custom_call.1} parent=95 // pred_fallthru
          _
        // Predicated region
        $region141: #{tpu_custom_call.1} parent=95 // pred_check
          %p841 = pneg %p325
        $region142: #{tpu_custom_call.1} parent=95 // pred_check_branch
          %843 = sbr.rel (%p841) target = $region144
        $region143: #{tpu_custom_call.1} parent=95 // pred_region
          %844 = dma.done [#allocation23], 16
        $region144: #{tpu_custom_call.1} parent=95 // pred_fallthru
          _
        // Predicated region
        $region145: #{tpu_custom_call.1} parent=95 // pred_check
          %p845 = pneg %p346
        $region146: #{tpu_custom_call.1} parent=95 // pred_check_branch
          %847 = sbr.rel (%p845) target = $region148
        $region147: #{tpu_custom_call.1} parent=95 // pred_region
          %848 = dma.done [#allocation23], 16
        $region148: #{tpu_custom_call.1} parent=95 // pred_fallthru
          _
        // Predicated region
        $region149: #{tpu_custom_call.1} parent=95 // pred_check
          %p849 = pneg %p367
        $region150: #{tpu_custom_call.1} parent=95 // pred_check_branch
          %851 = sbr.rel (%p849) target = $region152
        $region151: #{tpu_custom_call.1} parent=95 // pred_region
          %852 = dma.done [#allocation26], 16
        $region152: #{tpu_custom_call.1} parent=95 // pred_fallthru
          _
        // Predicated region
        $region153: #{tpu_custom_call.1} parent=95 // pred_check
          %p853 = pneg %p388
        $region154: #{tpu_custom_call.1} parent=95 // pred_check_branch
          %855 = sbr.rel (%p853) target = $region156
        $region155: #{tpu_custom_call.1} parent=95 // pred_region
          %856 = dma.done [#allocation26], 16
        $region156: #{tpu_custom_call.1} parent=95 // pred_fallthru
          _
        // Predicated region
        $region157: #{tpu_custom_call.1} parent=95 // pred_check
          %p857 = pneg %p409
        $region158: #{tpu_custom_call.1} parent=95 // pred_check_branch
          %859 = sbr.rel (%p857) target = $region160
        $region159: #{tpu_custom_call.1} parent=95 // pred_region
          %860 = dma.done [#allocation29], 256
        $region160: #{tpu_custom_call.1} parent=95 // pred_fallthru
          _
        // Predicated region
        $region161: #{tpu_custom_call.1} parent=95 // pred_check
          %p861 = pneg %p430
        $region162: #{tpu_custom_call.1} parent=95 // pred_check_branch
          %863 = sbr.rel (%p861) target = $region164
        $region163: #{tpu_custom_call.1} parent=95 // pred_region
          %864 = dma.done [#allocation29], 16
        $region164: #{tpu_custom_call.1} parent=95 // pred_fallthru
          _
        // Predicated region
        $region165: #{tpu_custom_call.1} parent=95 // pred_check
          %p865 = pneg %p451
        $region166: #{tpu_custom_call.1} parent=95 // pred_check_branch
          %867 = sbr.rel (%p865) target = $region168
        $region167: #{tpu_custom_call.1} parent=95 // pred_region
          %868 = dma.done [#allocation32], 512
        $region168: #{tpu_custom_call.1} parent=95 // pred_fallthru
          _
        // Predicated region
        $region169: #{tpu_custom_call.1} parent=95 // pred_check
          %p869 = pneg %p472
        $region170: #{tpu_custom_call.1} parent=95 // pred_check_branch
          %871 = sbr.rel (%p869) target = $region172
        $region171: #{tpu_custom_call.1} parent=95 // pred_region
          %872 = dma.done [#allocation32], 16
        $region172: #{tpu_custom_call.1} parent=95 // pred_fallthru
          _
        %s873 = sand.u32 %s69, 1
        %s874 = scalar_lea.sflag [#allocation5], %s873
        %s875 = sand.u32 %s69, 1
        %s876 = smul.addr %s875, 32
        %s877 = scalar_lea.vmem [#allocation4], %s876
        %p878 = pneg %p82
        %p879 = pneg %p79
        %s880 = sand.u32 %s47, 1
        %s881 = scalar_lea.sflag [#allocation8], %s880
        %s882 = sand.u32 %s95, 1
        %s883 = smul.addr %s882, 32
        %s884 = scalar_lea.vmem [#allocation7], %s883
        %p885 = pneg %p108
        %p886 = pneg %p105
        %s887 = sand.u32 %s47, 1
        %s888 = scalar_lea.sflag [#allocation8], %s887
        %s889 = sand.u32 %s123, 1
        %s890 = smul.addr %s889, 8
        %s891 = scalar_lea.vmem [#allocation9], %s890
        %p892 = pneg %p136
        %p893 = pneg %p133
        %p894 = pneg %p157
        %p895 = pneg %p154
        %p896 = pneg %p178
        %p897 = pneg %p175
        %p898 = pneg %p199
        %p899 = pneg %p196
        %p900 = pneg %p220
        %p901 = pneg %p217
        %p902 = pneg %p241
        %p903 = pneg %p238
        %p904 = pneg %p262
        %p905 = pneg %p259
        %p906 = pneg %p283
        %p907 = pneg %p280
        %p908 = pneg %p304
        %p909 = pneg %p301
        %p910 = pneg %p325
        %p911 = pneg %p322
        %p912 = pneg %p346
        %p913 = pneg %p343
        %p914 = pneg %p367
        %p915 = pneg %p364
        %p916 = pneg %p388
        %p917 = pneg %p385
        %p918 = pneg %p409
        %p919 = pneg %p406
        %p920 = pneg %p430
        %p921 = pneg %p427
        %p922 = pneg %p451
        %p923 = pneg %p448
        %p924 = pneg %p472
        %p925 = pneg %p469
        %p926 = pneg %p500
        %p927 = pneg %p497
        %s928 = sand.u32 %s487, 1
        %s929 = scalar_lea.sflag [#allocation6], %s928
        %s930 = sand.u32 %s487, 1
        %s931 = smul.addr %s930, 32
        %s932 = scalar_lea.vmem [#allocation34], %s931
        %s933 = smul.u32 4, %s52
        %s934 = smul.u32 4, %s52
        %p938 = scmp.eq.s32.totalorder %s52, 0
        // Predicated region
        $region173: #{tpu_custom_call.1} parent=95 // pred_check
          %p939 = pneg %p938
        $region174: #{tpu_custom_call.1} parent=95 // pred_check_branch
          %941 = sbr.rel (%p939) target = $region176
        $region175: #{tpu_custom_call.1} parent=95 // pred_region
          %v942 = vld [vmem:[%s795] sm:$0xf]
          %v943 = vld [vmem:[%s795 + $0x4] sm:$0xf]
          %v944 = vld [vmem:[%s795 + $0x8] sm:$0xf]
          %v945 = vld [vmem:[%s795 + $0xc] sm:$0xf]
          %v946 = vld [vmem:[%s795 + $0x10] sm:$0xf]
          %v947 = vld [vmem:[%s795 + $0x14] sm:$0xf]
          %v948 = vld [vmem:[%s795 + $0x18] sm:$0xf]
          %v949 = vld [vmem:[%s795 + $0x1c] sm:$0xf]
          %v950 = vld [vmem:[#allocation13] sm:$0xf]
          %v951 = vld [vmem:[#allocation13 + $0x4] sm:$0xf]
          %v952 = vld [vmem:[#allocation13 + $0x8] sm:$0xf]
          %v953 = vld [vmem:[#allocation13 + $0xc] sm:$0xf]
          %v954 = vld [vmem:[#allocation15] sm:$0x1]
          %v956 = vlaneseq
          %v957 = vshrl.u32 %v956, 7
          %v958 = vsub.s32 0, %v957
          %v959 = vrot.slane %v954, %v958
          %v969 = vunpack.c.l.b16 %v942
          %v970 = vunpack.c.l.b16 %v943
          %v971 = vunpack.c.l.b16 %v944
          %v972 = vunpack.c.l.b16 %v945
          %v973 = vunpack.c.l.b16 %v946
          %v974 = vunpack.c.l.b16 %v947
          %v975 = vunpack.c.l.b16 %v948
          %v976 = vunpack.c.l.b16 %v949
          %v977 = vpack.c.b16 %v970, %v969
          %v978 = vpack.c.b16 %v972, %v971
          %v979 = vpack.c.b16 %v974, %v973
          %v980 = vpack.c.b16 %v976, %v975
          %v985 = vunpack.c.l.b16 %v950
          %v986 = vunpack.c.l.b16 %v951
          %v987 = vunpack.c.l.b16 %v952
          %v988 = vunpack.c.l.b16 %v953
          %v989 = vpack.c.b16 %v986, %v985
          %v990 = vpack.c.b16 %v988, %v987
          %vm993 = vcmask 261120
          %v995 = vsel %vm993, %v977, 0
          %v998 = vsel %vm993, %v978, 0
          %v1001 = vsel %vm993, %v979, 0
          %v1004 = vsel %vm993, %v980, 0
          %1006 = vmatprep.subr.bf16.mxu0 0
          %1007 = vmatpush1.bf16.msra.mxu0 %v989
          %1008 = vmatprep.subr.bf16.mxu0 0
          %1009 = vmatpush1.bf16.msra.mxu0 %v990
          %1010 = vmatprep.subr.bf16.mxu0 0
          %1011 = vmatpush1.bf16.msra.mxu0 0
          %1012 = vmatprep.subr.bf16.mxu0 0
          %1013 = vmatpush1.bf16.msra.mxu0 0
          %1014 = vmatprep.subr.bf16.mxu0 0
          %1015 = vmatpush1.bf16.msra.mxu0 0
          %1016 = vmatprep.subr.bf16.mxu0 0
          %1017 = vmatpush1.bf16.msra.mxu0 0
          %1018 = vmatprep.subr.bf16.mxu0 0
          %1019 = vmatpush1.bf16.msra.mxu0 0
          %1020 = vmatprep.subr.bf16.mxu0 0
          %1021 = vmatpush1.bf16.msra.mxu0 0
          %1022 = vmatprep.subr.bf16.mxu0 0
          %1023 = vmatpush1.bf16.msra.mxu0 0
          %1024 = vmatprep.subr.bf16.mxu0 0
          %1025 = vmatpush1.bf16.msra.mxu0 0
          %1026 = vmatprep.subr.bf16.mxu0 0
          %1027 = vmatpush1.bf16.msra.mxu0 0
          %1028 = vmatprep.subr.bf16.mxu0 0
          %1029 = vmatpush1.bf16.msra.mxu0 0
          %1030 = vmatprep.subr.bf16.mxu0 0
          %1031 = vmatpush1.bf16.msra.mxu0 0
          %1032 = vmatprep.subr.bf16.mxu0 0
          %1033 = vmatpush1.bf16.msra.mxu0 0
          %1034 = vmatprep.subr.bf16.mxu0 0
          %1035 = vmatpush1.bf16.msra.mxu0 0
          %1036 = vmatprep.subr.bf16.mxu0 0
          %1037 = vmatpush1.bf16.msra.mxu0 0
          %1038 = vmatprep.mubr.bf16.mxu0 0
          %1039 = vmatmul.mubr.bf16.gmra.mrb[0].mxu0 %v995
          %v1040 = vpop.f32.mrb[0].mxu0
          %v1041 = vadd.f32 %v959, %v1040
          %v1042 = vpop.f32.mrb[0].mxu0
          %v1043 = vpop.f32.mrb[0].mxu0
          %v1044 = vadd.f32 %v959, %v1043
          %v1045 = vpop.f32.mrb[0].mxu0
          %1046 = vmatprep.mubr.bf16.mxu0 0
          %1047 = vmatmul.mubr.bf16.gmra.mrb[0].mxu0 %v998
          %v1048 = vpop.f32.mrb[0].mxu0
          %v1049 = vadd.f32 %v959, %v1048
          %v1050 = vpop.f32.mrb[0].mxu0
          %v1051 = vpop.f32.mrb[0].mxu0
          %v1052 = vadd.f32 %v959, %v1051
          %v1053 = vpop.f32.mrb[0].mxu0
          %1054 = vmatprep.mubr.bf16.mxu0 0
          %1055 = vmatmul.mubr.bf16.gmra.mrb[0].mxu0 %v1001
          %v1056 = vpop.f32.mrb[0].mxu0
          %v1057 = vadd.f32 %v959, %v1056
          %v1058 = vpop.f32.mrb[0].mxu0
          %v1059 = vpop.f32.mrb[0].mxu0
          %v1060 = vadd.f32 %v959, %v1059
          %v1061 = vpop.f32.mrb[0].mxu0
          %1062 = vmatprep.mubr.bf16.mxu0 0
          %1063 = vmatmul.mubr.bf16.gmra.mrb[0].mxu0 %v1004
          %v1064 = vpop.f32.mrb[0].mxu0
          %v1065 = vadd.f32 %v959, %v1064
          %v1066 = vpop.f32.mrb[0].mxu0
          %v1067 = vpop.f32.mrb[0].mxu0
          %v1068 = vadd.f32 %v959, %v1067
          %v1069 = vpop.f32.mrb[0].mxu0
          %1070 = vdwg.mxu0
          %v1071 = vld [vmem:[#allocation16] sm:$0xf]
          %v1072 = vld [vmem:[#allocation16 + $0x4] sm:$0xf]
          %v1073 = vld [vmem:[#allocation16 + $0x8] sm:$0xf]
          %v1074 = vld [vmem:[#allocation16 + $0xc] sm:$0xf]
          %v1075 = vld [vmem:[#allocation18] sm:$0x1]
          %v1077 = vlaneseq
          %v1078 = vshrl.u32 %v1077, 7
          %v1079 = vsub.s32 0, %v1078
          %v1080 = vrot.slane %v1075, %v1079
          %v1086 = vunpack.c.l.b16 %v1071
          %v1087 = vunpack.c.l.b16 %v1072
          %v1088 = vunpack.c.l.b16 %v1073
          %v1089 = vunpack.c.l.b16 %v1074
          %v1090 = vpack.c.b16 %v1087, %v1086
          %v1091 = vpack.c.b16 %v1089, %v1088
          %1094 = vmatprep.subr.bf16.mxu0 0
          %1095 = vmatpush1.bf16.msra.mxu0 %v1090
          %1096 = vmatprep.subr.bf16.mxu0 0
          %1097 = vmatpush1.bf16.msra.mxu0 %v1091
          %1098 = vmatprep.subr.bf16.mxu0 0
          %1099 = vmatpush1.bf16.msra.mxu0 0
          %1100 = vmatprep.subr.bf16.mxu0 0
          %1101 = vmatpush1.bf16.msra.mxu0 0
          %1102 = vmatprep.subr.bf16.mxu0 0
          %1103 = vmatpush1.bf16.msra.mxu0 0
          %1104 = vmatprep.subr.bf16.mxu0 0
          %1105 = vmatpush1.bf16.msra.mxu0 0
          %1106 = vmatprep.subr.bf16.mxu0 0
          %1107 = vmatpush1.bf16.msra.mxu0 0
          %1108 = vmatprep.subr.bf16.mxu0 0
          %1109 = vmatpush1.bf16.msra.mxu0 0
          %1110 = vmatprep.subr.bf16.mxu0 0
          %1111 = vmatpush1.bf16.msra.mxu0 0
          %1112 = vmatprep.subr.bf16.mxu0 0
          %1113 = vmatpush1.bf16.msra.mxu0 0
          %1114 = vmatprep.subr.bf16.mxu0 0
          %1115 = vmatpush1.bf16.msra.mxu0 0
          %1116 = vmatprep.subr.bf16.mxu0 0
          %1117 = vmatpush1.bf16.msra.mxu0 0
          %1118 = vmatprep.subr.bf16.mxu0 0
          %1119 = vmatpush1.bf16.msra.mxu0 0
          %1120 = vmatprep.subr.bf16.mxu0 0
          %1121 = vmatpush1.bf16.msra.mxu0 0
          %1122 = vmatprep.subr.bf16.mxu0 0
          %1123 = vmatpush1.bf16.msra.mxu0 0
          %1124 = vmatprep.subr.bf16.mxu0 0
          %1125 = vmatpush1.bf16.msra.mxu0 0
          %1126 = vmatprep.mubr.bf16.mxu0 0
          %1127 = vmatmul.mubr.bf16.gmra.mrb[0].mxu0 %v995
          %v1128 = vpop.f32.mrb[0].mxu0
          %v1129 = vadd.f32 %v1080, %v1128
          %v1130 = vpop.f32.mrb[0].mxu0
          %v1131 = vpop.f32.mrb[0].mxu0
          %v1132 = vadd.f32 %v1080, %v1131
          %v1133 = vpop.f32.mrb[0].mxu0
          %1134 = vmatprep.mubr.bf16.mxu0 0
          %1135 = vmatmul.mubr.bf16.gmra.mrb[0].mxu0 %v998
          %v1136 = vpop.f32.mrb[0].mxu0
          %v1137 = vadd.f32 %v1080, %v1136
          %v1138 = vpop.f32.mrb[0].mxu0
          %v1139 = vpop.f32.mrb[0].mxu0
          %v1140 = vadd.f32 %v1080, %v1139
          %v1141 = vpop.f32.mrb[0].mxu0
          %1142 = vmatprep.mubr.bf16.mxu0 0
          %1143 = vmatmul.mubr.bf16.gmra.mrb[0].mxu0 %v1001
          %v1144 = vpop.f32.mrb[0].mxu0
          %v1145 = vadd.f32 %v1080, %v1144
          %v1146 = vpop.f32.mrb[0].mxu0
          %v1147 = vpop.f32.mrb[0].mxu0
          %v1148 = vadd.f32 %v1080, %v1147
          %v1149 = vpop.f32.mrb[0].mxu0
          %1150 = vmatprep.mubr.bf16.mxu0 0
          %1151 = vmatmul.mubr.bf16.gmra.mrb[0].mxu0 %v1004
          %v1152 = vpop.f32.mrb[0].mxu0
          %v1153 = vadd.f32 %v1080, %v1152
          %v1154 = vpop.f32.mrb[0].mxu0
          %v1155 = vpop.f32.mrb[0].mxu0
          %v1156 = vadd.f32 %v1080, %v1155
          %v1157 = vpop.f32.mrb[0].mxu0
          %1158 = vdwg.mxu0
          %v1159 = vpack.c.bf16 %v1044, %v1041
          %v1160 = vpack.c.bf16 %v1052, %v1049
          %v1161 = vpack.c.bf16 %v1060, %v1057
          %v1162 = vpack.c.bf16 %v1068, %v1065
          %vm1163 = vcmask 64512
          %1164 = vst.msk [vmem:[#allocation2] sm:$0xff] %vm1163, %v1159
          %1165 = vst.msk [vmem:[#allocation2 + $0x8] sm:$0xff] %vm1163, %v1160
          %1166 = vst.msk [vmem:[#allocation2 + $0x10] sm:$0xff] %vm1163, %v1161
          %1167 = vst.msk [vmem:[#allocation2 + $0x18] sm:$0xff] %vm1163, %v1162
          %v1168 = vpack.c.bf16 %v1132, %v1129
          %v1169 = vpack.c.bf16 %v1140, %v1137
          %v1170 = vpack.c.bf16 %v1148, %v1145
          %v1171 = vpack.c.bf16 %v1156, %v1153
          %1172 = vst.msk [vmem:[#allocation3] sm:$0xff] %vm1163, %v1168
          %1173 = vst.msk [vmem:[#allocation3 + $0x8] sm:$0xff] %vm1163, %v1169
          %1174 = vst.msk [vmem:[#allocation3 + $0x10] sm:$0xff] %vm1163, %v1170
          %1175 = vst.msk [vmem:[#allocation3 + $0x18] sm:$0xff] %vm1163, %v1171
          %s1176 = scalar_lea.vmem [#allocation13], 16
          %v1177 = vld [vmem:[%s1176] sm:$0xf]
          %v1178 = vld [vmem:[%s1176 + $0x4] sm:$0xf]
          %v1179 = vld [vmem:[%s1176 + $0x8] sm:$0xf]
          %v1180 = vld [vmem:[%s1176 + $0xc] sm:$0xf]
          %s1181 = scalar_lea.vmem [#allocation15], 1
          %v1182 = vld [vmem:[%s1181] sm:$0x1]
          %v1184 = vlaneseq
          %v1185 = vshrl.u32 %v1184, 7
          %v1186 = vsub.s32 0, %v1185
          %v1187 = vrot.slane %v1182, %v1186
          %v1193 = vunpack.c.l.b16 %v1177
          %v1194 = vunpack.c.l.b16 %v1178
          %v1195 = vunpack.c.l.b16 %v1179
          %v1196 = vunpack.c.l.b16 %v1180
          %v1197 = vpack.c.b16 %v1194, %v1193
          %v1198 = vpack.c.b16 %v1196, %v1195
          %1201 = vmatprep.subr.bf16.mxu0 0
          %1202 = vmatpush1.bf16.msra.mxu0 %v1197
          %1203 = vmatprep.subr.bf16.mxu0 0
          %1204 = vmatpush1.bf16.msra.mxu0 %v1198
          %1205 = vmatprep.subr.bf16.mxu0 0
          %1206 = vmatpush1.bf16.msra.mxu0 0
          %1207 = vmatprep.subr.bf16.mxu0 0
          %1208 = vmatpush1.bf16.msra.mxu0 0
          %1209 = vmatprep.subr.bf16.mxu0 0
          %1210 = vmatpush1.bf16.msra.mxu0 0
          %1211 = vmatprep.subr.bf16.mxu0 0
          %1212 = vmatpush1.bf16.msra.mxu0 0
          %1213 = vmatprep.subr.bf16.mxu0 0
          %1214 = vmatpush1.bf16.msra.mxu0 0
          %1215 = vmatprep.subr.bf16.mxu0 0
          %1216 = vmatpush1.bf16.msra.mxu0 0
          %1217 = vmatprep.subr.bf16.mxu0 0
          %1218 = vmatpush1.bf16.msra.mxu0 0
          %1219 = vmatprep.subr.bf16.mxu0 0
          %1220 = vmatpush1.bf16.msra.mxu0 0
          %1221 = vmatprep.subr.bf16.mxu0 0
          %1222 = vmatpush1.bf16.msra.mxu0 0
          %1223 = vmatprep.subr.bf16.mxu0 0
          %1224 = vmatpush1.bf16.msra.mxu0 0
          %1225 = vmatprep.subr.bf16.mxu0 0
          %1226 = vmatpush1.bf16.msra.mxu0 0
          %1227 = vmatprep.subr.bf16.mxu0 0
          %1228 = vmatpush1.bf16.msra.mxu0 0
          %1229 = vmatprep.subr.bf16.mxu0 0
          %1230 = vmatpush1.bf16.msra.mxu0 0
          %1231 = vmatprep.subr.bf16.mxu0 0
          %1232 = vmatpush1.bf16.msra.mxu0 0
          %1233 = vmatprep.mubr.bf16.mxu0 0
          %1234 = vmatmul.mubr.bf16.gmra.mrb[0].mxu0 %v995
          %v1235 = vpop.f32.mrb[0].mxu0
          %v1236 = vadd.f32 %v1187, %v1235
          %v1237 = vpop.f32.mrb[0].mxu0
          %v1238 = vpop.f32.mrb[0].mxu0
          %v1239 = vadd.f32 %v1187, %v1238
          %v1240 = vpop.f32.mrb[0].mxu0
          %1241 = vmatprep.mubr.bf16.mxu0 0
          %1242 = vmatmul.mubr.bf16.gmra.mrb[0].mxu0 %v998
          %v1243 = vpop.f32.mrb[0].mxu0
          %v1244 = vadd.f32 %v1187, %v1243
          %v1245 = vpop.f32.mrb[0].mxu0
          %v1246 = vpop.f32.mrb[0].mxu0
          %v1247 = vadd.f32 %v1187, %v1246
          %v1248 = vpop.f32.mrb[0].mxu0
          %1249 = vmatprep.mubr.bf16.mxu0 0
          %1250 = vmatmul.mubr.bf16.gmra.mrb[0].mxu0 %v1001
          %v1251 = vpop.f32.mrb[0].mxu0
          %v1252 = vadd.f32 %v1187, %v1251
          %v1253 = vpop.f32.mrb[0].mxu0
          %v1254 = vpop.f32.mrb[0].mxu0
          %v1255 = vadd.f32 %v1187, %v1254
          %v1256 = vpop.f32.mrb[0].mxu0
          %1257 = vmatprep.mubr.bf16.mxu0 0
          %1258 = vmatmul.mubr.bf16.gmra.mrb[0].mxu0 %v1004
          %v1259 = vpop.f32.mrb[0].mxu0
          %v1260 = vadd.f32 %v1187, %v1259
          %v1261 = vpop.f32.mrb[0].mxu0
          %v1262 = vpop.f32.mrb[0].mxu0
          %v1263 = vadd.f32 %v1187, %v1262
          %v1264 = vpop.f32.mrb[0].mxu0
          %1265 = vdwg.mxu0
          %s1266 = scalar_lea.vmem [#allocation16], 16
          %v1267 = vld [vmem:[%s1266] sm:$0xf]
          %v1268 = vld [vmem:[%s1266 + $0x4] sm:$0xf]
          %v1269 = vld [vmem:[%s1266 + $0x8] sm:$0xf]
          %v1270 = vld [vmem:[%s1266 + $0xc] sm:$0xf]
          %s1271 = scalar_lea.vmem [#allocation18], 1
          %v1272 = vld [vmem:[%s1271] sm:$0x1]
          %v1274 = vlaneseq
          %v1275 = vshrl.u32 %v1274, 7
          %v1276 = vsub.s32 0, %v1275
          %v1277 = vrot.slane %v1272, %v1276
          %v1283 = vunpack.c.l.b16 %v1267
          %v1284 = vunpack.c.l.b16 %v1268
          %v1285 = vunpack.c.l.b16 %v1269
          %v1286 = vunpack.c.l.b16 %v1270
          %v1287 = vpack.c.b16 %v1284, %v1283
          %v1288 = vpack.c.b16 %v1286, %v1285
          %1291 = vmatprep.subr.bf16.mxu0 0
          %1292 = vmatpush1.bf16.msra.mxu0 %v1287
          %1293 = vmatprep.subr.bf16.mxu0 0
          %1294 = vmatpush1.bf16.msra.mxu0 %v1288
          %1295 = vmatprep.subr.bf16.mxu0 0
          %1296 = vmatpush1.bf16.msra.mxu0 0
          %1297 = vmatprep.subr.bf16.mxu0 0
          %1298 = vmatpush1.bf16.msra.mxu0 0
          %1299 = vmatprep.subr.bf16.mxu0 0
          %1300 = vmatpush1.bf16.msra.mxu0 0
          %1301 = vmatprep.subr.bf16.mxu0 0
          %1302 = vmatpush1.bf16.msra.mxu0 0
          %1303 = vmatprep.subr.bf16.mxu0 0
          %1304 = vmatpush1.bf16.msra.mxu0 0
          %1305 = vmatprep.subr.bf16.mxu0 0
          %1306 = vmatpush1.bf16.msra.mxu0 0
          %1307 = vmatprep.subr.bf16.mxu0 0
          %1308 = vmatpush1.bf16.msra.mxu0 0
          %1309 = vmatprep.subr.bf16.mxu0 0
          %1310 = vmatpush1.bf16.msra.mxu0 0
          %1311 = vmatprep.subr.bf16.mxu0 0
          %1312 = vmatpush1.bf16.msra.mxu0 0
          %1313 = vmatprep.subr.bf16.mxu0 0
          %1314 = vmatpush1.bf16.msra.mxu0 0
          %1315 = vmatprep.subr.bf16.mxu0 0
          %1316 = vmatpush1.bf16.msra.mxu0 0
          %1317 = vmatprep.subr.bf16.mxu0 0
          %1318 = vmatpush1.bf16.msra.mxu0 0
          %1319 = vmatprep.subr.bf16.mxu0 0
          %1320 = vmatpush1.bf16.msra.mxu0 0
          %1321 = vmatprep.subr.bf16.mxu0 0
          %1322 = vmatpush1.bf16.msra.mxu0 0
          %1323 = vmatprep.mubr.bf16.mxu0 0
          %1324 = vmatmul.mubr.bf16.gmra.mrb[0].mxu0 %v995
          %v1325 = vpop.f32.mrb[0].mxu0
          %v1326 = vadd.f32 %v1277, %v1325
          %v1327 = vpop.f32.mrb[0].mxu0
          %v1328 = vpop.f32.mrb[0].mxu0
          %v1329 = vadd.f32 %v1277, %v1328
          %v1330 = vpop.f32.mrb[0].mxu0
          %1331 = vmatprep.mubr.bf16.mxu0 0
          %1332 = vmatmul.mubr.bf16.gmra.mrb[0].mxu0 %v998
          %v1333 = vpop.f32.mrb[0].mxu0
          %v1334 = vadd.f32 %v1277, %v1333
          %v1335 = vpop.f32.mrb[0].mxu0
          %v1336 = vpop.f32.mrb[0].mxu0
          %v1337 = vadd.f32 %v1277, %v1336
          %v1338 = vpop.f32.mrb[0].mxu0
          %1339 = vmatprep.mubr.bf16.mxu0 0
          %1340 = vmatmul.mubr.bf16.gmra.mrb[0].mxu0 %v1001
          %v1341 = vpop.f32.mrb[0].mxu0
          %v1342 = vadd.f32 %v1277, %v1341
          %v1343 = vpop.f32.mrb[0].mxu0
          %v1344 = vpop.f32.mrb[0].mxu0
          %v1345 = vadd.f32 %v1277, %v1344
          %v1346 = vpop.f32.mrb[0].mxu0
          %1347 = vmatprep.mubr.bf16.mxu0 0
          %1348 = vmatmul.mubr.bf16.gmra.mrb[0].mxu0 %v1004
          %v1349 = vpop.f32.mrb[0].mxu0
          %v1350 = vadd.f32 %v1277, %v1349
          %v1351 = vpop.f32.mrb[0].mxu0
          %v1352 = vpop.f32.mrb[0].mxu0
          %v1353 = vadd.f32 %v1277, %v1352
          %v1354 = vpop.f32.mrb[0].mxu0
          %1355 = vdwg.mxu0
          %v1356 = vpack.c.bf16 %v1239, %v1236
          %v1357 = vpack.c.bf16 %v1247, %v1244
          %v1358 = vpack.c.bf16 %v1255, %v1252
          %v1359 = vpack.c.bf16 %v1263, %v1260
          %s1360 = scalar_lea.vmem [#allocation2], 32
          %1361 = vst.msk [vmem:[%s1360] sm:$0xff] %vm1163, %v1356
          %1362 = vst.msk [vmem:[%s1360 + $0x8] sm:$0xff] %vm1163, %v1357
          %1363 = vst.msk [vmem:[%s1360 + $0x10] sm:$0xff] %vm1163, %v1358
          %1364 = vst.msk [vmem:[%s1360 + $0x18] sm:$0xff] %vm1163, %v1359
          %v1365 = vpack.c.bf16 %v1329, %v1326
          %v1366 = vpack.c.bf16 %v1337, %v1334
          %v1367 = vpack.c.bf16 %v1345, %v1342
          %v1368 = vpack.c.bf16 %v1353, %v1350
          %s1369 = scalar_lea.vmem [#allocation3], 32
          %1370 = vst.msk [vmem:[%s1369] sm:$0xff] %vm1163, %v1365
          %1371 = vst.msk [vmem:[%s1369 + $0x8] sm:$0xff] %vm1163, %v1366
          %1372 = vst.msk [vmem:[%s1369 + $0x10] sm:$0xff] %vm1163, %v1367
          %1373 = vst.msk [vmem:[%s1369 + $0x18] sm:$0xff] %vm1163, %v1368
          %s1374 = scalar_lea.vmem [#allocation13], 32
          %v1375 = vld [vmem:[%s1374] sm:$0xf]
          %v1376 = vld [vmem:[%s1374 + $0x4] sm:$0xf]
          %v1377 = vld [vmem:[%s1374 + $0x8] sm:$0xf]
          %v1378 = vld [vmem:[%s1374 + $0xc] sm:$0xf]
          %s1379 = scalar_lea.vmem [#allocation15], 2
          %v1380 = vld [vmem:[%s1379] sm:$0x1]
          %v1382 = vlaneseq
          %v1383 = vshrl.u32 %v1382, 7
          %v1384 = vsub.s32 0, %v1383
          %v1385 = vrot.slane %v1380, %v1384
          %v1391 = vunpack.c.l.b16 %v1375
          %v1392 = vunpack.c.l.b16 %v1376
          %v1393 = vunpack.c.l.b16 %v1377
          %v1394 = vunpack.c.l.b16 %v1378
          %v1395 = vpack.c.b16 %v1392, %v1391
          %v1396 = vpack.c.b16 %v1394, %v1393
          %1399 = vmatprep.subr.bf16.mxu0 0
          %1400 = vmatpush1.bf16.msra.mxu0 %v1395
          %1401 = vmatprep.subr.bf16.mxu0 0
          %1402 = vmatpush1.bf16.msra.mxu0 %v1396
          %1403 = vmatprep.subr.bf16.mxu0 0
          %1404 = vmatpush1.bf16.msra.mxu0 0
          %1405 = vmatprep.subr.bf16.mxu0 0
          %1406 = vmatpush1.bf16.msra.mxu0 0
          %1407 = vmatprep.subr.bf16.mxu0 0
          %1408 = vmatpush1.bf16.msra.mxu0 0
          %1409 = vmatprep.subr.bf16.mxu0 0
          %1410 = vmatpush1.bf16.msra.mxu0 0
          %1411 = vmatprep.subr.bf16.mxu0 0
          %1412 = vmatpush1.bf16.msra.mxu0 0
          %1413 = vmatprep.subr.bf16.mxu0 0
          %1414 = vmatpush1.bf16.msra.mxu0 0
          %1415 = vmatprep.subr.bf16.mxu0 0
          %1416 = vmatpush1.bf16.msra.mxu0 0
          %1417 = vmatprep.subr.bf16.mxu0 0
          %1418 = vmatpush1.bf16.msra.mxu0 0
          %1419 = vmatprep.subr.bf16.mxu0 0
          %1420 = vmatpush1.bf16.msra.mxu0 0
          %1421 = vmatprep.subr.bf16.mxu0 0
          %1422 = vmatpush1.bf16.msra.mxu0 0
          %1423 = vmatprep.subr.bf16.mxu0 0
          %1424 = vmatpush1.bf16.msra.mxu0 0
          %1425 = vmatprep.subr.bf16.mxu0 0
          %1426 = vmatpush1.bf16.msra.mxu0 0
          %1427 = vmatprep.subr.bf16.mxu0 0
          %1428 = vmatpush1.bf16.msra.mxu0 0
          %1429 = vmatprep.subr.bf16.mxu0 0
          %1430 = vmatpush1.bf16.msra.mxu0 0
          %1431 = vmatprep.mubr.bf16.mxu0 0
          %1432 = vmatmul.mubr.bf16.gmra.mrb[0].mxu0 %v995
          %v1433 = vpop.f32.mrb[0].mxu0
          %v1434 = vadd.f32 %v1385, %v1433
          %v1435 = vpop.f32.mrb[0].mxu0
          %v1436 = vpop.f32.mrb[0].mxu0
          %v1437 = vadd.f32 %v1385, %v1436
          %v1438 = vpop.f32.mrb[0].mxu0
          %1439 = vmatprep.mubr.bf16.mxu0 0
          %1440 = vmatmul.mubr.bf16.gmra.mrb[0].mxu0 %v998
          %v1441 = vpop.f32.mrb[0].mxu0
          %v1442 = vadd.f32 %v1385, %v1441
          %v1443 = vpop.f32.mrb[0].mxu0
          %v1444 = vpop.f32.mrb[0].mxu0
          %v1445 = vadd.f32 %v1385, %v1444
          %v1446 = vpop.f32.mrb[0].mxu0
          %1447 = vmatprep.mubr.bf16.mxu0 0
          %1448 = vmatmul.mubr.bf16.gmra.mrb[0].mxu0 %v1001
          %v1449 = vpop.f32.mrb[0].mxu0
          %v1450 = vadd.f32 %v1385, %v1449
          %v1451 = vpop.f32.mrb[0].mxu0
          %v1452 = vpop.f32.mrb[0].mxu0
          %v1453 = vadd.f32 %v1385, %v1452
          %v1454 = vpop.f32.mrb[0].mxu0
          %1455 = vmatprep.mubr.bf16.mxu0 0
          %1456 = vmatmul.mubr.bf16.gmra.mrb[0].mxu0 %v1004
          %v1457 = vpop.f32.mrb[0].mxu0
          %v1458 = vadd.f32 %v1385, %v1457
          %v1459 = vpop.f32.mrb[0].mxu0
          %v1460 = vpop.f32.mrb[0].mxu0
          %v1461 = vadd.f32 %v1385, %v1460
          %v1462 = vpop.f32.mrb[0].mxu0
          %1463 = vdwg.mxu0
          %s1464 = scalar_lea.vmem [#allocation16], 32
          %v1465 = vld [vmem:[%s1464] sm:$0xf]
          %v1466 = vld [vmem:[%s1464 + $0x4] sm:$0xf]
          %v1467 = vld [vmem:[%s1464 + $0x8] sm:$0xf]
          %v1468 = vld [vmem:[%s1464 + $0xc] sm:$0xf]
          %s1469 = scalar_lea.vmem [#allocation18], 2
          %v1470 = vld [vmem:[%s1469] sm:$0x1]
          %v1472 = vlaneseq
          %v1473 = vshrl.u32 %v1472, 7
          %v1474 = vsub.s32 0, %v1473
          %v1475 = vrot.slane %v1470, %v1474
          %v1481 = vunpack.c.l.b16 %v1465
          %v1482 = vunpack.c.l.b16 %v1466
          %v1483 = vunpack.c.l.b16 %v1467
          %v1484 = vunpack.c.l.b16 %v1468
          %v1485 = vpack.c.b16 %v1482, %v1481
          %v1486 = vpack.c.b16 %v1484, %v1483
          %1489 = vmatprep.subr.bf16.mxu0 0
          %1490 = vmatpush1.bf16.msra.mxu0 %v1485
          %1491 = vmatprep.subr.bf16.mxu0 0
          %1492 = vmatpush1.bf16.msra.mxu0 %v1486
          %1493 = vmatprep.subr.bf16.mxu0 0
          %1494 = vmatpush1.bf16.msra.mxu0 0
          %1495 = vmatprep.subr.bf16.mxu0 0
          %1496 = vmatpush1.bf16.msra.mxu0 0
          %1497 = vmatprep.subr.bf16.mxu0 0
          %1498 = vmatpush1.bf16.msra.mxu0 0
          %1499 = vmatprep.subr.bf16.mxu0 0
          %1500 = vmatpush1.bf16.msra.mxu0 0
          %1501 = vmatprep.subr.bf16.mxu0 0
          %1502 = vmatpush1.bf16.msra.mxu0 0
          %1503 = vmatprep.subr.bf16.mxu0 0
          %1504 = vmatpush1.bf16.msra.mxu0 0
          %1505 = vmatprep.subr.bf16.mxu0 0
          %1506 = vmatpush1.bf16.msra.mxu0 0
          %1507 = vmatprep.subr.bf16.mxu0 0
          %1508 = vmatpush1.bf16.msra.mxu0 0
          %1509 = vmatprep.subr.bf16.mxu0 0
          %1510 = vmatpush1.bf16.msra.mxu0 0
          %1511 = vmatprep.subr.bf16.mxu0 0
          %1512 = vmatpush1.bf16.msra.mxu0 0
          %1513 = vmatprep.subr.bf16.mxu0 0
          %1514 = vmatpush1.bf16.msra.mxu0 0
          %1515 = vmatprep.subr.bf16.mxu0 0
          %1516 = vmatpush1.bf16.msra.mxu0 0
          %1517 = vmatprep.subr.bf16.mxu0 0
          %1518 = vmatpush1.bf16.msra.mxu0 0
          %1519 = vmatprep.subr.bf16.mxu0 0
          %1520 = vmatpush1.bf16.msra.mxu0 0
          %1521 = vmatprep.mubr.bf16.mxu0 0
          %1522 = vmatmul.mubr.bf16.gmra.mrb[0].mxu0 %v995
          %v1523 = vpop.f32.mrb[0].mxu0
          %v1524 = vadd.f32 %v1475, %v1523
          %v1525 = vpop.f32.mrb[0].mxu0
          %v1526 = vpop.f32.mrb[0].mxu0
          %v1527 = vadd.f32 %v1475, %v1526
          %v1528 = vpop.f32.mrb[0].mxu0
          %1529 = vmatprep.mubr.bf16.mxu0 0
          %1530 = vmatmul.mubr.bf16.gmra.mrb[0].mxu0 %v998
          %v1531 = vpop.f32.mrb[0].mxu0
          %v1532 = vadd.f32 %v1475, %v1531
          %v1533 = vpop.f32.mrb[0].mxu0
          %v1534 = vpop.f32.mrb[0].mxu0
          %v1535 = vadd.f32 %v1475, %v1534
          %v1536 = vpop.f32.mrb[0].mxu0
          %1537 = vmatprep.mubr.bf16.mxu0 0
          %1538 = vmatmul.mubr.bf16.gmra.mrb[0].mxu0 %v1001
          %v1539 = vpop.f32.mrb[0].mxu0
          %v1540 = vadd.f32 %v1475, %v1539
          %v1541 = vpop.f32.mrb[0].mxu0
          %v1542 = vpop.f32.mrb[0].mxu0
          %v1543 = vadd.f32 %v1475, %v1542
          %v1544 = vpop.f32.mrb[0].mxu0
          %1545 = vmatprep.mubr.bf16.mxu0 0
          %1546 = vmatmul.mubr.bf16.gmra.mrb[0].mxu0 %v1004
          %v1547 = vpop.f32.mrb[0].mxu0
          %v1548 = vadd.f32 %v1475, %v1547
          %v1549 = vpop.f32.mrb[0].mxu0
          %v1550 = vpop.f32.mrb[0].mxu0
          %v1551 = vadd.f32 %v1475, %v1550
          %v1552 = vpop.f32.mrb[0].mxu0
          %1553 = vdwg.mxu0
          %v1554 = vpack.c.bf16 %v1437, %v1434
          %v1555 = vpack.c.bf16 %v1445, %v1442
          %v1556 = vpack.c.bf16 %v1453, %v1450
          %v1557 = vpack.c.bf16 %v1461, %v1458
          %s1558 = scalar_lea.vmem [#allocation2], 64
          %1559 = vst.msk [vmem:[%s1558] sm:$0xff] %vm1163, %v1554
          %1560 = vst.msk [vmem:[%s1558 + $0x8] sm:$0xff] %vm1163, %v1555
          %1561 = vst.msk [vmem:[%s1558 + $0x10] sm:$0xff] %vm1163, %v1556
          %1562 = vst.msk [vmem:[%s1558 + $0x18] sm:$0xff] %vm1163, %v1557
          %v1563 = vpack.c.bf16 %v1527, %v1524
          %v1564 = vpack.c.bf16 %v1535, %v1532
          %v1565 = vpack.c.bf16 %v1543, %v1540
          %v1566 = vpack.c.bf16 %v1551, %v1548
          %s1567 = scalar_lea.vmem [#allocation3], 64
          %1568 = vst.msk [vmem:[%s1567] sm:$0xff] %vm1163, %v1563
          %1569 = vst.msk [vmem:[%s1567 + $0x8] sm:$0xff] %vm1163, %v1564
          %1570 = vst.msk [vmem:[%s1567 + $0x10] sm:$0xff] %vm1163, %v1565
          %1571 = vst.msk [vmem:[%s1567 + $0x18] sm:$0xff] %vm1163, %v1566
          %s1572 = scalar_lea.vmem [#allocation13], 48
          %v1573 = vld [vmem:[%s1572] sm:$0xf]
          %v1574 = vld [vmem:[%s1572 + $0x4] sm:$0xf]
          %v1575 = vld [vmem:[%s1572 + $0x8] sm:$0xf]
          %v1576 = vld [vmem:[%s1572 + $0xc] sm:$0xf]
          %s1577 = scalar_lea.vmem [#allocation15], 3
          %v1578 = vld [vmem:[%s1577] sm:$0x1]
          %v1580 = vlaneseq
          %v1581 = vshrl.u32 %v1580, 7
          %v1582 = vsub.s32 0, %v1581
          %v1583 = vrot.slane %v1578, %v1582
          %v1589 = vunpack.c.l.b16 %v1573
          %v1590 = vunpack.c.l.b16 %v1574
          %v1591 = vunpack.c.l.b16 %v1575
          %v1592 = vunpack.c.l.b16 %v1576
          %v1593 = vpack.c.b16 %v1590, %v1589
          %v1594 = vpack.c.b16 %v1592, %v1591
          %1597 = vmatprep.subr.bf16.mxu0 0
          %1598 = vmatpush1.bf16.msra.mxu0 %v1593
          %1599 = vmatprep.subr.bf16.mxu0 0
          %1600 = vmatpush1.bf16.msra.mxu0 %v1594
          %1601 = vmatprep.subr.bf16.mxu0 0
          %1602 = vmatpush1.bf16.msra.mxu0 0
          %1603 = vmatprep.subr.bf16.mxu0 0
          %1604 = vmatpush1.bf16.msra.mxu0 0
          %1605 = vmatprep.subr.bf16.mxu0 0
          %1606 = vmatpush1.bf16.msra.mxu0 0
          %1607 = vmatprep.subr.bf16.mxu0 0
          %1608 = vmatpush1.bf16.msra.mxu0 0
          %1609 = vmatprep.subr.bf16.mxu0 0
          %1610 = vmatpush1.bf16.msra.mxu0 0
          %1611 = vmatprep.subr.bf16.mxu0 0
          %1612 = vmatpush1.bf16.msra.mxu0 0
          %1613 = vmatprep.subr.bf16.mxu0 0
          %1614 = vmatpush1.bf16.msra.mxu0 0
          %1615 = vmatprep.subr.bf16.mxu0 0
          %1616 = vmatpush1.bf16.msra.mxu0 0
          %1617 = vmatprep.subr.bf16.mxu0 0
          %1618 = vmatpush1.bf16.msra.mxu0 0
          %1619 = vmatprep.subr.bf16.mxu0 0
          %1620 = vmatpush1.bf16.msra.mxu0 0
          %1621 = vmatprep.subr.bf16.mxu0 0
          %1622 = vmatpush1.bf16.msra.mxu0 0
          %1623 = vmatprep.subr.bf16.mxu0 0
          %1624 = vmatpush1.bf16.msra.mxu0 0
          %1625 = vmatprep.subr.bf16.mxu0 0
          %1626 = vmatpush1.bf16.msra.mxu0 0
          %1627 = vmatprep.subr.bf16.mxu0 0
          %1628 = vmatpush1.bf16.msra.mxu0 0
          %1629 = vmatprep.mubr.bf16.mxu0 0
          %1630 = vmatmul.mubr.bf16.gmra.mrb[0].mxu0 %v995
          %v1631 = vpop.f32.mrb[0].mxu0
          %v1632 = vadd.f32 %v1583, %v1631
          %v1633 = vpop.f32.mrb[0].mxu0
          %v1634 = vpop.f32.mrb[0].mxu0
          %v1635 = vadd.f32 %v1583, %v1634
          %v1636 = vpop.f32.mrb[0].mxu0
          %1637 = vmatprep.mubr.bf16.mxu0 0
          %1638 = vmatmul.mubr.bf16.gmra.mrb[0].mxu0 %v998
          %v1639 = vpop.f32.mrb[0].mxu0
          %v1640 = vadd.f32 %v1583, %v1639
          %v1641 = vpop.f32.mrb[0].mxu0
          %v1642 = vpop.f32.mrb[0].mxu0
          %v1643 = vadd.f32 %v1583, %v1642
          %v1644 = vpop.f32.mrb[0].mxu0
          %1645 = vmatprep.mubr.bf16.mxu0 0
          %1646 = vmatmul.mubr.bf16.gmra.mrb[0].mxu0 %v1001
          %v1647 = vpop.f32.mrb[0].mxu0
          %v1648 = vadd.f32 %v1583, %v1647
          %v1649 = vpop.f32.mrb[0].mxu0
          %v1650 = vpop.f32.mrb[0].mxu0
          %v1651 = vadd.f32 %v1583, %v1650
          %v1652 = vpop.f32.mrb[0].mxu0
          %1653 = vmatprep.mubr.bf16.mxu0 0
          %1654 = vmatmul.mubr.bf16.gmra.mrb[0].mxu0 %v1004
          %v1655 = vpop.f32.mrb[0].mxu0
          %v1656 = vadd.f32 %v1583, %v1655
          %v1657 = vpop.f32.mrb[0].mxu0
          %v1658 = vpop.f32.mrb[0].mxu0
          %v1659 = vadd.f32 %v1583, %v1658
          %v1660 = vpop.f32.mrb[0].mxu0
          %1661 = vdwg.mxu0
          %s1662 = scalar_lea.vmem [#allocation16], 48
          %v1663 = vld [vmem:[%s1662] sm:$0xf]
          %v1664 = vld [vmem:[%s1662 + $0x4] sm:$0xf]
          %v1665 = vld [vmem:[%s1662 + $0x8] sm:$0xf]
          %v1666 = vld [vmem:[%s1662 + $0xc] sm:$0xf]
          %s1667 = scalar_lea.vmem [#allocation18], 3
          %v1668 = vld [vmem:[%s1667] sm:$0x1]
          %v1670 = vlaneseq
          %v1671 = vshrl.u32 %v1670, 7
          %v1672 = vsub.s32 0, %v1671
          %v1673 = vrot.slane %v1668, %v1672
          %v1679 = vunpack.c.l.b16 %v1663
          %v1680 = vunpack.c.l.b16 %v1664
          %v1681 = vunpack.c.l.b16 %v1665
          %v1682 = vunpack.c.l.b16 %v1666
          %v1683 = vpack.c.b16 %v1680, %v1679
          %v1684 = vpack.c.b16 %v1682, %v1681
          %1687 = vmatprep.subr.bf16.mxu0 0
          %1688 = vmatpush1.bf16.msra.mxu0 %v1683
          %1689 = vmatprep.subr.bf16.mxu0 0
          %1690 = vmatpush1.bf16.msra.mxu0 %v1684
          %1691 = vmatprep.subr.bf16.mxu0 0
          %1692 = vmatpush1.bf16.msra.mxu0 0
          %1693 = vmatprep.subr.bf16.mxu0 0
          %1694 = vmatpush1.bf16.msra.mxu0 0
          %1695 = vmatprep.subr.bf16.mxu0 0
          %1696 = vmatpush1.bf16.msra.mxu0 0
          %1697 = vmatprep.subr.bf16.mxu0 0
          %1698 = vmatpush1.bf16.msra.mxu0 0
          %1699 = vmatprep.subr.bf16.mxu0 0
          %1700 = vmatpush1.bf16.msra.mxu0 0
          %1701 = vmatprep.subr.bf16.mxu0 0
          %1702 = vmatpush1.bf16.msra.mxu0 0
          %1703 = vmatprep.subr.bf16.mxu0 0
          %1704 = vmatpush1.bf16.msra.mxu0 0
          %1705 = vmatprep.subr.bf16.mxu0 0
          %1706 = vmatpush1.bf16.msra.mxu0 0
          %1707 = vmatprep.subr.bf16.mxu0 0
          %1708 = vmatpush1.bf16.msra.mxu0 0
          %1709 = vmatprep.subr.bf16.mxu0 0
          %1710 = vmatpush1.bf16.msra.mxu0 0
          %1711 = vmatprep.subr.bf16.mxu0 0
          %1712 = vmatpush1.bf16.msra.mxu0 0
          %1713 = vmatprep.subr.bf16.mxu0 0
          %1714 = vmatpush1.bf16.msra.mxu0 0
          %1715 = vmatprep.subr.bf16.mxu0 0
          %1716 = vmatpush1.bf16.msra.mxu0 0
          %1717 = vmatprep.subr.bf16.mxu0 0
          %1718 = vmatpush1.bf16.msra.mxu0 0
          %1719 = vmatprep.mubr.bf16.mxu0 0
          %1720 = vmatmul.mubr.bf16.gmra.mrb[0].mxu0 %v995
          %v1721 = vpop.f32.mrb[0].mxu0
          %v1722 = vadd.f32 %v1673, %v1721
          %v1723 = vpop.f32.mrb[0].mxu0
          %v1724 = vpop.f32.mrb[0].mxu0
          %v1725 = vadd.f32 %v1673, %v1724
          %v1726 = vpop.f32.mrb[0].mxu0
          %1727 = vmatprep.mubr.bf16.mxu0 0
          %1728 = vmatmul.mubr.bf16.gmra.mrb[0].mxu0 %v998
          %v1729 = vpop.f32.mrb[0].mxu0
          %v1730 = vadd.f32 %v1673, %v1729
          %v1731 = vpop.f32.mrb[0].mxu0
          %v1732 = vpop.f32.mrb[0].mxu0
          %v1733 = vadd.f32 %v1673, %v1732
          %v1734 = vpop.f32.mrb[0].mxu0
          %1735 = vmatprep.mubr.bf16.mxu0 0
          %1736 = vmatmul.mubr.bf16.gmra.mrb[0].mxu0 %v1001
          %v1737 = vpop.f32.mrb[0].mxu0
          %v1738 = vadd.f32 %v1673, %v1737
          %v1739 = vpop.f32.mrb[0].mxu0
          %v1740 = vpop.f32.mrb[0].mxu0
          %v1741 = vadd.f32 %v1673, %v1740
          %v1742 = vpop.f32.mrb[0].mxu0
          %1743 = vmatprep.mubr.bf16.mxu0 0
          %1744 = vmatmul.mubr.bf16.gmra.mrb[0].mxu0 %v1004
          %v1745 = vpop.f32.mrb[0].mxu0
          %v1746 = vadd.f32 %v1673, %v1745
          %v1747 = vpop.f32.mrb[0].mxu0
          %v1748 = vpop.f32.mrb[0].mxu0
          %v1749 = vadd.f32 %v1673, %v1748
          %v1750 = vpop.f32.mrb[0].mxu0
          %1751 = vdwg.mxu0
          %v1752 = vpack.c.bf16 %v1635, %v1632
          %v1753 = vpack.c.bf16 %v1643, %v1640
          %v1754 = vpack.c.bf16 %v1651, %v1648
          %v1755 = vpack.c.bf16 %v1659, %v1656
          %s1756 = scalar_lea.vmem [#allocation2], 96
          %1757 = vst.msk [vmem:[%s1756] sm:$0xff] %vm1163, %v1752
          %1758 = vst.msk [vmem:[%s1756 + $0x8] sm:$0xff] %vm1163, %v1753
          %1759 = vst.msk [vmem:[%s1756 + $0x10] sm:$0xff] %vm1163, %v1754
          %1760 = vst.msk [vmem:[%s1756 + $0x18] sm:$0xff] %vm1163, %v1755
          %v1761 = vpack.c.bf16 %v1725, %v1722
          %v1762 = vpack.c.bf16 %v1733, %v1730
          %v1763 = vpack.c.bf16 %v1741, %v1738
          %v1764 = vpack.c.bf16 %v1749, %v1746
          %s1765 = scalar_lea.vmem [#allocation3], 96
          %1766 = vst.msk [vmem:[%s1765] sm:$0xff] %vm1163, %v1761
          %1767 = vst.msk [vmem:[%s1765 + $0x8] sm:$0xff] %vm1163, %v1762
          %1768 = vst.msk [vmem:[%s1765 + $0x10] sm:$0xff] %vm1163, %v1763
          %1769 = vst.msk [vmem:[%s1765 + $0x18] sm:$0xff] %vm1163, %v1764
        $region176: #{tpu_custom_call.1} parent=95 // pred_fallthru
          _
        %v1770 = vld [vmem:[%s786] sm:$0xff]
        %v1771 = vld [vmem:[%s786 + $0x8] sm:$0xff]
        %v1772 = vld [vmem:[%s786 + $0x10] sm:$0xff]
        %v1773 = vld [vmem:[%s786 + $0x18] sm:$0xff]
        %v1774 = vpack.c.bf16 %v1771, %v1770
        %v1775 = vpack.c.bf16 %v1773, %v1772
        %v1776 = vld [vmem:[%s804] sm:$0xff]
        %vm1777 = vnez %v1776
        %v1778 = vld [vmem:[#allocation10] sm:$0xf]
        %v1779 = vld [vmem:[#allocation10 + $0x4] sm:$0xf]
        %v1780 = vld [vmem:[#allocation10 + $0x8] sm:$0xf]
        %v1781 = vld [vmem:[#allocation10 + $0xc] sm:$0xf]
        %v1782 = vld [vmem:[#allocation12] sm:$0x1]
        %v1784 = vlaneseq
        %v1785 = vshrl.u32 %v1784, 7
        %v1786 = vsub.s32 0, %v1785
        %v1787 = vrot.slane %v1782, %v1786
        %v1793 = vunpack.c.l.b16 %v1778
        %v1794 = vunpack.c.l.b16 %v1779
        %v1795 = vunpack.c.l.b16 %v1780
        %v1796 = vunpack.c.l.b16 %v1781
        %v1797 = vpack.c.b16 %v1794, %v1793
        %v1798 = vpack.c.b16 %v1796, %v1795
        %vm1801 = vcmask 261120
        %v1803 = vsel %vm1801, %v1774, 0
        %v1806 = vsel %vm1801, %v1775, 0
        %1808 = vmatprep.subr.bf16.mxu0 0
        %1809 = vmatpush1.bf16.msra.mxu0 %v1797
        %1810 = vmatprep.subr.bf16.mxu0 0
        %1811 = vmatpush1.bf16.msra.mxu0 %v1798
        %1812 = vmatprep.subr.bf16.mxu0 0
        %1813 = vmatpush1.bf16.msra.mxu0 0
        %1814 = vmatprep.subr.bf16.mxu0 0
        %1815 = vmatpush1.bf16.msra.mxu0 0
        %1816 = vmatprep.subr.bf16.mxu0 0
        %1817 = vmatpush1.bf16.msra.mxu0 0
        %1818 = vmatprep.subr.bf16.mxu0 0
        %1819 = vmatpush1.bf16.msra.mxu0 0
        %1820 = vmatprep.subr.bf16.mxu0 0
        %1821 = vmatpush1.bf16.msra.mxu0 0
        %1822 = vmatprep.subr.bf16.mxu0 0
        %1823 = vmatpush1.bf16.msra.mxu0 0
        %1824 = vmatprep.subr.bf16.mxu0 0
        %1825 = vmatpush1.bf16.msra.mxu0 0
        %1826 = vmatprep.subr.bf16.mxu0 0
        %1827 = vmatpush1.bf16.msra.mxu0 0
        %1828 = vmatprep.subr.bf16.mxu0 0
        %1829 = vmatpush1.bf16.msra.mxu0 0
        %1830 = vmatprep.subr.bf16.mxu0 0
        %1831 = vmatpush1.bf16.msra.mxu0 0
        %1832 = vmatprep.subr.bf16.mxu0 0
        %1833 = vmatpush1.bf16.msra.mxu0 0
        %1834 = vmatprep.subr.bf16.mxu0 0
        %1835 = vmatpush1.bf16.msra.mxu0 0
        %1836 = vmatprep.subr.bf16.mxu0 0
        %1837 = vmatpush1.bf16.msra.mxu0 0
        %1838 = vmatprep.subr.bf16.mxu0 0
        %1839 = vmatpush1.bf16.msra.mxu0 0
        %1840 = vmatprep.mubr.bf16.mxu0 0
        %1841 = vmatmul.mubr.bf16.gmra.mrb[0].mxu0 %v1803
        %v1842 = vpop.f32.mrb[0].mxu0
        %v1843 = vadd.f32 %v1787, %v1842
        %v1844 = vpop.f32.mrb[0].mxu0
        %v1845 = vpop.f32.mrb[0].mxu0
        %v1846 = vadd.f32 %v1787, %v1845
        %v1847 = vpop.f32.mrb[0].mxu0
        %1848 = vmatprep.mubr.bf16.mxu0 0
        %1849 = vmatmul.mubr.bf16.gmra.mrb[0].mxu0 %v1806
        %v1850 = vpop.f32.mrb[0].mxu0
        %v1851 = vadd.f32 %v1787, %v1850
        %v1852 = vpop.f32.mrb[0].mxu0
        %v1853 = vpop.f32.mrb[0].mxu0
        %v1854 = vadd.f32 %v1787, %v1853
        %v1855 = vpop.f32.mrb[0].mxu0
        %1856 = vdwg.mxu0
        %v1857 = vmul.f32 %v1843, 0.35355338
        %v1858 = vmul.f32 %v1846, 0.35355338
        %v1859 = vmul.f32 %v1851, 0.35355338
        %v1860 = vmul.f32 %v1854, 0.35355338
        %v1861 = vpack.c.bf16 %v1858, %v1857
        %v1862 = vpack.c.bf16 %v1860, %v1859
        %v1863 = vld [vmem:[#allocation2] sm:$0xff]
        %v1864 = vld [vmem:[#allocation2 + $0x8] sm:$0xff]
        %v1865 = vld [vmem:[#allocation2 + $0x10] sm:$0xff]
        %v1866 = vld [vmem:[#allocation2 + $0x18] sm:$0xff]
        %v1867 = vld [vmem:[#allocation3] sm:$0xff]
        %v1868 = vld [vmem:[#allocation3 + $0x8] sm:$0xff]
        %v1869 = vld [vmem:[#allocation3 + $0x10] sm:$0xff]
        %v1870 = vld [vmem:[#allocation3 + $0x18] sm:$0xff]
        %vm1871 = vcmask 64512
        %v1873 = vsel %vm1871, %v1861, 0
        %v1876 = vsel %vm1871, %v1862, 0
        %v1879 = vsel %vm1871, %v1863, 0
        %v1882 = vsel %vm1871, %v1864, 0
        %v1885 = vsel %vm1871, %v1865, 0
        %v1888 = vsel %vm1871, %v1866, 0
        %1890 = vmatprep.subr.bf16.mxu0 0
        %1891 = vmatpush1.bf16.xpose.msra.mxu0 %v1879
        %1892 = vmatprep.subr.bf16.mxu0 0
        %1893 = vmatpush1.bf16.xpose.msra.mxu0 %v1882
        %1894 = vmatprep.subr.bf16.mxu0 0
        %1895 = vmatpush1.bf16.xpose.msra.mxu0 %v1885
        %1896 = vmatprep.subr.bf16.mxu0 0
        %1897 = vmatpush1.bf16.xpose.msra.mxu0 %v1888
        %1898 = vmatprep.subr.bf16.mxu0 0
        %1899 = vmatpush1.bf16.xpose.msra.mxu0 0
        %1900 = vmatprep.subr.bf16.mxu0 0
        %1901 = vmatpush1.bf16.xpose.msra.mxu0 0
        %1902 = vmatprep.subr.bf16.mxu0 0
        %1903 = vmatpush1.bf16.xpose.msra.mxu0 0
        %1904 = vmatprep.subr.bf16.mxu0 0
        %1905 = vmatpush1.bf16.xpose.msra.mxu0 0
        %1906 = vmatprep.subr.bf16.mxu0 0
        %1907 = vmatpush1.bf16.xpose.msra.mxu0 0
        %1908 = vmatprep.subr.bf16.mxu0 0
        %1909 = vmatpush1.bf16.xpose.msra.mxu0 0
        %1910 = vmatprep.subr.bf16.mxu0 0
        %1911 = vmatpush1.bf16.xpose.msra.mxu0 0
        %1912 = vmatprep.subr.bf16.mxu0 0
        %1913 = vmatpush1.bf16.xpose.msra.mxu0 0
        %1914 = vmatprep.subr.bf16.mxu0 0
        %1915 = vmatpush1.bf16.xpose.msra.mxu0 0
        %1916 = vmatprep.subr.bf16.mxu0 0
        %1917 = vmatpush1.bf16.xpose.msra.mxu0 0
        %1918 = vmatprep.subr.bf16.mxu0 0
        %1919 = vmatpush1.bf16.xpose.msra.mxu0 0
        %1920 = vmatprep.subr.bf16.mxu0 0
        %1921 = vmatpush1.bf16.xpose.msra.mxu0 0
        %1922 = vmatprep.mubr.bf16.mxu0 0
        %1923 = vmatmul.mubr.bf16.gmra.mrb[0].mxu0 %v1873
        %v1924 = vpop.f32.mrb[0].mxu0
        %v1925 = vadd.f32 0.0, %v1924
        %v1926 = vpop.f32.mrb[0].mxu0
        %v1927 = vpop.f32.mrb[0].mxu0
        %v1928 = vadd.f32 0.0, %v1927
        %v1929 = vpop.f32.mrb[0].mxu0
        %1930 = vmatprep.mubr.bf16.mxu0 0
        %1931 = vmatmul.mubr.bf16.gmra.mrb[0].mxu0 %v1876
        %v1932 = vpop.f32.mrb[0].mxu0
        %v1933 = vadd.f32 0.0, %v1932
        %v1934 = vpop.f32.mrb[0].mxu0
        %v1935 = vpop.f32.mrb[0].mxu0
        %v1936 = vadd.f32 0.0, %v1935
        %v1937 = vpop.f32.mrb[0].mxu0
        %1938 = vdwg.mxu0
        %v1939 = vsel %vm1777, 16843009, 0
        %v1940 = vunpack.c.0.s8 %v1939
        %v1941 = vunpack.c.1.s8 %v1939
        %v1942 = vunpack.c.2.s8 %v1939
        %v1943 = vunpack.c.3.s8 %v1939
        %v1944 = vpack.c.b16 %v1940, %v1940
        %v1945 = vpack.c.b8 %v1944, %v1944
        %v1946 = vpack.c.b16 %v1941, %v1941
        %v1947 = vpack.c.b8 %v1946, %v1946
        %v1948 = vpack.c.b16 %v1942, %v1942
        %v1949 = vpack.c.b8 %v1948, %v1948
        %v1950 = vpack.c.b16 %v1943, %v1943
        %v1951 = vpack.c.b8 %v1950, %v1950
        %vm1952 = vnez %v1945
        %vm1953 = vnez %v1947
        %vm1954 = vnez %v1949
        %vm1955 = vnez %v1951
        %v1956 = vsel %vm1952, 16843009, 0
        %v1957 = vsel %vm1953, 16843009, 0
        %v1958 = vsel %vm1954, 16843009, 0
        %v1959 = vsel %vm1955, 16843009, 0
        %v1960 = vunpack.c.0.s8 %v1956
        %v1961 = vunpack.c.0.s8 %v1957
        %v1962 = vunpack.c.0.s8 %v1958
        %v1963 = vunpack.c.0.s8 %v1959
        %vm1964 = vcmp.ne.s32.totalorder %v1960, 0
        %vm1965 = vcmp.ne.s32.totalorder %v1961, 0
        %vm1966 = vcmp.ne.s32.totalorder %v1962, 0
        %vm1967 = vcmp.ne.s32.totalorder %v1963, 0
        %v1968 = vsel %vm1964, %v1925, -1e+09
        %v1969 = vsel %vm1965, %v1928, -1e+09
        %v1970 = vsel %vm1966, %v1933, -1e+09
        %v1971 = vsel %vm1967, %v1936, -1e+09
        %vm1972 = vcmask 523264
        %v1973 = vsel %vm1972, %v1968, -inf
        %1974 = vmax.xlane.f32.xlu0 %v1973
        %v1975 = vpop.xlane.xlu0 %1974
        %v1976 = vsel %vm1972, %v1969, -inf
        %1977 = vmax.xlane.f32.xlu0 %v1976
        %v1978 = vpop.xlane.xlu0 %1977
        %v1979 = vsel %vm1972, %v1970, -inf
        %1980 = vmax.xlane.f32.xlu0 %v1979
        %v1981 = vpop.xlane.xlu0 %1980
        %v1982 = vsel %vm1972, %v1971, -inf
        %1983 = vmax.xlane.f32.xlu0 %v1982
        %v1984 = vpop.xlane.xlu0 %1983
        %v1985 = vsub.f32 %v1968, %v1975
        %v1986 = vsub.f32 %v1969, %v1978
        %v1987 = vsub.f32 %v1970, %v1981
        %v1988 = vsub.f32 %v1971, %v1984
        %v1989 = vmul.f32 %v1985, 1.442695
        %v1990 = vpow.pop %v1989
        %v1991 = vmul.f32 %v1986, 1.442695
        %v1992 = vpow.pop %v1991
        %v1993 = vmul.f32 %v1987, 1.442695
        %v1994 = vpow.pop %v1993
        %v1995 = vmul.f32 %v1988, 1.442695
        %v1996 = vpow.pop %v1995
        %v1997 = vsel %vm1972, %v1990, 0.0
        %1998 = vadd.xlane.f32.xlu0 %v1997
        %v1999 = vpop.xlane.xlu0 %1998
        %v2000 = vsel %vm1972, %v1992, 0.0
        %2001 = vadd.xlane.f32.xlu0 %v2000
        %v2002 = vpop.xlane.xlu0 %2001
        %v2003 = vsel %vm1972, %v1994, 0.0
        %2004 = vadd.xlane.f32.xlu0 %v2003
        %v2005 = vpop.xlane.xlu0 %2004
        %v2006 = vsel %vm1972, %v1996, 0.0
        %2007 = vadd.xlane.f32.xlu0 %v2006
        %v2008 = vpop.xlane.xlu0 %2007
        %v2009 = vrcp.pop %v1999
        %v2010 = vrcp.pop %v2002
        %v2011 = vrcp.pop %v2005
        %v2012 = vrcp.pop %v2008
        %v2013 = vmul.f32 %v1990, %v2009
        %v2014 = vmul.f32 %v1992, %v2010
        %v2015 = vmul.f32 %v1994, %v2011
        %v2016 = vmul.f32 %v1996, %v2012
        %v2017 = vpack.c.bf16 %v2014, %v2013
        %v2018 = vpack.c.bf16 %v2016, %v2015
        %v2020 = vsel %vm1972, %v2017, 0
        %v2023 = vsel %vm1972, %v2018, 0
        %2025 = vmatprep.subr.bf16.mxu0 0
        %2026 = vmatpush1.bf16.msra.mxu0 %v1867
        %2027 = vmatprep.subr.bf16.mxu0 0
        %2028 = vmatpush1.bf16.msra.mxu0 %v1868
        %2029 = vmatprep.subr.bf16.mxu0 0
        %2030 = vmatpush1.bf16.msra.mxu0 %v1869
        %2031 = vmatprep.subr.bf16.mxu0 0
        %2032 = vmatpush1.bf16.msra.mxu0 %v1870
        %2033 = vmatprep.subr.bf16.mxu0 0
        %2034 = vmatpush1.bf16.msra.mxu0 0
        %2035 = vmatprep.subr.bf16.mxu0 0
        %2036 = vmatpush1.bf16.msra.mxu0 0
        %2037 = vmatprep.subr.bf16.mxu0 0
        %2038 = vmatpush1.bf16.msra.mxu0 0
        %2039 = vmatprep.subr.bf16.mxu0 0
        %2040 = vmatpush1.bf16.msra.mxu0 0
        %2041 = vmatprep.subr.bf16.mxu0 0
        %2042 = vmatpush1.bf16.msra.mxu0 0
        %2043 = vmatprep.subr.bf16.mxu0 0
        %2044 = vmatpush1.bf16.msra.mxu0 0
        %2045 = vmatprep.subr.bf16.mxu0 0
        %2046 = vmatpush1.bf16.msra.mxu0 0
        %2047 = vmatprep.subr.bf16.mxu0 0
        %2048 = vmatpush1.bf16.msra.mxu0 0
        %2049 = vmatprep.subr.bf16.mxu0 0
        %2050 = vmatpush1.bf16.msra.mxu0 0
        %2051 = vmatprep.subr.bf16.mxu0 0
        %2052 = vmatpush1.bf16.msra.mxu0 0
        %2053 = vmatprep.subr.bf16.mxu0 0
        %2054 = vmatpush1.bf16.msra.mxu0 0
        %2055 = vmatprep.subr.bf16.mxu0 0
        %2056 = vmatpush1.bf16.msra.mxu0 0
        %2057 = vmatprep.mubr.bf16.mxu0 0
        %2058 = vmatmul.mubr.bf16.gmra.mrb[0].mxu0 %v2020
        %v2059 = vpop.f32.mrb[0].mxu0
        %v2060 = vadd.f32 0.0, %v2059
        %v2061 = vpop.f32.mrb[0].mxu0
        %v2062 = vpop.f32.mrb[0].mxu0
        %v2063 = vadd.f32 0.0, %v2062
        %v2064 = vpop.f32.mrb[0].mxu0
        %2065 = vmatprep.mubr.bf16.mxu0 0
        %2066 = vmatmul.mubr.bf16.gmra.mrb[0].mxu0 %v2023
        %v2067 = vpop.f32.mrb[0].mxu0
        %v2068 = vadd.f32 0.0, %v2067
        %v2069 = vpop.f32.mrb[0].mxu0
        %v2070 = vpop.f32.mrb[0].mxu0
        %v2071 = vadd.f32 0.0, %v2070
        %v2072 = vpop.f32.mrb[0].mxu0
        %2073 = vdwg.mxu0
        %v2074 = vpack.c.bf16 %v2063, %v2060
        %v2075 = vpack.c.bf16 %v2071, %v2068
        %v2076 = vld [vmem:[#allocation19] sm:$0xf]
        %s2077 = scalar_lea.vmem [#allocation2], 32
        %v2078 = vld [vmem:[%s2077] sm:$0xff]
        %v2079 = vld [vmem:[%s2077 + $0x8] sm:$0xff]
        %v2080 = vld [vmem:[%s2077 + $0x10] sm:$0xff]
        %v2081 = vld [vmem:[%s2077 + $0x18] sm:$0xff]
        %s2082 = scalar_lea.vmem [#allocation3], 32
        %v2083 = vld [vmem:[%s2082] sm:$0xff]
        %v2084 = vld [vmem:[%s2082 + $0x8] sm:$0xff]
        %v2085 = vld [vmem:[%s2082 + $0x10] sm:$0xff]
        %v2086 = vld [vmem:[%s2082 + $0x18] sm:$0xff]
        %2089 = vrot.lane.b32.xlu0 %v1861, 120
        %v2090 = vpop.permute.xlu0 %2089
        %2091 = vrot.lane.b32.xlu0 %v1862, 120
        %v2092 = vpop.permute.xlu0 %2091
        %v2094 = vsel %vm1871, %v2090, 0
        %v2097 = vsel %vm1871, %v2092, 0
        %v2100 = vsel %vm1871, %v2078, 0
        %v2103 = vsel %vm1871, %v2079, 0
        %v2106 = vsel %vm1871, %v2080, 0
        %v2109 = vsel %vm1871, %v2081, 0
        %2111 = vmatprep.subr.bf16.mxu0 0
        %2112 = vmatpush1.bf16.xpose.msra.mxu0 %v2100
        %2113 = vmatprep.subr.bf16.mxu0 0
        %2114 = vmatpush1.bf16.xpose.msra.mxu0 %v2103
        %2115 = vmatprep.subr.bf16.mxu0 0
        %2116 = vmatpush1.bf16.xpose.msra.mxu0 %v2106
        %2117 = vmatprep.subr.bf16.mxu0 0
        %2118 = vmatpush1.bf16.xpose.msra.mxu0 %v2109
        %2119 = vmatprep.subr.bf16.mxu0 0
        %2120 = vmatpush1.bf16.xpose.msra.mxu0 0
        %2121 = vmatprep.subr.bf16.mxu0 0
        %2122 = vmatpush1.bf16.xpose.msra.mxu0 0
        %2123 = vmatprep.subr.bf16.mxu0 0
        %2124 = vmatpush1.bf16.xpose.msra.mxu0 0
        %2125 = vmatprep.subr.bf16.mxu0 0
        %2126 = vmatpush1.bf16.xpose.msra.mxu0 0
        %2127 = vmatprep.subr.bf16.mxu0 0
        %2128 = vmatpush1.bf16.xpose.msra.mxu0 0
        %2129 = vmatprep.subr.bf16.mxu0 0
        %2130 = vmatpush1.bf16.xpose.msra.mxu0 0
        %2131 = vmatprep.subr.bf16.mxu0 0
        %2132 = vmatpush1.bf16.xpose.msra.mxu0 0
        %2133 = vmatprep.subr.bf16.mxu0 0
        %2134 = vmatpush1.bf16.xpose.msra.mxu0 0
        %2135 = vmatprep.subr.bf16.mxu0 0
        %2136 = vmatpush1.bf16.xpose.msra.mxu0 0
        %2137 = vmatprep.subr.bf16.mxu0 0
        %2138 = vmatpush1.bf16.xpose.msra.mxu0 0
        %2139 = vmatprep.subr.bf16.mxu0 0
        %2140 = vmatpush1.bf16.xpose.msra.mxu0 0
        %2141 = vmatprep.subr.bf16.mxu0 0
        %2142 = vmatpush1.bf16.xpose.msra.mxu0 0
        %2143 = vmatprep.mubr.bf16.mxu0 0
        %2144 = vmatmul.mubr.bf16.gmra.mrb[0].mxu0 %v2094
        %v2145 = vpop.f32.mrb[0].mxu0
        %v2146 = vadd.f32 0.0, %v2145
        %v2147 = vpop.f32.mrb[0].mxu0
        %v2148 = vpop.f32.mrb[0].mxu0
        %v2149 = vadd.f32 0.0, %v2148
        %v2150 = vpop.f32.mrb[0].mxu0
        %2151 = vmatprep.mubr.bf16.mxu0 0
        %2152 = vmatmul.mubr.bf16.gmra.mrb[0].mxu0 %v2097
        %v2153 = vpop.f32.mrb[0].mxu0
        %v2154 = vadd.f32 0.0, %v2153
        %v2155 = vpop.f32.mrb[0].mxu0
        %v2156 = vpop.f32.mrb[0].mxu0
        %v2157 = vadd.f32 0.0, %v2156
        %v2158 = vpop.f32.mrb[0].mxu0
        %2159 = vdwg.mxu0
        %v2160 = vsel %vm1964, %v2146, -1e+09
        %v2161 = vsel %vm1965, %v2149, -1e+09
        %v2162 = vsel %vm1966, %v2154, -1e+09
        %v2163 = vsel %vm1967, %v2157, -1e+09
        %v2164 = vsel %vm1972, %v2160, -inf
        %2165 = vmax.xlane.f32.xlu0 %v2164
        %v2166 = vpop.xlane.xlu0 %2165
        %v2167 = vsel %vm1972, %v2161, -inf
        %2168 = vmax.xlane.f32.xlu0 %v2167
        %v2169 = vpop.xlane.xlu0 %2168
        %v2170 = vsel %vm1972, %v2162, -inf
        %2171 = vmax.xlane.f32.xlu0 %v2170
        %v2172 = vpop.xlane.xlu0 %2171
        %v2173 = vsel %vm1972, %v2163, -inf
        %2174 = vmax.xlane.f32.xlu0 %v2173
        %v2175 = vpop.xlane.xlu0 %2174
        %v2176 = vsub.f32 %v2160, %v2166
        %v2177 = vsub.f32 %v2161, %v2169
        %v2178 = vsub.f32 %v2162, %v2172
        %v2179 = vsub.f32 %v2163, %v2175
        %v2180 = vmul.f32 %v2176, 1.442695
        %v2181 = vpow.pop %v2180
        %v2182 = vmul.f32 %v2177, 1.442695
        %v2183 = vpow.pop %v2182
        %v2184 = vmul.f32 %v2178, 1.442695
        %v2185 = vpow.pop %v2184
        %v2186 = vmul.f32 %v2179, 1.442695
        %v2187 = vpow.pop %v2186
        %v2188 = vsel %vm1972, %v2181, 0.0
        %2189 = vadd.xlane.f32.xlu0 %v2188
        %v2190 = vpop.xlane.xlu0 %2189
        %v2191 = vsel %vm1972, %v2183, 0.0
        %2192 = vadd.xlane.f32.xlu0 %v2191
        %v2193 = vpop.xlane.xlu0 %2192
        %v2194 = vsel %vm1972, %v2185, 0.0
        %2195 = vadd.xlane.f32.xlu0 %v2194
        %v2196 = vpop.xlane.xlu0 %2195
        %v2197 = vsel %vm1972, %v2187, 0.0
        %2198 = vadd.xlane.f32.xlu0 %v2197
        %v2199 = vpop.xlane.xlu0 %2198
        %v2200 = vrcp.pop %v2190
        %v2201 = vrcp.pop %v2193
        %v2202 = vrcp.pop %v2196
        %v2203 = vrcp.pop %v2199
        %v2204 = vmul.f32 %v2181, %v2200
        %v2205 = vmul.f32 %v2183, %v2201
        %v2206 = vmul.f32 %v2185, %v2202
        %v2207 = vmul.f32 %v2187, %v2203
        %v2208 = vpack.c.bf16 %v2205, %v2204
        %v2209 = vpack.c.bf16 %v2207, %v2206
        %v2211 = vsel %vm1972, %v2208, 0
        %v2214 = vsel %vm1972, %v2209, 0
        %2216 = vmatprep.subr.bf16.mxu0 0
        %2217 = vmatpush1.bf16.msra.mxu0 %v2083
        %2218 = vmatprep.subr.bf16.mxu0 0
        %2219 = vmatpush1.bf16.msra.mxu0 %v2084
        %2220 = vmatprep.subr.bf16.mxu0 0
        %2221 = vmatpush1.bf16.msra.mxu0 %v2085
        %2222 = vmatprep.subr.bf16.mxu0 0
        %2223 = vmatpush1.bf16.msra.mxu0 %v2086
        %2224 = vmatprep.subr.bf16.mxu0 0
        %2225 = vmatpush1.bf16.msra.mxu0 0
        %2226 = vmatprep.subr.bf16.mxu0 0
        %2227 = vmatpush1.bf16.msra.mxu0 0
        %2228 = vmatprep.subr.bf16.mxu0 0
        %2229 = vmatpush1.bf16.msra.mxu0 0
        %2230 = vmatprep.subr.bf16.mxu0 0
        %2231 = vmatpush1.bf16.msra.mxu0 0
        %2232 = vmatprep.subr.bf16.mxu0 0
        %2233 = vmatpush1.bf16.msra.mxu0 0
        %2234 = vmatprep.subr.bf16.mxu0 0
        %2235 = vmatpush1.bf16.msra.mxu0 0
        %2236 = vmatprep.subr.bf16.mxu0 0
        %2237 = vmatpush1.bf16.msra.mxu0 0
        %2238 = vmatprep.subr.bf16.mxu0 0
        %2239 = vmatpush1.bf16.msra.mxu0 0
        %2240 = vmatprep.subr.bf16.mxu0 0
        %2241 = vmatpush1.bf16.msra.mxu0 0
        %2242 = vmatprep.subr.bf16.mxu0 0
        %2243 = vmatpush1.bf16.msra.mxu0 0
        %2244 = vmatprep.subr.bf16.mxu0 0
        %2245 = vmatpush1.bf16.msra.mxu0 0
        %2246 = vmatprep.subr.bf16.mxu0 0
        %2247 = vmatpush1.bf16.msra.mxu0 0
        %2248 = vmatprep.mubr.bf16.mxu0 0
        %2249 = vmatmul.mubr.bf16.gmra.mrb[0].mxu0 %v2211
        %v2250 = vpop.f32.mrb[0].mxu0
        %v2251 = vadd.f32 0.0, %v2250
        %v2252 = vpop.f32.mrb[0].mxu0
        %v2253 = vpop.f32.mrb[0].mxu0
        %v2254 = vadd.f32 0.0, %v2253
        %v2255 = vpop.f32.mrb[0].mxu0
        %2256 = vmatprep.mubr.bf16.mxu0 0
        %2257 = vmatmul.mubr.bf16.gmra.mrb[0].mxu0 %v2214
        %v2258 = vpop.f32.mrb[0].mxu0
        %v2259 = vadd.f32 0.0, %v2258
        %v2260 = vpop.f32.mrb[0].mxu0
        %v2261 = vpop.f32.mrb[0].mxu0
        %v2262 = vadd.f32 0.0, %v2261
        %v2263 = vpop.f32.mrb[0].mxu0
        %2264 = vdwg.mxu0
        %v2265 = vpack.c.bf16 %v2254, %v2251
        %v2266 = vpack.c.bf16 %v2262, %v2259
        %s2267 = scalar_lea.vmem [#allocation19], 4
        %v2268 = vld [vmem:[%s2267] sm:$0xf]
        %v2270 = vsel %vm1871, %v2265, 0
        %v2273 = vsel %vm1871, %v2266, 0
        %vm2275 = vcmask 1043456
        %v2277 = vsel %vm2275, %v2268, 0
        %2279 = vmatprep.subr.bf16.mxu0 0
        %2280 = vmatpush1.bf16.msra.mxu0 %v2277
        %2281 = vmatprep.subr.bf16.mxu0 0
        %2282 = vmatpush1.bf16.msra.mxu0 0
        %2283 = vmatprep.subr.bf16.mxu0 0
        %2284 = vmatpush1.bf16.msra.mxu0 0
        %2285 = vmatprep.subr.bf16.mxu0 0
        %2286 = vmatpush1.bf16.msra.mxu0 0
        %2287 = vmatprep.subr.bf16.mxu0 0
        %2288 = vmatpush1.bf16.msra.mxu0 0
        %2289 = vmatprep.subr.bf16.mxu0 0
        %2290 = vmatpush1.bf16.msra.mxu0 0
        %2291 = vmatprep.subr.bf16.mxu0 0
        %2292 = vmatpush1.bf16.msra.mxu0 0
        %2293 = vmatprep.subr.bf16.mxu0 0
        %2294 = vmatpush1.bf16.msra.mxu0 0
        %2295 = vmatprep.subr.bf16.mxu0 0
        %2296 = vmatpush1.bf16.msra.mxu0 0
        %2297 = vmatprep.subr.bf16.mxu0 0
        %2298 = vmatpush1.bf16.msra.mxu0 0
        %2299 = vmatprep.subr.bf16.mxu0 0
        %2300 = vmatpush1.bf16.msra.mxu0 0
        %2301 = vmatprep.subr.bf16.mxu0 0
        %2302 = vmatpush1.bf16.msra.mxu0 0
        %2303 = vmatprep.subr.bf16.mxu0 0
        %2304 = vmatpush1.bf16.msra.mxu0 0
        %2305 = vmatprep.subr.bf16.mxu0 0
        %2306 = vmatpush1.bf16.msra.mxu0 0
        %2307 = vmatprep.subr.bf16.mxu0 0
        %2308 = vmatpush1.bf16.msra.mxu0 0
        %2309 = vmatprep.subr.bf16.mxu0 0
        %2310 = vmatpush1.bf16.msra.mxu0 0
        %2311 = vmatprep.mubr.bf16.mxu0 0
        %2312 = vmatmul.mubr.bf16.gmra.mrb[0].mxu0 %v2270
        %v2313 = vpop.f32.mrb[0].mxu0
        %v2314 = vadd.f32 0.0, %v2313
        %v2315 = vpop.f32.mrb[0].mxu0
        %v2316 = vpop.f32.mrb[0].mxu0
        %v2317 = vadd.f32 0.0, %v2316
        %v2318 = vpop.f32.mrb[0].mxu0
        %2319 = vmatprep.mubr.bf16.mxu0 0
        %2320 = vmatmul.mubr.bf16.gmra.mrb[0].mxu0 %v2273
        %v2321 = vpop.f32.mrb[0].mxu0
        %v2322 = vadd.f32 0.0, %v2321
        %v2323 = vpop.f32.mrb[0].mxu0
        %v2324 = vpop.f32.mrb[0].mxu0
        %v2325 = vadd.f32 0.0, %v2324
        %v2326 = vpop.f32.mrb[0].mxu0
        %2327 = vdwg.mxu0
        %v2329 = vsel %vm1871, %v2074, 0
        %v2332 = vsel %vm1871, %v2075, 0
        %v2335 = vsel %vm2275, %v2076, 0
        %2337 = vmatprep.subr.bf16.mxu0 0
        %2338 = vmatpush1.bf16.msra.mxu0 %v2335
        %2339 = vmatprep.subr.bf16.mxu0 0
        %2340 = vmatpush1.bf16.msra.mxu0 0
        %2341 = vmatprep.subr.bf16.mxu0 0
        %2342 = vmatpush1.bf16.msra.mxu0 0
        %2343 = vmatprep.subr.bf16.mxu0 0
        %2344 = vmatpush1.bf16.msra.mxu0 0
        %2345 = vmatprep.subr.bf16.mxu0 0
        %2346 = vmatpush1.bf16.msra.mxu0 0
        %2347 = vmatprep.subr.bf16.mxu0 0
        %2348 = vmatpush1.bf16.msra.mxu0 0
        %2349 = vmatprep.subr.bf16.mxu0 0
        %2350 = vmatpush1.bf16.msra.mxu0 0
        %2351 = vmatprep.subr.bf16.mxu0 0
        %2352 = vmatpush1.bf16.msra.mxu0 0
        %2353 = vmatprep.subr.bf16.mxu0 0
        %2354 = vmatpush1.bf16.msra.mxu0 0
        %2355 = vmatprep.subr.bf16.mxu0 0
        %2356 = vmatpush1.bf16.msra.mxu0 0
        %2357 = vmatprep.subr.bf16.mxu0 0
        %2358 = vmatpush1.bf16.msra.mxu0 0
        %2359 = vmatprep.subr.bf16.mxu0 0
        %2360 = vmatpush1.bf16.msra.mxu0 0
        %2361 = vmatprep.subr.bf16.mxu0 0
        %2362 = vmatpush1.bf16.msra.mxu0 0
        %2363 = vmatprep.subr.bf16.mxu0 0
        %2364 = vmatpush1.bf16.msra.mxu0 0
        %2365 = vmatprep.subr.bf16.mxu0 0
        %2366 = vmatpush1.bf16.msra.mxu0 0
        %2367 = vmatprep.subr.bf16.mxu0 0
        %2368 = vmatpush1.bf16.msra.mxu0 0
        %2369 = vmatprep.mubr.bf16.mxu0 0
        %2370 = vmatmul.mubr.bf16.gmra.mrb[0].mxu0 %v2329
        %v2371 = vpop.f32.mrb[0].mxu0
        %v2372 = vadd.f32 %v2314, %v2371
        %v2373 = vpop.f32.mrb[0].mxu0
        %v2374 = vpop.f32.mrb[0].mxu0
        %v2375 = vadd.f32 %v2317, %v2374
        %v2376 = vpop.f32.mrb[0].mxu0
        %2377 = vmatprep.mubr.bf16.mxu0 0
        %2378 = vmatmul.mubr.bf16.gmra.mrb[0].mxu0 %v2332
        %v2379 = vpop.f32.mrb[0].mxu0
        %v2380 = vadd.f32 %v2322, %v2379
        %v2381 = vpop.f32.mrb[0].mxu0
        %v2382 = vpop.f32.mrb[0].mxu0
        %v2383 = vadd.f32 %v2325, %v2382
        %v2384 = vpop.f32.mrb[0].mxu0
        %2385 = vdwg.mxu0
        %s2386 = scalar_lea.vmem [#allocation2], 64
        %v2387 = vld [vmem:[%s2386] sm:$0xff]
        %v2388 = vld [vmem:[%s2386 + $0x8] sm:$0xff]
        %v2389 = vld [vmem:[%s2386 + $0x10] sm:$0xff]
        %v2390 = vld [vmem:[%s2386 + $0x18] sm:$0xff]
        %s2391 = scalar_lea.vmem [#allocation3], 64
        %v2392 = vld [vmem:[%s2391] sm:$0xff]
        %v2393 = vld [vmem:[%s2391 + $0x8] sm:$0xff]
        %v2394 = vld [vmem:[%s2391 + $0x10] sm:$0xff]
        %v2395 = vld [vmem:[%s2391 + $0x18] sm:$0xff]
        %2396 = vrot.lane.b32.xlu0 %v1861, 112
        %v2397 = vpop.permute.xlu0 %2396
        %2398 = vrot.lane.b32.xlu0 %v1862, 112
        %v2399 = vpop.permute.xlu0 %2398
        %v2401 = vsel %vm1871, %v2397, 0
        %v2404 = vsel %vm1871, %v2399, 0
        %v2407 = vsel %vm1871, %v2387, 0
        %v2410 = vsel %vm1871, %v2388, 0
        %v2413 = vsel %vm1871, %v2389, 0
        %v2416 = vsel %vm1871, %v2390, 0
        %2418 = vmatprep.subr.bf16.mxu0 0
        %2419 = vmatpush1.bf16.xpose.msra.mxu0 %v2407
        %2420 = vmatprep.subr.bf16.mxu0 0
        %2421 = vmatpush1.bf16.xpose.msra.mxu0 %v2410
        %2422 = vmatprep.subr.bf16.mxu0 0
        %2423 = vmatpush1.bf16.xpose.msra.mxu0 %v2413
        %2424 = vmatprep.subr.bf16.mxu0 0
        %2425 = vmatpush1.bf16.xpose.msra.mxu0 %v2416
        %2426 = vmatprep.subr.bf16.mxu0 0
        %2427 = vmatpush1.bf16.xpose.msra.mxu0 0
        %2428 = vmatprep.subr.bf16.mxu0 0
        %2429 = vmatpush1.bf16.xpose.msra.mxu0 0
        %2430 = vmatprep.subr.bf16.mxu0 0
        %2431 = vmatpush1.bf16.xpose.msra.mxu0 0
        %2432 = vmatprep.subr.bf16.mxu0 0
        %2433 = vmatpush1.bf16.xpose.msra.mxu0 0
        %2434 = vmatprep.subr.bf16.mxu0 0
        %2435 = vmatpush1.bf16.xpose.msra.mxu0 0
        %2436 = vmatprep.subr.bf16.mxu0 0
        %2437 = vmatpush1.bf16.xpose.msra.mxu0 0
        %2438 = vmatprep.subr.bf16.mxu0 0
        %2439 = vmatpush1.bf16.xpose.msra.mxu0 0
        %2440 = vmatprep.subr.bf16.mxu0 0
        %2441 = vmatpush1.bf16.xpose.msra.mxu0 0
        %2442 = vmatprep.subr.bf16.mxu0 0
        %2443 = vmatpush1.bf16.xpose.msra.mxu0 0
        %2444 = vmatprep.subr.bf16.mxu0 0
        %2445 = vmatpush1.bf16.xpose.msra.mxu0 0
        %2446 = vmatprep.subr.bf16.mxu0 0
        %2447 = vmatpush1.bf16.xpose.msra.mxu0 0
        %2448 = vmatprep.subr.bf16.mxu0 0
        %2449 = vmatpush1.bf16.xpose.msra.mxu0 0
        %2450 = vmatprep.mubr.bf16.mxu0 0
        %2451 = vmatmul.mubr.bf16.gmra.mrb[0].mxu0 %v2401
        %v2452 = vpop.f32.mrb[0].mxu0
        %v2453 = vadd.f32 0.0, %v2452
        %v2454 = vpop.f32.mrb[0].mxu0
        %v2455 = vpop.f32.mrb[0].mxu0
        %v2456 = vadd.f32 0.0, %v2455
        %v2457 = vpop.f32.mrb[0].mxu0
        %2458 = vmatprep.mubr.bf16.mxu0 0
        %2459 = vmatmul.mubr.bf16.gmra.mrb[0].mxu0 %v2404
        %v2460 = vpop.f32.mrb[0].mxu0
        %v2461 = vadd.f32 0.0, %v2460
        %v2462 = vpop.f32.mrb[0].mxu0
        %v2463 = vpop.f32.mrb[0].mxu0
        %v2464 = vadd.f32 0.0, %v2463
        %v2465 = vpop.f32.mrb[0].mxu0
        %2466 = vdwg.mxu0
        %v2467 = vsel %vm1964, %v2453, -1e+09
        %v2468 = vsel %vm1965, %v2456, -1e+09
        %v2469 = vsel %vm1966, %v2461, -1e+09
        %v2470 = vsel %vm1967, %v2464, -1e+09
        %v2471 = vsel %vm1972, %v2467, -inf
        %2472 = vmax.xlane.f32.xlu0 %v2471
        %v2473 = vpop.xlane.xlu0 %2472
        %v2474 = vsel %vm1972, %v2468, -inf
        %2475 = vmax.xlane.f32.xlu0 %v2474
        %v2476 = vpop.xlane.xlu0 %2475
        %v2477 = vsel %vm1972, %v2469, -inf
        %2478 = vmax.xlane.f32.xlu0 %v2477
        %v2479 = vpop.xlane.xlu0 %2478
        %v2480 = vsel %vm1972, %v2470, -inf
        %2481 = vmax.xlane.f32.xlu0 %v2480
        %v2482 = vpop.xlane.xlu0 %2481
        %v2483 = vsub.f32 %v2467, %v2473
        %v2484 = vsub.f32 %v2468, %v2476
        %v2485 = vsub.f32 %v2469, %v2479
        %v2486 = vsub.f32 %v2470, %v2482
        %v2487 = vmul.f32 %v2483, 1.442695
        %v2488 = vpow.pop %v2487
        %v2489 = vmul.f32 %v2484, 1.442695
        %v2490 = vpow.pop %v2489
        %v2491 = vmul.f32 %v2485, 1.442695
        %v2492 = vpow.pop %v2491
        %v2493 = vmul.f32 %v2486, 1.442695
        %v2494 = vpow.pop %v2493
        %v2495 = vsel %vm1972, %v2488, 0.0
        %2496 = vadd.xlane.f32.xlu0 %v2495
        %v2497 = vpop.xlane.xlu0 %2496
        %v2498 = vsel %vm1972, %v2490, 0.0
        %2499 = vadd.xlane.f32.xlu0 %v2498
        %v2500 = vpop.xlane.xlu0 %2499
        %v2501 = vsel %vm1972, %v2492, 0.0
        %2502 = vadd.xlane.f32.xlu0 %v2501
        %v2503 = vpop.xlane.xlu0 %2502
        %v2504 = vsel %vm1972, %v2494, 0.0
        %2505 = vadd.xlane.f32.xlu0 %v2504
        %v2506 = vpop.xlane.xlu0 %2505
        %v2507 = vrcp.pop %v2497
        %v2508 = vrcp.pop %v2500
        %v2509 = vrcp.pop %v2503
        %v2510 = vrcp.pop %v2506
        %v2511 = vmul.f32 %v2488, %v2507
        %v2512 = vmul.f32 %v2490, %v2508
        %v2513 = vmul.f32 %v2492, %v2509
        %v2514 = vmul.f32 %v2494, %v2510
        %v2515 = vpack.c.bf16 %v2512, %v2511
        %v2516 = vpack.c.bf16 %v2514, %v2513
        %v2518 = vsel %vm1972, %v2515, 0
        %v2521 = vsel %vm1972, %v2516, 0
        %2523 = vmatprep.subr.bf16.mxu0 0
        %2524 = vmatpush1.bf16.msra.mxu0 %v2392
        %2525 = vmatprep.subr.bf16.mxu0 0
        %2526 = vmatpush1.bf16.msra.mxu0 %v2393
        %2527 = vmatprep.subr.bf16.mxu0 0
        %2528 = vmatpush1.bf16.msra.mxu0 %v2394
        %2529 = vmatprep.subr.bf16.mxu0 0
        %2530 = vmatpush1.bf16.msra.mxu0 %v2395
        %2531 = vmatprep.subr.bf16.mxu0 0
        %2532 = vmatpush1.bf16.msra.mxu0 0
        %2533 = vmatprep.subr.bf16.mxu0 0
        %2534 = vmatpush1.bf16.msra.mxu0 0
        %2535 = vmatprep.subr.bf16.mxu0 0
        %2536 = vmatpush1.bf16.msra.mxu0 0
        %2537 = vmatprep.subr.bf16.mxu0 0
        %2538 = vmatpush1.bf16.msra.mxu0 0
        %2539 = vmatprep.subr.bf16.mxu0 0
        %2540 = vmatpush1.bf16.msra.mxu0 0
        %2541 = vmatprep.subr.bf16.mxu0 0
        %2542 = vmatpush1.bf16.msra.mxu0 0
        %2543 = vmatprep.subr.bf16.mxu0 0
        %2544 = vmatpush1.bf16.msra.mxu0 0
        %2545 = vmatprep.subr.bf16.mxu0 0
        %2546 = vmatpush1.bf16.msra.mxu0 0
        %2547 = vmatprep.subr.bf16.mxu0 0
        %2548 = vmatpush1.bf16.msra.mxu0 0
        %2549 = vmatprep.subr.bf16.mxu0 0
        %2550 = vmatpush1.bf16.msra.mxu0 0
        %2551 = vmatprep.subr.bf16.mxu0 0
        %2552 = vmatpush1.bf16.msra.mxu0 0
        %2553 = vmatprep.subr.bf16.mxu0 0
        %2554 = vmatpush1.bf16.msra.mxu0 0
        %2555 = vmatprep.mubr.bf16.mxu0 0
        %2556 = vmatmul.mubr.bf16.gmra.mrb[0].mxu0 %v2518
        %v2557 = vpop.f32.mrb[0].mxu0
        %v2558 = vadd.f32 0.0, %v2557
        %v2559 = vpop.f32.mrb[0].mxu0
        %v2560 = vpop.f32.mrb[0].mxu0
        %v2561 = vadd.f32 0.0, %v2560
        %v2562 = vpop.f32.mrb[0].mxu0
        %2563 = vmatprep.mubr.bf16.mxu0 0
        %2564 = vmatmul.mubr.bf16.gmra.mrb[0].mxu0 %v2521
        %v2565 = vpop.f32.mrb[0].mxu0
        %v2566 = vadd.f32 0.0, %v2565
        %v2567 = vpop.f32.mrb[0].mxu0
        %v2568 = vpop.f32.mrb[0].mxu0
        %v2569 = vadd.f32 0.0, %v2568
        %v2570 = vpop.f32.mrb[0].mxu0
        %2571 = vdwg.mxu0
        %v2572 = vpack.c.bf16 %v2561, %v2558
        %v2573 = vpack.c.bf16 %v2569, %v2566
        %s2574 = scalar_lea.vmem [#allocation19], 8
        %v2575 = vld [vmem:[%s2574] sm:$0xf]
        %v2577 = vsel %vm1871, %v2572, 0
        %v2580 = vsel %vm1871, %v2573, 0
        %v2583 = vsel %vm2275, %v2575, 0
        %2585 = vmatprep.subr.bf16.mxu0 0
        %2586 = vmatpush1.bf16.msra.mxu0 %v2583
        %2587 = vmatprep.subr.bf16.mxu0 0
        %2588 = vmatpush1.bf16.msra.mxu0 0
        %2589 = vmatprep.subr.bf16.mxu0 0
        %2590 = vmatpush1.bf16.msra.mxu0 0
        %2591 = vmatprep.subr.bf16.mxu0 0
        %2592 = vmatpush1.bf16.msra.mxu0 0
        %2593 = vmatprep.subr.bf16.mxu0 0
        %2594 = vmatpush1.bf16.msra.mxu0 0
        %2595 = vmatprep.subr.bf16.mxu0 0
        %2596 = vmatpush1.bf16.msra.mxu0 0
        %2597 = vmatprep.subr.bf16.mxu0 0
        %2598 = vmatpush1.bf16.msra.mxu0 0
        %2599 = vmatprep.subr.bf16.mxu0 0
        %2600 = vmatpush1.bf16.msra.mxu0 0
        %2601 = vmatprep.subr.bf16.mxu0 0
        %2602 = vmatpush1.bf16.msra.mxu0 0
        %2603 = vmatprep.subr.bf16.mxu0 0
        %2604 = vmatpush1.bf16.msra.mxu0 0
        %2605 = vmatprep.subr.bf16.mxu0 0
        %2606 = vmatpush1.bf16.msra.mxu0 0
        %2607 = vmatprep.subr.bf16.mxu0 0
        %2608 = vmatpush1.bf16.msra.mxu0 0
        %2609 = vmatprep.subr.bf16.mxu0 0
        %2610 = vmatpush1.bf16.msra.mxu0 0
        %2611 = vmatprep.subr.bf16.mxu0 0
        %2612 = vmatpush1.bf16.msra.mxu0 0
        %2613 = vmatprep.subr.bf16.mxu0 0
        %2614 = vmatpush1.bf16.msra.mxu0 0
        %2615 = vmatprep.subr.bf16.mxu0 0
        %2616 = vmatpush1.bf16.msra.mxu0 0
        %2617 = vmatprep.mubr.bf16.mxu0 0
        %2618 = vmatmul.mubr.bf16.gmra.mrb[0].mxu0 %v2577
        %v2619 = vpop.f32.mrb[0].mxu0
        %v2620 = vadd.f32 0.0, %v2619
        %v2621 = vpop.f32.mrb[0].mxu0
        %v2622 = vpop.f32.mrb[0].mxu0
        %v2623 = vadd.f32 0.0, %v2622
        %v2624 = vpop.f32.mrb[0].mxu0
        %2625 = vmatprep.mubr.bf16.mxu0 0
        %2626 = vmatmul.mubr.bf16.gmra.mrb[0].mxu0 %v2580
        %v2627 = vpop.f32.mrb[0].mxu0
        %v2628 = vadd.f32 0.0, %v2627
        %v2629 = vpop.f32.mrb[0].mxu0
        %v2630 = vpop.f32.mrb[0].mxu0
        %v2631 = vadd.f32 0.0, %v2630
        %v2632 = vpop.f32.mrb[0].mxu0
        %2633 = vdwg.mxu0
        %v2634 = vadd.f32 %v2372, %v2620
        %v2635 = vadd.f32 %v2375, %v2623
        %v2636 = vadd.f32 %v2380, %v2628
        %v2637 = vadd.f32 %v2383, %v2631
        %s2638 = scalar_lea.vmem [#allocation2], 96
        %v2639 = vld [vmem:[%s2638] sm:$0xff]
        %v2640 = vld [vmem:[%s2638 + $0x8] sm:$0xff]
        %v2641 = vld [vmem:[%s2638 + $0x10] sm:$0xff]
        %v2642 = vld [vmem:[%s2638 + $0x18] sm:$0xff]
        %s2643 = scalar_lea.vmem [#allocation3], 96
        %v2644 = vld [vmem:[%s2643] sm:$0xff]
        %v2645 = vld [vmem:[%s2643 + $0x8] sm:$0xff]
        %v2646 = vld [vmem:[%s2643 + $0x10] sm:$0xff]
        %v2647 = vld [vmem:[%s2643 + $0x18] sm:$0xff]
        %2648 = vrot.lane.b32.xlu0 %v1861, 104
        %v2649 = vpop.permute.xlu0 %2648
        %2650 = vrot.lane.b32.xlu0 %v1862, 104
        %v2651 = vpop.permute.xlu0 %2650
        %v2653 = vsel %vm1871, %v2649, 0
        %v2656 = vsel %vm1871, %v2651, 0
        %v2659 = vsel %vm1871, %v2639, 0
        %v2662 = vsel %vm1871, %v2640, 0
        %v2665 = vsel %vm1871, %v2641, 0
        %v2668 = vsel %vm1871, %v2642, 0
        %2670 = vmatprep.subr.bf16.mxu0 0
        %2671 = vmatpush1.bf16.xpose.msra.mxu0 %v2659
        %2672 = vmatprep.subr.bf16.mxu0 0
        %2673 = vmatpush1.bf16.xpose.msra.mxu0 %v2662
        %2674 = vmatprep.subr.bf16.mxu0 0
        %2675 = vmatpush1.bf16.xpose.msra.mxu0 %v2665
        %2676 = vmatprep.subr.bf16.mxu0 0
        %2677 = vmatpush1.bf16.xpose.msra.mxu0 %v2668
        %2678 = vmatprep.subr.bf16.mxu0 0
        %2679 = vmatpush1.bf16.xpose.msra.mxu0 0
        %2680 = vmatprep.subr.bf16.mxu0 0
        %2681 = vmatpush1.bf16.xpose.msra.mxu0 0
        %2682 = vmatprep.subr.bf16.mxu0 0
        %2683 = vmatpush1.bf16.xpose.msra.mxu0 0
        %2684 = vmatprep.subr.bf16.mxu0 0
        %2685 = vmatpush1.bf16.xpose.msra.mxu0 0
        %2686 = vmatprep.subr.bf16.mxu0 0
        %2687 = vmatpush1.bf16.xpose.msra.mxu0 0
        %2688 = vmatprep.subr.bf16.mxu0 0
        %2689 = vmatpush1.bf16.xpose.msra.mxu0 0
        %2690 = vmatprep.subr.bf16.mxu0 0
        %2691 = vmatpush1.bf16.xpose.msra.mxu0 0
        %2692 = vmatprep.subr.bf16.mxu0 0
        %2693 = vmatpush1.bf16.xpose.msra.mxu0 0
        %2694 = vmatprep.subr.bf16.mxu0 0
        %2695 = vmatpush1.bf16.xpose.msra.mxu0 0
        %2696 = vmatprep.subr.bf16.mxu0 0
        %2697 = vmatpush1.bf16.xpose.msra.mxu0 0
        %2698 = vmatprep.subr.bf16.mxu0 0
        %2699 = vmatpush1.bf16.xpose.msra.mxu0 0
        %2700 = vmatprep.subr.bf16.mxu0 0
        %2701 = vmatpush1.bf16.xpose.msra.mxu0 0
        %2702 = vmatprep.mubr.bf16.mxu0 0
        %2703 = vmatmul.mubr.bf16.gmra.mrb[0].mxu0 %v2653
        %v2704 = vpop.f32.mrb[0].mxu0
        %v2705 = vadd.f32 0.0, %v2704
        %v2706 = vpop.f32.mrb[0].mxu0
        %v2707 = vpop.f32.mrb[0].mxu0
        %v2708 = vadd.f32 0.0, %v2707
        %v2709 = vpop.f32.mrb[0].mxu0
        %2710 = vmatprep.mubr.bf16.mxu0 0
        %2711 = vmatmul.mubr.bf16.gmra.mrb[0].mxu0 %v2656
        %v2712 = vpop.f32.mrb[0].mxu0
        %v2713 = vadd.f32 0.0, %v2712
        %v2714 = vpop.f32.mrb[0].mxu0
        %v2715 = vpop.f32.mrb[0].mxu0
        %v2716 = vadd.f32 0.0, %v2715
        %v2717 = vpop.f32.mrb[0].mxu0
        %2718 = vdwg.mxu0
        %v2719 = vsel %vm1964, %v2705, -1e+09
        %v2720 = vsel %vm1965, %v2708, -1e+09
        %v2721 = vsel %vm1966, %v2713, -1e+09
        %v2722 = vsel %vm1967, %v2716, -1e+09
        %v2723 = vsel %vm1972, %v2719, -inf
        %2724 = vmax.xlane.f32.xlu0 %v2723
        %v2725 = vpop.xlane.xlu0 %2724
        %v2726 = vsel %vm1972, %v2720, -inf
        %2727 = vmax.xlane.f32.xlu0 %v2726
        %v2728 = vpop.xlane.xlu0 %2727
        %v2729 = vsel %vm1972, %v2721, -inf
        %2730 = vmax.xlane.f32.xlu0 %v2729
        %v2731 = vpop.xlane.xlu0 %2730
        %v2732 = vsel %vm1972, %v2722, -inf
        %2733 = vmax.xlane.f32.xlu0 %v2732
        %v2734 = vpop.xlane.xlu0 %2733
        %v2735 = vsub.f32 %v2719, %v2725
        %v2736 = vsub.f32 %v2720, %v2728
        %v2737 = vsub.f32 %v2721, %v2731
        %v2738 = vsub.f32 %v2722, %v2734
        %v2739 = vmul.f32 %v2735, 1.442695
        %v2740 = vpow.pop %v2739
        %v2741 = vmul.f32 %v2736, 1.442695
        %v2742 = vpow.pop %v2741
        %v2743 = vmul.f32 %v2737, 1.442695
        %v2744 = vpow.pop %v2743
        %v2745 = vmul.f32 %v2738, 1.442695
        %v2746 = vpow.pop %v2745
        %v2747 = vsel %vm1972, %v2740, 0.0
        %2748 = vadd.xlane.f32.xlu0 %v2747
        %v2749 = vpop.xlane.xlu0 %2748
        %v2750 = vsel %vm1972, %v2742, 0.0
        %2751 = vadd.xlane.f32.xlu0 %v2750
        %v2752 = vpop.xlane.xlu0 %2751
        %v2753 = vsel %vm1972, %v2744, 0.0
        %2754 = vadd.xlane.f32.xlu0 %v2753
        %v2755 = vpop.xlane.xlu0 %2754
        %v2756 = vsel %vm1972, %v2746, 0.0
        %2757 = vadd.xlane.f32.xlu0 %v2756
        %v2758 = vpop.xlane.xlu0 %2757
        %v2759 = vrcp.pop %v2749
        %v2760 = vrcp.pop %v2752
        %v2761 = vrcp.pop %v2755
        %v2762 = vrcp.pop %v2758
        %v2763 = vmul.f32 %v2740, %v2759
        %v2764 = vmul.f32 %v2742, %v2760
        %v2765 = vmul.f32 %v2744, %v2761
        %v2766 = vmul.f32 %v2746, %v2762
        %v2767 = vpack.c.bf16 %v2764, %v2763
        %v2768 = vpack.c.bf16 %v2766, %v2765
        %v2770 = vsel %vm1972, %v2767, 0
        %v2773 = vsel %vm1972, %v2768, 0
        %2775 = vmatprep.subr.bf16.mxu0 0
        %2776 = vmatpush1.bf16.msra.mxu0 %v2644
        %2777 = vmatprep.subr.bf16.mxu0 0
        %2778 = vmatpush1.bf16.msra.mxu0 %v2645
        %2779 = vmatprep.subr.bf16.mxu0 0
        %2780 = vmatpush1.bf16.msra.mxu0 %v2646
        %2781 = vmatprep.subr.bf16.mxu0 0
        %2782 = vmatpush1.bf16.msra.mxu0 %v2647
        %2783 = vmatprep.subr.bf16.mxu0 0
        %2784 = vmatpush1.bf16.msra.mxu0 0
        %2785 = vmatprep.subr.bf16.mxu0 0
        %2786 = vmatpush1.bf16.msra.mxu0 0
        %2787 = vmatprep.subr.bf16.mxu0 0
        %2788 = vmatpush1.bf16.msra.mxu0 0
        %2789 = vmatprep.subr.bf16.mxu0 0
        %2790 = vmatpush1.bf16.msra.mxu0 0
        %2791 = vmatprep.subr.bf16.mxu0 0
        %2792 = vmatpush1.bf16.msra.mxu0 0
        %2793 = vmatprep.subr.bf16.mxu0 0
        %2794 = vmatpush1.bf16.msra.mxu0 0
        %2795 = vmatprep.subr.bf16.mxu0 0
        %2796 = vmatpush1.bf16.msra.mxu0 0
        %2797 = vmatprep.subr.bf16.mxu0 0
        %2798 = vmatpush1.bf16.msra.mxu0 0
        %2799 = vmatprep.subr.bf16.mxu0 0
        %2800 = vmatpush1.bf16.msra.mxu0 0
        %2801 = vmatprep.subr.bf16.mxu0 0
        %2802 = vmatpush1.bf16.msra.mxu0 0
        %2803 = vmatprep.subr.bf16.mxu0 0
        %2804 = vmatpush1.bf16.msra.mxu0 0
        %2805 = vmatprep.subr.bf16.mxu0 0
        %2806 = vmatpush1.bf16.msra.mxu0 0
        %2807 = vmatprep.mubr.bf16.mxu0 0
        %2808 = vmatmul.mubr.bf16.gmra.mrb[0].mxu0 %v2770
        %v2809 = vpop.f32.mrb[0].mxu0
        %v2810 = vadd.f32 0.0, %v2809
        %v2811 = vpop.f32.mrb[0].mxu0
        %v2812 = vpop.f32.mrb[0].mxu0
        %v2813 = vadd.f32 0.0, %v2812
        %v2814 = vpop.f32.mrb[0].mxu0
        %2815 = vmatprep.mubr.bf16.mxu0 0
        %2816 = vmatmul.mubr.bf16.gmra.mrb[0].mxu0 %v2773
        %v2817 = vpop.f32.mrb[0].mxu0
        %v2818 = vadd.f32 0.0, %v2817
        %v2819 = vpop.f32.mrb[0].mxu0
        %v2820 = vpop.f32.mrb[0].mxu0
        %v2821 = vadd.f32 0.0, %v2820
        %v2822 = vpop.f32.mrb[0].mxu0
        %2823 = vdwg.mxu0
        %v2824 = vpack.c.bf16 %v2813, %v2810
        %v2825 = vpack.c.bf16 %v2821, %v2818
        %s2826 = scalar_lea.vmem [#allocation19], 12
        %v2827 = vld [vmem:[%s2826] sm:$0xf]
        %v2829 = vsel %vm1871, %v2824, 0
        %v2832 = vsel %vm1871, %v2825, 0
        %v2835 = vsel %vm2275, %v2827, 0
        %2837 = vmatprep.subr.bf16.mxu0 0
        %2838 = vmatpush1.bf16.msra.mxu0 %v2835
        %2839 = vmatprep.subr.bf16.mxu0 0
        %2840 = vmatpush1.bf16.msra.mxu0 0
        %2841 = vmatprep.subr.bf16.mxu0 0
        %2842 = vmatpush1.bf16.msra.mxu0 0
        %2843 = vmatprep.subr.bf16.mxu0 0
        %2844 = vmatpush1.bf16.msra.mxu0 0
        %2845 = vmatprep.subr.bf16.mxu0 0
        %2846 = vmatpush1.bf16.msra.mxu0 0
        %2847 = vmatprep.subr.bf16.mxu0 0
        %2848 = vmatpush1.bf16.msra.mxu0 0
        %2849 = vmatprep.subr.bf16.mxu0 0
        %2850 = vmatpush1.bf16.msra.mxu0 0
        %2851 = vmatprep.subr.bf16.mxu0 0
        %2852 = vmatpush1.bf16.msra.mxu0 0
        %2853 = vmatprep.subr.bf16.mxu0 0
        %2854 = vmatpush1.bf16.msra.mxu0 0
        %2855 = vmatprep.subr.bf16.mxu0 0
        %2856 = vmatpush1.bf16.msra.mxu0 0
        %2857 = vmatprep.subr.bf16.mxu0 0
        %2858 = vmatpush1.bf16.msra.mxu0 0
        %2859 = vmatprep.subr.bf16.mxu0 0
        %2860 = vmatpush1.bf16.msra.mxu0 0
        %2861 = vmatprep.subr.bf16.mxu0 0
        %2862 = vmatpush1.bf16.msra.mxu0 0
        %2863 = vmatprep.subr.bf16.mxu0 0
        %2864 = vmatpush1.bf16.msra.mxu0 0
        %2865 = vmatprep.subr.bf16.mxu0 0
        %2866 = vmatpush1.bf16.msra.mxu0 0
        %2867 = vmatprep.subr.bf16.mxu0 0
        %2868 = vmatpush1.bf16.msra.mxu0 0
        %2869 = vmatprep.mubr.bf16.mxu0 0
        %2870 = vmatmul.mubr.bf16.gmra.mrb[0].mxu0 %v2829
        %v2871 = vpop.f32.mrb[0].mxu0
        %v2872 = vadd.f32 0.0, %v2871
        %v2873 = vpop.f32.mrb[0].mxu0
        %v2874 = vpop.f32.mrb[0].mxu0
        %v2875 = vadd.f32 0.0, %v2874
        %v2876 = vpop.f32.mrb[0].mxu0
        %2877 = vmatprep.mubr.bf16.mxu0 0
        %2878 = vmatmul.mubr.bf16.gmra.mrb[0].mxu0 %v2832
        %v2879 = vpop.f32.mrb[0].mxu0
        %v2880 = vadd.f32 0.0, %v2879
        %v2881 = vpop.f32.mrb[0].mxu0
        %v2882 = vpop.f32.mrb[0].mxu0
        %v2883 = vadd.f32 0.0, %v2882
        %v2884 = vpop.f32.mrb[0].mxu0
        %2885 = vdwg.mxu0
        %v2886 = vadd.f32 %v2634, %v2872
        %v2887 = vadd.f32 %v2635, %v2875
        %v2888 = vadd.f32 %v2636, %v2880
        %v2889 = vadd.f32 %v2637, %v2883
        %v2890 = vld [vmem:[#allocation21] sm:$0x1]
        %v2892 = vlaneseq
        %v2893 = vshrl.u32 %v2892, 7
        %v2894 = vsub.s32 0, %v2893
        %v2895 = vrot.slane %v2890, %v2894
        %v2897 = vadd.f32 %v2886, %v2895
        %v2898 = vadd.f32 %v2887, %v2895
        %v2899 = vadd.f32 %v2888, %v2895
        %v2900 = vadd.f32 %v2889, %v2895
        %v2901 = vadd.f32 %v2897, %v1770
        %v2902 = vadd.f32 %v2898, %v1771
        %v2903 = vadd.f32 %v2899, %v1772
        %v2904 = vadd.f32 %v2900, %v1773
        %v2905 = vld [vmem:[#allocation22] sm:$0x1]
        %v2906 = vld [vmem:[#allocation24] sm:$0x1]
        %v2907 = vsel %vm1801, %v2901, 0.0
        %2908 = vadd.xlane.f32.xlu0 %v2907
        %v2909 = vpop.xlane.xlu0 %2908
        %v2910 = vsel %vm1801, %v2902, 0.0
        %2911 = vadd.xlane.f32.xlu0 %v2910
        %v2912 = vpop.xlane.xlu0 %2911
        %v2913 = vsel %vm1801, %v2903, 0.0
        %2914 = vadd.xlane.f32.xlu0 %v2913
        %v2915 = vpop.xlane.xlu0 %2914
        %v2916 = vsel %vm1801, %v2904, 0.0
        %2917 = vadd.xlane.f32.xlu0 %v2916
        %v2918 = vpop.xlane.xlu0 %2917
        %v2919 = vrcp.pop 32.0
        %v2920 = vmul.f32 %v2909, %v2919
        %v2921 = vmul.f32 %v2912, %v2919
        %v2922 = vmul.f32 %v2915, %v2919
        %v2923 = vmul.f32 %v2918, %v2919
        %v2924 = vsub.f32 %v2901, %v2920
        %v2925 = vsub.f32 %v2902, %v2921
        %v2926 = vsub.f32 %v2903, %v2922
        %v2927 = vsub.f32 %v2904, %v2923
        %v2928 = vmul.f32 %v2924, %v2924
        %v2929 = vmul.f32 %v2925, %v2925
        %v2930 = vmul.f32 %v2926, %v2926
        %v2931 = vmul.f32 %v2927, %v2927
        %v2932 = vsel %vm1801, %v2928, 0.0
        %2933 = vadd.xlane.f32.xlu0 %v2932
        %v2934 = vpop.xlane.xlu0 %2933
        %v2935 = vsel %vm1801, %v2929, 0.0
        %2936 = vadd.xlane.f32.xlu0 %v2935
        %v2937 = vpop.xlane.xlu0 %2936
        %v2938 = vsel %vm1801, %v2930, 0.0
        %2939 = vadd.xlane.f32.xlu0 %v2938
        %v2940 = vpop.xlane.xlu0 %2939
        %v2941 = vsel %vm1801, %v2931, 0.0
        %2942 = vadd.xlane.f32.xlu0 %v2941
        %v2943 = vpop.xlane.xlu0 %2942
        %v2944 = vmul.f32 %v2934, %v2919
        %v2945 = vmul.f32 %v2937, %v2919
        %v2946 = vmul.f32 %v2940, %v2919
        %v2947 = vmul.f32 %v2943, %v2919
        %v2948 = vadd.f32 %v2944, 1e-05
        %v2949 = vadd.f32 %v2945, 1e-05
        %v2950 = vadd.f32 %v2946, 1e-05
        %v2951 = vadd.f32 %v2947, 1e-05
        %v2952 = vrsqrt.pop %v2948
        %v2953 = vrsqrt.pop %v2949
        %v2954 = vrsqrt.pop %v2950
        %v2955 = vrsqrt.pop %v2951
        %v2956 = vmul.f32 %v2924, %v2952
        %v2957 = vmul.f32 %v2925, %v2953
        %v2958 = vmul.f32 %v2926, %v2954
        %v2959 = vmul.f32 %v2927, %v2955
        %v2961 = vlaneseq
        %v2962 = vshrl.u32 %v2961, 7
        %v2963 = vsub.s32 0, %v2962
        %v2964 = vrot.slane %v2905, %v2963
        %v2966 = vmul.f32 %v2956, %v2964
        %v2967 = vmul.f32 %v2957, %v2964
        %v2968 = vmul.f32 %v2958, %v2964
        %v2969 = vmul.f32 %v2959, %v2964
        %v2971 = vlaneseq
        %v2972 = vshrl.u32 %v2971, 7
        %v2973 = vsub.s32 0, %v2972
        %v2974 = vrot.slane %v2906, %v2973
        %v2976 = vadd.f32 %v2966, %v2974
        %v2977 = vadd.f32 %v2967, %v2974
        %v2978 = vadd.f32 %v2968, %v2974
        %v2979 = vadd.f32 %v2969, %v2974
        %v2980 = vpack.c.bf16 %v2977, %v2976
        %v2981 = vpack.c.bf16 %v2979, %v2978
        %v2982 = vld [vmem:[#allocation28] sm:$0xf]
        %v2983 = vld [vmem:[#allocation28 + $0x4] sm:$0xf]
        %v2984 = vld [vmem:[#allocation28 + $0x8] sm:$0xf]
        %v2985 = vld [vmem:[#allocation28 + $0xc] sm:$0xf]
        %v2986 = vld [vmem:[#allocation30] sm:$0x1]
        %v2988 = vlaneseq
        %v2989 = vshrl.u32 %v2988, 7
        %v2990 = vsub.s32 0, %v2989
        %v2991 = vrot.slane %v2986, %v2990
        %v2997 = vunpack.c.l.b16 %v2982
        %v2998 = vunpack.c.l.b16 %v2983
        %v2999 = vunpack.c.l.b16 %v2984
        %v3000 = vunpack.c.l.b16 %v2985
        %v3001 = vpack.c.b16 %v2998, %v2997
        %v3002 = vpack.c.b16 %v3000, %v2999
        %v3006 = vsel %vm1801, %v2980, 0
        %v3009 = vsel %vm1801, %v2981, 0
        %3011 = vmatprep.subr.bf16.mxu0 0
        %3012 = vmatpush1.bf16.msra.mxu0 %v3001
        %3013 = vmatprep.subr.bf16.mxu0 0
        %3014 = vmatpush1.bf16.msra.mxu0 %v3002
        %3015 = vmatprep.subr.bf16.mxu0 0
        %3016 = vmatpush1.bf16.msra.mxu0 0
        %3017 = vmatprep.subr.bf16.mxu0 0
        %3018 = vmatpush1.bf16.msra.mxu0 0
        %3019 = vmatprep.subr.bf16.mxu0 0
        %3020 = vmatpush1.bf16.msra.mxu0 0
        %3021 = vmatprep.subr.bf16.mxu0 0
        %3022 = vmatpush1.bf16.msra.mxu0 0
        %3023 = vmatprep.subr.bf16.mxu0 0
        %3024 = vmatpush1.bf16.msra.mxu0 0
        %3025 = vmatprep.subr.bf16.mxu0 0
        %3026 = vmatpush1.bf16.msra.mxu0 0
        %3027 = vmatprep.subr.bf16.mxu0 0
        %3028 = vmatpush1.bf16.msra.mxu0 0
        %3029 = vmatprep.subr.bf16.mxu0 0
        %3030 = vmatpush1.bf16.msra.mxu0 0
        %3031 = vmatprep.subr.bf16.mxu0 0
        %3032 = vmatpush1.bf16.msra.mxu0 0
        %3033 = vmatprep.subr.bf16.mxu0 0
        %3034 = vmatpush1.bf16.msra.mxu0 0
        %3035 = vmatprep.subr.bf16.mxu0 0
        %3036 = vmatpush1.bf16.msra.mxu0 0
        %3037 = vmatprep.subr.bf16.mxu0 0
        %3038 = vmatpush1.bf16.msra.mxu0 0
        %3039 = vmatprep.subr.bf16.mxu0 0
        %3040 = vmatpush1.bf16.msra.mxu0 0
        %3041 = vmatprep.subr.bf16.mxu0 0
        %3042 = vmatpush1.bf16.msra.mxu0 0
        %3043 = vmatprep.mubr.bf16.mxu0 0
        %3044 = vmatmul.mubr.bf16.gmra.mrb[0].mxu0 %v3006
        %v3045 = vpop.f32.mrb[0].mxu0
        %v3046 = vadd.f32 %v2991, %v3045
        %v3047 = vpop.f32.mrb[0].mxu0
        %v3048 = vpop.f32.mrb[0].mxu0
        %v3049 = vadd.f32 %v2991, %v3048
        %v3050 = vpop.f32.mrb[0].mxu0
        %3051 = vmatprep.mubr.bf16.mxu0 0
        %3052 = vmatmul.mubr.bf16.gmra.mrb[0].mxu0 %v3009
        %v3053 = vpop.f32.mrb[0].mxu0
        %v3054 = vadd.f32 %v2991, %v3053
        %v3055 = vpop.f32.mrb[0].mxu0
        %v3056 = vpop.f32.mrb[0].mxu0
        %v3057 = vadd.f32 %v2991, %v3056
        %v3058 = vpop.f32.mrb[0].mxu0
        %3059 = vdwg.mxu0
        %v3060 = vmax.f32 %v3046, 0.0
        %v3061 = vmax.f32 %v3049, 0.0
        %v3062 = vmax.f32 %v3054, 0.0
        %v3063 = vmax.f32 %v3057, 0.0
        %v3064 = vpack.c.bf16 %v3061, %v3060
        %v3065 = vpack.c.bf16 %v3063, %v3062
        %v3066 = vld [vmem:[#allocation31] sm:$0xf]
        %v3067 = vld [vmem:[#allocation31 + $0x4] sm:$0xf]
        %v3068 = vld [vmem:[#allocation31 + $0x8] sm:$0xf]
        %v3069 = vld [vmem:[#allocation31 + $0xc] sm:$0xf]
        %v3070 = vld [vmem:[#allocation31 + $0x10] sm:$0xf]
        %v3071 = vld [vmem:[#allocation31 + $0x14] sm:$0xf]
        %v3072 = vld [vmem:[#allocation31 + $0x18] sm:$0xf]
        %v3073 = vld [vmem:[#allocation31 + $0x1c] sm:$0xf]
        %v3074 = vld [vmem:[#allocation33] sm:$0x1]
        %v3076 = vlaneseq
        %v3077 = vshrl.u32 %v3076, 7
        %v3078 = vsub.s32 0, %v3077
        %v3079 = vrot.slane %v3074, %v3078
        %v3089 = vunpack.c.l.b16 %v3066
        %v3090 = vunpack.c.l.b16 %v3067
        %v3091 = vunpack.c.l.b16 %v3068
        %v3092 = vunpack.c.l.b16 %v3069
        %v3093 = vunpack.c.l.b16 %v3070
        %v3094 = vunpack.c.l.b16 %v3071
        %v3095 = vunpack.c.l.b16 %v3072
        %v3096 = vunpack.c.l.b16 %v3073
        %v3097 = vpack.c.b16 %v3090, %v3089
        %v3098 = vpack.c.b16 %v3092, %v3091
        %v3099 = vpack.c.b16 %v3094, %v3093
        %v3100 = vpack.c.b16 %v3096, %v3095
        %v3106 = vsel %vm1972, %v3064, 0
        %v3109 = vsel %vm1972, %v3065, 0
        %3111 = vmatprep.subr.bf16.mxu0 0
        %3112 = vmatpush1.bf16.msra.mxu0 %v3097
        %3113 = vmatprep.subr.bf16.mxu0 0
        %3114 = vmatpush1.bf16.msra.mxu0 %v3098
        %3115 = vmatprep.subr.bf16.mxu0 0
        %3116 = vmatpush1.bf16.msra.mxu0 %v3099
        %3117 = vmatprep.subr.bf16.mxu0 0
        %3118 = vmatpush1.bf16.msra.mxu0 %v3100
        %3119 = vmatprep.subr.bf16.mxu0 0
        %3120 = vmatpush1.bf16.msra.mxu0 0
        %3121 = vmatprep.subr.bf16.mxu0 0
        %3122 = vmatpush1.bf16.msra.mxu0 0
        %3123 = vmatprep.subr.bf16.mxu0 0
        %3124 = vmatpush1.bf16.msra.mxu0 0
        %3125 = vmatprep.subr.bf16.mxu0 0
        %3126 = vmatpush1.bf16.msra.mxu0 0
        %3127 = vmatprep.subr.bf16.mxu0 0
        %3128 = vmatpush1.bf16.msra.mxu0 0
        %3129 = vmatprep.subr.bf16.mxu0 0
        %3130 = vmatpush1.bf16.msra.mxu0 0
        %3131 = vmatprep.subr.bf16.mxu0 0
        %3132 = vmatpush1.bf16.msra.mxu0 0
        %3133 = vmatprep.subr.bf16.mxu0 0
        %3134 = vmatpush1.bf16.msra.mxu0 0
        %3135 = vmatprep.subr.bf16.mxu0 0
        %3136 = vmatpush1.bf16.msra.mxu0 0
        %3137 = vmatprep.subr.bf16.mxu0 0
        %3138 = vmatpush1.bf16.msra.mxu0 0
        %3139 = vmatprep.subr.bf16.mxu0 0
        %3140 = vmatpush1.bf16.msra.mxu0 0
        %3141 = vmatprep.subr.bf16.mxu0 0
        %3142 = vmatpush1.bf16.msra.mxu0 0
        %3143 = vmatprep.mubr.bf16.mxu0 0
        %3144 = vmatmul.mubr.bf16.gmra.mrb[0].mxu0 %v3106
        %v3145 = vpop.f32.mrb[0].mxu0
        %v3146 = vadd.f32 %v3079, %v3145
        %v3147 = vpop.f32.mrb[0].mxu0
        %v3148 = vpop.f32.mrb[0].mxu0
        %v3149 = vadd.f32 %v3079, %v3148
        %v3150 = vpop.f32.mrb[0].mxu0
        %3151 = vmatprep.mubr.bf16.mxu0 0
        %3152 = vmatmul.mubr.bf16.gmra.mrb[0].mxu0 %v3109
        %v3153 = vpop.f32.mrb[0].mxu0
        %v3154 = vadd.f32 %v3079, %v3153
        %v3155 = vpop.f32.mrb[0].mxu0
        %v3156 = vpop.f32.mrb[0].mxu0
        %v3157 = vadd.f32 %v3079, %v3156
        %v3158 = vpop.f32.mrb[0].mxu0
        %3159 = vdwg.mxu0
        %v3160 = vadd.f32 %v2976, %v3146
        %v3161 = vadd.f32 %v2977, %v3149
        %v3162 = vadd.f32 %v2978, %v3154
        %v3163 = vadd.f32 %v2979, %v3157
        %v3164 = vld [vmem:[#allocation25] sm:$0x1]
        %v3165 = vld [vmem:[#allocation27] sm:$0x1]
        %v3166 = vsel %vm1801, %v3160, 0.0
        %3167 = vadd.xlane.f32.xlu0 %v3166
        %v3168 = vpop.xlane.xlu0 %3167
        %v3169 = vsel %vm1801, %v3161, 0.0
        %3170 = vadd.xlane.f32.xlu0 %v3169
        %v3171 = vpop.xlane.xlu0 %3170
        %v3172 = vsel %vm1801, %v3162, 0.0
        %3173 = vadd.xlane.f32.xlu0 %v3172
        %v3174 = vpop.xlane.xlu0 %3173
        %v3175 = vsel %vm1801, %v3163, 0.0
        %3176 = vadd.xlane.f32.xlu0 %v3175
        %v3177 = vpop.xlane.xlu0 %3176
        %v3178 = vmul.f32 %v3168, %v2919
        %v3179 = vmul.f32 %v3171, %v2919
        %v3180 = vmul.f32 %v3174, %v2919
        %v3181 = vmul.f32 %v3177, %v2919
        %v3182 = vsub.f32 %v3160, %v3178
        %v3183 = vsub.f32 %v3161, %v3179
        %v3184 = vsub.f32 %v3162, %v3180
        %v3185 = vsub.f32 %v3163, %v3181
        %v3186 = vmul.f32 %v3182, %v3182
        %v3187 = vmul.f32 %v3183, %v3183
        %v3188 = vmul.f32 %v3184, %v3184
        %v3189 = vmul.f32 %v3185, %v3185
        %v3190 = vsel %vm1801, %v3186, 0.0
        %3191 = vadd.xlane.f32.xlu0 %v3190
        %v3192 = vpop.xlane.xlu0 %3191
        %v3193 = vsel %vm1801, %v3187, 0.0
        %3194 = vadd.xlane.f32.xlu0 %v3193
        %v3195 = vpop.xlane.xlu0 %3194
        %v3196 = vsel %vm1801, %v3188, 0.0
        %3197 = vadd.xlane.f32.xlu0 %v3196
        %v3198 = vpop.xlane.xlu0 %3197
        %v3199 = vsel %vm1801, %v3189, 0.0
        %3200 = vadd.xlane.f32.xlu0 %v3199
        %v3201 = vpop.xlane.xlu0 %3200
        %v3202 = vmul.f32 %v3192, %v2919
        %v3203 = vmul.f32 %v3195, %v2919
        %v3204 = vmul.f32 %v3198, %v2919
        %v3205 = vmul.f32 %v3201, %v2919
        %v3206 = vadd.f32 %v3202, 1e-05
        %v3207 = vadd.f32 %v3203, 1e-05
        %v3208 = vadd.f32 %v3204, 1e-05
        %v3209 = vadd.f32 %v3205, 1e-05
        %v3210 = vrsqrt.pop %v3206
        %v3211 = vrsqrt.pop %v3207
        %v3212 = vrsqrt.pop %v3208
        %v3213 = vrsqrt.pop %v3209
        %v3214 = vmul.f32 %v3182, %v3210
        %v3215 = vmul.f32 %v3183, %v3211
        %v3216 = vmul.f32 %v3184, %v3212
        %v3217 = vmul.f32 %v3185, %v3213
        %v3219 = vlaneseq
        %v3220 = vshrl.u32 %v3219, 7
        %v3221 = vsub.s32 0, %v3220
        %v3222 = vrot.slane %v3164, %v3221
        %v3224 = vmul.f32 %v3214, %v3222
        %v3225 = vmul.f32 %v3215, %v3222
        %v3226 = vmul.f32 %v3216, %v3222
        %v3227 = vmul.f32 %v3217, %v3222
        %v3229 = vlaneseq
        %v3230 = vshrl.u32 %v3229, 7
        %v3231 = vsub.s32 0, %v3230
        %v3232 = vrot.slane %v3165, %v3231
        %v3234 = vadd.f32 %v3224, %v3232
        %v3235 = vadd.f32 %v3225, %v3232
        %v3236 = vadd.f32 %v3226, %v3232
        %v3237 = vadd.f32 %v3227, %v3232
        %3238 = vst.msk [vmem:[%s932] sm:$0xff] %vm1801, %v3234
        %3239 = vst.msk [vmem:[%s932 + $0x8] sm:$0xff] %vm1801, %v3235
        %3240 = vst.msk [vmem:[%s932 + $0x10] sm:$0xff] %vm1801, %v3236
        %3241 = vst.msk [vmem:[%s932 + $0x18] sm:$0xff] %vm1801, %v3237
        %s3242 = sand.u32 %s487, 1
        %s3243 = scalar_lea.sflag [#allocation6], %s3242
        %s3244 = sand.u32 %s487, 1
        %s3245 = smul.addr %s3244, 32
        %s3246 = scalar_lea.vmem [#allocation34], %s3245
        // Predicated region
        $region177: #{tpu_custom_call.1} parent=95 // pred_check
          %p3247 = pneg %p497
        $region178: #{tpu_custom_call.1} parent=95 // pred_check_branch
          %3249 = sbr.rel (%p3247) target = $region180
        $region179: #{tpu_custom_call.1} parent=95 // pred_region
          %s3250 = smul.u32 4, %s52
          %s3252 = ssub.s32 512, 512
          %3253 = vsyncadd %s3243, %s3252
          %s3254 = smul.addr %s51, 8
          %s3255 = sadd.s32 %s3250, %s3254
          %s3256 = smul.addr %s3255, 128
          %s3257 = scalar_lea.hbm %s19, %s3256
          %s3258 = sshll.u32 %s3246, 4
          %s3259 = int_to_ptr.vmem [resolvable:$true] %s3258
          %3264 = dma.vmem_to_hbm [thread:$0]  %s3259, 512, %s3257, %s3243, 128, 128, 8
        $region180: #{tpu_custom_call.1} parent=95 // pred_fallthru
          _
      $region96: #{tpu_custom_call.1} parent=5 // pred_fallthru
        _
      %p3265 = scmp.le.s32.totalorder 2, %s42
      // Predicated region
      $region181: #{tpu_custom_call.1} parent=5 // pred_check
        %p3266 = pneg %p3265
      $region182: #{tpu_custom_call.1} parent=5 // pred_check_branch
        %3268 = sbr.rel (%p3266) target = $region184
      $region183: #{tpu_custom_call.1} parent=5 // pred_region
        %s3269 = ssub.s32 %s42, 2
        // Predicated region
        $region185: #{tpu_custom_call.1} parent=183 // pred_check
          %p3270 = pneg %p503
        $region186: #{tpu_custom_call.1} parent=183 // pred_check_branch
          %3272 = sbr.rel (%p3270) target = $region188
        $region187: #{tpu_custom_call.1} parent=183 // pred_region
          %s3273 = sand.u32 %s488, 1
          %s3274 = scalar_lea.sflag [#allocation6], %s3273
          %s3275 = sand.u32 %s488, 1
          %s3276 = smul.addr %s3275, 32
          %s3277 = scalar_lea.vmem [#allocation34], %s3276
          %3278 = dma.done %s3274, 512
        $region188: #{tpu_custom_call.1} parent=183 // pred_fallthru
          _
      $region184: #{tpu_custom_call.1} parent=5 // pred_fallthru
        _
    $region6: #{tpu_custom_call.1} parent=1 // loop_footer
      %s46 = sadd.s32 1, %s42
    $region7: #{tpu_custom_call.1} parent=1 // loop_footer_branch
      %41 = sbr.rel target = $region3
    $region8: #{tpu_custom_call.1} parent=1 // loop_exit
      _
    %3279 = vsyncpa [#allocation5], 1
    %s3280 = scalar_lea.sflag [#allocation5], 1
    %3281 = vsyncpa %s3280, 1
    %3282 = vsyncpa [#allocation8], 1
    %s3283 = scalar_lea.sflag [#allocation8], 1
    %3284 = vsyncpa %s3283, 1
    %3285 = vsyncpa [#allocation11], 1
    %3286 = vsyncpa [#allocation14], 1
    %3287 = vsyncpa [#allocation17], 1
    %3288 = vsyncpa [#allocation20], 1
    %3289 = vsyncpa [#allocation23], 1
    %3290 = vsyncpa [#allocation26], 1
    %3291 = vsyncpa [#allocation29], 1
    %3292 = vsyncpa [#allocation32], 1
    %3293 = vsyncpa [#allocation6], 1
    %s3294 = scalar_lea.sflag [#allocation6], 1
    %3295 = vsyncpa %s3294, 1

</llo_original>
